<compile_context>
chip_gen: v7x
topology: tpu7x:2x2x1
jax: 0.10.0
libtpu: 0.0.40
codegen_flags: <defaults>
</compile_context>

<pallas_src>
import jax
import jax.numpy as jnp
from jax.experimental import pallas as pl
from jax.experimental.pallas import tpu as pltpu


# ---------------------------------------------------------------------------
# Layout constants (dictated by the module's default 28x28x1 config)
# ---------------------------------------------------------------------------
_G = 16                               # padded-grid width for conv2 staging
_P1 = 14 * _G                         # 224: conv1-pooled positions on 14x16 grid
_GUARD = 8                            # zero guard rows above/below the grid
_AROWS = _GUARD + 16 * _G + _GUARD    # 272 rows in the conv2 staging scratch
_BASE = _GUARD + _G                   # 24: flat row of grid position (gh=1, gw=0)


# ---------------------------------------------------------------------------
# Kernel A: fused conv1+BN+ReLU+pool  ->  conv2+BN+ReLU+pool
# ---------------------------------------------------------------------------

def _conv_feature_kernel(p1_ref, vmask_ref, w1_ref, s1_ref, b1_ref,
                         w2_ref, s2_ref, b2_ref, out_ref, a_ref):
    # p1_ref   : (1, 4, 224, 9)  conv1 im2col patches, grouped by pool quadrant
    # vmask_ref: (224, 1)        1.0 for valid grid columns (gw in 1..14) else 0
    # w1_ref   : (9, 64)         conv1 weight (kh,kw major) -> out channels
    # s1/b1    : (1, 64)         folded BN scale / bias (includes conv bias)
    # w2_ref   : (9, 64, 128)    conv2 weight per tap (tap = kh*3+kw)
    # s2/b2    : (1, 128)
    # out_ref  : (1, 112, 128)   pooled conv2 features; valid rows qh*16 + 2*qw
    # a_ref    : VMEM (272, 64)  zero guard-banded 16-wide flat grid staging

    w1 = w1_ref[...]
    s1 = s1_ref[...]
    b1 = b1_ref[...]

    # ---- block 1: conv(1->64) + BN + ReLU evaluated per 2x2-pool quadrant;
    #      the maxpool is a running elementwise max over the 4 quadrants.
    y1p = None
    for q in range(4):
        z = jnp.dot(p1_ref[0, q], w1, preferred_element_type=jnp.float32)
        z = jnp.maximum(z * s1 + b1, 0.0)
        y1p = z if y1p is None else jnp.maximum(y1p, z)
    # zero the junk grid columns (gw == 0 / 15) so they act as conv2 padding
    y1p = y1p * vmask_ref[...]

    # ---- stage the pooled 14x14x64 map on the zero guard-banded flat grid
    a_ref[...] = jnp.zeros_like(a_ref)
    a_ref[pl.ds(_BASE, _P1), :] = y1p

    # ---- block 2: conv(64->128) as 9 accumulated matmuls over flat shifts
    acc = jnp.zeros((_P1, 128), jnp.float32)
    for kh in range(3):
        for kw in range(3):
            start = _BASE + (kh - 1) * _G + (kw - 1)
            acc = acc + jnp.dot(a_ref[pl.ds(start, _P1), :],
                                w2_ref[kh * 3 + kw],
                                preferred_element_type=jnp.float32)
    y2 = jnp.maximum(acc * s2_ref[...] + b2_ref[...], 0.0)

    # ---- fused 2x2 maxpool of the 14x14 conv2 output.
    #      y2 rows = h2*16 + gw, valid gw in 1..14.  Valid pooled values land
    #      at out rows qh*16 + 2*qw (host slices them out; rest is zero/junk).
    out_ref[...] = jnp.zeros_like(out_ref)
    for qh in range(7):
        r0 = y2[(2 * qh) * _G:(2 * qh + 1) * _G, :]
        r1 = y2[(2 * qh + 1) * _G:(2 * qh + 2) * _G, :]
        hmax = jnp.maximum(r0, r1)                        # (16, 128)
        wmax = jnp.maximum(hmax[1:15, :], hmax[2:16, :])  # (14, 128)
        out_ref[0, pl.ds(qh * _G, 14), :] = wmax


def conv_feature_extractor(p1, vmask, w1, s1, b1, w2, s2, b2):
    B = p1.shape[0]
    return pl.pallas_call(
        _conv_feature_kernel,
        out_shape=jax.ShapeDtypeStruct((B, 7 * _G, 128), jnp.float32),
        grid=(B,),
        in_specs=[
            pl.BlockSpec((1, 4, _P1, 9), lambda b: (b, 0, 0, 0)),
            pl.BlockSpec((_P1, 1), lambda b: (0, 0)),
            pl.BlockSpec((9, 64), lambda b: (0, 0)),
            pl.BlockSpec((1, 64), lambda b: (0, 0)),
            pl.BlockSpec((1, 64), lambda b: (0, 0)),
            pl.BlockSpec((9, 64, 128), lambda b: (0, 0, 0)),
            pl.BlockSpec((1, 128), lambda b: (0, 0)),
            pl.BlockSpec((1, 128), lambda b: (0, 0)),
        ],
        out_specs=pl.BlockSpec((1, 7 * _G, 128), lambda b: (b, 0, 0)),
        scratch_shapes=[pltpu.VMEM((_AROWS, 64), jnp.float32)],
        compiler_params=pltpu.CompilerParams(
            dimension_semantics=("parallel",)),
    )(p1, vmask, w1, s1, b1, w2, s2, b2)


# ---------------------------------------------------------------------------
# Kernel B: FC stack (Linear+BN+ReLU x2, final Linear), bf16 weights, f32 acc
# ---------------------------------------------------------------------------

def _fc_stack_kernel(x_ref, w1_ref, b1_ref, w2_ref, b2_ref, w3_ref, b3_ref,
                     out_ref):
    x = x_ref[...].astype(jnp.bfloat16)
    h1 = jnp.dot(x, w1_ref[...], preferred_element_type=jnp.float32)
    h1 = jnp.maximum(h1 + b1_ref[...], 0.0)
    h2 = jnp.dot(h1.astype(jnp.bfloat16), w2_ref[...],
                 preferred_element_type=jnp.float32)
    h2 = jnp.maximum(h2 + b2_ref[...], 0.0)
    out_ref[...] = jnp.dot(h2.astype(jnp.bfloat16), w3_ref[...],
                           preferred_element_type=jnp.float32) + b3_ref[...]


def fc_stack(x, w1, b1, w2, b2, w3, b3):
    B = x.shape[0]
    n = w3.shape[1]
    return pl.pallas_call(
        _fc_stack_kernel,
        out_shape=jax.ShapeDtypeStruct((B, n), jnp.float32),
    )(x, w1, b1, w2, b2, w3, b3)


# ---------------------------------------------------------------------------
# Host glue (tiny: quadrant im2col, parameter folding, feature decimation)
# ---------------------------------------------------------------------------

def conv1_quadrant_patches(x_nchw):
    """(B,1,28,28) -> (B, 4, 224, 9): conv1 im2col grouped by 2x2-pool quadrant
    on a zero-padded 14x16 output grid (grid cols 0 and 15 are junk)."""
    B = x_nchw.shape[0]
    x = x_nchw[:, 0]                                   # (B, 28, 28)
    xp = jnp.pad(x, ((0, 0), (1, 1), (1, 1)))          # (B, 30, 30)
    quads = []
    for a in range(2):
        for b in range(2):
            taps = []
            for kh in range(3):
                for kw in range(3):
                    taps.append(xp[:, a + kh:a + kh + 28:2,
                                   b + kw:b + kw + 28:2])    # (B, 14, 14)
            quads.append(jnp.stack(taps, axis=-1))           # (B, 14, 14, 9)
    p = jnp.stack(quads, axis=1)                             # (B, 4, 14, 14, 9)
    p = jnp.pad(p, ((0, 0), (0, 0), (0, 0), (1, 1), (0, 0)))  # (B,4,14,16,9)
    return p.reshape(B, 4, _P1, 9)


def valid_column_mask():
    gw = jnp.arange(_P1) % _G
    return (((gw >= 1) & (gw <= 14)).astype(jnp.float32)).reshape(_P1, 1)


def fold_conv_bn(conv_b, gamma, beta, mean, var, eps=1e-5):
    scale = gamma / jnp.sqrt(var + eps)
    bias = (conv_b - mean) * scale + beta
    return scale[None, :], bias[None, :]


def fold_fc_bn(w_t, b, gamma, beta, mean, var, eps=1e-5):
    # w_t is (in, out).  BN(x @ w_t + b) == x @ (w_t*s) + ((b-mean)*s+beta)
    scale = gamma / jnp.sqrt(var + eps)
    return w_t * scale[None, :], ((b - mean) * scale + beta)[None, :]


def method_cnn_forward(x_nchw, p):
    """Forward pass of Method_CNN (eval mode). x_nchw: (B, 1, 28, 28) f32."""
    B = x_nchw.shape[0]

    # conv weights in (kh*3+kw, cin, cout) order + folded BN affine
    w1 = jnp.transpose(p['conv1_w'], (2, 3, 1, 0)).reshape(9, 64)
    s1, b1 = fold_conv_bn(p['conv1_b'], *p['bn1'])
    w2 = jnp.transpose(p['conv2_w'], (2, 3, 1, 0)).reshape(9, 64, 128)
    s2, b2 = fold_conv_bn(p['conv2_b'], *p['bn2'])

    p1 = conv1_quadrant_patches(x_nchw)
    vmask = valid_column_mask()
    conv_out = conv_feature_extractor(p1, vmask, w1, s1, b1, w2, s2, b2)

    # decimate the 14x16-grid pooled output to the 7x7 valid positions
    # (rows qh*16 + 2*qw), flattened in (h, w, c) order -> (B, 6272)
    feat = conv_out.reshape(B, 7, _G, 128)[:, :, 0:14:2, :].reshape(B, 7 * 7 * 128)

    # FC weights: permute fc1 inputs from torch's (c,h,w) order to our (h,w,c)
    # order, fold BN into weights/bias, cast weights to bf16.
    w1f = p['fc1_w'].T.reshape(128, 49, 256).transpose(1, 0, 2).reshape(6272, 256)
    w1f, b1f = fold_fc_bn(w1f, p['fc1_b'], *p['bn_fc1'])
    w2f, b2f = fold_fc_bn(p['fc2_w'].T, p['fc2_b'], *p['bn_fc2'])
    w3f, b3f = p['fc3_w'].T, p['fc3_b'][None, :]

    return fc_stack(feat,
                    w1f.astype(jnp.bfloat16), b1f,
                    w2f.astype(jnp.bfloat16), b2f,
                    w3f.astype(jnp.bfloat16), b3f)


# ---------------------------------------------------------------------------
# Deterministic parameter initialization (PyTorch shapes, synthetic values)
# ---------------------------------------------------------------------------

def init_params(key):
    ks = jax.random.split(key, 16)

    def n(k, shape, scale):
        return jax.random.normal(k, shape, jnp.float32) * scale

    def bn_params(k, c):
        k1, k2, k3, k4 = jax.random.split(k, 4)
        gamma = 1.0 + 0.1 * jax.random.normal(k1, (c,), jnp.float32)
        beta = 0.1 * jax.random.normal(k2, (c,), jnp.float32)
        mean = 0.1 * jax.random.normal(k3, (c,), jnp.float32)
        var = 0.5 + jax.random.uniform(k4, (c,), jnp.float32)
        return (gamma, beta, mean, var)

    return {
        'conv1_w': n(ks[0], (64, 1, 3, 3), 1.0 / 3.0),
        'conv1_b': n(ks[1], (64,), 0.1),
        'bn1': bn_params(ks[2], 64),
        'conv2_w': n(ks[3], (128, 64, 3, 3), 1.0 / 24.0),
        'conv2_b': n(ks[4], (128,), 0.1),
        'bn2': bn_params(ks[5], 128),
        'fc1_w': n(ks[6], (256, 6272), 1.0 / 79.2),
        'fc1_b': n(ks[7], (256,), 0.1),
        'bn_fc1': bn_params(ks[8], 256),
        'fc2_w': n(ks[9], (128, 256), 1.0 / 16.0),
        'fc2_b': n(ks[10], (128,), 0.1),
        'bn_fc2': bn_params(ks[11], 128),
        'fc3_w': n(ks[12], (10, 128), 1.0 / 11.3),
        'fc3_b': n(ks[13], (10,), 0.1),
    }


# ---------------------------------------------------------------------------
# Pure-JAX reference (for correctness sanity check)
# ---------------------------------------------------------------------------

def reference_forward(x_nchw, p):
    eps = 1e-5

    def conv(x, w, b):
        y = jax.lax.conv_general_dilated(
            x, w, (1, 1), ((1, 1), (1, 1)),
            dimension_numbers=('NCHW', 'OIHW', 'NCHW'),
            precision=jax.lax.Precision.HIGHEST)
        return y + b[None, :, None, None]

    def bn(x, stats):
        g, be, mu, var = stats
        return (g[None, :, None, None] * (x - mu[None, :, None, None])
                / jnp.sqrt(var[None, :, None, None] + eps)
                + be[None, :, None, None])

    def pool(x):
        return jax.lax.reduce_window(x, -jnp.inf, jax.lax.max,
                                     (1, 1, 2, 2), (1, 1, 2, 2), 'VALID')

    x = pool(jnp.maximum(bn(conv(x_nchw, p['conv1_w'], p['conv1_b']),
                            p['bn1']), 0.0))
    x = pool(jnp.maximum(bn(conv(x, p['conv2_w'], p['conv2_b']),
                            p['bn2']), 0.0))
    x = x.reshape(x.shape[0], -1)

    def fc_bn_relu(x, w, b, stats):
        g, be, mu, var = stats
        y = x @ w.T + b
        y = g * (y - mu) / jnp.sqrt(var + eps) + be
        return jnp.maximum(y, 0.0)

    x = fc_bn_relu(x, p['fc1_w'], p['fc1_b'], p['bn_fc1'])
    x = fc_bn_relu(x, p['fc2_w'], p['fc2_b'], p['bn_fc2'])
    return x @ p['fc3_w'].T + p['fc3_b']


# ---------------------------------------------------------------------------

if __name__ == "__main__":
    key = jax.random.PRNGKey(0)
    kx, kp = jax.random.split(key)
    # Small batch; spatial/channel sizes are dictated by the module's defaults.
    x = jax.random.normal(kx, (2, 1, 28, 28), jnp.float32)
    params = init_params(kp)

    fwd = jax.jit(method_cnn_forward)
    out = jax.block_until_ready(fwd(x, params))
    assert out.shape == (2, 10), out.shape

    ref = jax.block_until_ready(reference_forward(x, params))
    err = float(jnp.max(jnp.abs(out - ref)))
    # FC stack uses bf16 weights/activations with f32 accumulation -> small
    # quantization error vs the HIGHEST-precision f32 reference.
    assert jnp.allclose(out, ref, rtol=2e-2, atol=2e-2), (
        f"mismatch vs reference, max abs err={err}")

    print("KERNEL_OK")
</pallas_src>

<mosaic_0001>
module attributes {stable_mosaic.version = 11 : i64} {
  func.func @_conv_feature_kernel(%arg0: i32, %arg1: memref<1x4x224x9xf32, #tpu.memory_space<vmem>>, %arg2: memref<224x1xf32, #tpu.memory_space<vmem>>, %arg3: memref<9x64xf32, #tpu.memory_space<vmem>>, %arg4: memref<1x64xf32, #tpu.memory_space<vmem>>, %arg5: memref<1x64xf32, #tpu.memory_space<vmem>>, %arg6: memref<9x64x128xf32, #tpu.memory_space<vmem>>, %arg7: memref<1x128xf32, #tpu.memory_space<vmem>>, %arg8: memref<1x128xf32, #tpu.memory_space<vmem>>, %arg9: memref<1x112x128xf32, #tpu.memory_space<vmem>>, %arg10: memref<272x64xf32, #tpu.memory_space<vmem>>) attributes {dimension_semantics = [#tpu.dimension_semantics<parallel>], iteration_bounds = array<i64: 2>, scalar_prefetch = 0 : i64, scratch_operands = 1 : i64, tpu.core_type = #tpu.core_type<tc>, window_params = [{transform_indices = @transform_0, window_bounds = array<i64: 1, 4, 224, 9>}, {pipeline_mode = #tpu.pipeline_mode<synchronous>, transform_indices = @transform_1, window_bounds = array<i64: 224, 1>}, {pipeline_mode = #tpu.pipeline_mode<synchronous>, transform_indices = @transform_2, window_bounds = array<i64: 9, 64>}, {pipeline_mode = #tpu.pipeline_mode<synchronous>, transform_indices = @transform_3, window_bounds = array<i64: 1, 64>}, {pipeline_mode = #tpu.pipeline_mode<synchronous>, transform_indices = @transform_4, window_bounds = array<i64: 1, 64>}, {pipeline_mode = #tpu.pipeline_mode<synchronous>, transform_indices = @transform_5, window_bounds = array<i64: 9, 64, 128>}, {pipeline_mode = #tpu.pipeline_mode<synchronous>, transform_indices = @transform_6, window_bounds = array<i64: 1, 128>}, {pipeline_mode = #tpu.pipeline_mode<synchronous>, transform_indices = @transform_7, window_bounds = array<i64: 1, 128>}, {transform_indices = @transform_8, window_bounds = array<i64: 1, 112, 128>}]} {
    %c0 = arith.constant 0 : index
    %c0_0 = arith.constant 0 : index
    %0 = vector.load %arg3[%c0, %c0_0] : memref<9x64xf32, #tpu.memory_space<vmem>>, vector<9x64xf32>
    %c0_1 = arith.constant 0 : index
    %c0_2 = arith.constant 0 : index
    %1 = vector.load %arg4[%c0_1, %c0_2] : memref<1x64xf32, #tpu.memory_space<vmem>>, vector<1x64xf32>
    %c0_3 = arith.constant 0 : index
    %c0_4 = arith.constant 0 : index
    %2 = vector.load %arg5[%c0_3, %c0_4] : memref<1x64xf32, #tpu.memory_space<vmem>>, vector<1x64xf32>
    %c0_5 = arith.constant 0 : index
    %c0_6 = arith.constant 0 : index
    %c0_7 = arith.constant 0 : index
    %c0_8 = arith.constant 0 : index
    %3 = vector.load %arg1[%c0_5, %c0_6, %c0_7, %c0_8] : memref<1x4x224x9xf32, #tpu.memory_space<vmem>>, vector<1x1x224x9xf32>
    %4 = vector.shape_cast %3 : vector<1x1x224x9xf32> to vector<224x9xf32>
    %cst = arith.constant dense<0.000000e+00> : vector<224x64xf32>
    %5 = tpu.matmul %4, %0, %cst {dimension_numbers = #tpu.dot_dimension_numbers<[1], [0], [0], [1], [0, 0, 1, 1], [], []>} : vector<224x9xf32>, vector<9x64xf32>, vector<224x64xf32> -> vector<224x64xf32>
    %6 = vector.broadcast %1 : vector<1x64xf32> to vector<224x64xf32>
    %7 = arith.mulf %5, %6 : vector<224x64xf32>
    %8 = vector.broadcast %2 : vector<1x64xf32> to vector<224x64xf32>
    %9 = arith.addf %7, %8 : vector<224x64xf32>
    %cst_9 = arith.constant 0.000000e+00 : f32
    %10 = vector.broadcast %cst_9 : f32 to vector<224x64xf32>
    %11 = arith.maximumf %9, %10 : vector<224x64xf32>
    %c0_10 = arith.constant 0 : index
    %c1 = arith.constant 1 : index
    %c0_11 = arith.constant 0 : index
    %c0_12 = arith.constant 0 : index
    %12 = vector.load %arg1[%c0_10, %c1, %c0_11, %c0_12] : memref<1x4x224x9xf32, #tpu.memory_space<vmem>>, vector<1x1x224x9xf32>
    %13 = vector.shape_cast %12 : vector<1x1x224x9xf32> to vector<224x9xf32>
    %cst_13 = arith.constant dense<0.000000e+00> : vector<224x64xf32>
    %14 = tpu.matmul %13, %0, %cst_13 {dimension_numbers = #tpu.dot_dimension_numbers<[1], [0], [0], [1], [0, 0, 1, 1], [], []>} : vector<224x9xf32>, vector<9x64xf32>, vector<224x64xf32> -> vector<224x64xf32>
    %15 = vector.broadcast %1 : vector<1x64xf32> to vector<224x64xf32>
    %16 = arith.mulf %14, %15 : vector<224x64xf32>
    %17 = vector.broadcast %2 : vector<1x64xf32> to vector<224x64xf32>
    %18 = arith.addf %16, %17 : vector<224x64xf32>
    %cst_14 = arith.constant 0.000000e+00 : f32
    %19 = vector.broadcast %cst_14 : f32 to vector<224x64xf32>
    %20 = arith.maximumf %18, %19 : vector<224x64xf32>
    %21 = arith.maximumf %11, %20 : vector<224x64xf32>
    %c0_15 = arith.constant 0 : index
    %c2 = arith.constant 2 : index
    %c0_16 = arith.constant 0 : index
    %c0_17 = arith.constant 0 : index
    %22 = vector.load %arg1[%c0_15, %c2, %c0_16, %c0_17] : memref<1x4x224x9xf32, #tpu.memory_space<vmem>>, vector<1x1x224x9xf32>
    %23 = vector.shape_cast %22 : vector<1x1x224x9xf32> to vector<224x9xf32>
    %cst_18 = arith.constant dense<0.000000e+00> : vector<224x64xf32>
    %24 = tpu.matmul %23, %0, %cst_18 {dimension_numbers = #tpu.dot_dimension_numbers<[1], [0], [0], [1], [0, 0, 1, 1], [], []>} : vector<224x9xf32>, vector<9x64xf32>, vector<224x64xf32> -> vector<224x64xf32>
    %25 = vector.broadcast %1 : vector<1x64xf32> to vector<224x64xf32>
    %26 = arith.mulf %24, %25 : vector<224x64xf32>
    %27 = vector.broadcast %2 : vector<1x64xf32> to vector<224x64xf32>
    %28 = arith.addf %26, %27 : vector<224x64xf32>
    %cst_19 = arith.constant 0.000000e+00 : f32
    %29 = vector.broadcast %cst_19 : f32 to vector<224x64xf32>
    %30 = arith.maximumf %28, %29 : vector<224x64xf32>
    %31 = arith.maximumf %21, %30 : vector<224x64xf32>
    %c0_20 = arith.constant 0 : index
    %c3 = arith.constant 3 : index
    %c0_21 = arith.constant 0 : index
    %c0_22 = arith.constant 0 : index
    %32 = vector.load %arg1[%c0_20, %c3, %c0_21, %c0_22] : memref<1x4x224x9xf32, #tpu.memory_space<vmem>>, vector<1x1x224x9xf32>
    %33 = vector.shape_cast %32 : vector<1x1x224x9xf32> to vector<224x9xf32>
    %cst_23 = arith.constant dense<0.000000e+00> : vector<224x64xf32>
    %34 = tpu.matmul %33, %0, %cst_23 {dimension_numbers = #tpu.dot_dimension_numbers<[1], [0], [0], [1], [0, 0, 1, 1], [], []>} : vector<224x9xf32>, vector<9x64xf32>, vector<224x64xf32> -> vector<224x64xf32>
    %35 = vector.broadcast %1 : vector<1x64xf32> to vector<224x64xf32>
    %36 = arith.mulf %34, %35 : vector<224x64xf32>
    %37 = vector.broadcast %2 : vector<1x64xf32> to vector<224x64xf32>
    %38 = arith.addf %36, %37 : vector<224x64xf32>
    %cst_24 = arith.constant 0.000000e+00 : f32
    %39 = vector.broadcast %cst_24 : f32 to vector<224x64xf32>
    %40 = arith.maximumf %38, %39 : vector<224x64xf32>
    %41 = arith.maximumf %31, %40 : vector<224x64xf32>
    %c0_25 = arith.constant 0 : index
    %c0_26 = arith.constant 0 : index
    %42 = vector.load %arg2[%c0_25, %c0_26] : memref<224x1xf32, #tpu.memory_space<vmem>>, vector<224x1xf32>
    %43 = vector.broadcast %42 : vector<224x1xf32> to vector<224x64xf32>
    %44 = arith.mulf %41, %43 : vector<224x64xf32>
    %cst_27 = arith.constant 0.000000e+00 : f32
    %45 = vector.broadcast %cst_27 : f32 to vector<272x64xf32>
    %c0_28 = arith.constant 0 : index
    %c0_29 = arith.constant 0 : index
    %46 = vector.load %arg10[%c0_28, %c0_29] : memref<272x64xf32, #tpu.memory_space<vmem>>, vector<272x64xf32>
    tpu.vector_store %arg10[%c0_28, %c0_29], %45 {strides = array<i32>} : memref<272x64xf32, #tpu.memory_space<vmem>>, vector<272x64xf32>,
    %c24 = arith.constant 24 : index
    %c0_30 = arith.constant 0 : index
    %47 = vector.load %arg10[%c24, %c0_30] : memref<272x64xf32, #tpu.memory_space<vmem>>, vector<224x64xf32>
    tpu.vector_store %arg10[%c24, %c0_30], %44 {strides = array<i32>} : memref<272x64xf32, #tpu.memory_space<vmem>>, vector<224x64xf32>,
    %cst_31 = arith.constant 0.000000e+00 : f32
    %48 = vector.broadcast %cst_31 : f32 to vector<224x128xf32>
    %c7 = arith.constant 7 : index
    %c0_32 = arith.constant 0 : index
    %49 = vector.load %arg10[%c7, %c0_32] : memref<272x64xf32, #tpu.memory_space<vmem>>, vector<224x64xf32>
    %c0_33 = arith.constant 0 : index
    %c0_34 = arith.constant 0 : index
    %c0_35 = arith.constant 0 : index
    %50 = vector.load %arg6[%c0_33, %c0_34, %c0_35] : memref<9x64x128xf32, #tpu.memory_space<vmem>>, vector<1x64x128xf32>
    %51 = vector.shape_cast %50 : vector<1x64x128xf32> to vector<64x128xf32>
    %cst_36 = arith.constant dense<0.000000e+00> : vector<224x128xf32>
    %52 = tpu.matmul %49, %51, %cst_36 {dimension_numbers = #tpu.dot_dimension_numbers<[1], [0], [0], [1], [0, 0, 1, 1], [], []>} : vector<224x64xf32>, vector<64x128xf32>, vector<224x128xf32> -> vector<224x128xf32>
    %53 = arith.addf %48, %52 : vector<224x128xf32>
    %c8 = arith.constant 8 : index
    %c0_37 = arith.constant 0 : index
    %54 = vector.load %arg10[%c8, %c0_37] : memref<272x64xf32, #tpu.memory_space<vmem>>, vector<224x64xf32>
    %c1_38 = arith.constant 1 : index
    %c0_39 = arith.constant 0 : index
    %c0_40 = arith.constant 0 : index
    %55 = vector.load %arg6[%c1_38, %c0_39, %c0_40] : memref<9x64x128xf32, #tpu.memory_space<vmem>>, vector<1x64x128xf32>
    %56 = vector.shape_cast %55 : vector<1x64x128xf32> to vector<64x128xf32>
    %cst_41 = arith.constant dense<0.000000e+00> : vector<224x128xf32>
    %57 = tpu.matmul %54, %56, %cst_41 {dimension_numbers = #tpu.dot_dimension_numbers<[1], [0], [0], [1], [0, 0, 1, 1], [], []>} : vector<224x64xf32>, vector<64x128xf32>, vector<224x128xf32> -> vector<224x128xf32>
    %58 = arith.addf %53, %57 : vector<224x128xf32>
    %c9 = arith.constant 9 : index
    %c0_42 = arith.constant 0 : index
    %59 = vector.load %arg10[%c9, %c0_42] : memref<272x64xf32, #tpu.memory_space<vmem>>, vector<224x64xf32>
    %c2_43 = arith.constant 2 : index
    %c0_44 = arith.constant 0 : index
    %c0_45 = arith.constant 0 : index
    %60 = vector.load %arg6[%c2_43, %c0_44, %c0_45] : memref<9x64x128xf32, #tpu.memory_space<vmem>>, vector<1x64x128xf32>
    %61 = vector.shape_cast %60 : vector<1x64x128xf32> to vector<64x128xf32>
    %cst_46 = arith.constant dense<0.000000e+00> : vector<224x128xf32>
    %62 = tpu.matmul %59, %61, %cst_46 {dimension_numbers = #tpu.dot_dimension_numbers<[1], [0], [0], [1], [0, 0, 1, 1], [], []>} : vector<224x64xf32>, vector<64x128xf32>, vector<224x128xf32> -> vector<224x128xf32>
    %63 = arith.addf %58, %62 : vector<224x128xf32>
    %c23 = arith.constant 23 : index
    %c0_47 = arith.constant 0 : index
    %64 = vector.load %arg10[%c23, %c0_47] : memref<272x64xf32, #tpu.memory_space<vmem>>, vector<224x64xf32>
    %c3_48 = arith.constant 3 : index
    %c0_49 = arith.constant 0 : index
    %c0_50 = arith.constant 0 : index
    %65 = vector.load %arg6[%c3_48, %c0_49, %c0_50] : memref<9x64x128xf32, #tpu.memory_space<vmem>>, vector<1x64x128xf32>
    %66 = vector.shape_cast %65 : vector<1x64x128xf32> to vector<64x128xf32>
    %cst_51 = arith.constant dense<0.000000e+00> : vector<224x128xf32>
    %67 = tpu.matmul %64, %66, %cst_51 {dimension_numbers = #tpu.dot_dimension_numbers<[1], [0], [0], [1], [0, 0, 1, 1], [], []>} : vector<224x64xf32>, vector<64x128xf32>, vector<224x128xf32> -> vector<224x128xf32>
    %68 = arith.addf %63, %67 : vector<224x128xf32>
    %c24_52 = arith.constant 24 : index
    %c0_53 = arith.constant 0 : index
    %69 = vector.load %arg10[%c24_52, %c0_53] : memref<272x64xf32, #tpu.memory_space<vmem>>, vector<224x64xf32>
    %c4 = arith.constant 4 : index
    %c0_54 = arith.constant 0 : index
    %c0_55 = arith.constant 0 : index
    %70 = vector.load %arg6[%c4, %c0_54, %c0_55] : memref<9x64x128xf32, #tpu.memory_space<vmem>>, vector<1x64x128xf32>
    %71 = vector.shape_cast %70 : vector<1x64x128xf32> to vector<64x128xf32>
    %cst_56 = arith.constant dense<0.000000e+00> : vector<224x128xf32>
    %72 = tpu.matmul %69, %71, %cst_56 {dimension_numbers = #tpu.dot_dimension_numbers<[1], [0], [0], [1], [0, 0, 1, 1], [], []>} : vector<224x64xf32>, vector<64x128xf32>, vector<224x128xf32> -> vector<224x128xf32>
    %73 = arith.addf %68, %72 : vector<224x128xf32>
    %c25 = arith.constant 25 : index
    %c0_57 = arith.constant 0 : index
    %74 = vector.load %arg10[%c25, %c0_57] : memref<272x64xf32, #tpu.memory_space<vmem>>, vector<224x64xf32>
    %c5 = arith.constant 5 : index
    %c0_58 = arith.constant 0 : index
    %c0_59 = arith.constant 0 : index
    %75 = vector.load %arg6[%c5, %c0_58, %c0_59] : memref<9x64x128xf32, #tpu.memory_space<vmem>>, vector<1x64x128xf32>
    %76 = vector.shape_cast %75 : vector<1x64x128xf32> to vector<64x128xf32>
    %cst_60 = arith.constant dense<0.000000e+00> : vector<224x128xf32>
    %77 = tpu.matmul %74, %76, %cst_60 {dimension_numbers = #tpu.dot_dimension_numbers<[1], [0], [0], [1], [0, 0, 1, 1], [], []>} : vector<224x64xf32>, vector<64x128xf32>, vector<224x128xf32> -> vector<224x128xf32>
    %78 = arith.addf %73, %77 : vector<224x128xf32>
    %c39 = arith.constant 39 : index
    %c0_61 = arith.constant 0 : index
    %79 = vector.load %arg10[%c39, %c0_61] : memref<272x64xf32, #tpu.memory_space<vmem>>, vector<224x64xf32>
    %c6 = arith.constant 6 : index
    %c0_62 = arith.constant 0 : index
    %c0_63 = arith.constant 0 : index
    %80 = vector.load %arg6[%c6, %c0_62, %c0_63] : memref<9x64x128xf32, #tpu.memory_space<vmem>>, vector<1x64x128xf32>
    %81 = vector.shape_cast %80 : vector<1x64x128xf32> to vector<64x128xf32>
    %cst_64 = arith.constant dense<0.000000e+00> : vector<224x128xf32>
    %82 = tpu.matmul %79, %81, %cst_64 {dimension_numbers = #tpu.dot_dimension_numbers<[1], [0], [0], [1], [0, 0, 1, 1], [], []>} : vector<224x64xf32>, vector<64x128xf32>, vector<224x128xf32> -> vector<224x128xf32>
    %83 = arith.addf %78, %82 : vector<224x128xf32>
    %c40 = arith.constant 40 : index
    %c0_65 = arith.constant 0 : index
    %84 = vector.load %arg10[%c40, %c0_65] : memref<272x64xf32, #tpu.memory_space<vmem>>, vector<224x64xf32>
    %c7_66 = arith.constant 7 : index
    %c0_67 = arith.constant 0 : index
    %c0_68 = arith.constant 0 : index
    %85 = vector.load %arg6[%c7_66, %c0_67, %c0_68] : memref<9x64x128xf32, #tpu.memory_space<vmem>>, vector<1x64x128xf32>
    %86 = vector.shape_cast %85 : vector<1x64x128xf32> to vector<64x128xf32>
    %cst_69 = arith.constant dense<0.000000e+00> : vector<224x128xf32>
    %87 = tpu.matmul %84, %86, %cst_69 {dimension_numbers = #tpu.dot_dimension_numbers<[1], [0], [0], [1], [0, 0, 1, 1], [], []>} : vector<224x64xf32>, vector<64x128xf32>, vector<224x128xf32> -> vector<224x128xf32>
    %88 = arith.addf %83, %87 : vector<224x128xf32>
    %c41 = arith.constant 41 : index
    %c0_70 = arith.constant 0 : index
    %89 = vector.load %arg10[%c41, %c0_70] : memref<272x64xf32, #tpu.memory_space<vmem>>, vector<224x64xf32>
    %c8_71 = arith.constant 8 : index
    %c0_72 = arith.constant 0 : index
    %c0_73 = arith.constant 0 : index
    %90 = vector.load %arg6[%c8_71, %c0_72, %c0_73] : memref<9x64x128xf32, #tpu.memory_space<vmem>>, vector<1x64x128xf32>
    %91 = vector.shape_cast %90 : vector<1x64x128xf32> to vector<64x128xf32>
    %cst_74 = arith.constant dense<0.000000e+00> : vector<224x128xf32>
    %92 = tpu.matmul %89, %91, %cst_74 {dimension_numbers = #tpu.dot_dimension_numbers<[1], [0], [0], [1], [0, 0, 1, 1], [], []>} : vector<224x64xf32>, vector<64x128xf32>, vector<224x128xf32> -> vector<224x128xf32>
    %93 = arith.addf %88, %92 : vector<224x128xf32>
    %c0_75 = arith.constant 0 : index
    %c0_76 = arith.constant 0 : index
    %94 = vector.load %arg7[%c0_75, %c0_76] : memref<1x128xf32, #tpu.memory_space<vmem>>, vector<1x128xf32>
    %95 = vector.broadcast %94 : vector<1x128xf32> to vector<224x128xf32>
    %96 = arith.mulf %93, %95 : vector<224x128xf32>
    %c0_77 = arith.constant 0 : index
    %c0_78 = arith.constant 0 : index
    %97 = vector.load %arg8[%c0_77, %c0_78] : memref<1x128xf32, #tpu.memory_space<vmem>>, vector<1x128xf32>
    %98 = vector.broadcast %97 : vector<1x128xf32> to vector<224x128xf32>
    %99 = arith.addf %96, %98 : vector<224x128xf32>
    %cst_79 = arith.constant 0.000000e+00 : f32
    %100 = vector.broadcast %cst_79 : f32 to vector<224x128xf32>
    %101 = arith.maximumf %99, %100 : vector<224x128xf32>
    %cst_80 = arith.constant 0.000000e+00 : f32
    %102 = vector.broadcast %cst_80 : f32 to vector<1x112x128xf32>
    %c0_81 = arith.constant 0 : index
    %c0_82 = arith.constant 0 : index
    %c0_83 = arith.constant 0 : index
    %103 = vector.load %arg9[%c0_81, %c0_82, %c0_83] : memref<1x112x128xf32, #tpu.memory_space<vmem>>, vector<1x112x128xf32>
    tpu.vector_store %arg9[%c0_81, %c0_82, %c0_83], %102 {strides = array<i32>} : memref<1x112x128xf32, #tpu.memory_space<vmem>>, vector<1x112x128xf32>,
    %104 = vector.extract_strided_slice %101 {offsets = [0, 0], sizes = [16, 128], strides = [1, 1]} : vector<224x128xf32> to vector<16x128xf32>
    %105 = vector.extract_strided_slice %101 {offsets = [16, 0], sizes = [16, 128], strides = [1, 1]} : vector<224x128xf32> to vector<16x128xf32>
    %106 = arith.maximumf %104, %105 : vector<16x128xf32>
    %107 = vector.extract_strided_slice %106 {offsets = [1, 0], sizes = [14, 128], strides = [1, 1]} : vector<16x128xf32> to vector<14x128xf32>
    %108 = vector.extract_strided_slice %106 {offsets = [2, 0], sizes = [14, 128], strides = [1, 1]} : vector<16x128xf32> to vector<14x128xf32>
    %109 = arith.maximumf %107, %108 : vector<14x128xf32>
    %c0_84 = arith.constant 0 : index
    %c0_85 = arith.constant 0 : index
    %c0_86 = arith.constant 0 : index
    %110 = vector.load %arg9[%c0_84, %c0_85, %c0_86] : memref<1x112x128xf32, #tpu.memory_space<vmem>>, vector<1x14x128xf32>
    %111 = vector.shape_cast %110 : vector<1x14x128xf32> to vector<14x128xf32>
    %112 = vector.shape_cast %109 : vector<14x128xf32> to vector<1x14x128xf32>
    tpu.vector_store %arg9[%c0_84, %c0_85, %c0_86], %112 {strides = array<i32>} : memref<1x112x128xf32, #tpu.memory_space<vmem>>, vector<1x14x128xf32>,
    %113 = vector.extract_strided_slice %101 {offsets = [32, 0], sizes = [16, 128], strides = [1, 1]} : vector<224x128xf32> to vector<16x128xf32>
    %114 = vector.extract_strided_slice %101 {offsets = [48, 0], sizes = [16, 128], strides = [1, 1]} : vector<224x128xf32> to vector<16x128xf32>
    %115 = arith.maximumf %113, %114 : vector<16x128xf32>
    %116 = vector.extract_strided_slice %115 {offsets = [1, 0], sizes = [14, 128], strides = [1, 1]} : vector<16x128xf32> to vector<14x128xf32>
    %117 = vector.extract_strided_slice %115 {offsets = [2, 0], sizes = [14, 128], strides = [1, 1]} : vector<16x128xf32> to vector<14x128xf32>
    %118 = arith.maximumf %116, %117 : vector<14x128xf32>
    %c0_87 = arith.constant 0 : index
    %c16 = arith.constant 16 : index
    %c0_88 = arith.constant 0 : index
    %119 = vector.load %arg9[%c0_87, %c16, %c0_88] : memref<1x112x128xf32, #tpu.memory_space<vmem>>, vector<1x14x128xf32>
    %120 = vector.shape_cast %119 : vector<1x14x128xf32> to vector<14x128xf32>
    %121 = vector.shape_cast %118 : vector<14x128xf32> to vector<1x14x128xf32>
    tpu.vector_store %arg9[%c0_87, %c16, %c0_88], %121 {strides = array<i32>} : memref<1x112x128xf32, #tpu.memory_space<vmem>>, vector<1x14x128xf32>,
    %122 = vector.extract_strided_slice %101 {offsets = [64, 0], sizes = [16, 128], strides = [1, 1]} : vector<224x128xf32> to vector<16x128xf32>
    %123 = vector.extract_strided_slice %101 {offsets = [80, 0], sizes = [16, 128], strides = [1, 1]} : vector<224x128xf32> to vector<16x128xf32>
    %124 = arith.maximumf %122, %123 : vector<16x128xf32>
    %125 = vector.extract_strided_slice %124 {offsets = [1, 0], sizes = [14, 128], strides = [1, 1]} : vector<16x128xf32> to vector<14x128xf32>
    %126 = vector.extract_strided_slice %124 {offsets = [2, 0], sizes = [14, 128], strides = [1, 1]} : vector<16x128xf32> to vector<14x128xf32>
    %127 = arith.maximumf %125, %126 : vector<14x128xf32>
    %c0_89 = arith.constant 0 : index
    %c32 = arith.constant 32 : index
    %c0_90 = arith.constant 0 : index
    %128 = vector.load %arg9[%c0_89, %c32, %c0_90] : memref<1x112x128xf32, #tpu.memory_space<vmem>>, vector<1x14x128xf32>
    %129 = vector.shape_cast %128 : vector<1x14x128xf32> to vector<14x128xf32>
    %130 = vector.shape_cast %127 : vector<14x128xf32> to vector<1x14x128xf32>
    tpu.vector_store %arg9[%c0_89, %c32, %c0_90], %130 {strides = array<i32>} : memref<1x112x128xf32, #tpu.memory_space<vmem>>, vector<1x14x128xf32>,
    %131 = vector.extract_strided_slice %101 {offsets = [96, 0], sizes = [16, 128], strides = [1, 1]} : vector<224x128xf32> to vector<16x128xf32>
    %132 = vector.extract_strided_slice %101 {offsets = [112, 0], sizes = [16, 128], strides = [1, 1]} : vector<224x128xf32> to vector<16x128xf32>
    %133 = arith.maximumf %131, %132 : vector<16x128xf32>
    %134 = vector.extract_strided_slice %133 {offsets = [1, 0], sizes = [14, 128], strides = [1, 1]} : vector<16x128xf32> to vector<14x128xf32>
    %135 = vector.extract_strided_slice %133 {offsets = [2, 0], sizes = [14, 128], strides = [1, 1]} : vector<16x128xf32> to vector<14x128xf32>
    %136 = arith.maximumf %134, %135 : vector<14x128xf32>
    %c0_91 = arith.constant 0 : index
    %c48 = arith.constant 48 : index
    %c0_92 = arith.constant 0 : index
    %137 = vector.load %arg9[%c0_91, %c48, %c0_92] : memref<1x112x128xf32, #tpu.memory_space<vmem>>, vector<1x14x128xf32>
    %138 = vector.shape_cast %137 : vector<1x14x128xf32> to vector<14x128xf32>
    %139 = vector.shape_cast %136 : vector<14x128xf32> to vector<1x14x128xf32>
    tpu.vector_store %arg9[%c0_91, %c48, %c0_92], %139 {strides = array<i32>} : memref<1x112x128xf32, #tpu.memory_space<vmem>>, vector<1x14x128xf32>,
    %140 = vector.extract_strided_slice %101 {offsets = [128, 0], sizes = [16, 128], strides = [1, 1]} : vector<224x128xf32> to vector<16x128xf32>
    %141 = vector.extract_strided_slice %101 {offsets = [144, 0], sizes = [16, 128], strides = [1, 1]} : vector<224x128xf32> to vector<16x128xf32>
    %142 = arith.maximumf %140, %141 : vector<16x128xf32>
    %143 = vector.extract_strided_slice %142 {offsets = [1, 0], sizes = [14, 128], strides = [1, 1]} : vector<16x128xf32> to vector<14x128xf32>
    %144 = vector.extract_strided_slice %142 {offsets = [2, 0], sizes = [14, 128], strides = [1, 1]} : vector<16x128xf32> to vector<14x128xf32>
    %145 = arith.maximumf %143, %144 : vector<14x128xf32>
    %c0_93 = arith.constant 0 : index
    %c64 = arith.constant 64 : index
    %c0_94 = arith.constant 0 : index
    %146 = vector.load %arg9[%c0_93, %c64, %c0_94] : memref<1x112x128xf32, #tpu.memory_space<vmem>>, vector<1x14x128xf32>
    %147 = vector.shape_cast %146 : vector<1x14x128xf32> to vector<14x128xf32>
    %148 = vector.shape_cast %145 : vector<14x128xf32> to vector<1x14x128xf32>
    tpu.vector_store %arg9[%c0_93, %c64, %c0_94], %148 {strides = array<i32>} : memref<1x112x128xf32, #tpu.memory_space<vmem>>, vector<1x14x128xf32>,
    %149 = vector.extract_strided_slice %101 {offsets = [160, 0], sizes = [16, 128], strides = [1, 1]} : vector<224x128xf32> to vector<16x128xf32>
    %150 = vector.extract_strided_slice %101 {offsets = [176, 0], sizes = [16, 128], strides = [1, 1]} : vector<224x128xf32> to vector<16x128xf32>
    %151 = arith.maximumf %149, %150 : vector<16x128xf32>
    %152 = vector.extract_strided_slice %151 {offsets = [1, 0], sizes = [14, 128], strides = [1, 1]} : vector<16x128xf32> to vector<14x128xf32>
    %153 = vector.extract_strided_slice %151 {offsets = [2, 0], sizes = [14, 128], strides = [1, 1]} : vector<16x128xf32> to vector<14x128xf32>
    %154 = arith.maximumf %152, %153 : vector<14x128xf32>
    %c0_95 = arith.constant 0 : index
    %c80 = arith.constant 80 : index
    %c0_96 = arith.constant 0 : index
    %155 = vector.load %arg9[%c0_95, %c80, %c0_96] : memref<1x112x128xf32, #tpu.memory_space<vmem>>, vector<1x14x128xf32>
    %156 = vector.shape_cast %155 : vector<1x14x128xf32> to vector<14x128xf32>
    %157 = vector.shape_cast %154 : vector<14x128xf32> to vector<1x14x128xf32>
    tpu.vector_store %arg9[%c0_95, %c80, %c0_96], %157 {strides = array<i32>} : memref<1x112x128xf32, #tpu.memory_space<vmem>>, vector<1x14x128xf32>,
    %158 = vector.extract_strided_slice %101 {offsets = [192, 0], sizes = [16, 128], strides = [1, 1]} : vector<224x128xf32> to vector<16x128xf32>
    %159 = vector.extract_strided_slice %101 {offsets = [208, 0], sizes = [16, 128], strides = [1, 1]} : vector<224x128xf32> to vector<16x128xf32>
    %160 = arith.maximumf %158, %159 : vector<16x128xf32>
    %161 = vector.extract_strided_slice %160 {offsets = [1, 0], sizes = [14, 128], strides = [1, 1]} : vector<16x128xf32> to vector<14x128xf32>
    %162 = vector.extract_strided_slice %160 {offsets = [2, 0], sizes = [14, 128], strides = [1, 1]} : vector<16x128xf32> to vector<14x128xf32>
    %163 = arith.maximumf %161, %162 : vector<14x128xf32>
    %c0_97 = arith.constant 0 : index
    %c96 = arith.constant 96 : index
    %c0_98 = arith.constant 0 : index
    %164 = vector.load %arg9[%c0_97, %c96, %c0_98] : memref<1x112x128xf32, #tpu.memory_space<vmem>>, vector<1x14x128xf32>
    %165 = vector.shape_cast %164 : vector<1x14x128xf32> to vector<14x128xf32>
    %166 = vector.shape_cast %163 : vector<14x128xf32> to vector<1x14x128xf32>
    tpu.vector_store %arg9[%c0_97, %c96, %c0_98], %166 {strides = array<i32>} : memref<1x112x128xf32, #tpu.memory_space<vmem>>, vector<1x14x128xf32>,
    return
  }
  func.func @transform_0(%arg0: i32) -> (i32, i32, i32, i32) {
    %c0_i32 = arith.constant 0 : i32
    %c0_i32_0 = arith.constant 0 : i32
    %c0_i32_1 = arith.constant 0 : i32
    %c0_i32_2 = arith.constant 0 : i32
    return %arg0, %c0_i32, %c0_i32_0, %c0_i32_1 : i32, i32, i32, i32
  }
  func.func @transform_1(%arg0: i32) -> (i32, i32) {
    %c0_i32 = arith.constant 0 : i32
    %c0_i32_0 = arith.constant 0 : i32
    %c0_i32_1 = arith.constant 0 : i32
    return %c0_i32, %c0_i32_0 : i32, i32
  }
  func.func @transform_2(%arg0: i32) -> (i32, i32) {
    %c0_i32 = arith.constant 0 : i32
    %c0_i32_0 = arith.constant 0 : i32
    %c0_i32_1 = arith.constant 0 : i32
    return %c0_i32, %c0_i32_0 : i32, i32
  }
  func.func @transform_3(%arg0: i32) -> (i32, i32) {
    %c0_i32 = arith.constant 0 : i32
    %c0_i32_0 = arith.constant 0 : i32
    %c0_i32_1 = arith.constant 0 : i32
    return %c0_i32, %c0_i32_0 : i32, i32
  }
  func.func @transform_4(%arg0: i32) -> (i32, i32) {
    %c0_i32 = arith.constant 0 : i32
    %c0_i32_0 = arith.constant 0 : i32
    %c0_i32_1 = arith.constant 0 : i32
    return %c0_i32, %c0_i32_0 : i32, i32
  }
  func.func @transform_5(%arg0: i32) -> (i32, i32, i32) {
    %c0_i32 = arith.constant 0 : i32
    %c0_i32_0 = arith.constant 0 : i32
    %c0_i32_1 = arith.constant 0 : i32
    %c0_i32_2 = arith.constant 0 : i32
    return %c0_i32, %c0_i32_0, %c0_i32_1 : i32, i32, i32
  }
  func.func @transform_6(%arg0: i32) -> (i32, i32) {
    %c0_i32 = arith.constant 0 : i32
    %c0_i32_0 = arith.constant 0 : i32
    %c0_i32_1 = arith.constant 0 : i32
    return %c0_i32, %c0_i32_0 : i32, i32
  }
  func.func @transform_7(%arg0: i32) -> (i32, i32) {
    %c0_i32 = arith.constant 0 : i32
    %c0_i32_0 = arith.constant 0 : i32
    %c0_i32_1 = arith.constant 0 : i32
    return %c0_i32, %c0_i32_0 : i32, i32
  }
  func.func @transform_8(%arg0: i32) -> (i32, i32, i32) {
    %c0_i32 = arith.constant 0 : i32
    %c0_i32_0 = arith.constant 0 : i32
    %c0_i32_1 = arith.constant 0 : i32
    return %arg0, %c0_i32, %c0_i32_0 : i32, i32, i32
  }
}

module attributes {stable_mosaic.version = 11 : i64} {
  func.func @_fc_stack_kernel(%arg0: memref<2x6272xf32, #tpu.memory_space<vmem>>, %arg1: memref<6272x256xbf16, #tpu.memory_space<vmem>>, %arg2: memref<1x256xf32, #tpu.memory_space<vmem>>, %arg3: memref<256x128xbf16, #tpu.memory_space<vmem>>, %arg4: memref<1x128xf32, #tpu.memory_space<vmem>>, %arg5: memref<128x10xbf16, #tpu.memory_space<vmem>>, %arg6: memref<1x10xf32, #tpu.memory_space<vmem>>, %arg7: memref<2x10xf32, #tpu.memory_space<vmem>>) attributes {dimension_semantics = [], scalar_prefetch = 0 : i64, scratch_operands = 0 : i64, tpu.core_type = #tpu.core_type<tc>} {
    %c0 = arith.constant 0 : index
    %c0_0 = arith.constant 0 : index
    %0 = vector.load %arg0[%c0, %c0_0] : memref<2x6272xf32, #tpu.memory_space<vmem>>, vector<2x6272xf32>
    %1 = arith.truncf %0 : vector<2x6272xf32> to vector<2x6272xbf16>
    %c0_1 = arith.constant 0 : index
    %c0_2 = arith.constant 0 : index
    %2 = vector.load %arg1[%c0_1, %c0_2] : memref<6272x256xbf16, #tpu.memory_space<vmem>>, vector<6272x256xbf16>
    %cst = arith.constant dense<0.000000e+00> : vector<2x256xf32>
    %3 = tpu.matmul %1, %2, %cst {dimension_numbers = #tpu.dot_dimension_numbers<[1], [0], [0], [1], [0, 0, 1, 1], [], []>} : vector<2x6272xbf16>, vector<6272x256xbf16>, vector<2x256xf32> -> vector<2x256xf32>
    %c0_3 = arith.constant 0 : index
    %c0_4 = arith.constant 0 : index
    %4 = vector.load %arg2[%c0_3, %c0_4] : memref<1x256xf32, #tpu.memory_space<vmem>>, vector<1x256xf32>
    %5 = vector.broadcast %4 : vector<1x256xf32> to vector<2x256xf32>
    %6 = arith.addf %3, %5 : vector<2x256xf32>
    %cst_5 = arith.constant 0.000000e+00 : f32
    %7 = vector.broadcast %cst_5 : f32 to vector<2x256xf32>
    %8 = arith.maximumf %6, %7 : vector<2x256xf32>
    %9 = arith.truncf %8 : vector<2x256xf32> to vector<2x256xbf16>
    %c0_6 = arith.constant 0 : index
    %c0_7 = arith.constant 0 : index
    %10 = vector.load %arg3[%c0_6, %c0_7] : memref<256x128xbf16, #tpu.memory_space<vmem>>, vector<256x128xbf16>
    %cst_8 = arith.constant dense<0.000000e+00> : vector<2x128xf32>
    %11 = tpu.matmul %9, %10, %cst_8 {dimension_numbers = #tpu.dot_dimension_numbers<[1], [0], [0], [1], [0, 0, 1, 1], [], []>} : vector<2x256xbf16>, vector<256x128xbf16>, vector<2x128xf32> -> vector<2x128xf32>
    %c0_9 = arith.constant 0 : index
    %c0_10 = arith.constant 0 : index
    %12 = vector.load %arg4[%c0_9, %c0_10] : memref<1x128xf32, #tpu.memory_space<vmem>>, vector<1x128xf32>
    %13 = vector.broadcast %12 : vector<1x128xf32> to vector<2x128xf32>
    %14 = arith.addf %11, %13 : vector<2x128xf32>
    %cst_11 = arith.constant 0.000000e+00 : f32
    %15 = vector.broadcast %cst_11 : f32 to vector<2x128xf32>
    %16 = arith.maximumf %14, %15 : vector<2x128xf32>
    %17 = arith.truncf %16 : vector<2x128xf32> to vector<2x128xbf16>
    %c0_12 = arith.constant 0 : index
    %c0_13 = arith.constant 0 : index
    %18 = vector.load %arg5[%c0_12, %c0_13] : memref<128x10xbf16, #tpu.memory_space<vmem>>, vector<128x10xbf16>
    %cst_14 = arith.constant dense<0.000000e+00> : vector<2x10xf32>
    %19 = tpu.matmul %17, %18, %cst_14 {dimension_numbers = #tpu.dot_dimension_numbers<[1], [0], [0], [1], [0, 0, 1, 1], [], []>} : vector<2x128xbf16>, vector<128x10xbf16>, vector<2x10xf32> -> vector<2x10xf32>
    %c0_15 = arith.constant 0 : index
    %c0_16 = arith.constant 0 : index
    %20 = vector.load %arg6[%c0_15, %c0_16] : memref<1x10xf32, #tpu.memory_space<vmem>>, vector<1x10xf32>
    %21 = vector.broadcast %20 : vector<1x10xf32> to vector<2x10xf32>
    %22 = arith.addf %19, %21 : vector<2x10xf32>
    %c0_17 = arith.constant 0 : index
    %c0_18 = arith.constant 0 : index
    %23 = vector.load %arg7[%c0_17, %c0_18] : memref<2x10xf32, #tpu.memory_space<vmem>>, vector<2x10xf32>
    tpu.vector_store %arg7[%c0_17, %c0_18], %22 {strides = array<i32>} : memref<2x10xf32, #tpu.memory_space<vmem>>, vector<2x10xf32>,
    return
  }
}

</mosaic_0001>

<llo_original>
// kernel: method_cnn_forward.2
$region0: #{method_cnn_forward.2}
  #allocation0 [shape = 'u32[]', space=smem, size = 0x4, offset = 0x4, fixed_abs, tag = 'smem constant byte address 0x4 - core index']
  #allocation1 [shape = 'u32[144,128]{1,0:T(1,128)}', space=vmem, size = 0x12000, scoped, tag = 'internal scratch']
  #allocation2 [shape = 'f32[272,64]{1,0:T(8,128)}', space=vmem, size = 0x22000, scoped, tag = 'scratch operand']
  %s0 = inlined_call_operand.vmem [shape: f32[2,4,224,9], index: 0, kind: input, shape index: {}]
  %s1 = inlined_call_operand.vmem [shape: f32[224,1], index: 1, kind: input, shape index: {}]
  %s2 = inlined_call_operand.vmem [shape: f32[9,64], index: 2, kind: input, shape index: {}]
  %s3 = inlined_call_operand.vmem [shape: f32[1,64], index: 3, kind: input, shape index: {}]
  %s4 = inlined_call_operand.vmem [shape: f32[1,64], index: 4, kind: input, shape index: {}]
  %s5 = inlined_call_operand.hbm [shape: f32[9,64,128], index: 5, kind: input, shape index: {}]
  %s6 = inlined_call_operand.vmem [shape: f32[1,128], index: 6, kind: input, shape index: {}]
  %s7 = inlined_call_operand.vmem [shape: f32[1,128], index: 7, kind: input, shape index: {}]
  %s8 = inlined_call_operand.vmem [shape: f32[2,112,128], index: 8, kind: output, shape index: {}]
  %s9 = sld [smem:[#allocation0]]
  $region69: #{method_cnn_forward.2} parent=0
    _
  %s11 = ssub.s32 1, %s9
  %s12 = scalar_select 0, %s11, %s9
  $region1: #{method_cnn_forward.2} parent=0
    #allocation3 [shape = 'u8[294912]{0}', space=vmem, size = 0x48000, scoped, tag = 'input window, operand 5, single buffered']
    #allocation4 [shape = 's32[2]{0}', space=sflag, size = 0x8, scoped, tag = 'scoped memory for method_cnn_forward.2']
    %13 = vsyncpa [#allocation4], 0
    loop: start=0, step=1, limit=4
    $region2: #{method_cnn_forward.2} parent=1 // loop_pre_header
      _
    $region3: #{method_cnn_forward.2} parent=1 // loop_header
      %s15 = sphi 0, %s19
      %p16 = scmp.ge.s32.totalorder %s15, 4
      %s25 = sphi 0, %s27
      %s28 = sphi 0, %s25
      %s29 = sphi 0, %s28
      %s45 = sphi 0, %s29
      %s49 = sphi 0, %s49
      %s51 = sphi 0, %s49
      %s52 = sphi 0, %s51
      %s66 = sphi 0, %s52
      %s70 = sphi 0, %s70
      %s72 = sphi 0, %s70
      %s73 = sphi 0, %s72
      %s87 = sphi 0, %s73
      %s91 = sphi 0, %s91
      %s93 = sphi 0, %s91
      %s94 = sphi 0, %s93
      %s108 = sphi 0, %s94
      %s112 = sphi 0, %s112
      %s114 = sphi 0, %s112
      %s115 = sphi 0, %s114
      %s129 = sphi 0, %s115
      %s133 = sphi 0, %s133
      %s135 = sphi 0, %s133
      %s136 = sphi 0, %s135
      %s150 = sphi 0, %s136
      %s154 = sphi 0, %s154
      %s156 = sphi 0, %s154
      %s157 = sphi 0, %s156
      %s171 = sphi 0, %s157
      %s175 = sphi 0, %s175
      %s177 = sphi 0, %s175
      %s178 = sphi 0, %s177
      %s192 = sphi 0, %s178
      %s198 = sphi 0, %s200
      %s201 = sphi 0, %s198
      %s202 = sphi 0, %s201
      %s218 = sphi 0, %s202
    $region4: #{method_cnn_forward.2} parent=1 // loop_header_branch
      %18 = sbr.rel (%p16) target = $region8
    $region5: #{method_cnn_forward.2} parent=1 // loop_body
      %s20 = ssub.s32 %s15, 1
      %s21 = ssub.s32 %s15, 2
      %s22 = sadd.s32 %s15, 1
      %s23 = ssub.s32 %s15, %s22
      %p24 = scmp.eq.s32.totalorder %s23, 0
      %s26 = sadd.s32 %s25, 1
      %s27 = scalar_select %p24, %s25, %s26
      %p30 = pneg %p24
      %p31 = scmp.eq.s32.totalorder %s15, 1
      %p32 = por %p30, %p31
      %p33 = scmp.ne.s32.totalorder %s25, %s28
      %p34 = scmp.eq.s32.totalorder %s15, 0
      %p35 = por %p33, %p34
      %p36 = scmp.ne.s32.totalorder %s25, %s28
      %p37 = scmp.eq.s32.totalorder %s20, 1
      %p38 = por %p36, %p37
      %p39 = scmp.ne.s32.totalorder %s28, %s29
      %p40 = scmp.eq.s32.totalorder %s20, 0
      %p41 = por %p39, %p40
      %p42 = scmp.ne.s32.totalorder %s28, %s29
      %p43 = scmp.eq.s32.totalorder %s21, 1
      %p44 = por %p42, %p43
      %p46 = scmp.ne.s32.totalorder %s29, %s45
      %p47 = scmp.eq.s32.totalorder %s21, 0
      %p48 = por %p46, %p47
      %s50 = sadd.s32 %s49, 1
      %p53 = scmp.eq.s32.totalorder %s15, 1
      %p54 = scmp.ne.s32.totalorder %s49, %s51
      %p55 = scmp.eq.s32.totalorder %s15, 0
      %p56 = por %p54, %p55
      %p57 = scmp.ne.s32.totalorder %s49, %s51
      %p58 = scmp.eq.s32.totalorder %s20, 1
      %p59 = por %p57, %p58
      %p60 = scmp.ne.s32.totalorder %s51, %s52
      %p61 = scmp.eq.s32.totalorder %s20, 0
      %p62 = por %p60, %p61
      %p63 = scmp.ne.s32.totalorder %s51, %s52
      %p64 = scmp.eq.s32.totalorder %s21, 1
      %p65 = por %p63, %p64
      %p67 = scmp.ne.s32.totalorder %s52, %s66
      %p68 = scmp.eq.s32.totalorder %s21, 0
      %p69 = por %p67, %p68
      %s71 = sadd.s32 %s70, 1
      %p74 = scmp.eq.s32.totalorder %s15, 1
      %p75 = scmp.ne.s32.totalorder %s70, %s72
      %p76 = scmp.eq.s32.totalorder %s15, 0
      %p77 = por %p75, %p76
      %p78 = scmp.ne.s32.totalorder %s70, %s72
      %p79 = scmp.eq.s32.totalorder %s20, 1
      %p80 = por %p78, %p79
      %p81 = scmp.ne.s32.totalorder %s72, %s73
      %p82 = scmp.eq.s32.totalorder %s20, 0
      %p83 = por %p81, %p82
      %p84 = scmp.ne.s32.totalorder %s72, %s73
      %p85 = scmp.eq.s32.totalorder %s21, 1
      %p86 = por %p84, %p85
      %p88 = scmp.ne.s32.totalorder %s73, %s87
      %p89 = scmp.eq.s32.totalorder %s21, 0
      %p90 = por %p88, %p89
      %s92 = sadd.s32 %s91, 1
      %p95 = scmp.eq.s32.totalorder %s15, 1
      %p96 = scmp.ne.s32.totalorder %s91, %s93
      %p97 = scmp.eq.s32.totalorder %s15, 0
      %p98 = por %p96, %p97
      %p99 = scmp.ne.s32.totalorder %s91, %s93
      %p100 = scmp.eq.s32.totalorder %s20, 1
      %p101 = por %p99, %p100
      %p102 = scmp.ne.s32.totalorder %s93, %s94
      %p103 = scmp.eq.s32.totalorder %s20, 0
      %p104 = por %p102, %p103
      %p105 = scmp.ne.s32.totalorder %s93, %s94
      %p106 = scmp.eq.s32.totalorder %s21, 1
      %p107 = por %p105, %p106
      %p109 = scmp.ne.s32.totalorder %s94, %s108
      %p110 = scmp.eq.s32.totalorder %s21, 0
      %p111 = por %p109, %p110
      %s113 = sadd.s32 %s112, 1
      %p116 = scmp.eq.s32.totalorder %s15, 1
      %p117 = scmp.ne.s32.totalorder %s112, %s114
      %p118 = scmp.eq.s32.totalorder %s15, 0
      %p119 = por %p117, %p118
      %p120 = scmp.ne.s32.totalorder %s112, %s114
      %p121 = scmp.eq.s32.totalorder %s20, 1
      %p122 = por %p120, %p121
      %p123 = scmp.ne.s32.totalorder %s114, %s115
      %p124 = scmp.eq.s32.totalorder %s20, 0
      %p125 = por %p123, %p124
      %p126 = scmp.ne.s32.totalorder %s114, %s115
      %p127 = scmp.eq.s32.totalorder %s21, 1
      %p128 = por %p126, %p127
      %p130 = scmp.ne.s32.totalorder %s115, %s129
      %p131 = scmp.eq.s32.totalorder %s21, 0
      %p132 = por %p130, %p131
      %s134 = sadd.s32 %s133, 1
      %p137 = scmp.eq.s32.totalorder %s15, 1
      %p138 = scmp.ne.s32.totalorder %s133, %s135
      %p139 = scmp.eq.s32.totalorder %s15, 0
      %p140 = por %p138, %p139
      %p141 = scmp.ne.s32.totalorder %s133, %s135
      %p142 = scmp.eq.s32.totalorder %s20, 1
      %p143 = por %p141, %p142
      %p144 = scmp.ne.s32.totalorder %s135, %s136
      %p145 = scmp.eq.s32.totalorder %s20, 0
      %p146 = por %p144, %p145
      %p147 = scmp.ne.s32.totalorder %s135, %s136
      %p148 = scmp.eq.s32.totalorder %s21, 1
      %p149 = por %p147, %p148
      %p151 = scmp.ne.s32.totalorder %s136, %s150
      %p152 = scmp.eq.s32.totalorder %s21, 0
      %p153 = por %p151, %p152
      %s155 = sadd.s32 %s154, 1
      %p158 = scmp.eq.s32.totalorder %s15, 1
      %p159 = scmp.ne.s32.totalorder %s154, %s156
      %p160 = scmp.eq.s32.totalorder %s15, 0
      %p161 = por %p159, %p160
      %p162 = scmp.ne.s32.totalorder %s154, %s156
      %p163 = scmp.eq.s32.totalorder %s20, 1
      %p164 = por %p162, %p163
      %p165 = scmp.ne.s32.totalorder %s156, %s157
      %p166 = scmp.eq.s32.totalorder %s20, 0
      %p167 = por %p165, %p166
      %p168 = scmp.ne.s32.totalorder %s156, %s157
      %p169 = scmp.eq.s32.totalorder %s21, 1
      %p170 = por %p168, %p169
      %p172 = scmp.ne.s32.totalorder %s157, %s171
      %p173 = scmp.eq.s32.totalorder %s21, 0
      %p174 = por %p172, %p173
      %s176 = sadd.s32 %s175, 1
      %p179 = scmp.eq.s32.totalorder %s15, 1
      %p180 = scmp.ne.s32.totalorder %s175, %s177
      %p181 = scmp.eq.s32.totalorder %s15, 0
      %p182 = por %p180, %p181
      %p183 = scmp.ne.s32.totalorder %s175, %s177
      %p184 = scmp.eq.s32.totalorder %s20, 1
      %p185 = por %p183, %p184
      %p186 = scmp.ne.s32.totalorder %s177, %s178
      %p187 = scmp.eq.s32.totalorder %s20, 0
      %p188 = por %p186, %p187
      %p189 = scmp.ne.s32.totalorder %s177, %s178
      %p190 = scmp.eq.s32.totalorder %s21, 1
      %p191 = por %p189, %p190
      %p193 = scmp.ne.s32.totalorder %s178, %s192
      %p194 = scmp.eq.s32.totalorder %s21, 0
      %p195 = por %p193, %p194
      %s196 = ssub.s32 %s15, %s22
      %p197 = scmp.eq.s32.totalorder %s196, 0
      %s199 = sadd.s32 %s198, 1
      %s200 = scalar_select %p197, %s198, %s199
      %p203 = pneg %p197
      %p204 = scmp.eq.s32.totalorder %s15, 1
      %p205 = por %p203, %p204
      %p206 = scmp.ne.s32.totalorder %s198, %s201
      %p207 = scmp.eq.s32.totalorder %s15, 0
      %p208 = por %p206, %p207
      %p209 = scmp.ne.s32.totalorder %s198, %s201
      %p210 = scmp.eq.s32.totalorder %s20, 1
      %p211 = por %p209, %p210
      %p212 = scmp.ne.s32.totalorder %s201, %s202
      %p213 = scmp.eq.s32.totalorder %s20, 0
      %p214 = por %p212, %p213
      %p215 = scmp.ne.s32.totalorder %s201, %s202
      %p216 = scmp.eq.s32.totalorder %s21, 1
      %p217 = por %p215, %p216
      %p219 = scmp.ne.s32.totalorder %s202, %s218
      %p220 = scmp.eq.s32.totalorder %s21, 0
      %p221 = por %p219, %p220
      %p222 = scmp.le.s32.totalorder 1, %s15
      %p223 = scmp.lt.s32.totalorder %s15, 3
      %p224 = pnand %p222, %p223
      %p225 = pneg %p224
      // Predicated region
      $region9: #{method_cnn_forward.2} parent=5 // pred_check
        _
      $region10: #{method_cnn_forward.2} parent=5 // pred_check_branch
        %227 = sbr.rel (%p224) target = $region12
      $region11: #{method_cnn_forward.2} parent=5 // pred_region
        %s228 = ssub.s32 %s15, 1
        // Predicated region
        $region13: #{method_cnn_forward.2} parent=11 // pred_check
          %p229 = pneg %p62
        $region14: #{method_cnn_forward.2} parent=11 // pred_check_branch
          %231 = sbr.rel (%p229) target = $region16
        $region15: #{method_cnn_forward.2} parent=11 // pred_region
          _
        $region16: #{method_cnn_forward.2} parent=11 // pred_fallthru
          _
        // Predicated region
        $region17: #{method_cnn_forward.2} parent=11 // pred_check
          %p232 = pneg %p83
        $region18: #{method_cnn_forward.2} parent=11 // pred_check_branch
          %234 = sbr.rel (%p232) target = $region20
        $region19: #{method_cnn_forward.2} parent=11 // pred_region
          _
        $region20: #{method_cnn_forward.2} parent=11 // pred_fallthru
          _
        // Predicated region
        $region21: #{method_cnn_forward.2} parent=11 // pred_check
          %p235 = pneg %p104
        $region22: #{method_cnn_forward.2} parent=11 // pred_check_branch
          %237 = sbr.rel (%p235) target = $region24
        $region23: #{method_cnn_forward.2} parent=11 // pred_region
          _
        $region24: #{method_cnn_forward.2} parent=11 // pred_fallthru
          _
        // Predicated region
        $region25: #{method_cnn_forward.2} parent=11 // pred_check
          %p238 = pneg %p125
        $region26: #{method_cnn_forward.2} parent=11 // pred_check_branch
          %240 = sbr.rel (%p238) target = $region28
        $region27: #{method_cnn_forward.2} parent=11 // pred_region
          _
        $region28: #{method_cnn_forward.2} parent=11 // pred_fallthru
          _
        // Predicated region
        $region29: #{method_cnn_forward.2} parent=11 // pred_check
          %p241 = pneg %p146
        $region30: #{method_cnn_forward.2} parent=11 // pred_check_branch
          %243 = sbr.rel (%p241) target = $region32
        $region31: #{method_cnn_forward.2} parent=11 // pred_region
          %s245 = ssub.s32 9216, 9216
          %246 = vsyncadd [#allocation4], %s245
          %s247 = sshll.u32 [#allocation3], 4
          %s248 = int_to_ptr.vmem [resolvable:$true] %s247
          %253 = dma.hbm_to_vmem [thread:$0]  %s5, 9216, %s248, [#allocation4], 128, 128, 8
        $region32: #{method_cnn_forward.2} parent=11 // pred_fallthru
          _
        // Predicated region
        $region33: #{method_cnn_forward.2} parent=11 // pred_check
          %p254 = pneg %p167
        $region34: #{method_cnn_forward.2} parent=11 // pred_check_branch
          %256 = sbr.rel (%p254) target = $region36
        $region35: #{method_cnn_forward.2} parent=11 // pred_region
          _
        $region36: #{method_cnn_forward.2} parent=11 // pred_fallthru
          _
        // Predicated region
        $region37: #{method_cnn_forward.2} parent=11 // pred_check
          %p257 = pneg %p188
        $region38: #{method_cnn_forward.2} parent=11 // pred_check_branch
          %259 = sbr.rel (%p257) target = $region40
        $region39: #{method_cnn_forward.2} parent=11 // pred_region
          _
        $region40: #{method_cnn_forward.2} parent=11 // pred_fallthru
          _
      $region12: #{method_cnn_forward.2} parent=5 // pred_fallthru
        _
      %p260 = scmp.lt.s32.totalorder %s15, 2
      // Predicated region
      $region41: #{method_cnn_forward.2} parent=5 // pred_check
        %p261 = pneg %p260
      $region42: #{method_cnn_forward.2} parent=5 // pred_check_branch
        %263 = sbr.rel (%p261) target = $region44
      $region43: #{method_cnn_forward.2} parent=5 // pred_region
        // Predicated region
        $region45: #{method_cnn_forward.2} parent=43 // pred_check
          %p264 = pneg %p35
        $region46: #{method_cnn_forward.2} parent=43 // pred_check_branch
          %266 = sbr.rel (%p264) target = $region48
        $region47: #{method_cnn_forward.2} parent=43 // pred_region
          %p267 = scmp.lt.s32.totalorder %s15, 1
          %s268 = scalar_select %p267, %s15, 1
          %s269 = smul.addr %s268, 112
          %s270 = smul.addr %s269, 8
          %s271 = scalar_lea.vmem %s0, %s270
        $region48: #{method_cnn_forward.2} parent=43 // pred_fallthru
          _
      $region44: #{method_cnn_forward.2} parent=5 // pred_fallthru
        _
      %p272 = scmp.le.s32.totalorder 1, %s15
      %p273 = scmp.lt.s32.totalorder %s15, 3
      %p274 = pnand %p272, %p273
      %p275 = pneg %p274
      // Predicated region
      $region49: #{method_cnn_forward.2} parent=5 // pred_check
        _
      $region50: #{method_cnn_forward.2} parent=5 // pred_check_branch
        %277 = sbr.rel (%p274) target = $region52
      $region51: #{method_cnn_forward.2} parent=5 // pred_region
        %s278 = ssub.s32 %s15, 1
        // Predicated region
        $region53: #{method_cnn_forward.2} parent=51 // pred_check
          %p279 = pneg %p146
        $region54: #{method_cnn_forward.2} parent=51 // pred_check_branch
          %281 = sbr.rel (%p279) target = $region56
        $region55: #{method_cnn_forward.2} parent=51 // pred_region
          %282 = dma.done [#allocation4], 9216
        $region56: #{method_cnn_forward.2} parent=51 // pred_fallthru
          _
        %p283 = scmp.lt.s32.totalorder %s20, 1
        %s284 = scalar_select %p283, %s20, 1
        %s285 = smul.addr %s284, 112
        %s286 = smul.addr %s285, 8
        %s287 = scalar_lea.vmem %s0, %s286
        %p288 = pneg %p41
        %p289 = pneg %p38
        %p290 = pneg %p62
        %p291 = pneg %p59
        %p292 = pneg %p83
        %p293 = pneg %p80
        %p294 = pneg %p104
        %p295 = pneg %p101
        %p296 = pneg %p125
        %p297 = pneg %p122
        %p298 = pneg %p146
        %p299 = pneg %p143
        %p300 = pneg %p167
        %p301 = pneg %p164
        %p302 = pneg %p188
        %p303 = pneg %p185
        %p304 = pneg %p214
        %p305 = pneg %p211
        %p306 = scmp.lt.s32.totalorder %s20, 1
        %s307 = scalar_select %p306, %s20, 1
        %s308 = smul.addr %s307, 14
        %s309 = smul.addr %s308, 8
        %s310 = scalar_lea.vmem %s8, %s309
        %p311 = scmp.lt.s32.totalorder %s20, 1
        %s312 = scalar_select %p311, %s20, 1
        %s313 = smul.addr %s312, 112
        %s314 = smul.addr %s313, 8
        %s315 = scalar_lea.vmem %s0, %s314
        %p316 = scmp.lt.s32.totalorder %s20, 1
        %s317 = scalar_select %p316, %s20, 1
        %s318 = smul.addr %s317, 14
        %s319 = smul.addr %s318, 8
        %s320 = scalar_lea.vmem %s8, %s319
        %v321 = vld [vmem:[%s2] sm:$0xff]
        %v322 = vld [vmem:[%s2 + $0x8] sm:$0x1]
        %v323 = vld [vmem:[%s3] sm:$0x1]
        %v324 = vld [vmem:[%s4] sm:$0x1]
        %v325 = vld [vmem:[%s315] sm:$0xff]
        %v326 = vld [vmem:[%s315 + $0x8] sm:$0xff]
        %v327 = vld [vmem:[%s315 + $0x10] sm:$0xff]
        %v328 = vld [vmem:[%s315 + $0x18] sm:$0xff]
        %v329 = vld [vmem:[%s315 + $0x20] sm:$0xff]
        %v330 = vld [vmem:[%s315 + $0x28] sm:$0xff]
        %v331 = vld [vmem:[%s315 + $0x30] sm:$0xff]
        %v332 = vld [vmem:[%s315 + $0x38] sm:$0xff]
        %v333 = vld [vmem:[%s315 + $0x40] sm:$0xff]
        %v334 = vld [vmem:[%s315 + $0x48] sm:$0xff]
        %v335 = vld [vmem:[%s315 + $0x50] sm:$0xff]
        %v336 = vld [vmem:[%s315 + $0x58] sm:$0xff]
        %v337 = vld [vmem:[%s315 + $0x60] sm:$0xff]
        %v338 = vld [vmem:[%s315 + $0x68] sm:$0xff]
        %v339 = vld [vmem:[%s315 + $0x70] sm:$0xff]
        %v340 = vld [vmem:[%s315 + $0x78] sm:$0xff]
        %v341 = vld [vmem:[%s315 + $0x80] sm:$0xff]
        %v342 = vld [vmem:[%s315 + $0x88] sm:$0xff]
        %v343 = vld [vmem:[%s315 + $0x90] sm:$0xff]
        %v344 = vld [vmem:[%s315 + $0x98] sm:$0xff]
        %v345 = vld [vmem:[%s315 + $0xa0] sm:$0xff]
        %v346 = vld [vmem:[%s315 + $0xa8] sm:$0xff]
        %v347 = vld [vmem:[%s315 + $0xb0] sm:$0xff]
        %v348 = vld [vmem:[%s315 + $0xb8] sm:$0xff]
        %v349 = vld [vmem:[%s315 + $0xc0] sm:$0xff]
        %v350 = vld [vmem:[%s315 + $0xc8] sm:$0xff]
        %v351 = vld [vmem:[%s315 + $0xd0] sm:$0xff]
        %v352 = vld [vmem:[%s315 + $0xd8] sm:$0xff]
        %vm353 = vcmask 72704
        %v355 = vsel %vm353, %v325, 0
        %v358 = vsel %vm353, %v326, 0
        %v361 = vsel %vm353, %v327, 0
        %v364 = vsel %vm353, %v328, 0
        %v367 = vsel %vm353, %v329, 0
        %v370 = vsel %vm353, %v330, 0
        %v373 = vsel %vm353, %v331, 0
        %v376 = vsel %vm353, %v332, 0
        %v379 = vsel %vm353, %v333, 0
        %v382 = vsel %vm353, %v334, 0
        %v385 = vsel %vm353, %v335, 0
        %v388 = vsel %vm353, %v336, 0
        %v391 = vsel %vm353, %v337, 0
        %v394 = vsel %vm353, %v338, 0
        %v397 = vsel %vm353, %v339, 0
        %v400 = vsel %vm353, %v340, 0
        %v403 = vsel %vm353, %v341, 0
        %v406 = vsel %vm353, %v342, 0
        %v409 = vsel %vm353, %v343, 0
        %v412 = vsel %vm353, %v344, 0
        %v415 = vsel %vm353, %v345, 0
        %v418 = vsel %vm353, %v346, 0
        %v421 = vsel %vm353, %v347, 0
        %v424 = vsel %vm353, %v348, 0
        %v427 = vsel %vm353, %v349, 0
        %v430 = vsel %vm353, %v350, 0
        %v433 = vsel %vm353, %v351, 0
        %v436 = vsel %vm353, %v352, 0
        %vm438 = vcmask 1040384
        %v440 = vsel %vm438, %v322, 0
        %442 = vmatprep.subr.mxu0 0.0
        %443 = vmatpush1.msra.mxu0 %v321
        %444 = vmatprep.subr.mxu0 0.0
        %445 = vmatpush1.msra.mxu0 %v440
        %446 = vmatprep.subr.mxu0 0.0
        %447 = vmatpush1.msra.mxu0 0.0
        %448 = vmatprep.subr.mxu0 0.0
        %449 = vmatpush1.msra.mxu0 0.0
        %450 = vmatprep.subr.mxu0 0.0
        %451 = vmatpush1.msra.mxu0 0.0
        %452 = vmatprep.subr.mxu0 0.0
        %453 = vmatpush1.msra.mxu0 0.0
        %454 = vmatprep.subr.mxu0 0.0
        %455 = vmatpush1.msra.mxu0 0.0
        %456 = vmatprep.subr.mxu0 0.0
        %457 = vmatpush1.msra.mxu0 0.0
        %458 = vmatprep.subr.mxu0 0.0
        %459 = vmatpush1.msra.mxu0 0.0
        %460 = vmatprep.subr.mxu0 0.0
        %461 = vmatpush1.msra.mxu0 0.0
        %462 = vmatprep.subr.mxu0 0.0
        %463 = vmatpush1.msra.mxu0 0.0
        %464 = vmatprep.subr.mxu0 0.0
        %465 = vmatpush1.msra.mxu0 0.0
        %466 = vmatprep.subr.mxu0 0.0
        %467 = vmatpush1.msra.mxu0 0.0
        %468 = vmatprep.subr.mxu0 0.0
        %469 = vmatpush1.msra.mxu0 0.0
        %470 = vmatprep.subr.mxu0 0.0
        %471 = vmatpush1.msra.mxu0 0.0
        %472 = vmatprep.subr.mxu0 0.0
        %473 = vmatpush1.msra.mxu0 0.0
        %474 = vmatprep.subr.mxu0 0.0
        %475 = vmatpush1.msra.mxu0 0.0
        %476 = vmatprep.subr.mxu0 0.0
        %477 = vmatpush1.msra.mxu0 0.0
        %478 = vmatprep.subr.mxu0 0.0
        %479 = vmatpush1.msra.mxu0 0.0
        %480 = vmatprep.subr.mxu0 0.0
        %481 = vmatpush1.msra.mxu0 0.0
        %482 = vmatprep.subr.mxu0 0.0
        %483 = vmatpush1.msra.mxu0 0.0
        %484 = vmatprep.subr.mxu0 0.0
        %485 = vmatpush1.msra.mxu0 0.0
        %486 = vmatprep.subr.mxu0 0.0
        %487 = vmatpush1.msra.mxu0 0.0
        %488 = vmatprep.subr.mxu0 0.0
        %489 = vmatpush1.msra.mxu0 0.0
        %490 = vmatprep.subr.mxu0 0.0
        %491 = vmatpush1.msra.mxu0 0.0
        %492 = vmatprep.subr.mxu0 0.0
        %493 = vmatpush1.msra.mxu0 0.0
        %494 = vmatprep.subr.mxu0 0.0
        %495 = vmatpush1.msra.mxu0 0.0
        %496 = vmatprep.subr.mxu0 0.0
        %497 = vmatpush1.msra.mxu0 0.0
        %498 = vmatprep.subr.mxu0 0.0
        %499 = vmatpush1.msra.mxu0 0.0
        %500 = vmatprep.subr.mxu0 0.0
        %501 = vmatpush1.msra.mxu0 0.0
        %502 = vmatprep.subr.mxu0 0.0
        %503 = vmatpush1.msra.mxu0 0.0
        %504 = vmatprep.subr.mxu0 0.0
        %505 = vmatpush1.msra.mxu0 0.0
        %506 = vmatprep.mubr.f32.mxu0 0.0
        %507 = vmatmul.mubr.f32.gmra.mrb[0].mxu0 %v355
        %v508 = vpop.f32.mrb[0].mxu0
        %v509 = vadd.f32 0.0, %v508
        %v510 = vpop.f32.mrb[0].mxu0
        %511 = vmatprep.mubr.f32.mxu0 0.0
        %512 = vmatmul.mubr.f32.gmra.mrb[0].mxu0 %v358
        %v513 = vpop.f32.mrb[0].mxu0
        %v514 = vadd.f32 0.0, %v513
        %v515 = vpop.f32.mrb[0].mxu0
        %516 = vmatprep.mubr.f32.mxu0 0.0
        %517 = vmatmul.mubr.f32.gmra.mrb[0].mxu0 %v361
        %v518 = vpop.f32.mrb[0].mxu0
        %v519 = vadd.f32 0.0, %v518
        %v520 = vpop.f32.mrb[0].mxu0
        %521 = vmatprep.mubr.f32.mxu0 0.0
        %522 = vmatmul.mubr.f32.gmra.mrb[0].mxu0 %v364
        %v523 = vpop.f32.mrb[0].mxu0
        %v524 = vadd.f32 0.0, %v523
        %v525 = vpop.f32.mrb[0].mxu0
        %526 = vmatprep.mubr.f32.mxu0 0.0
        %527 = vmatmul.mubr.f32.gmra.mrb[0].mxu0 %v367
        %v528 = vpop.f32.mrb[0].mxu0
        %v529 = vadd.f32 0.0, %v528
        %v530 = vpop.f32.mrb[0].mxu0
        %531 = vmatprep.mubr.f32.mxu0 0.0
        %532 = vmatmul.mubr.f32.gmra.mrb[0].mxu0 %v370
        %v533 = vpop.f32.mrb[0].mxu0
        %v534 = vadd.f32 0.0, %v533
        %v535 = vpop.f32.mrb[0].mxu0
        %536 = vmatprep.mubr.f32.mxu0 0.0
        %537 = vmatmul.mubr.f32.gmra.mrb[0].mxu0 %v373
        %v538 = vpop.f32.mrb[0].mxu0
        %v539 = vadd.f32 0.0, %v538
        %v540 = vpop.f32.mrb[0].mxu0
        %541 = vmatprep.mubr.f32.mxu0 0.0
        %542 = vmatmul.mubr.f32.gmra.mrb[0].mxu0 %v376
        %v543 = vpop.f32.mrb[0].mxu0
        %v544 = vadd.f32 0.0, %v543
        %v545 = vpop.f32.mrb[0].mxu0
        %546 = vmatprep.mubr.f32.mxu0 0.0
        %547 = vmatmul.mubr.f32.gmra.mrb[0].mxu0 %v379
        %v548 = vpop.f32.mrb[0].mxu0
        %v549 = vadd.f32 0.0, %v548
        %v550 = vpop.f32.mrb[0].mxu0
        %551 = vmatprep.mubr.f32.mxu0 0.0
        %552 = vmatmul.mubr.f32.gmra.mrb[0].mxu0 %v382
        %v553 = vpop.f32.mrb[0].mxu0
        %v554 = vadd.f32 0.0, %v553
        %v555 = vpop.f32.mrb[0].mxu0
        %556 = vmatprep.mubr.f32.mxu0 0.0
        %557 = vmatmul.mubr.f32.gmra.mrb[0].mxu0 %v385
        %v558 = vpop.f32.mrb[0].mxu0
        %v559 = vadd.f32 0.0, %v558
        %v560 = vpop.f32.mrb[0].mxu0
        %561 = vmatprep.mubr.f32.mxu0 0.0
        %562 = vmatmul.mubr.f32.gmra.mrb[0].mxu0 %v388
        %v563 = vpop.f32.mrb[0].mxu0
        %v564 = vadd.f32 0.0, %v563
        %v565 = vpop.f32.mrb[0].mxu0
        %566 = vmatprep.mubr.f32.mxu0 0.0
        %567 = vmatmul.mubr.f32.gmra.mrb[0].mxu0 %v391
        %v568 = vpop.f32.mrb[0].mxu0
        %v569 = vadd.f32 0.0, %v568
        %v570 = vpop.f32.mrb[0].mxu0
        %571 = vmatprep.mubr.f32.mxu0 0.0
        %572 = vmatmul.mubr.f32.gmra.mrb[0].mxu0 %v394
        %v573 = vpop.f32.mrb[0].mxu0
        %v574 = vadd.f32 0.0, %v573
        %v575 = vpop.f32.mrb[0].mxu0
        %576 = vmatprep.mubr.f32.mxu0 0.0
        %577 = vmatmul.mubr.f32.gmra.mrb[0].mxu0 %v397
        %v578 = vpop.f32.mrb[0].mxu0
        %v579 = vadd.f32 0.0, %v578
        %v580 = vpop.f32.mrb[0].mxu0
        %581 = vmatprep.mubr.f32.mxu0 0.0
        %582 = vmatmul.mubr.f32.gmra.mrb[0].mxu0 %v400
        %v583 = vpop.f32.mrb[0].mxu0
        %v584 = vadd.f32 0.0, %v583
        %v585 = vpop.f32.mrb[0].mxu0
        %586 = vmatprep.mubr.f32.mxu0 0.0
        %587 = vmatmul.mubr.f32.gmra.mrb[0].mxu0 %v403
        %v588 = vpop.f32.mrb[0].mxu0
        %v589 = vadd.f32 0.0, %v588
        %v590 = vpop.f32.mrb[0].mxu0
        %591 = vmatprep.mubr.f32.mxu0 0.0
        %592 = vmatmul.mubr.f32.gmra.mrb[0].mxu0 %v406
        %v593 = vpop.f32.mrb[0].mxu0
        %v594 = vadd.f32 0.0, %v593
        %v595 = vpop.f32.mrb[0].mxu0
        %596 = vmatprep.mubr.f32.mxu0 0.0
        %597 = vmatmul.mubr.f32.gmra.mrb[0].mxu0 %v409
        %v598 = vpop.f32.mrb[0].mxu0
        %v599 = vadd.f32 0.0, %v598
        %v600 = vpop.f32.mrb[0].mxu0
        %601 = vmatprep.mubr.f32.mxu0 0.0
        %602 = vmatmul.mubr.f32.gmra.mrb[0].mxu0 %v412
        %v603 = vpop.f32.mrb[0].mxu0
        %v604 = vadd.f32 0.0, %v603
        %v605 = vpop.f32.mrb[0].mxu0
        %606 = vmatprep.mubr.f32.mxu0 0.0
        %607 = vmatmul.mubr.f32.gmra.mrb[0].mxu0 %v415
        %v608 = vpop.f32.mrb[0].mxu0
        %v609 = vadd.f32 0.0, %v608
        %v610 = vpop.f32.mrb[0].mxu0
        %611 = vmatprep.mubr.f32.mxu0 0.0
        %612 = vmatmul.mubr.f32.gmra.mrb[0].mxu0 %v418
        %v613 = vpop.f32.mrb[0].mxu0
        %v614 = vadd.f32 0.0, %v613
        %v615 = vpop.f32.mrb[0].mxu0
        %616 = vmatprep.mubr.f32.mxu0 0.0
        %617 = vmatmul.mubr.f32.gmra.mrb[0].mxu0 %v421
        %v618 = vpop.f32.mrb[0].mxu0
        %v619 = vadd.f32 0.0, %v618
        %v620 = vpop.f32.mrb[0].mxu0
        %621 = vmatprep.mubr.f32.mxu0 0.0
        %622 = vmatmul.mubr.f32.gmra.mrb[0].mxu0 %v424
        %v623 = vpop.f32.mrb[0].mxu0
        %v624 = vadd.f32 0.0, %v623
        %v625 = vpop.f32.mrb[0].mxu0
        %626 = vmatprep.mubr.f32.mxu0 0.0
        %627 = vmatmul.mubr.f32.gmra.mrb[0].mxu0 %v427
        %v628 = vpop.f32.mrb[0].mxu0
        %v629 = vadd.f32 0.0, %v628
        %v630 = vpop.f32.mrb[0].mxu0
        %631 = vmatprep.mubr.f32.mxu0 0.0
        %632 = vmatmul.mubr.f32.gmra.mrb[0].mxu0 %v430
        %v633 = vpop.f32.mrb[0].mxu0
        %v634 = vadd.f32 0.0, %v633
        %v635 = vpop.f32.mrb[0].mxu0
        %636 = vmatprep.mubr.f32.mxu0 0.0
        %637 = vmatmul.mubr.f32.gmra.mrb[0].mxu0 %v433
        %v638 = vpop.f32.mrb[0].mxu0
        %v639 = vadd.f32 0.0, %v638
        %v640 = vpop.f32.mrb[0].mxu0
        %641 = vmatprep.mubr.f32.mxu0 0.0
        %642 = vmatmul.mubr.f32.gmra.mrb[0].mxu0 %v436
        %v643 = vpop.f32.mrb[0].mxu0
        %v644 = vadd.f32 0.0, %v643
        %v645 = vpop.f32.mrb[0].mxu0
        %646 = vdwg.mxu0
        %v648 = vlaneseq
        %v649 = vshrl.u32 %v648, 7
        %v650 = vsub.s32 0, %v649
        %v651 = vrot.slane %v323, %v650
        %v653 = vmul.f32 %v509, %v651
        %v654 = vmul.f32 %v514, %v651
        %v655 = vmul.f32 %v519, %v651
        %v656 = vmul.f32 %v524, %v651
        %v657 = vmul.f32 %v529, %v651
        %v658 = vmul.f32 %v534, %v651
        %v659 = vmul.f32 %v539, %v651
        %v660 = vmul.f32 %v544, %v651
        %v661 = vmul.f32 %v549, %v651
        %v662 = vmul.f32 %v554, %v651
        %v663 = vmul.f32 %v559, %v651
        %v664 = vmul.f32 %v564, %v651
        %v665 = vmul.f32 %v569, %v651
        %v666 = vmul.f32 %v574, %v651
        %v667 = vmul.f32 %v579, %v651
        %v668 = vmul.f32 %v584, %v651
        %v669 = vmul.f32 %v589, %v651
        %v670 = vmul.f32 %v594, %v651
        %v671 = vmul.f32 %v599, %v651
        %v672 = vmul.f32 %v604, %v651
        %v673 = vmul.f32 %v609, %v651
        %v674 = vmul.f32 %v614, %v651
        %v675 = vmul.f32 %v619, %v651
        %v676 = vmul.f32 %v624, %v651
        %v677 = vmul.f32 %v629, %v651
        %v678 = vmul.f32 %v634, %v651
        %v679 = vmul.f32 %v639, %v651
        %v680 = vmul.f32 %v644, %v651
        %v682 = vlaneseq
        %v683 = vshrl.u32 %v682, 7
        %v684 = vsub.s32 0, %v683
        %v685 = vrot.slane %v324, %v684
        %v687 = vadd.f32 %v653, %v685
        %v688 = vadd.f32 %v654, %v685
        %v689 = vadd.f32 %v655, %v685
        %v690 = vadd.f32 %v656, %v685
        %v691 = vadd.f32 %v657, %v685
        %v692 = vadd.f32 %v658, %v685
        %v693 = vadd.f32 %v659, %v685
        %v694 = vadd.f32 %v660, %v685
        %v695 = vadd.f32 %v661, %v685
        %v696 = vadd.f32 %v662, %v685
        %v697 = vadd.f32 %v663, %v685
        %v698 = vadd.f32 %v664, %v685
        %v699 = vadd.f32 %v665, %v685
        %v700 = vadd.f32 %v666, %v685
        %v701 = vadd.f32 %v667, %v685
        %v702 = vadd.f32 %v668, %v685
        %v703 = vadd.f32 %v669, %v685
        %v704 = vadd.f32 %v670, %v685
        %v705 = vadd.f32 %v671, %v685
        %v706 = vadd.f32 %v672, %v685
        %v707 = vadd.f32 %v673, %v685
        %v708 = vadd.f32 %v674, %v685
        %v709 = vadd.f32 %v675, %v685
        %v710 = vadd.f32 %v676, %v685
        %v711 = vadd.f32 %v677, %v685
        %v712 = vadd.f32 %v678, %v685
        %v713 = vadd.f32 %v679, %v685
        %v714 = vadd.f32 %v680, %v685
        %v715 = vmax.f32 %v687, 0.0
        %v716 = vmax.f32 %v688, 0.0
        %v717 = vmax.f32 %v689, 0.0
        %v718 = vmax.f32 %v690, 0.0
        %v719 = vmax.f32 %v691, 0.0
        %v720 = vmax.f32 %v692, 0.0
        %v721 = vmax.f32 %v693, 0.0
        %v722 = vmax.f32 %v694, 0.0
        %v723 = vmax.f32 %v695, 0.0
        %v724 = vmax.f32 %v696, 0.0
        %v725 = vmax.f32 %v697, 0.0
        %v726 = vmax.f32 %v698, 0.0
        %v727 = vmax.f32 %v699, 0.0
        %v728 = vmax.f32 %v700, 0.0
        %v729 = vmax.f32 %v701, 0.0
        %v730 = vmax.f32 %v702, 0.0
        %v731 = vmax.f32 %v703, 0.0
        %v732 = vmax.f32 %v704, 0.0
        %v733 = vmax.f32 %v705, 0.0
        %v734 = vmax.f32 %v706, 0.0
        %v735 = vmax.f32 %v707, 0.0
        %v736 = vmax.f32 %v708, 0.0
        %v737 = vmax.f32 %v709, 0.0
        %v738 = vmax.f32 %v710, 0.0
        %v739 = vmax.f32 %v711, 0.0
        %v740 = vmax.f32 %v712, 0.0
        %v741 = vmax.f32 %v713, 0.0
        %v742 = vmax.f32 %v714, 0.0
        %s743 = scalar_lea.vmem %s315, 224
        %v744 = vld [vmem:[%s743] sm:$0xff]
        %v745 = vld [vmem:[%s743 + $0x8] sm:$0xff]
        %v746 = vld [vmem:[%s743 + $0x10] sm:$0xff]
        %v747 = vld [vmem:[%s743 + $0x18] sm:$0xff]
        %v748 = vld [vmem:[%s743 + $0x20] sm:$0xff]
        %v749 = vld [vmem:[%s743 + $0x28] sm:$0xff]
        %v750 = vld [vmem:[%s743 + $0x30] sm:$0xff]
        %v751 = vld [vmem:[%s743 + $0x38] sm:$0xff]
        %v752 = vld [vmem:[%s743 + $0x40] sm:$0xff]
        %v753 = vld [vmem:[%s743 + $0x48] sm:$0xff]
        %v754 = vld [vmem:[%s743 + $0x50] sm:$0xff]
        %v755 = vld [vmem:[%s743 + $0x58] sm:$0xff]
        %v756 = vld [vmem:[%s743 + $0x60] sm:$0xff]
        %v757 = vld [vmem:[%s743 + $0x68] sm:$0xff]
        %v758 = vld [vmem:[%s743 + $0x70] sm:$0xff]
        %v759 = vld [vmem:[%s743 + $0x78] sm:$0xff]
        %v760 = vld [vmem:[%s743 + $0x80] sm:$0xff]
        %v761 = vld [vmem:[%s743 + $0x88] sm:$0xff]
        %v762 = vld [vmem:[%s743 + $0x90] sm:$0xff]
        %v763 = vld [vmem:[%s743 + $0x98] sm:$0xff]
        %v764 = vld [vmem:[%s743 + $0xa0] sm:$0xff]
        %v765 = vld [vmem:[%s743 + $0xa8] sm:$0xff]
        %v766 = vld [vmem:[%s743 + $0xb0] sm:$0xff]
        %v767 = vld [vmem:[%s743 + $0xb8] sm:$0xff]
        %v768 = vld [vmem:[%s743 + $0xc0] sm:$0xff]
        %v769 = vld [vmem:[%s743 + $0xc8] sm:$0xff]
        %v770 = vld [vmem:[%s743 + $0xd0] sm:$0xff]
        %v771 = vld [vmem:[%s743 + $0xd8] sm:$0xff]
        %v773 = vsel %vm353, %v744, 0
        %v776 = vsel %vm353, %v745, 0
        %v779 = vsel %vm353, %v746, 0
        %v782 = vsel %vm353, %v747, 0
        %v785 = vsel %vm353, %v748, 0
        %v788 = vsel %vm353, %v749, 0
        %v791 = vsel %vm353, %v750, 0
        %v794 = vsel %vm353, %v751, 0
        %v797 = vsel %vm353, %v752, 0
        %v800 = vsel %vm353, %v753, 0
        %v803 = vsel %vm353, %v754, 0
        %v806 = vsel %vm353, %v755, 0
        %v809 = vsel %vm353, %v756, 0
        %v812 = vsel %vm353, %v757, 0
        %v815 = vsel %vm353, %v758, 0
        %v818 = vsel %vm353, %v759, 0
        %v821 = vsel %vm353, %v760, 0
        %v824 = vsel %vm353, %v761, 0
        %v827 = vsel %vm353, %v762, 0
        %v830 = vsel %vm353, %v763, 0
        %v833 = vsel %vm353, %v764, 0
        %v836 = vsel %vm353, %v765, 0
        %v839 = vsel %vm353, %v766, 0
        %v842 = vsel %vm353, %v767, 0
        %v845 = vsel %vm353, %v768, 0
        %v848 = vsel %vm353, %v769, 0
        %v851 = vsel %vm353, %v770, 0
        %v854 = vsel %vm353, %v771, 0
        %856 = vmatprep.subr.mxu0 0.0
        %857 = vmatpush1.msra.mxu0 %v321
        %858 = vmatprep.subr.mxu0 0.0
        %859 = vmatpush1.msra.mxu0 %v440
        %860 = vmatprep.subr.mxu0 0.0
        %861 = vmatpush1.msra.mxu0 0.0
        %862 = vmatprep.subr.mxu0 0.0
        %863 = vmatpush1.msra.mxu0 0.0
        %864 = vmatprep.subr.mxu0 0.0
        %865 = vmatpush1.msra.mxu0 0.0
        %866 = vmatprep.subr.mxu0 0.0
        %867 = vmatpush1.msra.mxu0 0.0
        %868 = vmatprep.subr.mxu0 0.0
        %869 = vmatpush1.msra.mxu0 0.0
        %870 = vmatprep.subr.mxu0 0.0
        %871 = vmatpush1.msra.mxu0 0.0
        %872 = vmatprep.subr.mxu0 0.0
        %873 = vmatpush1.msra.mxu0 0.0
        %874 = vmatprep.subr.mxu0 0.0
        %875 = vmatpush1.msra.mxu0 0.0
        %876 = vmatprep.subr.mxu0 0.0
        %877 = vmatpush1.msra.mxu0 0.0
        %878 = vmatprep.subr.mxu0 0.0
        %879 = vmatpush1.msra.mxu0 0.0
        %880 = vmatprep.subr.mxu0 0.0
        %881 = vmatpush1.msra.mxu0 0.0
        %882 = vmatprep.subr.mxu0 0.0
        %883 = vmatpush1.msra.mxu0 0.0
        %884 = vmatprep.subr.mxu0 0.0
        %885 = vmatpush1.msra.mxu0 0.0
        %886 = vmatprep.subr.mxu0 0.0
        %887 = vmatpush1.msra.mxu0 0.0
        %888 = vmatprep.subr.mxu0 0.0
        %889 = vmatpush1.msra.mxu0 0.0
        %890 = vmatprep.subr.mxu0 0.0
        %891 = vmatpush1.msra.mxu0 0.0
        %892 = vmatprep.subr.mxu0 0.0
        %893 = vmatpush1.msra.mxu0 0.0
        %894 = vmatprep.subr.mxu0 0.0
        %895 = vmatpush1.msra.mxu0 0.0
        %896 = vmatprep.subr.mxu0 0.0
        %897 = vmatpush1.msra.mxu0 0.0
        %898 = vmatprep.subr.mxu0 0.0
        %899 = vmatpush1.msra.mxu0 0.0
        %900 = vmatprep.subr.mxu0 0.0
        %901 = vmatpush1.msra.mxu0 0.0
        %902 = vmatprep.subr.mxu0 0.0
        %903 = vmatpush1.msra.mxu0 0.0
        %904 = vmatprep.subr.mxu0 0.0
        %905 = vmatpush1.msra.mxu0 0.0
        %906 = vmatprep.subr.mxu0 0.0
        %907 = vmatpush1.msra.mxu0 0.0
        %908 = vmatprep.subr.mxu0 0.0
        %909 = vmatpush1.msra.mxu0 0.0
        %910 = vmatprep.subr.mxu0 0.0
        %911 = vmatpush1.msra.mxu0 0.0
        %912 = vmatprep.subr.mxu0 0.0
        %913 = vmatpush1.msra.mxu0 0.0
        %914 = vmatprep.subr.mxu0 0.0
        %915 = vmatpush1.msra.mxu0 0.0
        %916 = vmatprep.subr.mxu0 0.0
        %917 = vmatpush1.msra.mxu0 0.0
        %918 = vmatprep.subr.mxu0 0.0
        %919 = vmatpush1.msra.mxu0 0.0
        %920 = vmatprep.mubr.f32.mxu0 0.0
        %921 = vmatmul.mubr.f32.gmra.mrb[0].mxu0 %v773
        %v922 = vpop.f32.mrb[0].mxu0
        %v923 = vadd.f32 0.0, %v922
        %v924 = vpop.f32.mrb[0].mxu0
        %925 = vmatprep.mubr.f32.mxu0 0.0
        %926 = vmatmul.mubr.f32.gmra.mrb[0].mxu0 %v776
        %v927 = vpop.f32.mrb[0].mxu0
        %v928 = vadd.f32 0.0, %v927
        %v929 = vpop.f32.mrb[0].mxu0
        %930 = vmatprep.mubr.f32.mxu0 0.0
        %931 = vmatmul.mubr.f32.gmra.mrb[0].mxu0 %v779
        %v932 = vpop.f32.mrb[0].mxu0
        %v933 = vadd.f32 0.0, %v932
        %v934 = vpop.f32.mrb[0].mxu0
        %935 = vmatprep.mubr.f32.mxu0 0.0
        %936 = vmatmul.mubr.f32.gmra.mrb[0].mxu0 %v782
        %v937 = vpop.f32.mrb[0].mxu0
        %v938 = vadd.f32 0.0, %v937
        %v939 = vpop.f32.mrb[0].mxu0
        %940 = vmatprep.mubr.f32.mxu0 0.0
        %941 = vmatmul.mubr.f32.gmra.mrb[0].mxu0 %v785
        %v942 = vpop.f32.mrb[0].mxu0
        %v943 = vadd.f32 0.0, %v942
        %v944 = vpop.f32.mrb[0].mxu0
        %945 = vmatprep.mubr.f32.mxu0 0.0
        %946 = vmatmul.mubr.f32.gmra.mrb[0].mxu0 %v788
        %v947 = vpop.f32.mrb[0].mxu0
        %v948 = vadd.f32 0.0, %v947
        %v949 = vpop.f32.mrb[0].mxu0
        %950 = vmatprep.mubr.f32.mxu0 0.0
        %951 = vmatmul.mubr.f32.gmra.mrb[0].mxu0 %v791
        %v952 = vpop.f32.mrb[0].mxu0
        %v953 = vadd.f32 0.0, %v952
        %v954 = vpop.f32.mrb[0].mxu0
        %955 = vmatprep.mubr.f32.mxu0 0.0
        %956 = vmatmul.mubr.f32.gmra.mrb[0].mxu0 %v794
        %v957 = vpop.f32.mrb[0].mxu0
        %v958 = vadd.f32 0.0, %v957
        %v959 = vpop.f32.mrb[0].mxu0
        %960 = vmatprep.mubr.f32.mxu0 0.0
        %961 = vmatmul.mubr.f32.gmra.mrb[0].mxu0 %v797
        %v962 = vpop.f32.mrb[0].mxu0
        %v963 = vadd.f32 0.0, %v962
        %v964 = vpop.f32.mrb[0].mxu0
        %965 = vmatprep.mubr.f32.mxu0 0.0
        %966 = vmatmul.mubr.f32.gmra.mrb[0].mxu0 %v800
        %v967 = vpop.f32.mrb[0].mxu0
        %v968 = vadd.f32 0.0, %v967
        %v969 = vpop.f32.mrb[0].mxu0
        %970 = vmatprep.mubr.f32.mxu0 0.0
        %971 = vmatmul.mubr.f32.gmra.mrb[0].mxu0 %v803
        %v972 = vpop.f32.mrb[0].mxu0
        %v973 = vadd.f32 0.0, %v972
        %v974 = vpop.f32.mrb[0].mxu0
        %975 = vmatprep.mubr.f32.mxu0 0.0
        %976 = vmatmul.mubr.f32.gmra.mrb[0].mxu0 %v806
        %v977 = vpop.f32.mrb[0].mxu0
        %v978 = vadd.f32 0.0, %v977
        %v979 = vpop.f32.mrb[0].mxu0
        %980 = vmatprep.mubr.f32.mxu0 0.0
        %981 = vmatmul.mubr.f32.gmra.mrb[0].mxu0 %v809
        %v982 = vpop.f32.mrb[0].mxu0
        %v983 = vadd.f32 0.0, %v982
        %v984 = vpop.f32.mrb[0].mxu0
        %985 = vmatprep.mubr.f32.mxu0 0.0
        %986 = vmatmul.mubr.f32.gmra.mrb[0].mxu0 %v812
        %v987 = vpop.f32.mrb[0].mxu0
        %v988 = vadd.f32 0.0, %v987
        %v989 = vpop.f32.mrb[0].mxu0
        %990 = vmatprep.mubr.f32.mxu0 0.0
        %991 = vmatmul.mubr.f32.gmra.mrb[0].mxu0 %v815
        %v992 = vpop.f32.mrb[0].mxu0
        %v993 = vadd.f32 0.0, %v992
        %v994 = vpop.f32.mrb[0].mxu0
        %995 = vmatprep.mubr.f32.mxu0 0.0
        %996 = vmatmul.mubr.f32.gmra.mrb[0].mxu0 %v818
        %v997 = vpop.f32.mrb[0].mxu0
        %v998 = vadd.f32 0.0, %v997
        %v999 = vpop.f32.mrb[0].mxu0
        %1000 = vmatprep.mubr.f32.mxu0 0.0
        %1001 = vmatmul.mubr.f32.gmra.mrb[0].mxu0 %v821
        %v1002 = vpop.f32.mrb[0].mxu0
        %v1003 = vadd.f32 0.0, %v1002
        %v1004 = vpop.f32.mrb[0].mxu0
        %1005 = vmatprep.mubr.f32.mxu0 0.0
        %1006 = vmatmul.mubr.f32.gmra.mrb[0].mxu0 %v824
        %v1007 = vpop.f32.mrb[0].mxu0
        %v1008 = vadd.f32 0.0, %v1007
        %v1009 = vpop.f32.mrb[0].mxu0
        %1010 = vmatprep.mubr.f32.mxu0 0.0
        %1011 = vmatmul.mubr.f32.gmra.mrb[0].mxu0 %v827
        %v1012 = vpop.f32.mrb[0].mxu0
        %v1013 = vadd.f32 0.0, %v1012
        %v1014 = vpop.f32.mrb[0].mxu0
        %1015 = vmatprep.mubr.f32.mxu0 0.0
        %1016 = vmatmul.mubr.f32.gmra.mrb[0].mxu0 %v830
        %v1017 = vpop.f32.mrb[0].mxu0
        %v1018 = vadd.f32 0.0, %v1017
        %v1019 = vpop.f32.mrb[0].mxu0
        %1020 = vmatprep.mubr.f32.mxu0 0.0
        %1021 = vmatmul.mubr.f32.gmra.mrb[0].mxu0 %v833
        %v1022 = vpop.f32.mrb[0].mxu0
        %v1023 = vadd.f32 0.0, %v1022
        %v1024 = vpop.f32.mrb[0].mxu0
        %1025 = vmatprep.mubr.f32.mxu0 0.0
        %1026 = vmatmul.mubr.f32.gmra.mrb[0].mxu0 %v836
        %v1027 = vpop.f32.mrb[0].mxu0
        %v1028 = vadd.f32 0.0, %v1027
        %v1029 = vpop.f32.mrb[0].mxu0
        %1030 = vmatprep.mubr.f32.mxu0 0.0
        %1031 = vmatmul.mubr.f32.gmra.mrb[0].mxu0 %v839
        %v1032 = vpop.f32.mrb[0].mxu0
        %v1033 = vadd.f32 0.0, %v1032
        %v1034 = vpop.f32.mrb[0].mxu0
        %1035 = vmatprep.mubr.f32.mxu0 0.0
        %1036 = vmatmul.mubr.f32.gmra.mrb[0].mxu0 %v842
        %v1037 = vpop.f32.mrb[0].mxu0
        %v1038 = vadd.f32 0.0, %v1037
        %v1039 = vpop.f32.mrb[0].mxu0
        %1040 = vmatprep.mubr.f32.mxu0 0.0
        %1041 = vmatmul.mubr.f32.gmra.mrb[0].mxu0 %v845
        %v1042 = vpop.f32.mrb[0].mxu0
        %v1043 = vadd.f32 0.0, %v1042
        %v1044 = vpop.f32.mrb[0].mxu0
        %1045 = vmatprep.mubr.f32.mxu0 0.0
        %1046 = vmatmul.mubr.f32.gmra.mrb[0].mxu0 %v848
        %v1047 = vpop.f32.mrb[0].mxu0
        %v1048 = vadd.f32 0.0, %v1047
        %v1049 = vpop.f32.mrb[0].mxu0
        %1050 = vmatprep.mubr.f32.mxu0 0.0
        %1051 = vmatmul.mubr.f32.gmra.mrb[0].mxu0 %v851
        %v1052 = vpop.f32.mrb[0].mxu0
        %v1053 = vadd.f32 0.0, %v1052
        %v1054 = vpop.f32.mrb[0].mxu0
        %1055 = vmatprep.mubr.f32.mxu0 0.0
        %1056 = vmatmul.mubr.f32.gmra.mrb[0].mxu0 %v854
        %v1057 = vpop.f32.mrb[0].mxu0
        %v1058 = vadd.f32 0.0, %v1057
        %v1059 = vpop.f32.mrb[0].mxu0
        %1060 = vdwg.mxu0
        %v1061 = vmul.f32 %v923, %v651
        %v1062 = vmul.f32 %v928, %v651
        %v1063 = vmul.f32 %v933, %v651
        %v1064 = vmul.f32 %v938, %v651
        %v1065 = vmul.f32 %v943, %v651
        %v1066 = vmul.f32 %v948, %v651
        %v1067 = vmul.f32 %v953, %v651
        %v1068 = vmul.f32 %v958, %v651
        %v1069 = vmul.f32 %v963, %v651
        %v1070 = vmul.f32 %v968, %v651
        %v1071 = vmul.f32 %v973, %v651
        %v1072 = vmul.f32 %v978, %v651
        %v1073 = vmul.f32 %v983, %v651
        %v1074 = vmul.f32 %v988, %v651
        %v1075 = vmul.f32 %v993, %v651
        %v1076 = vmul.f32 %v998, %v651
        %v1077 = vmul.f32 %v1003, %v651
        %v1078 = vmul.f32 %v1008, %v651
        %v1079 = vmul.f32 %v1013, %v651
        %v1080 = vmul.f32 %v1018, %v651
        %v1081 = vmul.f32 %v1023, %v651
        %v1082 = vmul.f32 %v1028, %v651
        %v1083 = vmul.f32 %v1033, %v651
        %v1084 = vmul.f32 %v1038, %v651
        %v1085 = vmul.f32 %v1043, %v651
        %v1086 = vmul.f32 %v1048, %v651
        %v1087 = vmul.f32 %v1053, %v651
        %v1088 = vmul.f32 %v1058, %v651
        %v1089 = vadd.f32 %v1061, %v685
        %v1090 = vadd.f32 %v1062, %v685
        %v1091 = vadd.f32 %v1063, %v685
        %v1092 = vadd.f32 %v1064, %v685
        %v1093 = vadd.f32 %v1065, %v685
        %v1094 = vadd.f32 %v1066, %v685
        %v1095 = vadd.f32 %v1067, %v685
        %v1096 = vadd.f32 %v1068, %v685
        %v1097 = vadd.f32 %v1069, %v685
        %v1098 = vadd.f32 %v1070, %v685
        %v1099 = vadd.f32 %v1071, %v685
        %v1100 = vadd.f32 %v1072, %v685
        %v1101 = vadd.f32 %v1073, %v685
        %v1102 = vadd.f32 %v1074, %v685
        %v1103 = vadd.f32 %v1075, %v685
        %v1104 = vadd.f32 %v1076, %v685
        %v1105 = vadd.f32 %v1077, %v685
        %v1106 = vadd.f32 %v1078, %v685
        %v1107 = vadd.f32 %v1079, %v685
        %v1108 = vadd.f32 %v1080, %v685
        %v1109 = vadd.f32 %v1081, %v685
        %v1110 = vadd.f32 %v1082, %v685
        %v1111 = vadd.f32 %v1083, %v685
        %v1112 = vadd.f32 %v1084, %v685
        %v1113 = vadd.f32 %v1085, %v685
        %v1114 = vadd.f32 %v1086, %v685
        %v1115 = vadd.f32 %v1087, %v685
        %v1116 = vadd.f32 %v1088, %v685
        %v1117 = vmax.f32 %v1089, 0.0
        %v1118 = vmax.f32 %v1090, 0.0
        %v1119 = vmax.f32 %v1091, 0.0
        %v1120 = vmax.f32 %v1092, 0.0
        %v1121 = vmax.f32 %v1093, 0.0
        %v1122 = vmax.f32 %v1094, 0.0
        %v1123 = vmax.f32 %v1095, 0.0
        %v1124 = vmax.f32 %v1096, 0.0
        %v1125 = vmax.f32 %v1097, 0.0
        %v1126 = vmax.f32 %v1098, 0.0
        %v1127 = vmax.f32 %v1099, 0.0
        %v1128 = vmax.f32 %v1100, 0.0
        %v1129 = vmax.f32 %v1101, 0.0
        %v1130 = vmax.f32 %v1102, 0.0
        %v1131 = vmax.f32 %v1103, 0.0
        %v1132 = vmax.f32 %v1104, 0.0
        %v1133 = vmax.f32 %v1105, 0.0
        %v1134 = vmax.f32 %v1106, 0.0
        %v1135 = vmax.f32 %v1107, 0.0
        %v1136 = vmax.f32 %v1108, 0.0
        %v1137 = vmax.f32 %v1109, 0.0
        %v1138 = vmax.f32 %v1110, 0.0
        %v1139 = vmax.f32 %v1111, 0.0
        %v1140 = vmax.f32 %v1112, 0.0
        %v1141 = vmax.f32 %v1113, 0.0
        %v1142 = vmax.f32 %v1114, 0.0
        %v1143 = vmax.f32 %v1115, 0.0
        %v1144 = vmax.f32 %v1116, 0.0
        %v1145 = vmax.f32 %v715, %v1117
        %v1146 = vmax.f32 %v716, %v1118
        %v1147 = vmax.f32 %v717, %v1119
        %v1148 = vmax.f32 %v718, %v1120
        %v1149 = vmax.f32 %v719, %v1121
        %v1150 = vmax.f32 %v720, %v1122
        %v1151 = vmax.f32 %v721, %v1123
        %v1152 = vmax.f32 %v722, %v1124
        %v1153 = vmax.f32 %v723, %v1125
        %v1154 = vmax.f32 %v724, %v1126
        %v1155 = vmax.f32 %v725, %v1127
        %v1156 = vmax.f32 %v726, %v1128
        %v1157 = vmax.f32 %v727, %v1129
        %v1158 = vmax.f32 %v728, %v1130
        %v1159 = vmax.f32 %v729, %v1131
        %v1160 = vmax.f32 %v730, %v1132
        %v1161 = vmax.f32 %v731, %v1133
        %v1162 = vmax.f32 %v732, %v1134
        %v1163 = vmax.f32 %v733, %v1135
        %v1164 = vmax.f32 %v734, %v1136
        %v1165 = vmax.f32 %v735, %v1137
        %v1166 = vmax.f32 %v736, %v1138
        %v1167 = vmax.f32 %v737, %v1139
        %v1168 = vmax.f32 %v738, %v1140
        %v1169 = vmax.f32 %v739, %v1141
        %v1170 = vmax.f32 %v740, %v1142
        %v1171 = vmax.f32 %v741, %v1143
        %v1172 = vmax.f32 %v742, %v1144
        %s1173 = scalar_lea.vmem %s315, 448
        %v1174 = vld [vmem:[%s1173] sm:$0xff]
        %v1175 = vld [vmem:[%s1173 + $0x8] sm:$0xff]
        %v1176 = vld [vmem:[%s1173 + $0x10] sm:$0xff]
        %v1177 = vld [vmem:[%s1173 + $0x18] sm:$0xff]
        %v1178 = vld [vmem:[%s1173 + $0x20] sm:$0xff]
        %v1179 = vld [vmem:[%s1173 + $0x28] sm:$0xff]
        %v1180 = vld [vmem:[%s1173 + $0x30] sm:$0xff]
        %v1181 = vld [vmem:[%s1173 + $0x38] sm:$0xff]
        %v1182 = vld [vmem:[%s1173 + $0x40] sm:$0xff]
        %v1183 = vld [vmem:[%s1173 + $0x48] sm:$0xff]
        %v1184 = vld [vmem:[%s1173 + $0x50] sm:$0xff]
        %v1185 = vld [vmem:[%s1173 + $0x58] sm:$0xff]
        %v1186 = vld [vmem:[%s1173 + $0x60] sm:$0xff]
        %v1187 = vld [vmem:[%s1173 + $0x68] sm:$0xff]
        %v1188 = vld [vmem:[%s1173 + $0x70] sm:$0xff]
        %v1189 = vld [vmem:[%s1173 + $0x78] sm:$0xff]
        %v1190 = vld [vmem:[%s1173 + $0x80] sm:$0xff]
        %v1191 = vld [vmem:[%s1173 + $0x88] sm:$0xff]
        %v1192 = vld [vmem:[%s1173 + $0x90] sm:$0xff]
        %v1193 = vld [vmem:[%s1173 + $0x98] sm:$0xff]
        %v1194 = vld [vmem:[%s1173 + $0xa0] sm:$0xff]
        %v1195 = vld [vmem:[%s1173 + $0xa8] sm:$0xff]
        %v1196 = vld [vmem:[%s1173 + $0xb0] sm:$0xff]
        %v1197 = vld [vmem:[%s1173 + $0xb8] sm:$0xff]
        %v1198 = vld [vmem:[%s1173 + $0xc0] sm:$0xff]
        %v1199 = vld [vmem:[%s1173 + $0xc8] sm:$0xff]
        %v1200 = vld [vmem:[%s1173 + $0xd0] sm:$0xff]
        %v1201 = vld [vmem:[%s1173 + $0xd8] sm:$0xff]
        %v1203 = vsel %vm353, %v1174, 0
        %v1206 = vsel %vm353, %v1175, 0
        %v1209 = vsel %vm353, %v1176, 0
        %v1212 = vsel %vm353, %v1177, 0
        %v1215 = vsel %vm353, %v1178, 0
        %v1218 = vsel %vm353, %v1179, 0
        %v1221 = vsel %vm353, %v1180, 0
        %v1224 = vsel %vm353, %v1181, 0
        %v1227 = vsel %vm353, %v1182, 0
        %v1230 = vsel %vm353, %v1183, 0
        %v1233 = vsel %vm353, %v1184, 0
        %v1236 = vsel %vm353, %v1185, 0
        %v1239 = vsel %vm353, %v1186, 0
        %v1242 = vsel %vm353, %v1187, 0
        %v1245 = vsel %vm353, %v1188, 0
        %v1248 = vsel %vm353, %v1189, 0
        %v1251 = vsel %vm353, %v1190, 0
        %v1254 = vsel %vm353, %v1191, 0
        %v1257 = vsel %vm353, %v1192, 0
        %v1260 = vsel %vm353, %v1193, 0
        %v1263 = vsel %vm353, %v1194, 0
        %v1266 = vsel %vm353, %v1195, 0
        %v1269 = vsel %vm353, %v1196, 0
        %v1272 = vsel %vm353, %v1197, 0
        %v1275 = vsel %vm353, %v1198, 0
        %v1278 = vsel %vm353, %v1199, 0
        %v1281 = vsel %vm353, %v1200, 0
        %v1284 = vsel %vm353, %v1201, 0
        %1286 = vmatprep.subr.mxu0 0.0
        %1287 = vmatpush1.msra.mxu0 %v321
        %1288 = vmatprep.subr.mxu0 0.0
        %1289 = vmatpush1.msra.mxu0 %v440
        %1290 = vmatprep.subr.mxu0 0.0
        %1291 = vmatpush1.msra.mxu0 0.0
        %1292 = vmatprep.subr.mxu0 0.0
        %1293 = vmatpush1.msra.mxu0 0.0
        %1294 = vmatprep.subr.mxu0 0.0
        %1295 = vmatpush1.msra.mxu0 0.0
        %1296 = vmatprep.subr.mxu0 0.0
        %1297 = vmatpush1.msra.mxu0 0.0
        %1298 = vmatprep.subr.mxu0 0.0
        %1299 = vmatpush1.msra.mxu0 0.0
        %1300 = vmatprep.subr.mxu0 0.0
        %1301 = vmatpush1.msra.mxu0 0.0
        %1302 = vmatprep.subr.mxu0 0.0
        %1303 = vmatpush1.msra.mxu0 0.0
        %1304 = vmatprep.subr.mxu0 0.0
        %1305 = vmatpush1.msra.mxu0 0.0
        %1306 = vmatprep.subr.mxu0 0.0
        %1307 = vmatpush1.msra.mxu0 0.0
        %1308 = vmatprep.subr.mxu0 0.0
        %1309 = vmatpush1.msra.mxu0 0.0
        %1310 = vmatprep.subr.mxu0 0.0
        %1311 = vmatpush1.msra.mxu0 0.0
        %1312 = vmatprep.subr.mxu0 0.0
        %1313 = vmatpush1.msra.mxu0 0.0
        %1314 = vmatprep.subr.mxu0 0.0
        %1315 = vmatpush1.msra.mxu0 0.0
        %1316 = vmatprep.subr.mxu0 0.0
        %1317 = vmatpush1.msra.mxu0 0.0
        %1318 = vmatprep.subr.mxu0 0.0
        %1319 = vmatpush1.msra.mxu0 0.0
        %1320 = vmatprep.subr.mxu0 0.0
        %1321 = vmatpush1.msra.mxu0 0.0
        %1322 = vmatprep.subr.mxu0 0.0
        %1323 = vmatpush1.msra.mxu0 0.0
        %1324 = vmatprep.subr.mxu0 0.0
        %1325 = vmatpush1.msra.mxu0 0.0
        %1326 = vmatprep.subr.mxu0 0.0
        %1327 = vmatpush1.msra.mxu0 0.0
        %1328 = vmatprep.subr.mxu0 0.0
        %1329 = vmatpush1.msra.mxu0 0.0
        %1330 = vmatprep.subr.mxu0 0.0
        %1331 = vmatpush1.msra.mxu0 0.0
        %1332 = vmatprep.subr.mxu0 0.0
        %1333 = vmatpush1.msra.mxu0 0.0
        %1334 = vmatprep.subr.mxu0 0.0
        %1335 = vmatpush1.msra.mxu0 0.0
        %1336 = vmatprep.subr.mxu0 0.0
        %1337 = vmatpush1.msra.mxu0 0.0
        %1338 = vmatprep.subr.mxu0 0.0
        %1339 = vmatpush1.msra.mxu0 0.0
        %1340 = vmatprep.subr.mxu0 0.0
        %1341 = vmatpush1.msra.mxu0 0.0
        %1342 = vmatprep.subr.mxu0 0.0
        %1343 = vmatpush1.msra.mxu0 0.0
        %1344 = vmatprep.subr.mxu0 0.0
        %1345 = vmatpush1.msra.mxu0 0.0
        %1346 = vmatprep.subr.mxu0 0.0
        %1347 = vmatpush1.msra.mxu0 0.0
        %1348 = vmatprep.subr.mxu0 0.0
        %1349 = vmatpush1.msra.mxu0 0.0
        %1350 = vmatprep.mubr.f32.mxu0 0.0
        %1351 = vmatmul.mubr.f32.gmra.mrb[0].mxu0 %v1203
        %v1352 = vpop.f32.mrb[0].mxu0
        %v1353 = vadd.f32 0.0, %v1352
        %v1354 = vpop.f32.mrb[0].mxu0
        %1355 = vmatprep.mubr.f32.mxu0 0.0
        %1356 = vmatmul.mubr.f32.gmra.mrb[0].mxu0 %v1206
        %v1357 = vpop.f32.mrb[0].mxu0
        %v1358 = vadd.f32 0.0, %v1357
        %v1359 = vpop.f32.mrb[0].mxu0
        %1360 = vmatprep.mubr.f32.mxu0 0.0
        %1361 = vmatmul.mubr.f32.gmra.mrb[0].mxu0 %v1209
        %v1362 = vpop.f32.mrb[0].mxu0
        %v1363 = vadd.f32 0.0, %v1362
        %v1364 = vpop.f32.mrb[0].mxu0
        %1365 = vmatprep.mubr.f32.mxu0 0.0
        %1366 = vmatmul.mubr.f32.gmra.mrb[0].mxu0 %v1212
        %v1367 = vpop.f32.mrb[0].mxu0
        %v1368 = vadd.f32 0.0, %v1367
        %v1369 = vpop.f32.mrb[0].mxu0
        %1370 = vmatprep.mubr.f32.mxu0 0.0
        %1371 = vmatmul.mubr.f32.gmra.mrb[0].mxu0 %v1215
        %v1372 = vpop.f32.mrb[0].mxu0
        %v1373 = vadd.f32 0.0, %v1372
        %v1374 = vpop.f32.mrb[0].mxu0
        %1375 = vmatprep.mubr.f32.mxu0 0.0
        %1376 = vmatmul.mubr.f32.gmra.mrb[0].mxu0 %v1218
        %v1377 = vpop.f32.mrb[0].mxu0
        %v1378 = vadd.f32 0.0, %v1377
        %v1379 = vpop.f32.mrb[0].mxu0
        %1380 = vmatprep.mubr.f32.mxu0 0.0
        %1381 = vmatmul.mubr.f32.gmra.mrb[0].mxu0 %v1221
        %v1382 = vpop.f32.mrb[0].mxu0
        %v1383 = vadd.f32 0.0, %v1382
        %v1384 = vpop.f32.mrb[0].mxu0
        %1385 = vmatprep.mubr.f32.mxu0 0.0
        %1386 = vmatmul.mubr.f32.gmra.mrb[0].mxu0 %v1224
        %v1387 = vpop.f32.mrb[0].mxu0
        %v1388 = vadd.f32 0.0, %v1387
        %v1389 = vpop.f32.mrb[0].mxu0
        %1390 = vmatprep.mubr.f32.mxu0 0.0
        %1391 = vmatmul.mubr.f32.gmra.mrb[0].mxu0 %v1227
        %v1392 = vpop.f32.mrb[0].mxu0
        %v1393 = vadd.f32 0.0, %v1392
        %v1394 = vpop.f32.mrb[0].mxu0
        %1395 = vmatprep.mubr.f32.mxu0 0.0
        %1396 = vmatmul.mubr.f32.gmra.mrb[0].mxu0 %v1230
        %v1397 = vpop.f32.mrb[0].mxu0
        %v1398 = vadd.f32 0.0, %v1397
        %v1399 = vpop.f32.mrb[0].mxu0
        %1400 = vmatprep.mubr.f32.mxu0 0.0
        %1401 = vmatmul.mubr.f32.gmra.mrb[0].mxu0 %v1233
        %v1402 = vpop.f32.mrb[0].mxu0
        %v1403 = vadd.f32 0.0, %v1402
        %v1404 = vpop.f32.mrb[0].mxu0
        %1405 = vmatprep.mubr.f32.mxu0 0.0
        %1406 = vmatmul.mubr.f32.gmra.mrb[0].mxu0 %v1236
        %v1407 = vpop.f32.mrb[0].mxu0
        %v1408 = vadd.f32 0.0, %v1407
        %v1409 = vpop.f32.mrb[0].mxu0
        %1410 = vmatprep.mubr.f32.mxu0 0.0
        %1411 = vmatmul.mubr.f32.gmra.mrb[0].mxu0 %v1239
        %v1412 = vpop.f32.mrb[0].mxu0
        %v1413 = vadd.f32 0.0, %v1412
        %v1414 = vpop.f32.mrb[0].mxu0
        %1415 = vmatprep.mubr.f32.mxu0 0.0
        %1416 = vmatmul.mubr.f32.gmra.mrb[0].mxu0 %v1242
        %v1417 = vpop.f32.mrb[0].mxu0
        %v1418 = vadd.f32 0.0, %v1417
        %v1419 = vpop.f32.mrb[0].mxu0
        %1420 = vmatprep.mubr.f32.mxu0 0.0
        %1421 = vmatmul.mubr.f32.gmra.mrb[0].mxu0 %v1245
        %v1422 = vpop.f32.mrb[0].mxu0
        %v1423 = vadd.f32 0.0, %v1422
        %v1424 = vpop.f32.mrb[0].mxu0
        %1425 = vmatprep.mubr.f32.mxu0 0.0
        %1426 = vmatmul.mubr.f32.gmra.mrb[0].mxu0 %v1248
        %v1427 = vpop.f32.mrb[0].mxu0
        %v1428 = vadd.f32 0.0, %v1427
        %v1429 = vpop.f32.mrb[0].mxu0
        %1430 = vmatprep.mubr.f32.mxu0 0.0
        %1431 = vmatmul.mubr.f32.gmra.mrb[0].mxu0 %v1251
        %v1432 = vpop.f32.mrb[0].mxu0
        %v1433 = vadd.f32 0.0, %v1432
        %v1434 = vpop.f32.mrb[0].mxu0
        %1435 = vmatprep.mubr.f32.mxu0 0.0
        %1436 = vmatmul.mubr.f32.gmra.mrb[0].mxu0 %v1254
        %v1437 = vpop.f32.mrb[0].mxu0
        %v1438 = vadd.f32 0.0, %v1437
        %v1439 = vpop.f32.mrb[0].mxu0
        %1440 = vmatprep.mubr.f32.mxu0 0.0
        %1441 = vmatmul.mubr.f32.gmra.mrb[0].mxu0 %v1257
        %v1442 = vpop.f32.mrb[0].mxu0
        %v1443 = vadd.f32 0.0, %v1442
        %v1444 = vpop.f32.mrb[0].mxu0
        %1445 = vmatprep.mubr.f32.mxu0 0.0
        %1446 = vmatmul.mubr.f32.gmra.mrb[0].mxu0 %v1260
        %v1447 = vpop.f32.mrb[0].mxu0
        %v1448 = vadd.f32 0.0, %v1447
        %v1449 = vpop.f32.mrb[0].mxu0
        %1450 = vmatprep.mubr.f32.mxu0 0.0
        %1451 = vmatmul.mubr.f32.gmra.mrb[0].mxu0 %v1263
        %v1452 = vpop.f32.mrb[0].mxu0
        %v1453 = vadd.f32 0.0, %v1452
        %v1454 = vpop.f32.mrb[0].mxu0
        %1455 = vmatprep.mubr.f32.mxu0 0.0
        %1456 = vmatmul.mubr.f32.gmra.mrb[0].mxu0 %v1266
        %v1457 = vpop.f32.mrb[0].mxu0
        %v1458 = vadd.f32 0.0, %v1457
        %v1459 = vpop.f32.mrb[0].mxu0
        %1460 = vmatprep.mubr.f32.mxu0 0.0
        %1461 = vmatmul.mubr.f32.gmra.mrb[0].mxu0 %v1269
        %v1462 = vpop.f32.mrb[0].mxu0
        %v1463 = vadd.f32 0.0, %v1462
        %v1464 = vpop.f32.mrb[0].mxu0
        %1465 = vmatprep.mubr.f32.mxu0 0.0
        %1466 = vmatmul.mubr.f32.gmra.mrb[0].mxu0 %v1272
        %v1467 = vpop.f32.mrb[0].mxu0
        %v1468 = vadd.f32 0.0, %v1467
        %v1469 = vpop.f32.mrb[0].mxu0
        %1470 = vmatprep.mubr.f32.mxu0 0.0
        %1471 = vmatmul.mubr.f32.gmra.mrb[0].mxu0 %v1275
        %v1472 = vpop.f32.mrb[0].mxu0
        %v1473 = vadd.f32 0.0, %v1472
        %v1474 = vpop.f32.mrb[0].mxu0
        %1475 = vmatprep.mubr.f32.mxu0 0.0
        %1476 = vmatmul.mubr.f32.gmra.mrb[0].mxu0 %v1278
        %v1477 = vpop.f32.mrb[0].mxu0
        %v1478 = vadd.f32 0.0, %v1477
        %v1479 = vpop.f32.mrb[0].mxu0
        %1480 = vmatprep.mubr.f32.mxu0 0.0
        %1481 = vmatmul.mubr.f32.gmra.mrb[0].mxu0 %v1281
        %v1482 = vpop.f32.mrb[0].mxu0
        %v1483 = vadd.f32 0.0, %v1482
        %v1484 = vpop.f32.mrb[0].mxu0
        %1485 = vmatprep.mubr.f32.mxu0 0.0
        %1486 = vmatmul.mubr.f32.gmra.mrb[0].mxu0 %v1284
        %v1487 = vpop.f32.mrb[0].mxu0
        %v1488 = vadd.f32 0.0, %v1487
        %v1489 = vpop.f32.mrb[0].mxu0
        %1490 = vdwg.mxu0
        %v1491 = vmul.f32 %v1353, %v651
        %v1492 = vmul.f32 %v1358, %v651
        %v1493 = vmul.f32 %v1363, %v651
        %v1494 = vmul.f32 %v1368, %v651
        %v1495 = vmul.f32 %v1373, %v651
        %v1496 = vmul.f32 %v1378, %v651
        %v1497 = vmul.f32 %v1383, %v651
        %v1498 = vmul.f32 %v1388, %v651
        %v1499 = vmul.f32 %v1393, %v651
        %v1500 = vmul.f32 %v1398, %v651
        %v1501 = vmul.f32 %v1403, %v651
        %v1502 = vmul.f32 %v1408, %v651
        %v1503 = vmul.f32 %v1413, %v651
        %v1504 = vmul.f32 %v1418, %v651
        %v1505 = vmul.f32 %v1423, %v651
        %v1506 = vmul.f32 %v1428, %v651
        %v1507 = vmul.f32 %v1433, %v651
        %v1508 = vmul.f32 %v1438, %v651
        %v1509 = vmul.f32 %v1443, %v651
        %v1510 = vmul.f32 %v1448, %v651
        %v1511 = vmul.f32 %v1453, %v651
        %v1512 = vmul.f32 %v1458, %v651
        %v1513 = vmul.f32 %v1463, %v651
        %v1514 = vmul.f32 %v1468, %v651
        %v1515 = vmul.f32 %v1473, %v651
        %v1516 = vmul.f32 %v1478, %v651
        %v1517 = vmul.f32 %v1483, %v651
        %v1518 = vmul.f32 %v1488, %v651
        %v1519 = vadd.f32 %v1491, %v685
        %v1520 = vadd.f32 %v1492, %v685
        %v1521 = vadd.f32 %v1493, %v685
        %v1522 = vadd.f32 %v1494, %v685
        %v1523 = vadd.f32 %v1495, %v685
        %v1524 = vadd.f32 %v1496, %v685
        %v1525 = vadd.f32 %v1497, %v685
        %v1526 = vadd.f32 %v1498, %v685
        %v1527 = vadd.f32 %v1499, %v685
        %v1528 = vadd.f32 %v1500, %v685
        %v1529 = vadd.f32 %v1501, %v685
        %v1530 = vadd.f32 %v1502, %v685
        %v1531 = vadd.f32 %v1503, %v685
        %v1532 = vadd.f32 %v1504, %v685
        %v1533 = vadd.f32 %v1505, %v685
        %v1534 = vadd.f32 %v1506, %v685
        %v1535 = vadd.f32 %v1507, %v685
        %v1536 = vadd.f32 %v1508, %v685
        %v1537 = vadd.f32 %v1509, %v685
        %v1538 = vadd.f32 %v1510, %v685
        %v1539 = vadd.f32 %v1511, %v685
        %v1540 = vadd.f32 %v1512, %v685
        %v1541 = vadd.f32 %v1513, %v685
        %v1542 = vadd.f32 %v1514, %v685
        %v1543 = vadd.f32 %v1515, %v685
        %v1544 = vadd.f32 %v1516, %v685
        %v1545 = vadd.f32 %v1517, %v685
        %v1546 = vadd.f32 %v1518, %v685
        %v1547 = vmax.f32 %v1519, 0.0
        %v1548 = vmax.f32 %v1520, 0.0
        %v1549 = vmax.f32 %v1521, 0.0
        %v1550 = vmax.f32 %v1522, 0.0
        %v1551 = vmax.f32 %v1523, 0.0
        %v1552 = vmax.f32 %v1524, 0.0
        %v1553 = vmax.f32 %v1525, 0.0
        %v1554 = vmax.f32 %v1526, 0.0
        %v1555 = vmax.f32 %v1527, 0.0
        %v1556 = vmax.f32 %v1528, 0.0
        %v1557 = vmax.f32 %v1529, 0.0
        %v1558 = vmax.f32 %v1530, 0.0
        %v1559 = vmax.f32 %v1531, 0.0
        %v1560 = vmax.f32 %v1532, 0.0
        %v1561 = vmax.f32 %v1533, 0.0
        %v1562 = vmax.f32 %v1534, 0.0
        %v1563 = vmax.f32 %v1535, 0.0
        %v1564 = vmax.f32 %v1536, 0.0
        %v1565 = vmax.f32 %v1537, 0.0
        %v1566 = vmax.f32 %v1538, 0.0
        %v1567 = vmax.f32 %v1539, 0.0
        %v1568 = vmax.f32 %v1540, 0.0
        %v1569 = vmax.f32 %v1541, 0.0
        %v1570 = vmax.f32 %v1542, 0.0
        %v1571 = vmax.f32 %v1543, 0.0
        %v1572 = vmax.f32 %v1544, 0.0
        %v1573 = vmax.f32 %v1545, 0.0
        %v1574 = vmax.f32 %v1546, 0.0
        %v1575 = vmax.f32 %v1145, %v1547
        %v1576 = vmax.f32 %v1146, %v1548
        %v1577 = vmax.f32 %v1147, %v1549
        %v1578 = vmax.f32 %v1148, %v1550
        %v1579 = vmax.f32 %v1149, %v1551
        %v1580 = vmax.f32 %v1150, %v1552
        %v1581 = vmax.f32 %v1151, %v1553
        %v1582 = vmax.f32 %v1152, %v1554
        %v1583 = vmax.f32 %v1153, %v1555
        %v1584 = vmax.f32 %v1154, %v1556
        %v1585 = vmax.f32 %v1155, %v1557
        %v1586 = vmax.f32 %v1156, %v1558
        %v1587 = vmax.f32 %v1157, %v1559
        %v1588 = vmax.f32 %v1158, %v1560
        %v1589 = vmax.f32 %v1159, %v1561
        %v1590 = vmax.f32 %v1160, %v1562
        %v1591 = vmax.f32 %v1161, %v1563
        %v1592 = vmax.f32 %v1162, %v1564
        %v1593 = vmax.f32 %v1163, %v1565
        %v1594 = vmax.f32 %v1164, %v1566
        %v1595 = vmax.f32 %v1165, %v1567
        %v1596 = vmax.f32 %v1166, %v1568
        %v1597 = vmax.f32 %v1167, %v1569
        %v1598 = vmax.f32 %v1168, %v1570
        %v1599 = vmax.f32 %v1169, %v1571
        %v1600 = vmax.f32 %v1170, %v1572
        %v1601 = vmax.f32 %v1171, %v1573
        %v1602 = vmax.f32 %v1172, %v1574
        %s1603 = scalar_lea.vmem %s315, 672
        %v1604 = vld [vmem:[%s1603] sm:$0xff]
        %v1605 = vld [vmem:[%s1603 + $0x8] sm:$0xff]
        %v1606 = vld [vmem:[%s1603 + $0x10] sm:$0xff]
        %v1607 = vld [vmem:[%s1603 + $0x18] sm:$0xff]
        %v1608 = vld [vmem:[%s1603 + $0x20] sm:$0xff]
        %v1609 = vld [vmem:[%s1603 + $0x28] sm:$0xff]
        %v1610 = vld [vmem:[%s1603 + $0x30] sm:$0xff]
        %v1611 = vld [vmem:[%s1603 + $0x38] sm:$0xff]
        %v1612 = vld [vmem:[%s1603 + $0x40] sm:$0xff]
        %v1613 = vld [vmem:[%s1603 + $0x48] sm:$0xff]
        %v1614 = vld [vmem:[%s1603 + $0x50] sm:$0xff]
        %v1615 = vld [vmem:[%s1603 + $0x58] sm:$0xff]
        %v1616 = vld [vmem:[%s1603 + $0x60] sm:$0xff]
        %v1617 = vld [vmem:[%s1603 + $0x68] sm:$0xff]
        %v1618 = vld [vmem:[%s1603 + $0x70] sm:$0xff]
        %v1619 = vld [vmem:[%s1603 + $0x78] sm:$0xff]
        %v1620 = vld [vmem:[%s1603 + $0x80] sm:$0xff]
        %v1621 = vld [vmem:[%s1603 + $0x88] sm:$0xff]
        %v1622 = vld [vmem:[%s1603 + $0x90] sm:$0xff]
        %v1623 = vld [vmem:[%s1603 + $0x98] sm:$0xff]
        %v1624 = vld [vmem:[%s1603 + $0xa0] sm:$0xff]
        %v1625 = vld [vmem:[%s1603 + $0xa8] sm:$0xff]
        %v1626 = vld [vmem:[%s1603 + $0xb0] sm:$0xff]
        %v1627 = vld [vmem:[%s1603 + $0xb8] sm:$0xff]
        %v1628 = vld [vmem:[%s1603 + $0xc0] sm:$0xff]
        %v1629 = vld [vmem:[%s1603 + $0xc8] sm:$0xff]
        %v1630 = vld [vmem:[%s1603 + $0xd0] sm:$0xff]
        %v1631 = vld [vmem:[%s1603 + $0xd8] sm:$0xff]
        %v1633 = vsel %vm353, %v1604, 0
        %v1636 = vsel %vm353, %v1605, 0
        %v1639 = vsel %vm353, %v1606, 0
        %v1642 = vsel %vm353, %v1607, 0
        %v1645 = vsel %vm353, %v1608, 0
        %v1648 = vsel %vm353, %v1609, 0
        %v1651 = vsel %vm353, %v1610, 0
        %v1654 = vsel %vm353, %v1611, 0
        %v1657 = vsel %vm353, %v1612, 0
        %v1660 = vsel %vm353, %v1613, 0
        %v1663 = vsel %vm353, %v1614, 0
        %v1666 = vsel %vm353, %v1615, 0
        %v1669 = vsel %vm353, %v1616, 0
        %v1672 = vsel %vm353, %v1617, 0
        %v1675 = vsel %vm353, %v1618, 0
        %v1678 = vsel %vm353, %v1619, 0
        %v1681 = vsel %vm353, %v1620, 0
        %v1684 = vsel %vm353, %v1621, 0
        %v1687 = vsel %vm353, %v1622, 0
        %v1690 = vsel %vm353, %v1623, 0
        %v1693 = vsel %vm353, %v1624, 0
        %v1696 = vsel %vm353, %v1625, 0
        %v1699 = vsel %vm353, %v1626, 0
        %v1702 = vsel %vm353, %v1627, 0
        %v1705 = vsel %vm353, %v1628, 0
        %v1708 = vsel %vm353, %v1629, 0
        %v1711 = vsel %vm353, %v1630, 0
        %v1714 = vsel %vm353, %v1631, 0
        %1716 = vmatprep.subr.mxu0 0.0
        %1717 = vmatpush1.msra.mxu0 %v321
        %1718 = vmatprep.subr.mxu0 0.0
        %1719 = vmatpush1.msra.mxu0 %v440
        %1720 = vmatprep.subr.mxu0 0.0
        %1721 = vmatpush1.msra.mxu0 0.0
        %1722 = vmatprep.subr.mxu0 0.0
        %1723 = vmatpush1.msra.mxu0 0.0
        %1724 = vmatprep.subr.mxu0 0.0
        %1725 = vmatpush1.msra.mxu0 0.0
        %1726 = vmatprep.subr.mxu0 0.0
        %1727 = vmatpush1.msra.mxu0 0.0
        %1728 = vmatprep.subr.mxu0 0.0
        %1729 = vmatpush1.msra.mxu0 0.0
        %1730 = vmatprep.subr.mxu0 0.0
        %1731 = vmatpush1.msra.mxu0 0.0
        %1732 = vmatprep.subr.mxu0 0.0
        %1733 = vmatpush1.msra.mxu0 0.0
        %1734 = vmatprep.subr.mxu0 0.0
        %1735 = vmatpush1.msra.mxu0 0.0
        %1736 = vmatprep.subr.mxu0 0.0
        %1737 = vmatpush1.msra.mxu0 0.0
        %1738 = vmatprep.subr.mxu0 0.0
        %1739 = vmatpush1.msra.mxu0 0.0
        %1740 = vmatprep.subr.mxu0 0.0
        %1741 = vmatpush1.msra.mxu0 0.0
        %1742 = vmatprep.subr.mxu0 0.0
        %1743 = vmatpush1.msra.mxu0 0.0
        %1744 = vmatprep.subr.mxu0 0.0
        %1745 = vmatpush1.msra.mxu0 0.0
        %1746 = vmatprep.subr.mxu0 0.0
        %1747 = vmatpush1.msra.mxu0 0.0
        %1748 = vmatprep.subr.mxu0 0.0
        %1749 = vmatpush1.msra.mxu0 0.0
        %1750 = vmatprep.subr.mxu0 0.0
        %1751 = vmatpush1.msra.mxu0 0.0
        %1752 = vmatprep.subr.mxu0 0.0
        %1753 = vmatpush1.msra.mxu0 0.0
        %1754 = vmatprep.subr.mxu0 0.0
        %1755 = vmatpush1.msra.mxu0 0.0
        %1756 = vmatprep.subr.mxu0 0.0
        %1757 = vmatpush1.msra.mxu0 0.0
        %1758 = vmatprep.subr.mxu0 0.0
        %1759 = vmatpush1.msra.mxu0 0.0
        %1760 = vmatprep.subr.mxu0 0.0
        %1761 = vmatpush1.msra.mxu0 0.0
        %1762 = vmatprep.subr.mxu0 0.0
        %1763 = vmatpush1.msra.mxu0 0.0
        %1764 = vmatprep.subr.mxu0 0.0
        %1765 = vmatpush1.msra.mxu0 0.0
        %1766 = vmatprep.subr.mxu0 0.0
        %1767 = vmatpush1.msra.mxu0 0.0
        %1768 = vmatprep.subr.mxu0 0.0
        %1769 = vmatpush1.msra.mxu0 0.0
        %1770 = vmatprep.subr.mxu0 0.0
        %1771 = vmatpush1.msra.mxu0 0.0
        %1772 = vmatprep.subr.mxu0 0.0
        %1773 = vmatpush1.msra.mxu0 0.0
        %1774 = vmatprep.subr.mxu0 0.0
        %1775 = vmatpush1.msra.mxu0 0.0
        %1776 = vmatprep.subr.mxu0 0.0
        %1777 = vmatpush1.msra.mxu0 0.0
        %1778 = vmatprep.subr.mxu0 0.0
        %1779 = vmatpush1.msra.mxu0 0.0
        %1780 = vmatprep.mubr.f32.mxu0 0.0
        %1781 = vmatmul.mubr.f32.gmra.mrb[0].mxu0 %v1633
        %v1782 = vpop.f32.mrb[0].mxu0
        %v1783 = vadd.f32 0.0, %v1782
        %v1784 = vpop.f32.mrb[0].mxu0
        %1785 = vmatprep.mubr.f32.mxu0 0.0
        %1786 = vmatmul.mubr.f32.gmra.mrb[0].mxu0 %v1636
        %v1787 = vpop.f32.mrb[0].mxu0
        %v1788 = vadd.f32 0.0, %v1787
        %v1789 = vpop.f32.mrb[0].mxu0
        %1790 = vmatprep.mubr.f32.mxu0 0.0
        %1791 = vmatmul.mubr.f32.gmra.mrb[0].mxu0 %v1639
        %v1792 = vpop.f32.mrb[0].mxu0
        %v1793 = vadd.f32 0.0, %v1792
        %v1794 = vpop.f32.mrb[0].mxu0
        %1795 = vmatprep.mubr.f32.mxu0 0.0
        %1796 = vmatmul.mubr.f32.gmra.mrb[0].mxu0 %v1642
        %v1797 = vpop.f32.mrb[0].mxu0
        %v1798 = vadd.f32 0.0, %v1797
        %v1799 = vpop.f32.mrb[0].mxu0
        %1800 = vmatprep.mubr.f32.mxu0 0.0
        %1801 = vmatmul.mubr.f32.gmra.mrb[0].mxu0 %v1645
        %v1802 = vpop.f32.mrb[0].mxu0
        %v1803 = vadd.f32 0.0, %v1802
        %v1804 = vpop.f32.mrb[0].mxu0
        %1805 = vmatprep.mubr.f32.mxu0 0.0
        %1806 = vmatmul.mubr.f32.gmra.mrb[0].mxu0 %v1648
        %v1807 = vpop.f32.mrb[0].mxu0
        %v1808 = vadd.f32 0.0, %v1807
        %v1809 = vpop.f32.mrb[0].mxu0
        %1810 = vmatprep.mubr.f32.mxu0 0.0
        %1811 = vmatmul.mubr.f32.gmra.mrb[0].mxu0 %v1651
        %v1812 = vpop.f32.mrb[0].mxu0
        %v1813 = vadd.f32 0.0, %v1812
        %v1814 = vpop.f32.mrb[0].mxu0
        %1815 = vmatprep.mubr.f32.mxu0 0.0
        %1816 = vmatmul.mubr.f32.gmra.mrb[0].mxu0 %v1654
        %v1817 = vpop.f32.mrb[0].mxu0
        %v1818 = vadd.f32 0.0, %v1817
        %v1819 = vpop.f32.mrb[0].mxu0
        %1820 = vmatprep.mubr.f32.mxu0 0.0
        %1821 = vmatmul.mubr.f32.gmra.mrb[0].mxu0 %v1657
        %v1822 = vpop.f32.mrb[0].mxu0
        %v1823 = vadd.f32 0.0, %v1822
        %v1824 = vpop.f32.mrb[0].mxu0
        %1825 = vmatprep.mubr.f32.mxu0 0.0
        %1826 = vmatmul.mubr.f32.gmra.mrb[0].mxu0 %v1660
        %v1827 = vpop.f32.mrb[0].mxu0
        %v1828 = vadd.f32 0.0, %v1827
        %v1829 = vpop.f32.mrb[0].mxu0
        %1830 = vmatprep.mubr.f32.mxu0 0.0
        %1831 = vmatmul.mubr.f32.gmra.mrb[0].mxu0 %v1663
        %v1832 = vpop.f32.mrb[0].mxu0
        %v1833 = vadd.f32 0.0, %v1832
        %v1834 = vpop.f32.mrb[0].mxu0
        %1835 = vmatprep.mubr.f32.mxu0 0.0
        %1836 = vmatmul.mubr.f32.gmra.mrb[0].mxu0 %v1666
        %v1837 = vpop.f32.mrb[0].mxu0
        %v1838 = vadd.f32 0.0, %v1837
        %v1839 = vpop.f32.mrb[0].mxu0
        %1840 = vmatprep.mubr.f32.mxu0 0.0
        %1841 = vmatmul.mubr.f32.gmra.mrb[0].mxu0 %v1669
        %v1842 = vpop.f32.mrb[0].mxu0
        %v1843 = vadd.f32 0.0, %v1842
        %v1844 = vpop.f32.mrb[0].mxu0
        %1845 = vmatprep.mubr.f32.mxu0 0.0
        %1846 = vmatmul.mubr.f32.gmra.mrb[0].mxu0 %v1672
        %v1847 = vpop.f32.mrb[0].mxu0
        %v1848 = vadd.f32 0.0, %v1847
        %v1849 = vpop.f32.mrb[0].mxu0
        %1850 = vmatprep.mubr.f32.mxu0 0.0
        %1851 = vmatmul.mubr.f32.gmra.mrb[0].mxu0 %v1675
        %v1852 = vpop.f32.mrb[0].mxu0
        %v1853 = vadd.f32 0.0, %v1852
        %v1854 = vpop.f32.mrb[0].mxu0
        %1855 = vmatprep.mubr.f32.mxu0 0.0
        %1856 = vmatmul.mubr.f32.gmra.mrb[0].mxu0 %v1678
        %v1857 = vpop.f32.mrb[0].mxu0
        %v1858 = vadd.f32 0.0, %v1857
        %v1859 = vpop.f32.mrb[0].mxu0
        %1860 = vmatprep.mubr.f32.mxu0 0.0
        %1861 = vmatmul.mubr.f32.gmra.mrb[0].mxu0 %v1681
        %v1862 = vpop.f32.mrb[0].mxu0
        %v1863 = vadd.f32 0.0, %v1862
        %v1864 = vpop.f32.mrb[0].mxu0
        %1865 = vmatprep.mubr.f32.mxu0 0.0
        %1866 = vmatmul.mubr.f32.gmra.mrb[0].mxu0 %v1684
        %v1867 = vpop.f32.mrb[0].mxu0
        %v1868 = vadd.f32 0.0, %v1867
        %v1869 = vpop.f32.mrb[0].mxu0
        %1870 = vmatprep.mubr.f32.mxu0 0.0
        %1871 = vmatmul.mubr.f32.gmra.mrb[0].mxu0 %v1687
        %v1872 = vpop.f32.mrb[0].mxu0
        %v1873 = vadd.f32 0.0, %v1872
        %v1874 = vpop.f32.mrb[0].mxu0
        %1875 = vmatprep.mubr.f32.mxu0 0.0
        %1876 = vmatmul.mubr.f32.gmra.mrb[0].mxu0 %v1690
        %v1877 = vpop.f32.mrb[0].mxu0
        %v1878 = vadd.f32 0.0, %v1877
        %v1879 = vpop.f32.mrb[0].mxu0
        %1880 = vmatprep.mubr.f32.mxu0 0.0
        %1881 = vmatmul.mubr.f32.gmra.mrb[0].mxu0 %v1693
        %v1882 = vpop.f32.mrb[0].mxu0
        %v1883 = vadd.f32 0.0, %v1882
        %v1884 = vpop.f32.mrb[0].mxu0
        %1885 = vmatprep.mubr.f32.mxu0 0.0
        %1886 = vmatmul.mubr.f32.gmra.mrb[0].mxu0 %v1696
        %v1887 = vpop.f32.mrb[0].mxu0
        %v1888 = vadd.f32 0.0, %v1887
        %v1889 = vpop.f32.mrb[0].mxu0
        %1890 = vmatprep.mubr.f32.mxu0 0.0
        %1891 = vmatmul.mubr.f32.gmra.mrb[0].mxu0 %v1699
        %v1892 = vpop.f32.mrb[0].mxu0
        %v1893 = vadd.f32 0.0, %v1892
        %v1894 = vpop.f32.mrb[0].mxu0
        %1895 = vmatprep.mubr.f32.mxu0 0.0
        %1896 = vmatmul.mubr.f32.gmra.mrb[0].mxu0 %v1702
        %v1897 = vpop.f32.mrb[0].mxu0
        %v1898 = vadd.f32 0.0, %v1897
        %v1899 = vpop.f32.mrb[0].mxu0
        %1900 = vmatprep.mubr.f32.mxu0 0.0
        %1901 = vmatmul.mubr.f32.gmra.mrb[0].mxu0 %v1705
        %v1902 = vpop.f32.mrb[0].mxu0
        %v1903 = vadd.f32 0.0, %v1902
        %v1904 = vpop.f32.mrb[0].mxu0
        %1905 = vmatprep.mubr.f32.mxu0 0.0
        %1906 = vmatmul.mubr.f32.gmra.mrb[0].mxu0 %v1708
        %v1907 = vpop.f32.mrb[0].mxu0
        %v1908 = vadd.f32 0.0, %v1907
        %v1909 = vpop.f32.mrb[0].mxu0
        %1910 = vmatprep.mubr.f32.mxu0 0.0
        %1911 = vmatmul.mubr.f32.gmra.mrb[0].mxu0 %v1711
        %v1912 = vpop.f32.mrb[0].mxu0
        %v1913 = vadd.f32 0.0, %v1912
        %v1914 = vpop.f32.mrb[0].mxu0
        %1915 = vmatprep.mubr.f32.mxu0 0.0
        %1916 = vmatmul.mubr.f32.gmra.mrb[0].mxu0 %v1714
        %v1917 = vpop.f32.mrb[0].mxu0
        %v1918 = vadd.f32 0.0, %v1917
        %v1919 = vpop.f32.mrb[0].mxu0
        %1920 = vdwg.mxu0
        %v1921 = vmul.f32 %v1783, %v651
        %v1922 = vmul.f32 %v1788, %v651
        %v1923 = vmul.f32 %v1793, %v651
        %v1924 = vmul.f32 %v1798, %v651
        %v1925 = vmul.f32 %v1803, %v651
        %v1926 = vmul.f32 %v1808, %v651
        %v1927 = vmul.f32 %v1813, %v651
        %v1928 = vmul.f32 %v1818, %v651
        %v1929 = vmul.f32 %v1823, %v651
        %v1930 = vmul.f32 %v1828, %v651
        %v1931 = vmul.f32 %v1833, %v651
        %v1932 = vmul.f32 %v1838, %v651
        %v1933 = vmul.f32 %v1843, %v651
        %v1934 = vmul.f32 %v1848, %v651
        %v1935 = vmul.f32 %v1853, %v651
        %v1936 = vmul.f32 %v1858, %v651
        %v1937 = vmul.f32 %v1863, %v651
        %v1938 = vmul.f32 %v1868, %v651
        %v1939 = vmul.f32 %v1873, %v651
        %v1940 = vmul.f32 %v1878, %v651
        %v1941 = vmul.f32 %v1883, %v651
        %v1942 = vmul.f32 %v1888, %v651
        %v1943 = vmul.f32 %v1893, %v651
        %v1944 = vmul.f32 %v1898, %v651
        %v1945 = vmul.f32 %v1903, %v651
        %v1946 = vmul.f32 %v1908, %v651
        %v1947 = vmul.f32 %v1913, %v651
        %v1948 = vmul.f32 %v1918, %v651
        %v1949 = vadd.f32 %v1921, %v685
        %v1950 = vadd.f32 %v1922, %v685
        %v1951 = vadd.f32 %v1923, %v685
        %v1952 = vadd.f32 %v1924, %v685
        %v1953 = vadd.f32 %v1925, %v685
        %v1954 = vadd.f32 %v1926, %v685
        %v1955 = vadd.f32 %v1927, %v685
        %v1956 = vadd.f32 %v1928, %v685
        %v1957 = vadd.f32 %v1929, %v685
        %v1958 = vadd.f32 %v1930, %v685
        %v1959 = vadd.f32 %v1931, %v685
        %v1960 = vadd.f32 %v1932, %v685
        %v1961 = vadd.f32 %v1933, %v685
        %v1962 = vadd.f32 %v1934, %v685
        %v1963 = vadd.f32 %v1935, %v685
        %v1964 = vadd.f32 %v1936, %v685
        %v1965 = vadd.f32 %v1937, %v685
        %v1966 = vadd.f32 %v1938, %v685
        %v1967 = vadd.f32 %v1939, %v685
        %v1968 = vadd.f32 %v1940, %v685
        %v1969 = vadd.f32 %v1941, %v685
        %v1970 = vadd.f32 %v1942, %v685
        %v1971 = vadd.f32 %v1943, %v685
        %v1972 = vadd.f32 %v1944, %v685
        %v1973 = vadd.f32 %v1945, %v685
        %v1974 = vadd.f32 %v1946, %v685
        %v1975 = vadd.f32 %v1947, %v685
        %v1976 = vadd.f32 %v1948, %v685
        %v1977 = vmax.f32 %v1949, 0.0
        %v1978 = vmax.f32 %v1950, 0.0
        %v1979 = vmax.f32 %v1951, 0.0
        %v1980 = vmax.f32 %v1952, 0.0
        %v1981 = vmax.f32 %v1953, 0.0
        %v1982 = vmax.f32 %v1954, 0.0
        %v1983 = vmax.f32 %v1955, 0.0
        %v1984 = vmax.f32 %v1956, 0.0
        %v1985 = vmax.f32 %v1957, 0.0
        %v1986 = vmax.f32 %v1958, 0.0
        %v1987 = vmax.f32 %v1959, 0.0
        %v1988 = vmax.f32 %v1960, 0.0
        %v1989 = vmax.f32 %v1961, 0.0
        %v1990 = vmax.f32 %v1962, 0.0
        %v1991 = vmax.f32 %v1963, 0.0
        %v1992 = vmax.f32 %v1964, 0.0
        %v1993 = vmax.f32 %v1965, 0.0
        %v1994 = vmax.f32 %v1966, 0.0
        %v1995 = vmax.f32 %v1967, 0.0
        %v1996 = vmax.f32 %v1968, 0.0
        %v1997 = vmax.f32 %v1969, 0.0
        %v1998 = vmax.f32 %v1970, 0.0
        %v1999 = vmax.f32 %v1971, 0.0
        %v2000 = vmax.f32 %v1972, 0.0
        %v2001 = vmax.f32 %v1973, 0.0
        %v2002 = vmax.f32 %v1974, 0.0
        %v2003 = vmax.f32 %v1975, 0.0
        %v2004 = vmax.f32 %v1976, 0.0
        %v2005 = vmax.f32 %v1575, %v1977
        %v2006 = vmax.f32 %v1576, %v1978
        %v2007 = vmax.f32 %v1577, %v1979
        %v2008 = vmax.f32 %v1578, %v1980
        %v2009 = vmax.f32 %v1579, %v1981
        %v2010 = vmax.f32 %v1580, %v1982
        %v2011 = vmax.f32 %v1581, %v1983
        %v2012 = vmax.f32 %v1582, %v1984
        %v2013 = vmax.f32 %v1583, %v1985
        %v2014 = vmax.f32 %v1584, %v1986
        %v2015 = vmax.f32 %v1585, %v1987
        %v2016 = vmax.f32 %v1586, %v1988
        %v2017 = vmax.f32 %v1587, %v1989
        %v2018 = vmax.f32 %v1588, %v1990
        %v2019 = vmax.f32 %v1589, %v1991
        %v2020 = vmax.f32 %v1590, %v1992
        %v2021 = vmax.f32 %v1591, %v1993
        %v2022 = vmax.f32 %v1592, %v1994
        %v2023 = vmax.f32 %v1593, %v1995
        %v2024 = vmax.f32 %v1594, %v1996
        %v2025 = vmax.f32 %v1595, %v1997
        %v2026 = vmax.f32 %v1596, %v1998
        %v2027 = vmax.f32 %v1597, %v1999
        %v2028 = vmax.f32 %v1598, %v2000
        %v2029 = vmax.f32 %v1599, %v2001
        %v2030 = vmax.f32 %v1600, %v2002
        %v2031 = vmax.f32 %v1601, %v2003
        %v2032 = vmax.f32 %v1602, %v2004
        %v2033 = vld [vmem:[%s1] sm:$0xff]
        %v2034 = vld [vmem:[%s1 + $0x8] sm:$0xff]
        %v2035 = vld [vmem:[%s1 + $0x10] sm:$0xff]
        %v2036 = vld [vmem:[%s1 + $0x18] sm:$0xff]
        %v2037 = vld [vmem:[%s1 + $0x20] sm:$0xff]
        %v2038 = vld [vmem:[%s1 + $0x28] sm:$0xff]
        %v2039 = vld [vmem:[%s1 + $0x30] sm:$0xff]
        %v2040 = vld [vmem:[%s1 + $0x38] sm:$0xff]
        %v2041 = vld [vmem:[%s1 + $0x40] sm:$0xff]
        %v2042 = vld [vmem:[%s1 + $0x48] sm:$0xff]
        %v2043 = vld [vmem:[%s1 + $0x50] sm:$0xff]
        %v2044 = vld [vmem:[%s1 + $0x58] sm:$0xff]
        %v2045 = vld [vmem:[%s1 + $0x60] sm:$0xff]
        %v2046 = vld [vmem:[%s1 + $0x68] sm:$0xff]
        %v2047 = vld [vmem:[%s1 + $0x70] sm:$0xff]
        %v2048 = vld [vmem:[%s1 + $0x78] sm:$0xff]
        %v2049 = vld [vmem:[%s1 + $0x80] sm:$0xff]
        %v2050 = vld [vmem:[%s1 + $0x88] sm:$0xff]
        %v2051 = vld [vmem:[%s1 + $0x90] sm:$0xff]
        %v2052 = vld [vmem:[%s1 + $0x98] sm:$0xff]
        %v2053 = vld [vmem:[%s1 + $0xa0] sm:$0xff]
        %v2054 = vld [vmem:[%s1 + $0xa8] sm:$0xff]
        %v2055 = vld [vmem:[%s1 + $0xb0] sm:$0xff]
        %v2056 = vld [vmem:[%s1 + $0xb8] sm:$0xff]
        %v2057 = vld [vmem:[%s1 + $0xc0] sm:$0xff]
        %v2058 = vld [vmem:[%s1 + $0xc8] sm:$0xff]
        %v2059 = vld [vmem:[%s1 + $0xd0] sm:$0xff]
        %v2060 = vld [vmem:[%s1 + $0xd8] sm:$0xff]
        %2062 = vset.pattern.permute.xlu0 0
        %2063 = vperm.xlu0 %2062, %v2033
        %v2064 = vpop.permute.xlu0 %2063
        %2067 = vset.pattern.permute.xlu0 0
        %2068 = vperm.xlu0 %2067, %v2034
        %v2069 = vpop.permute.xlu0 %2068
        %2072 = vset.pattern.permute.xlu0 0
        %2073 = vperm.xlu0 %2072, %v2035
        %v2074 = vpop.permute.xlu0 %2073
        %2077 = vset.pattern.permute.xlu0 0
        %2078 = vperm.xlu0 %2077, %v2036
        %v2079 = vpop.permute.xlu0 %2078
        %2082 = vset.pattern.permute.xlu0 0
        %2083 = vperm.xlu0 %2082, %v2037
        %v2084 = vpop.permute.xlu0 %2083
        %2087 = vset.pattern.permute.xlu0 0
        %2088 = vperm.xlu0 %2087, %v2038
        %v2089 = vpop.permute.xlu0 %2088
        %2092 = vset.pattern.permute.xlu0 0
        %2093 = vperm.xlu0 %2092, %v2039
        %v2094 = vpop.permute.xlu0 %2093
        %2097 = vset.pattern.permute.xlu0 0
        %2098 = vperm.xlu0 %2097, %v2040
        %v2099 = vpop.permute.xlu0 %2098
        %2102 = vset.pattern.permute.xlu0 0
        %2103 = vperm.xlu0 %2102, %v2041
        %v2104 = vpop.permute.xlu0 %2103
        %2107 = vset.pattern.permute.xlu0 0
        %2108 = vperm.xlu0 %2107, %v2042
        %v2109 = vpop.permute.xlu0 %2108
        %2112 = vset.pattern.permute.xlu0 0
        %2113 = vperm.xlu0 %2112, %v2043
        %v2114 = vpop.permute.xlu0 %2113
        %2117 = vset.pattern.permute.xlu0 0
        %2118 = vperm.xlu0 %2117, %v2044
        %v2119 = vpop.permute.xlu0 %2118
        %2122 = vset.pattern.permute.xlu0 0
        %2123 = vperm.xlu0 %2122, %v2045
        %v2124 = vpop.permute.xlu0 %2123
        %2127 = vset.pattern.permute.xlu0 0
        %2128 = vperm.xlu0 %2127, %v2046
        %v2129 = vpop.permute.xlu0 %2128
        %2132 = vset.pattern.permute.xlu0 0
        %2133 = vperm.xlu0 %2132, %v2047
        %v2134 = vpop.permute.xlu0 %2133
        %2137 = vset.pattern.permute.xlu0 0
        %2138 = vperm.xlu0 %2137, %v2048
        %v2139 = vpop.permute.xlu0 %2138
        %2142 = vset.pattern.permute.xlu0 0
        %2143 = vperm.xlu0 %2142, %v2049
        %v2144 = vpop.permute.xlu0 %2143
        %2147 = vset.pattern.permute.xlu0 0
        %2148 = vperm.xlu0 %2147, %v2050
        %v2149 = vpop.permute.xlu0 %2148
        %2152 = vset.pattern.permute.xlu0 0
        %2153 = vperm.xlu0 %2152, %v2051
        %v2154 = vpop.permute.xlu0 %2153
        %2157 = vset.pattern.permute.xlu0 0
        %2158 = vperm.xlu0 %2157, %v2052
        %v2159 = vpop.permute.xlu0 %2158
        %2162 = vset.pattern.permute.xlu0 0
        %2163 = vperm.xlu0 %2162, %v2053
        %v2164 = vpop.permute.xlu0 %2163
        %2167 = vset.pattern.permute.xlu0 0
        %2168 = vperm.xlu0 %2167, %v2054
        %v2169 = vpop.permute.xlu0 %2168
        %2172 = vset.pattern.permute.xlu0 0
        %2173 = vperm.xlu0 %2172, %v2055
        %v2174 = vpop.permute.xlu0 %2173
        %2177 = vset.pattern.permute.xlu0 0
        %2178 = vperm.xlu0 %2177, %v2056
        %v2179 = vpop.permute.xlu0 %2178
        %2182 = vset.pattern.permute.xlu0 0
        %2183 = vperm.xlu0 %2182, %v2057
        %v2184 = vpop.permute.xlu0 %2183
        %2187 = vset.pattern.permute.xlu0 0
        %2188 = vperm.xlu0 %2187, %v2058
        %v2189 = vpop.permute.xlu0 %2188
        %2192 = vset.pattern.permute.xlu0 0
        %2193 = vperm.xlu0 %2192, %v2059
        %v2194 = vpop.permute.xlu0 %2193
        %2197 = vset.pattern.permute.xlu0 0
        %2198 = vperm.xlu0 %2197, %v2060
        %v2199 = vpop.permute.xlu0 %2198
        %v2201 = vmul.f32 %v2005, %v2064
        %v2202 = vmul.f32 %v2006, %v2069
        %v2203 = vmul.f32 %v2007, %v2074
        %v2204 = vmul.f32 %v2008, %v2079
        %v2205 = vmul.f32 %v2009, %v2084
        %v2206 = vmul.f32 %v2010, %v2089
        %v2207 = vmul.f32 %v2011, %v2094
        %v2208 = vmul.f32 %v2012, %v2099
        %v2209 = vmul.f32 %v2013, %v2104
        %v2210 = vmul.f32 %v2014, %v2109
        %v2211 = vmul.f32 %v2015, %v2114
        %v2212 = vmul.f32 %v2016, %v2119
        %v2213 = vmul.f32 %v2017, %v2124
        %v2214 = vmul.f32 %v2018, %v2129
        %v2215 = vmul.f32 %v2019, %v2134
        %v2216 = vmul.f32 %v2020, %v2139
        %v2217 = vmul.f32 %v2021, %v2144
        %v2218 = vmul.f32 %v2022, %v2149
        %v2219 = vmul.f32 %v2023, %v2154
        %v2220 = vmul.f32 %v2024, %v2159
        %v2221 = vmul.f32 %v2025, %v2164
        %v2222 = vmul.f32 %v2026, %v2169
        %v2223 = vmul.f32 %v2027, %v2174
        %v2224 = vmul.f32 %v2028, %v2179
        %v2225 = vmul.f32 %v2029, %v2184
        %v2226 = vmul.f32 %v2030, %v2189
        %v2227 = vmul.f32 %v2031, %v2194
        %v2228 = vmul.f32 %v2032, %v2199
        %vm2229 = vcmask 523264
        %2230 = vst.msk [vmem:[#allocation2] sm:$0xff] %vm2229, 0.0
        %2231 = vst.msk [vmem:[#allocation2 + $0x8] sm:$0xff] %vm2229, 0.0
        %2232 = vst.msk [vmem:[#allocation2 + $0x10] sm:$0xff] %vm2229, 0.0
        %2233 = vst.msk [vmem:[#allocation2 + $0x18] sm:$0xff] %vm2229, 0.0
        %2234 = vst.msk [vmem:[#allocation2 + $0x20] sm:$0xff] %vm2229, 0.0
        %2235 = vst.msk [vmem:[#allocation2 + $0x28] sm:$0xff] %vm2229, 0.0
        %2236 = vst.msk [vmem:[#allocation2 + $0x30] sm:$0xff] %vm2229, 0.0
        %2237 = vst.msk [vmem:[#allocation2 + $0x38] sm:$0xff] %vm2229, 0.0
        %2238 = vst.msk [vmem:[#allocation2 + $0x40] sm:$0xff] %vm2229, 0.0
        %2239 = vst.msk [vmem:[#allocation2 + $0x48] sm:$0xff] %vm2229, 0.0
        %2240 = vst.msk [vmem:[#allocation2 + $0x50] sm:$0xff] %vm2229, 0.0
        %2241 = vst.msk [vmem:[#allocation2 + $0x58] sm:$0xff] %vm2229, 0.0
        %2242 = vst.msk [vmem:[#allocation2 + $0x60] sm:$0xff] %vm2229, 0.0
        %2243 = vst.msk [vmem:[#allocation2 + $0x68] sm:$0xff] %vm2229, 0.0
        %2244 = vst.msk [vmem:[#allocation2 + $0x70] sm:$0xff] %vm2229, 0.0
        %2245 = vst.msk [vmem:[#allocation2 + $0x78] sm:$0xff] %vm2229, 0.0
        %2246 = vst.msk [vmem:[#allocation2 + $0x80] sm:$0xff] %vm2229, 0.0
        %2247 = vst.msk [vmem:[#allocation2 + $0x88] sm:$0xff] %vm2229, 0.0
        %2248 = vst.msk [vmem:[#allocation2 + $0x90] sm:$0xff] %vm2229, 0.0
        %2249 = vst.msk [vmem:[#allocation2 + $0x98] sm:$0xff] %vm2229, 0.0
        %2250 = vst.msk [vmem:[#allocation2 + $0xa0] sm:$0xff] %vm2229, 0.0
        %2251 = vst.msk [vmem:[#allocation2 + $0xa8] sm:$0xff] %vm2229, 0.0
        %2252 = vst.msk [vmem:[#allocation2 + $0xb0] sm:$0xff] %vm2229, 0.0
        %2253 = vst.msk [vmem:[#allocation2 + $0xb8] sm:$0xff] %vm2229, 0.0
        %2254 = vst.msk [vmem:[#allocation2 + $0xc0] sm:$0xff] %vm2229, 0.0
        %2255 = vst.msk [vmem:[#allocation2 + $0xc8] sm:$0xff] %vm2229, 0.0
        %2256 = vst.msk [vmem:[#allocation2 + $0xd0] sm:$0xff] %vm2229, 0.0
        %2257 = vst.msk [vmem:[#allocation2 + $0xd8] sm:$0xff] %vm2229, 0.0
        %2258 = vst.msk [vmem:[#allocation2 + $0xe0] sm:$0xff] %vm2229, 0.0
        %2259 = vst.msk [vmem:[#allocation2 + $0xe8] sm:$0xff] %vm2229, 0.0
        %2260 = vst.msk [vmem:[#allocation2 + $0xf0] sm:$0xff] %vm2229, 0.0
        %2261 = vst.msk [vmem:[#allocation2 + $0xf8] sm:$0xff] %vm2229, 0.0
        %2262 = vst.msk [vmem:[#allocation2 + $0x100] sm:$0xff] %vm2229, 0.0
        %2263 = vst.msk [vmem:[#allocation2 + $0x108] sm:$0xff] %vm2229, 0.0
        %2264 = vst.msk [vmem:[#allocation2 + $0x18] sm:$0xff] %vm2229, %v2201
        %2265 = vst.msk [vmem:[#allocation2 + $0x20] sm:$0xff] %vm2229, %v2202
        %2266 = vst.msk [vmem:[#allocation2 + $0x28] sm:$0xff] %vm2229, %v2203
        %2267 = vst.msk [vmem:[#allocation2 + $0x30] sm:$0xff] %vm2229, %v2204
        %2268 = vst.msk [vmem:[#allocation2 + $0x38] sm:$0xff] %vm2229, %v2205
        %2269 = vst.msk [vmem:[#allocation2 + $0x40] sm:$0xff] %vm2229, %v2206
        %2270 = vst.msk [vmem:[#allocation2 + $0x48] sm:$0xff] %vm2229, %v2207
        %2271 = vst.msk [vmem:[#allocation2 + $0x50] sm:$0xff] %vm2229, %v2208
        %2272 = vst.msk [vmem:[#allocation2 + $0x58] sm:$0xff] %vm2229, %v2209
        %2273 = vst.msk [vmem:[#allocation2 + $0x60] sm:$0xff] %vm2229, %v2210
        %2274 = vst.msk [vmem:[#allocation2 + $0x68] sm:$0xff] %vm2229, %v2211
        %2275 = vst.msk [vmem:[#allocation2 + $0x70] sm:$0xff] %vm2229, %v2212
        %2276 = vst.msk [vmem:[#allocation2 + $0x78] sm:$0xff] %vm2229, %v2213
        %2277 = vst.msk [vmem:[#allocation2 + $0x80] sm:$0xff] %vm2229, %v2214
        %2278 = vst.msk [vmem:[#allocation2 + $0x88] sm:$0xff] %vm2229, %v2215
        %2279 = vst.msk [vmem:[#allocation2 + $0x90] sm:$0xff] %vm2229, %v2216
        %2280 = vst.msk [vmem:[#allocation2 + $0x98] sm:$0xff] %vm2229, %v2217
        %2281 = vst.msk [vmem:[#allocation2 + $0xa0] sm:$0xff] %vm2229, %v2218
        %2282 = vst.msk [vmem:[#allocation2 + $0xa8] sm:$0xff] %vm2229, %v2219
        %2283 = vst.msk [vmem:[#allocation2 + $0xb0] sm:$0xff] %vm2229, %v2220
        %2284 = vst.msk [vmem:[#allocation2 + $0xb8] sm:$0xff] %vm2229, %v2221
        %2285 = vst.msk [vmem:[#allocation2 + $0xc0] sm:$0xff] %vm2229, %v2222
        %2286 = vst.msk [vmem:[#allocation2 + $0xc8] sm:$0xff] %vm2229, %v2223
        %2287 = vst.msk [vmem:[#allocation2 + $0xd0] sm:$0xff] %vm2229, %v2224
        %2288 = vst.msk [vmem:[#allocation2 + $0xd8] sm:$0xff] %vm2229, %v2225
        %2289 = vst.msk [vmem:[#allocation2 + $0xe0] sm:$0xff] %vm2229, %v2226
        %2290 = vst.msk [vmem:[#allocation2 + $0xe8] sm:$0xff] %vm2229, %v2227
        %2291 = vst.msk [vmem:[#allocation2 + $0xf0] sm:$0xff] %vm2229, %v2228
        %v2292 = vld [vmem:[#allocation2 + $0x7] sm:$0xff]
        %v2293 = vld [vmem:[#allocation2 + $0xf] sm:$0xff]
        %v2294 = vld [vmem:[#allocation2 + $0x17] sm:$0xff]
        %v2295 = vld [vmem:[#allocation2 + $0x1f] sm:$0xff]
        %v2296 = vld [vmem:[#allocation2 + $0x27] sm:$0xff]
        %v2297 = vld [vmem:[#allocation2 + $0x2f] sm:$0xff]
        %v2298 = vld [vmem:[#allocation2 + $0x37] sm:$0xff]
        %v2299 = vld [vmem:[#allocation2 + $0x3f] sm:$0xff]
        %v2300 = vld [vmem:[#allocation2 + $0x47] sm:$0xff]
        %v2301 = vld [vmem:[#allocation2 + $0x4f] sm:$0xff]
        %v2302 = vld [vmem:[#allocation2 + $0x57] sm:$0xff]
        %v2303 = vld [vmem:[#allocation2 + $0x5f] sm:$0xff]
        %v2304 = vld [vmem:[#allocation2 + $0x67] sm:$0xff]
        %v2305 = vld [vmem:[#allocation2 + $0x6f] sm:$0xff]
        %v2306 = vld [vmem:[#allocation2 + $0x77] sm:$0xff]
        %v2307 = vld [vmem:[#allocation2 + $0x7f] sm:$0xff]
        %v2308 = vld [vmem:[#allocation2 + $0x87] sm:$0xff]
        %v2309 = vld [vmem:[#allocation2 + $0x8f] sm:$0xff]
        %v2310 = vld [vmem:[#allocation2 + $0x97] sm:$0xff]
        %v2311 = vld [vmem:[#allocation2 + $0x9f] sm:$0xff]
        %v2312 = vld [vmem:[#allocation2 + $0xa7] sm:$0xff]
        %v2313 = vld [vmem:[#allocation2 + $0xaf] sm:$0xff]
        %v2314 = vld [vmem:[#allocation2 + $0xb7] sm:$0xff]
        %v2315 = vld [vmem:[#allocation2 + $0xbf] sm:$0xff]
        %v2316 = vld [vmem:[#allocation2 + $0xc7] sm:$0xff]
        %v2317 = vld [vmem:[#allocation2 + $0xcf] sm:$0xff]
        %v2318 = vld [vmem:[#allocation2 + $0xd7] sm:$0xff]
        %v2319 = vld [vmem:[#allocation2 + $0xdf] sm:$0xff]
        %v2320 = vld [vmem:[#allocation3] sm:$0xff]
        %v2321 = vld [vmem:[#allocation3 + $0x8] sm:$0xff]
        %v2322 = vld [vmem:[#allocation3 + $0x10] sm:$0xff]
        %v2323 = vld [vmem:[#allocation3 + $0x18] sm:$0xff]
        %v2324 = vld [vmem:[#allocation3 + $0x20] sm:$0xff]
        %v2325 = vld [vmem:[#allocation3 + $0x28] sm:$0xff]
        %v2326 = vld [vmem:[#allocation3 + $0x30] sm:$0xff]
        %v2327 = vld [vmem:[#allocation3 + $0x38] sm:$0xff]
        %v2328 = vld [vmem:[#allocation2 + $0x8] sm:$0xff]
        %v2329 = vld [vmem:[#allocation2 + $0x10] sm:$0xff]
        %v2330 = vld [vmem:[#allocation2 + $0x18] sm:$0xff]
        %v2331 = vld [vmem:[#allocation2 + $0x20] sm:$0xff]
        %v2332 = vld [vmem:[#allocation2 + $0x28] sm:$0xff]
        %v2333 = vld [vmem:[#allocation2 + $0x30] sm:$0xff]
        %v2334 = vld [vmem:[#allocation2 + $0x38] sm:$0xff]
        %v2335 = vld [vmem:[#allocation2 + $0x40] sm:$0xff]
        %v2336 = vld [vmem:[#allocation2 + $0x48] sm:$0xff]
        %v2337 = vld [vmem:[#allocation2 + $0x50] sm:$0xff]
        %v2338 = vld [vmem:[#allocation2 + $0x58] sm:$0xff]
        %v2339 = vld [vmem:[#allocation2 + $0x60] sm:$0xff]
        %v2340 = vld [vmem:[#allocation2 + $0x68] sm:$0xff]
        %v2341 = vld [vmem:[#allocation2 + $0x70] sm:$0xff]
        %v2342 = vld [vmem:[#allocation2 + $0x78] sm:$0xff]
        %v2343 = vld [vmem:[#allocation2 + $0x80] sm:$0xff]
        %v2344 = vld [vmem:[#allocation2 + $0x88] sm:$0xff]
        %v2345 = vld [vmem:[#allocation2 + $0x90] sm:$0xff]
        %v2346 = vld [vmem:[#allocation2 + $0x98] sm:$0xff]
        %v2347 = vld [vmem:[#allocation2 + $0xa0] sm:$0xff]
        %v2348 = vld [vmem:[#allocation2 + $0xa8] sm:$0xff]
        %v2349 = vld [vmem:[#allocation2 + $0xb0] sm:$0xff]
        %v2350 = vld [vmem:[#allocation2 + $0xb8] sm:$0xff]
        %v2351 = vld [vmem:[#allocation2 + $0xc0] sm:$0xff]
        %v2352 = vld [vmem:[#allocation2 + $0xc8] sm:$0xff]
        %v2353 = vld [vmem:[#allocation2 + $0xd0] sm:$0xff]
        %v2354 = vld [vmem:[#allocation2 + $0xd8] sm:$0xff]
        %v2355 = vld [vmem:[#allocation2 + $0xe0] sm:$0xff]
        %s2356 = scalar_lea.vmem [#allocation3], 64
        %v2357 = vld [vmem:[%s2356] sm:$0xff]
        %v2358 = vld [vmem:[%s2356 + $0x8] sm:$0xff]
        %v2359 = vld [vmem:[%s2356 + $0x10] sm:$0xff]
        %v2360 = vld [vmem:[%s2356 + $0x18] sm:$0xff]
        %v2361 = vld [vmem:[%s2356 + $0x20] sm:$0xff]
        %v2362 = vld [vmem:[%s2356 + $0x28] sm:$0xff]
        %v2363 = vld [vmem:[%s2356 + $0x30] sm:$0xff]
        %v2364 = vld [vmem:[%s2356 + $0x38] sm:$0xff]
        %v2366 = vsel %vm2229, %v2328, 0
        %v2369 = vsel %vm2229, %v2329, 0
        %v2372 = vsel %vm2229, %v2330, 0
        %v2375 = vsel %vm2229, %v2331, 0
        %v2378 = vsel %vm2229, %v2332, 0
        %v2381 = vsel %vm2229, %v2333, 0
        %v2384 = vsel %vm2229, %v2334, 0
        %v2387 = vsel %vm2229, %v2335, 0
        %v2390 = vsel %vm2229, %v2336, 0
        %v2393 = vsel %vm2229, %v2337, 0
        %v2396 = vsel %vm2229, %v2338, 0
        %v2399 = vsel %vm2229, %v2339, 0
        %v2402 = vsel %vm2229, %v2340, 0
        %v2405 = vsel %vm2229, %v2341, 0
        %v2408 = vsel %vm2229, %v2342, 0
        %v2411 = vsel %vm2229, %v2343, 0
        %v2414 = vsel %vm2229, %v2344, 0
        %v2417 = vsel %vm2229, %v2345, 0
        %v2420 = vsel %vm2229, %v2346, 0
        %v2423 = vsel %vm2229, %v2347, 0
        %v2426 = vsel %vm2229, %v2348, 0
        %v2429 = vsel %vm2229, %v2349, 0
        %v2432 = vsel %vm2229, %v2350, 0
        %v2435 = vsel %vm2229, %v2351, 0
        %v2438 = vsel %vm2229, %v2352, 0
        %v2441 = vsel %vm2229, %v2353, 0
        %v2444 = vsel %vm2229, %v2354, 0
        %v2447 = vsel %vm2229, %v2355, 0
        %2449 = vmatprep.subr.mxu0 0.0
        %2450 = vmatpush1.msra.mxu0 %v2357
        %2451 = vmatprep.subr.mxu0 0.0
        %2452 = vmatpush1.msra.mxu0 %v2358
        %2453 = vmatprep.subr.mxu0 0.0
        %2454 = vmatpush1.msra.mxu0 %v2359
        %2455 = vmatprep.subr.mxu0 0.0
        %2456 = vmatpush1.msra.mxu0 %v2360
        %2457 = vmatprep.subr.mxu0 0.0
        %2458 = vmatpush1.msra.mxu0 %v2361
        %2459 = vmatprep.subr.mxu0 0.0
        %2460 = vmatpush1.msra.mxu0 %v2362
        %2461 = vmatprep.subr.mxu0 0.0
        %2462 = vmatpush1.msra.mxu0 %v2363
        %2463 = vmatprep.subr.mxu0 0.0
        %2464 = vmatpush1.msra.mxu0 %v2364
        %2465 = vmatprep.subr.mxu0 0.0
        %2466 = vmatpush1.msra.mxu0 0.0
        %2467 = vmatprep.subr.mxu0 0.0
        %2468 = vmatpush1.msra.mxu0 0.0
        %2469 = vmatprep.subr.mxu0 0.0
        %2470 = vmatpush1.msra.mxu0 0.0
        %2471 = vmatprep.subr.mxu0 0.0
        %2472 = vmatpush1.msra.mxu0 0.0
        %2473 = vmatprep.subr.mxu0 0.0
        %2474 = vmatpush1.msra.mxu0 0.0
        %2475 = vmatprep.subr.mxu0 0.0
        %2476 = vmatpush1.msra.mxu0 0.0
        %2477 = vmatprep.subr.mxu0 0.0
        %2478 = vmatpush1.msra.mxu0 0.0
        %2479 = vmatprep.subr.mxu0 0.0
        %2480 = vmatpush1.msra.mxu0 0.0
        %2481 = vmatprep.subr.mxu0 0.0
        %2482 = vmatpush1.msra.mxu0 0.0
        %2483 = vmatprep.subr.mxu0 0.0
        %2484 = vmatpush1.msra.mxu0 0.0
        %2485 = vmatprep.subr.mxu0 0.0
        %2486 = vmatpush1.msra.mxu0 0.0
        %2487 = vmatprep.subr.mxu0 0.0
        %2488 = vmatpush1.msra.mxu0 0.0
        %2489 = vmatprep.subr.mxu0 0.0
        %2490 = vmatpush1.msra.mxu0 0.0
        %2491 = vmatprep.subr.mxu0 0.0
        %2492 = vmatpush1.msra.mxu0 0.0
        %2493 = vmatprep.subr.mxu0 0.0
        %2494 = vmatpush1.msra.mxu0 0.0
        %2495 = vmatprep.subr.mxu0 0.0
        %2496 = vmatpush1.msra.mxu0 0.0
        %2497 = vmatprep.subr.mxu0 0.0
        %2498 = vmatpush1.msra.mxu0 0.0
        %2499 = vmatprep.subr.mxu0 0.0
        %2500 = vmatpush1.msra.mxu0 0.0
        %2501 = vmatprep.subr.mxu0 0.0
        %2502 = vmatpush1.msra.mxu0 0.0
        %2503 = vmatprep.subr.mxu0 0.0
        %2504 = vmatpush1.msra.mxu0 0.0
        %2505 = vmatprep.subr.mxu0 0.0
        %2506 = vmatpush1.msra.mxu0 0.0
        %2507 = vmatprep.subr.mxu0 0.0
        %2508 = vmatpush1.msra.mxu0 0.0
        %2509 = vmatprep.subr.mxu0 0.0
        %2510 = vmatpush1.msra.mxu0 0.0
        %2511 = vmatprep.subr.mxu0 0.0
        %2512 = vmatpush1.msra.mxu0 0.0
        %2513 = vmatprep.mubr.f32.mxu0 0.0
        %2514 = vmatmul.mubr.f32.gmra.mrb[0].mxu0 %v2366
        %v2515 = vpop.f32.mrb[0].mxu0
        %v2516 = vadd.f32 0.0, %v2515
        %v2517 = vpop.f32.mrb[0].mxu0
        %2518 = vmatprep.mubr.f32.mxu0 0.0
        %2519 = vmatmul.mubr.f32.gmra.mrb[0].mxu0 %v2369
        %v2520 = vpop.f32.mrb[0].mxu0
        %v2521 = vadd.f32 0.0, %v2520
        %v2522 = vpop.f32.mrb[0].mxu0
        %2523 = vmatprep.mubr.f32.mxu0 0.0
        %2524 = vmatmul.mubr.f32.gmra.mrb[0].mxu0 %v2372
        %v2525 = vpop.f32.mrb[0].mxu0
        %v2526 = vadd.f32 0.0, %v2525
        %v2527 = vpop.f32.mrb[0].mxu0
        %2528 = vmatprep.mubr.f32.mxu0 0.0
        %2529 = vmatmul.mubr.f32.gmra.mrb[0].mxu0 %v2375
        %v2530 = vpop.f32.mrb[0].mxu0
        %v2531 = vadd.f32 0.0, %v2530
        %v2532 = vpop.f32.mrb[0].mxu0
        %2533 = vmatprep.mubr.f32.mxu0 0.0
        %2534 = vmatmul.mubr.f32.gmra.mrb[0].mxu0 %v2378
        %v2535 = vpop.f32.mrb[0].mxu0
        %v2536 = vadd.f32 0.0, %v2535
        %v2537 = vpop.f32.mrb[0].mxu0
        %2538 = vmatprep.mubr.f32.mxu0 0.0
        %2539 = vmatmul.mubr.f32.gmra.mrb[0].mxu0 %v2381
        %v2540 = vpop.f32.mrb[0].mxu0
        %v2541 = vadd.f32 0.0, %v2540
        %v2542 = vpop.f32.mrb[0].mxu0
        %2543 = vmatprep.mubr.f32.mxu0 0.0
        %2544 = vmatmul.mubr.f32.gmra.mrb[0].mxu0 %v2384
        %v2545 = vpop.f32.mrb[0].mxu0
        %v2546 = vadd.f32 0.0, %v2545
        %v2547 = vpop.f32.mrb[0].mxu0
        %2548 = vmatprep.mubr.f32.mxu0 0.0
        %2549 = vmatmul.mubr.f32.gmra.mrb[0].mxu0 %v2387
        %v2550 = vpop.f32.mrb[0].mxu0
        %v2551 = vadd.f32 0.0, %v2550
        %v2552 = vpop.f32.mrb[0].mxu0
        %2553 = vmatprep.mubr.f32.mxu0 0.0
        %2554 = vmatmul.mubr.f32.gmra.mrb[0].mxu0 %v2390
        %v2555 = vpop.f32.mrb[0].mxu0
        %v2556 = vadd.f32 0.0, %v2555
        %v2557 = vpop.f32.mrb[0].mxu0
        %2558 = vmatprep.mubr.f32.mxu0 0.0
        %2559 = vmatmul.mubr.f32.gmra.mrb[0].mxu0 %v2393
        %v2560 = vpop.f32.mrb[0].mxu0
        %v2561 = vadd.f32 0.0, %v2560
        %v2562 = vpop.f32.mrb[0].mxu0
        %2563 = vmatprep.mubr.f32.mxu0 0.0
        %2564 = vmatmul.mubr.f32.gmra.mrb[0].mxu0 %v2396
        %v2565 = vpop.f32.mrb[0].mxu0
        %v2566 = vadd.f32 0.0, %v2565
        %v2567 = vpop.f32.mrb[0].mxu0
        %2568 = vmatprep.mubr.f32.mxu0 0.0
        %2569 = vmatmul.mubr.f32.gmra.mrb[0].mxu0 %v2399
        %v2570 = vpop.f32.mrb[0].mxu0
        %v2571 = vadd.f32 0.0, %v2570
        %v2572 = vpop.f32.mrb[0].mxu0
        %2573 = vmatprep.mubr.f32.mxu0 0.0
        %2574 = vmatmul.mubr.f32.gmra.mrb[0].mxu0 %v2402
        %v2575 = vpop.f32.mrb[0].mxu0
        %v2576 = vadd.f32 0.0, %v2575
        %v2577 = vpop.f32.mrb[0].mxu0
        %2578 = vmatprep.mubr.f32.mxu0 0.0
        %2579 = vmatmul.mubr.f32.gmra.mrb[0].mxu0 %v2405
        %v2580 = vpop.f32.mrb[0].mxu0
        %v2581 = vadd.f32 0.0, %v2580
        %v2582 = vpop.f32.mrb[0].mxu0
        %2583 = vmatprep.mubr.f32.mxu0 0.0
        %2584 = vmatmul.mubr.f32.gmra.mrb[0].mxu0 %v2408
        %v2585 = vpop.f32.mrb[0].mxu0
        %v2586 = vadd.f32 0.0, %v2585
        %v2587 = vpop.f32.mrb[0].mxu0
        %2588 = vmatprep.mubr.f32.mxu0 0.0
        %2589 = vmatmul.mubr.f32.gmra.mrb[0].mxu0 %v2411
        %v2590 = vpop.f32.mrb[0].mxu0
        %v2591 = vadd.f32 0.0, %v2590
        %v2592 = vpop.f32.mrb[0].mxu0
        %2593 = vmatprep.mubr.f32.mxu0 0.0
        %2594 = vmatmul.mubr.f32.gmra.mrb[0].mxu0 %v2414
        %v2595 = vpop.f32.mrb[0].mxu0
        %v2596 = vadd.f32 0.0, %v2595
        %v2597 = vpop.f32.mrb[0].mxu0
        %2598 = vmatprep.mubr.f32.mxu0 0.0
        %2599 = vmatmul.mubr.f32.gmra.mrb[0].mxu0 %v2417
        %v2600 = vpop.f32.mrb[0].mxu0
        %v2601 = vadd.f32 0.0, %v2600
        %v2602 = vpop.f32.mrb[0].mxu0
        %2603 = vmatprep.mubr.f32.mxu0 0.0
        %2604 = vmatmul.mubr.f32.gmra.mrb[0].mxu0 %v2420
        %v2605 = vpop.f32.mrb[0].mxu0
        %v2606 = vadd.f32 0.0, %v2605
        %v2607 = vpop.f32.mrb[0].mxu0
        %2608 = vmatprep.mubr.f32.mxu0 0.0
        %2609 = vmatmul.mubr.f32.gmra.mrb[0].mxu0 %v2423
        %v2610 = vpop.f32.mrb[0].mxu0
        %v2611 = vadd.f32 0.0, %v2610
        %v2612 = vpop.f32.mrb[0].mxu0
        %2613 = vmatprep.mubr.f32.mxu0 0.0
        %2614 = vmatmul.mubr.f32.gmra.mrb[0].mxu0 %v2426
        %v2615 = vpop.f32.mrb[0].mxu0
        %v2616 = vadd.f32 0.0, %v2615
        %v2617 = vpop.f32.mrb[0].mxu0
        %2618 = vmatprep.mubr.f32.mxu0 0.0
        %2619 = vmatmul.mubr.f32.gmra.mrb[0].mxu0 %v2429
        %v2620 = vpop.f32.mrb[0].mxu0
        %v2621 = vadd.f32 0.0, %v2620
        %v2622 = vpop.f32.mrb[0].mxu0
        %2623 = vmatprep.mubr.f32.mxu0 0.0
        %2624 = vmatmul.mubr.f32.gmra.mrb[0].mxu0 %v2432
        %v2625 = vpop.f32.mrb[0].mxu0
        %v2626 = vadd.f32 0.0, %v2625
        %v2627 = vpop.f32.mrb[0].mxu0
        %2628 = vmatprep.mubr.f32.mxu0 0.0
        %2629 = vmatmul.mubr.f32.gmra.mrb[0].mxu0 %v2435
        %v2630 = vpop.f32.mrb[0].mxu0
        %v2631 = vadd.f32 0.0, %v2630
        %v2632 = vpop.f32.mrb[0].mxu0
        %2633 = vmatprep.mubr.f32.mxu0 0.0
        %2634 = vmatmul.mubr.f32.gmra.mrb[0].mxu0 %v2438
        %v2635 = vpop.f32.mrb[0].mxu0
        %v2636 = vadd.f32 0.0, %v2635
        %v2637 = vpop.f32.mrb[0].mxu0
        %2638 = vmatprep.mubr.f32.mxu0 0.0
        %2639 = vmatmul.mubr.f32.gmra.mrb[0].mxu0 %v2441
        %v2640 = vpop.f32.mrb[0].mxu0
        %v2641 = vadd.f32 0.0, %v2640
        %v2642 = vpop.f32.mrb[0].mxu0
        %2643 = vmatprep.mubr.f32.mxu0 0.0
        %2644 = vmatmul.mubr.f32.gmra.mrb[0].mxu0 %v2444
        %v2645 = vpop.f32.mrb[0].mxu0
        %v2646 = vadd.f32 0.0, %v2645
        %v2647 = vpop.f32.mrb[0].mxu0
        %2648 = vmatprep.mubr.f32.mxu0 0.0
        %2649 = vmatmul.mubr.f32.gmra.mrb[0].mxu0 %v2447
        %v2650 = vpop.f32.mrb[0].mxu0
        %v2651 = vadd.f32 0.0, %v2650
        %v2652 = vpop.f32.mrb[0].mxu0
        %2653 = vdwg.mxu0
        %v2655 = vsel %vm2229, %v2292, 0
        %v2658 = vsel %vm2229, %v2293, 0
        %v2661 = vsel %vm2229, %v2294, 0
        %v2664 = vsel %vm2229, %v2295, 0
        %v2667 = vsel %vm2229, %v2296, 0
        %v2670 = vsel %vm2229, %v2297, 0
        %v2673 = vsel %vm2229, %v2298, 0
        %v2676 = vsel %vm2229, %v2299, 0
        %v2679 = vsel %vm2229, %v2300, 0
        %v2682 = vsel %vm2229, %v2301, 0
        %v2685 = vsel %vm2229, %v2302, 0
        %v2688 = vsel %vm2229, %v2303, 0
        %v2691 = vsel %vm2229, %v2304, 0
        %v2694 = vsel %vm2229, %v2305, 0
        %v2697 = vsel %vm2229, %v2306, 0
        %v2700 = vsel %vm2229, %v2307, 0
        %v2703 = vsel %vm2229, %v2308, 0
        %v2706 = vsel %vm2229, %v2309, 0
        %v2709 = vsel %vm2229, %v2310, 0
        %v2712 = vsel %vm2229, %v2311, 0
        %v2715 = vsel %vm2229, %v2312, 0
        %v2718 = vsel %vm2229, %v2313, 0
        %v2721 = vsel %vm2229, %v2314, 0
        %v2724 = vsel %vm2229, %v2315, 0
        %v2727 = vsel %vm2229, %v2316, 0
        %v2730 = vsel %vm2229, %v2317, 0
        %v2733 = vsel %vm2229, %v2318, 0
        %v2736 = vsel %vm2229, %v2319, 0
        %2738 = vmatprep.subr.mxu0 0.0
        %2739 = vmatpush1.msra.mxu0 %v2320
        %2740 = vmatprep.subr.mxu0 0.0
        %2741 = vmatpush1.msra.mxu0 %v2321
        %2742 = vmatprep.subr.mxu0 0.0
        %2743 = vmatpush1.msra.mxu0 %v2322
        %2744 = vmatprep.subr.mxu0 0.0
        %2745 = vmatpush1.msra.mxu0 %v2323
        %2746 = vmatprep.subr.mxu0 0.0
        %2747 = vmatpush1.msra.mxu0 %v2324
        %2748 = vmatprep.subr.mxu0 0.0
        %2749 = vmatpush1.msra.mxu0 %v2325
        %2750 = vmatprep.subr.mxu0 0.0
        %2751 = vmatpush1.msra.mxu0 %v2326
        %2752 = vmatprep.subr.mxu0 0.0
        %2753 = vmatpush1.msra.mxu0 %v2327
        %2754 = vmatprep.subr.mxu0 0.0
        %2755 = vmatpush1.msra.mxu0 0.0
        %2756 = vmatprep.subr.mxu0 0.0
        %2757 = vmatpush1.msra.mxu0 0.0
        %2758 = vmatprep.subr.mxu0 0.0
        %2759 = vmatpush1.msra.mxu0 0.0
        %2760 = vmatprep.subr.mxu0 0.0
        %2761 = vmatpush1.msra.mxu0 0.0
        %2762 = vmatprep.subr.mxu0 0.0
        %2763 = vmatpush1.msra.mxu0 0.0
        %2764 = vmatprep.subr.mxu0 0.0
        %2765 = vmatpush1.msra.mxu0 0.0
        %2766 = vmatprep.subr.mxu0 0.0
        %2767 = vmatpush1.msra.mxu0 0.0
        %2768 = vmatprep.subr.mxu0 0.0
        %2769 = vmatpush1.msra.mxu0 0.0
        %2770 = vmatprep.subr.mxu0 0.0
        %2771 = vmatpush1.msra.mxu0 0.0
        %2772 = vmatprep.subr.mxu0 0.0
        %2773 = vmatpush1.msra.mxu0 0.0
        %2774 = vmatprep.subr.mxu0 0.0
        %2775 = vmatpush1.msra.mxu0 0.0
        %2776 = vmatprep.subr.mxu0 0.0
        %2777 = vmatpush1.msra.mxu0 0.0
        %2778 = vmatprep.subr.mxu0 0.0
        %2779 = vmatpush1.msra.mxu0 0.0
        %2780 = vmatprep.subr.mxu0 0.0
        %2781 = vmatpush1.msra.mxu0 0.0
        %2782 = vmatprep.subr.mxu0 0.0
        %2783 = vmatpush1.msra.mxu0 0.0
        %2784 = vmatprep.subr.mxu0 0.0
        %2785 = vmatpush1.msra.mxu0 0.0
        %2786 = vmatprep.subr.mxu0 0.0
        %2787 = vmatpush1.msra.mxu0 0.0
        %2788 = vmatprep.subr.mxu0 0.0
        %2789 = vmatpush1.msra.mxu0 0.0
        %2790 = vmatprep.subr.mxu0 0.0
        %2791 = vmatpush1.msra.mxu0 0.0
        %2792 = vmatprep.subr.mxu0 0.0
        %2793 = vmatpush1.msra.mxu0 0.0
        %2794 = vmatprep.subr.mxu0 0.0
        %2795 = vmatpush1.msra.mxu0 0.0
        %2796 = vmatprep.subr.mxu0 0.0
        %2797 = vmatpush1.msra.mxu0 0.0
        %2798 = vmatprep.subr.mxu0 0.0
        %2799 = vmatpush1.msra.mxu0 0.0
        %2800 = vmatprep.subr.mxu0 0.0
        %2801 = vmatpush1.msra.mxu0 0.0
        %2802 = vmatprep.mubr.f32.mxu0 0.0
        %2803 = vmatmul.mubr.f32.gmra.mrb[0].mxu0 %v2655
        %v2804 = vpop.f32.mrb[0].mxu0
        %v2805 = vadd.f32 %v2516, %v2804
        %v2806 = vpop.f32.mrb[0].mxu0
        %2807 = vmatprep.mubr.f32.mxu0 0.0
        %2808 = vmatmul.mubr.f32.gmra.mrb[0].mxu0 %v2658
        %v2809 = vpop.f32.mrb[0].mxu0
        %v2810 = vadd.f32 %v2521, %v2809
        %v2811 = vpop.f32.mrb[0].mxu0
        %2812 = vmatprep.mubr.f32.mxu0 0.0
        %2813 = vmatmul.mubr.f32.gmra.mrb[0].mxu0 %v2661
        %v2814 = vpop.f32.mrb[0].mxu0
        %v2815 = vadd.f32 %v2526, %v2814
        %v2816 = vpop.f32.mrb[0].mxu0
        %2817 = vmatprep.mubr.f32.mxu0 0.0
        %2818 = vmatmul.mubr.f32.gmra.mrb[0].mxu0 %v2664
        %v2819 = vpop.f32.mrb[0].mxu0
        %v2820 = vadd.f32 %v2531, %v2819
        %v2821 = vpop.f32.mrb[0].mxu0
        %2822 = vmatprep.mubr.f32.mxu0 0.0
        %2823 = vmatmul.mubr.f32.gmra.mrb[0].mxu0 %v2667
        %v2824 = vpop.f32.mrb[0].mxu0
        %v2825 = vadd.f32 %v2536, %v2824
        %v2826 = vpop.f32.mrb[0].mxu0
        %2827 = vmatprep.mubr.f32.mxu0 0.0
        %2828 = vmatmul.mubr.f32.gmra.mrb[0].mxu0 %v2670
        %v2829 = vpop.f32.mrb[0].mxu0
        %v2830 = vadd.f32 %v2541, %v2829
        %v2831 = vpop.f32.mrb[0].mxu0
        %2832 = vmatprep.mubr.f32.mxu0 0.0
        %2833 = vmatmul.mubr.f32.gmra.mrb[0].mxu0 %v2673
        %v2834 = vpop.f32.mrb[0].mxu0
        %v2835 = vadd.f32 %v2546, %v2834
        %v2836 = vpop.f32.mrb[0].mxu0
        %2837 = vmatprep.mubr.f32.mxu0 0.0
        %2838 = vmatmul.mubr.f32.gmra.mrb[0].mxu0 %v2676
        %v2839 = vpop.f32.mrb[0].mxu0
        %v2840 = vadd.f32 %v2551, %v2839
        %v2841 = vpop.f32.mrb[0].mxu0
        %2842 = vmatprep.mubr.f32.mxu0 0.0
        %2843 = vmatmul.mubr.f32.gmra.mrb[0].mxu0 %v2679
        %v2844 = vpop.f32.mrb[0].mxu0
        %v2845 = vadd.f32 %v2556, %v2844
        %v2846 = vpop.f32.mrb[0].mxu0
        %2847 = vmatprep.mubr.f32.mxu0 0.0
        %2848 = vmatmul.mubr.f32.gmra.mrb[0].mxu0 %v2682
        %v2849 = vpop.f32.mrb[0].mxu0
        %v2850 = vadd.f32 %v2561, %v2849
        %v2851 = vpop.f32.mrb[0].mxu0
        %2852 = vmatprep.mubr.f32.mxu0 0.0
        %2853 = vmatmul.mubr.f32.gmra.mrb[0].mxu0 %v2685
        %v2854 = vpop.f32.mrb[0].mxu0
        %v2855 = vadd.f32 %v2566, %v2854
        %v2856 = vpop.f32.mrb[0].mxu0
        %2857 = vmatprep.mubr.f32.mxu0 0.0
        %2858 = vmatmul.mubr.f32.gmra.mrb[0].mxu0 %v2688
        %v2859 = vpop.f32.mrb[0].mxu0
        %v2860 = vadd.f32 %v2571, %v2859
        %v2861 = vpop.f32.mrb[0].mxu0
        %2862 = vmatprep.mubr.f32.mxu0 0.0
        %2863 = vmatmul.mubr.f32.gmra.mrb[0].mxu0 %v2691
        %v2864 = vpop.f32.mrb[0].mxu0
        %v2865 = vadd.f32 %v2576, %v2864
        %v2866 = vpop.f32.mrb[0].mxu0
        %2867 = vmatprep.mubr.f32.mxu0 0.0
        %2868 = vmatmul.mubr.f32.gmra.mrb[0].mxu0 %v2694
        %v2869 = vpop.f32.mrb[0].mxu0
        %v2870 = vadd.f32 %v2581, %v2869
        %v2871 = vpop.f32.mrb[0].mxu0
        %2872 = vmatprep.mubr.f32.mxu0 0.0
        %2873 = vmatmul.mubr.f32.gmra.mrb[0].mxu0 %v2697
        %v2874 = vpop.f32.mrb[0].mxu0
        %v2875 = vadd.f32 %v2586, %v2874
        %v2876 = vpop.f32.mrb[0].mxu0
        %2877 = vmatprep.mubr.f32.mxu0 0.0
        %2878 = vmatmul.mubr.f32.gmra.mrb[0].mxu0 %v2700
        %v2879 = vpop.f32.mrb[0].mxu0
        %v2880 = vadd.f32 %v2591, %v2879
        %v2881 = vpop.f32.mrb[0].mxu0
        %2882 = vmatprep.mubr.f32.mxu0 0.0
        %2883 = vmatmul.mubr.f32.gmra.mrb[0].mxu0 %v2703
        %v2884 = vpop.f32.mrb[0].mxu0
        %v2885 = vadd.f32 %v2596, %v2884
        %v2886 = vpop.f32.mrb[0].mxu0
        %2887 = vmatprep.mubr.f32.mxu0 0.0
        %2888 = vmatmul.mubr.f32.gmra.mrb[0].mxu0 %v2706
        %v2889 = vpop.f32.mrb[0].mxu0
        %v2890 = vadd.f32 %v2601, %v2889
        %v2891 = vpop.f32.mrb[0].mxu0
        %2892 = vmatprep.mubr.f32.mxu0 0.0
        %2893 = vmatmul.mubr.f32.gmra.mrb[0].mxu0 %v2709
        %v2894 = vpop.f32.mrb[0].mxu0
        %v2895 = vadd.f32 %v2606, %v2894
        %v2896 = vpop.f32.mrb[0].mxu0
        %2897 = vmatprep.mubr.f32.mxu0 0.0
        %2898 = vmatmul.mubr.f32.gmra.mrb[0].mxu0 %v2712
        %v2899 = vpop.f32.mrb[0].mxu0
        %v2900 = vadd.f32 %v2611, %v2899
        %v2901 = vpop.f32.mrb[0].mxu0
        %2902 = vmatprep.mubr.f32.mxu0 0.0
        %2903 = vmatmul.mubr.f32.gmra.mrb[0].mxu0 %v2715
        %v2904 = vpop.f32.mrb[0].mxu0
        %v2905 = vadd.f32 %v2616, %v2904
        %v2906 = vpop.f32.mrb[0].mxu0
        %2907 = vmatprep.mubr.f32.mxu0 0.0
        %2908 = vmatmul.mubr.f32.gmra.mrb[0].mxu0 %v2718
        %v2909 = vpop.f32.mrb[0].mxu0
        %v2910 = vadd.f32 %v2621, %v2909
        %v2911 = vpop.f32.mrb[0].mxu0
        %2912 = vmatprep.mubr.f32.mxu0 0.0
        %2913 = vmatmul.mubr.f32.gmra.mrb[0].mxu0 %v2721
        %v2914 = vpop.f32.mrb[0].mxu0
        %v2915 = vadd.f32 %v2626, %v2914
        %v2916 = vpop.f32.mrb[0].mxu0
        %2917 = vmatprep.mubr.f32.mxu0 0.0
        %2918 = vmatmul.mubr.f32.gmra.mrb[0].mxu0 %v2724
        %v2919 = vpop.f32.mrb[0].mxu0
        %v2920 = vadd.f32 %v2631, %v2919
        %v2921 = vpop.f32.mrb[0].mxu0
        %2922 = vmatprep.mubr.f32.mxu0 0.0
        %2923 = vmatmul.mubr.f32.gmra.mrb[0].mxu0 %v2727
        %v2924 = vpop.f32.mrb[0].mxu0
        %v2925 = vadd.f32 %v2636, %v2924
        %v2926 = vpop.f32.mrb[0].mxu0
        %2927 = vmatprep.mubr.f32.mxu0 0.0
        %2928 = vmatmul.mubr.f32.gmra.mrb[0].mxu0 %v2730
        %v2929 = vpop.f32.mrb[0].mxu0
        %v2930 = vadd.f32 %v2641, %v2929
        %v2931 = vpop.f32.mrb[0].mxu0
        %2932 = vmatprep.mubr.f32.mxu0 0.0
        %2933 = vmatmul.mubr.f32.gmra.mrb[0].mxu0 %v2733
        %v2934 = vpop.f32.mrb[0].mxu0
        %v2935 = vadd.f32 %v2646, %v2934
        %v2936 = vpop.f32.mrb[0].mxu0
        %2937 = vmatprep.mubr.f32.mxu0 0.0
        %2938 = vmatmul.mubr.f32.gmra.mrb[0].mxu0 %v2736
        %v2939 = vpop.f32.mrb[0].mxu0
        %v2940 = vadd.f32 %v2651, %v2939
        %v2941 = vpop.f32.mrb[0].mxu0
        %2942 = vdwg.mxu0
        %v2943 = vld [vmem:[#allocation2 + $0x9] sm:$0xff]
        %v2944 = vld [vmem:[#allocation2 + $0x11] sm:$0xff]
        %v2945 = vld [vmem:[#allocation2 + $0x19] sm:$0xff]
        %v2946 = vld [vmem:[#allocation2 + $0x21] sm:$0xff]
        %v2947 = vld [vmem:[#allocation2 + $0x29] sm:$0xff]
        %v2948 = vld [vmem:[#allocation2 + $0x31] sm:$0xff]
        %v2949 = vld [vmem:[#allocation2 + $0x39] sm:$0xff]
        %v2950 = vld [vmem:[#allocation2 + $0x41] sm:$0xff]
        %v2951 = vld [vmem:[#allocation2 + $0x49] sm:$0xff]
        %v2952 = vld [vmem:[#allocation2 + $0x51] sm:$0xff]
        %v2953 = vld [vmem:[#allocation2 + $0x59] sm:$0xff]
        %v2954 = vld [vmem:[#allocation2 + $0x61] sm:$0xff]
        %v2955 = vld [vmem:[#allocation2 + $0x69] sm:$0xff]
        %v2956 = vld [vmem:[#allocation2 + $0x71] sm:$0xff]
        %v2957 = vld [vmem:[#allocation2 + $0x79] sm:$0xff]
        %v2958 = vld [vmem:[#allocation2 + $0x81] sm:$0xff]
        %v2959 = vld [vmem:[#allocation2 + $0x89] sm:$0xff]
        %v2960 = vld [vmem:[#allocation2 + $0x91] sm:$0xff]
        %v2961 = vld [vmem:[#allocation2 + $0x99] sm:$0xff]
        %v2962 = vld [vmem:[#allocation2 + $0xa1] sm:$0xff]
        %v2963 = vld [vmem:[#allocation2 + $0xa9] sm:$0xff]
        %v2964 = vld [vmem:[#allocation2 + $0xb1] sm:$0xff]
        %v2965 = vld [vmem:[#allocation2 + $0xb9] sm:$0xff]
        %v2966 = vld [vmem:[#allocation2 + $0xc1] sm:$0xff]
        %v2967 = vld [vmem:[#allocation2 + $0xc9] sm:$0xff]
        %v2968 = vld [vmem:[#allocation2 + $0xd1] sm:$0xff]
        %v2969 = vld [vmem:[#allocation2 + $0xd9] sm:$0xff]
        %v2970 = vld [vmem:[#allocation2 + $0xe1] sm:$0xff]
        %s2971 = scalar_lea.vmem [#allocation3], 128
        %v2972 = vld [vmem:[%s2971] sm:$0xff]
        %v2973 = vld [vmem:[%s2971 + $0x8] sm:$0xff]
        %v2974 = vld [vmem:[%s2971 + $0x10] sm:$0xff]
        %v2975 = vld [vmem:[%s2971 + $0x18] sm:$0xff]
        %v2976 = vld [vmem:[%s2971 + $0x20] sm:$0xff]
        %v2977 = vld [vmem:[%s2971 + $0x28] sm:$0xff]
        %v2978 = vld [vmem:[%s2971 + $0x30] sm:$0xff]
        %v2979 = vld [vmem:[%s2971 + $0x38] sm:$0xff]
        %v2981 = vsel %vm2229, %v2943, 0
        %v2984 = vsel %vm2229, %v2944, 0
        %v2987 = vsel %vm2229, %v2945, 0
        %v2990 = vsel %vm2229, %v2946, 0
        %v2993 = vsel %vm2229, %v2947, 0
        %v2996 = vsel %vm2229, %v2948, 0
        %v2999 = vsel %vm2229, %v2949, 0
        %v3002 = vsel %vm2229, %v2950, 0
        %v3005 = vsel %vm2229, %v2951, 0
        %v3008 = vsel %vm2229, %v2952, 0
        %v3011 = vsel %vm2229, %v2953, 0
        %v3014 = vsel %vm2229, %v2954, 0
        %v3017 = vsel %vm2229, %v2955, 0
        %v3020 = vsel %vm2229, %v2956, 0
        %v3023 = vsel %vm2229, %v2957, 0
        %v3026 = vsel %vm2229, %v2958, 0
        %v3029 = vsel %vm2229, %v2959, 0
        %v3032 = vsel %vm2229, %v2960, 0
        %v3035 = vsel %vm2229, %v2961, 0
        %v3038 = vsel %vm2229, %v2962, 0
        %v3041 = vsel %vm2229, %v2963, 0
        %v3044 = vsel %vm2229, %v2964, 0
        %v3047 = vsel %vm2229, %v2965, 0
        %v3050 = vsel %vm2229, %v2966, 0
        %v3053 = vsel %vm2229, %v2967, 0
        %v3056 = vsel %vm2229, %v2968, 0
        %v3059 = vsel %vm2229, %v2969, 0
        %v3062 = vsel %vm2229, %v2970, 0
        %3064 = vmatprep.subr.mxu0 0.0
        %3065 = vmatpush1.msra.mxu0 %v2972
        %3066 = vmatprep.subr.mxu0 0.0
        %3067 = vmatpush1.msra.mxu0 %v2973
        %3068 = vmatprep.subr.mxu0 0.0
        %3069 = vmatpush1.msra.mxu0 %v2974
        %3070 = vmatprep.subr.mxu0 0.0
        %3071 = vmatpush1.msra.mxu0 %v2975
        %3072 = vmatprep.subr.mxu0 0.0
        %3073 = vmatpush1.msra.mxu0 %v2976
        %3074 = vmatprep.subr.mxu0 0.0
        %3075 = vmatpush1.msra.mxu0 %v2977
        %3076 = vmatprep.subr.mxu0 0.0
        %3077 = vmatpush1.msra.mxu0 %v2978
        %3078 = vmatprep.subr.mxu0 0.0
        %3079 = vmatpush1.msra.mxu0 %v2979
        %3080 = vmatprep.subr.mxu0 0.0
        %3081 = vmatpush1.msra.mxu0 0.0
        %3082 = vmatprep.subr.mxu0 0.0
        %3083 = vmatpush1.msra.mxu0 0.0
        %3084 = vmatprep.subr.mxu0 0.0
        %3085 = vmatpush1.msra.mxu0 0.0
        %3086 = vmatprep.subr.mxu0 0.0
        %3087 = vmatpush1.msra.mxu0 0.0
        %3088 = vmatprep.subr.mxu0 0.0
        %3089 = vmatpush1.msra.mxu0 0.0
        %3090 = vmatprep.subr.mxu0 0.0
        %3091 = vmatpush1.msra.mxu0 0.0
        %3092 = vmatprep.subr.mxu0 0.0
        %3093 = vmatpush1.msra.mxu0 0.0
        %3094 = vmatprep.subr.mxu0 0.0
        %3095 = vmatpush1.msra.mxu0 0.0
        %3096 = vmatprep.subr.mxu0 0.0
        %3097 = vmatpush1.msra.mxu0 0.0
        %3098 = vmatprep.subr.mxu0 0.0
        %3099 = vmatpush1.msra.mxu0 0.0
        %3100 = vmatprep.subr.mxu0 0.0
        %3101 = vmatpush1.msra.mxu0 0.0
        %3102 = vmatprep.subr.mxu0 0.0
        %3103 = vmatpush1.msra.mxu0 0.0
        %3104 = vmatprep.subr.mxu0 0.0
        %3105 = vmatpush1.msra.mxu0 0.0
        %3106 = vmatprep.subr.mxu0 0.0
        %3107 = vmatpush1.msra.mxu0 0.0
        %3108 = vmatprep.subr.mxu0 0.0
        %3109 = vmatpush1.msra.mxu0 0.0
        %3110 = vmatprep.subr.mxu0 0.0
        %3111 = vmatpush1.msra.mxu0 0.0
        %3112 = vmatprep.subr.mxu0 0.0
        %3113 = vmatpush1.msra.mxu0 0.0
        %3114 = vmatprep.subr.mxu0 0.0
        %3115 = vmatpush1.msra.mxu0 0.0
        %3116 = vmatprep.subr.mxu0 0.0
        %3117 = vmatpush1.msra.mxu0 0.0
        %3118 = vmatprep.subr.mxu0 0.0
        %3119 = vmatpush1.msra.mxu0 0.0
        %3120 = vmatprep.subr.mxu0 0.0
        %3121 = vmatpush1.msra.mxu0 0.0
        %3122 = vmatprep.subr.mxu0 0.0
        %3123 = vmatpush1.msra.mxu0 0.0
        %3124 = vmatprep.subr.mxu0 0.0
        %3125 = vmatpush1.msra.mxu0 0.0
        %3126 = vmatprep.subr.mxu0 0.0
        %3127 = vmatpush1.msra.mxu0 0.0
        %3128 = vmatprep.mubr.f32.mxu0 0.0
        %3129 = vmatmul.mubr.f32.gmra.mrb[0].mxu0 %v2981
        %v3130 = vpop.f32.mrb[0].mxu0
        %v3131 = vadd.f32 0.0, %v3130
        %v3132 = vpop.f32.mrb[0].mxu0
        %3133 = vmatprep.mubr.f32.mxu0 0.0
        %3134 = vmatmul.mubr.f32.gmra.mrb[0].mxu0 %v2984
        %v3135 = vpop.f32.mrb[0].mxu0
        %v3136 = vadd.f32 0.0, %v3135
        %v3137 = vpop.f32.mrb[0].mxu0
        %3138 = vmatprep.mubr.f32.mxu0 0.0
        %3139 = vmatmul.mubr.f32.gmra.mrb[0].mxu0 %v2987
        %v3140 = vpop.f32.mrb[0].mxu0
        %v3141 = vadd.f32 0.0, %v3140
        %v3142 = vpop.f32.mrb[0].mxu0
        %3143 = vmatprep.mubr.f32.mxu0 0.0
        %3144 = vmatmul.mubr.f32.gmra.mrb[0].mxu0 %v2990
        %v3145 = vpop.f32.mrb[0].mxu0
        %v3146 = vadd.f32 0.0, %v3145
        %v3147 = vpop.f32.mrb[0].mxu0
        %3148 = vmatprep.mubr.f32.mxu0 0.0
        %3149 = vmatmul.mubr.f32.gmra.mrb[0].mxu0 %v2993
        %v3150 = vpop.f32.mrb[0].mxu0
        %v3151 = vadd.f32 0.0, %v3150
        %v3152 = vpop.f32.mrb[0].mxu0
        %3153 = vmatprep.mubr.f32.mxu0 0.0
        %3154 = vmatmul.mubr.f32.gmra.mrb[0].mxu0 %v2996
        %v3155 = vpop.f32.mrb[0].mxu0
        %v3156 = vadd.f32 0.0, %v3155
        %v3157 = vpop.f32.mrb[0].mxu0
        %3158 = vmatprep.mubr.f32.mxu0 0.0
        %3159 = vmatmul.mubr.f32.gmra.mrb[0].mxu0 %v2999
        %v3160 = vpop.f32.mrb[0].mxu0
        %v3161 = vadd.f32 0.0, %v3160
        %v3162 = vpop.f32.mrb[0].mxu0
        %3163 = vmatprep.mubr.f32.mxu0 0.0
        %3164 = vmatmul.mubr.f32.gmra.mrb[0].mxu0 %v3002
        %v3165 = vpop.f32.mrb[0].mxu0
        %v3166 = vadd.f32 0.0, %v3165
        %v3167 = vpop.f32.mrb[0].mxu0
        %3168 = vmatprep.mubr.f32.mxu0 0.0
        %3169 = vmatmul.mubr.f32.gmra.mrb[0].mxu0 %v3005
        %v3170 = vpop.f32.mrb[0].mxu0
        %v3171 = vadd.f32 0.0, %v3170
        %v3172 = vpop.f32.mrb[0].mxu0
        %3173 = vmatprep.mubr.f32.mxu0 0.0
        %3174 = vmatmul.mubr.f32.gmra.mrb[0].mxu0 %v3008
        %v3175 = vpop.f32.mrb[0].mxu0
        %v3176 = vadd.f32 0.0, %v3175
        %v3177 = vpop.f32.mrb[0].mxu0
        %3178 = vmatprep.mubr.f32.mxu0 0.0
        %3179 = vmatmul.mubr.f32.gmra.mrb[0].mxu0 %v3011
        %v3180 = vpop.f32.mrb[0].mxu0
        %v3181 = vadd.f32 0.0, %v3180
        %v3182 = vpop.f32.mrb[0].mxu0
        %3183 = vmatprep.mubr.f32.mxu0 0.0
        %3184 = vmatmul.mubr.f32.gmra.mrb[0].mxu0 %v3014
        %v3185 = vpop.f32.mrb[0].mxu0
        %v3186 = vadd.f32 0.0, %v3185
        %v3187 = vpop.f32.mrb[0].mxu0
        %3188 = vmatprep.mubr.f32.mxu0 0.0
        %3189 = vmatmul.mubr.f32.gmra.mrb[0].mxu0 %v3017
        %v3190 = vpop.f32.mrb[0].mxu0
        %v3191 = vadd.f32 0.0, %v3190
        %v3192 = vpop.f32.mrb[0].mxu0
        %3193 = vmatprep.mubr.f32.mxu0 0.0
        %3194 = vmatmul.mubr.f32.gmra.mrb[0].mxu0 %v3020
        %v3195 = vpop.f32.mrb[0].mxu0
        %v3196 = vadd.f32 0.0, %v3195
        %v3197 = vpop.f32.mrb[0].mxu0
        %3198 = vmatprep.mubr.f32.mxu0 0.0
        %3199 = vmatmul.mubr.f32.gmra.mrb[0].mxu0 %v3023
        %v3200 = vpop.f32.mrb[0].mxu0
        %v3201 = vadd.f32 0.0, %v3200
        %v3202 = vpop.f32.mrb[0].mxu0
        %3203 = vmatprep.mubr.f32.mxu0 0.0
        %3204 = vmatmul.mubr.f32.gmra.mrb[0].mxu0 %v3026
        %v3205 = vpop.f32.mrb[0].mxu0
        %v3206 = vadd.f32 0.0, %v3205
        %v3207 = vpop.f32.mrb[0].mxu0
        %3208 = vmatprep.mubr.f32.mxu0 0.0
        %3209 = vmatmul.mubr.f32.gmra.mrb[0].mxu0 %v3029
        %v3210 = vpop.f32.mrb[0].mxu0
        %v3211 = vadd.f32 0.0, %v3210
        %v3212 = vpop.f32.mrb[0].mxu0
        %3213 = vmatprep.mubr.f32.mxu0 0.0
        %3214 = vmatmul.mubr.f32.gmra.mrb[0].mxu0 %v3032
        %v3215 = vpop.f32.mrb[0].mxu0
        %v3216 = vadd.f32 0.0, %v3215
        %v3217 = vpop.f32.mrb[0].mxu0
        %3218 = vmatprep.mubr.f32.mxu0 0.0
        %3219 = vmatmul.mubr.f32.gmra.mrb[0].mxu0 %v3035
        %v3220 = vpop.f32.mrb[0].mxu0
        %v3221 = vadd.f32 0.0, %v3220
        %v3222 = vpop.f32.mrb[0].mxu0
        %3223 = vmatprep.mubr.f32.mxu0 0.0
        %3224 = vmatmul.mubr.f32.gmra.mrb[0].mxu0 %v3038
        %v3225 = vpop.f32.mrb[0].mxu0
        %v3226 = vadd.f32 0.0, %v3225
        %v3227 = vpop.f32.mrb[0].mxu0
        %3228 = vmatprep.mubr.f32.mxu0 0.0
        %3229 = vmatmul.mubr.f32.gmra.mrb[0].mxu0 %v3041
        %v3230 = vpop.f32.mrb[0].mxu0
        %v3231 = vadd.f32 0.0, %v3230
        %v3232 = vpop.f32.mrb[0].mxu0
        %3233 = vmatprep.mubr.f32.mxu0 0.0
        %3234 = vmatmul.mubr.f32.gmra.mrb[0].mxu0 %v3044
        %v3235 = vpop.f32.mrb[0].mxu0
        %v3236 = vadd.f32 0.0, %v3235
        %v3237 = vpop.f32.mrb[0].mxu0
        %3238 = vmatprep.mubr.f32.mxu0 0.0
        %3239 = vmatmul.mubr.f32.gmra.mrb[0].mxu0 %v3047
        %v3240 = vpop.f32.mrb[0].mxu0
        %v3241 = vadd.f32 0.0, %v3240
        %v3242 = vpop.f32.mrb[0].mxu0
        %3243 = vmatprep.mubr.f32.mxu0 0.0
        %3244 = vmatmul.mubr.f32.gmra.mrb[0].mxu0 %v3050
        %v3245 = vpop.f32.mrb[0].mxu0
        %v3246 = vadd.f32 0.0, %v3245
        %v3247 = vpop.f32.mrb[0].mxu0
        %3248 = vmatprep.mubr.f32.mxu0 0.0
        %3249 = vmatmul.mubr.f32.gmra.mrb[0].mxu0 %v3053
        %v3250 = vpop.f32.mrb[0].mxu0
        %v3251 = vadd.f32 0.0, %v3250
        %v3252 = vpop.f32.mrb[0].mxu0
        %3253 = vmatprep.mubr.f32.mxu0 0.0
        %3254 = vmatmul.mubr.f32.gmra.mrb[0].mxu0 %v3056
        %v3255 = vpop.f32.mrb[0].mxu0
        %v3256 = vadd.f32 0.0, %v3255
        %v3257 = vpop.f32.mrb[0].mxu0
        %3258 = vmatprep.mubr.f32.mxu0 0.0
        %3259 = vmatmul.mubr.f32.gmra.mrb[0].mxu0 %v3059
        %v3260 = vpop.f32.mrb[0].mxu0
        %v3261 = vadd.f32 0.0, %v3260
        %v3262 = vpop.f32.mrb[0].mxu0
        %3263 = vmatprep.mubr.f32.mxu0 0.0
        %3264 = vmatmul.mubr.f32.gmra.mrb[0].mxu0 %v3062
        %v3265 = vpop.f32.mrb[0].mxu0
        %v3266 = vadd.f32 0.0, %v3265
        %v3267 = vpop.f32.mrb[0].mxu0
        %3268 = vdwg.mxu0
        %v3269 = vadd.f32 %v2805, %v3131
        %v3270 = vadd.f32 %v2810, %v3136
        %v3271 = vadd.f32 %v2815, %v3141
        %v3272 = vadd.f32 %v2820, %v3146
        %v3273 = vadd.f32 %v2825, %v3151
        %v3274 = vadd.f32 %v2830, %v3156
        %v3275 = vadd.f32 %v2835, %v3161
        %v3276 = vadd.f32 %v2840, %v3166
        %v3277 = vadd.f32 %v2845, %v3171
        %v3278 = vadd.f32 %v2850, %v3176
        %v3279 = vadd.f32 %v2855, %v3181
        %v3280 = vadd.f32 %v2860, %v3186
        %v3281 = vadd.f32 %v2865, %v3191
        %v3282 = vadd.f32 %v2870, %v3196
        %v3283 = vadd.f32 %v2875, %v3201
        %v3284 = vadd.f32 %v2880, %v3206
        %v3285 = vadd.f32 %v2885, %v3211
        %v3286 = vadd.f32 %v2890, %v3216
        %v3287 = vadd.f32 %v2895, %v3221
        %v3288 = vadd.f32 %v2900, %v3226
        %v3289 = vadd.f32 %v2905, %v3231
        %v3290 = vadd.f32 %v2910, %v3236
        %v3291 = vadd.f32 %v2915, %v3241
        %v3292 = vadd.f32 %v2920, %v3246
        %v3293 = vadd.f32 %v2925, %v3251
        %v3294 = vadd.f32 %v2930, %v3256
        %v3295 = vadd.f32 %v2935, %v3261
        %v3296 = vadd.f32 %v2940, %v3266
        %v3297 = vld [vmem:[#allocation2 + $0x17] sm:$0xff]
        %v3298 = vld [vmem:[#allocation2 + $0x1f] sm:$0xff]
        %v3299 = vld [vmem:[#allocation2 + $0x27] sm:$0xff]
        %v3300 = vld [vmem:[#allocation2 + $0x2f] sm:$0xff]
        %v3301 = vld [vmem:[#allocation2 + $0x37] sm:$0xff]
        %v3302 = vld [vmem:[#allocation2 + $0x3f] sm:$0xff]
        %v3303 = vld [vmem:[#allocation2 + $0x47] sm:$0xff]
        %v3304 = vld [vmem:[#allocation2 + $0x4f] sm:$0xff]
        %v3305 = vld [vmem:[#allocation2 + $0x57] sm:$0xff]
        %v3306 = vld [vmem:[#allocation2 + $0x5f] sm:$0xff]
        %v3307 = vld [vmem:[#allocation2 + $0x67] sm:$0xff]
        %v3308 = vld [vmem:[#allocation2 + $0x6f] sm:$0xff]
        %v3309 = vld [vmem:[#allocation2 + $0x77] sm:$0xff]
        %v3310 = vld [vmem:[#allocation2 + $0x7f] sm:$0xff]
        %v3311 = vld [vmem:[#allocation2 + $0x87] sm:$0xff]
        %v3312 = vld [vmem:[#allocation2 + $0x8f] sm:$0xff]
        %v3313 = vld [vmem:[#allocation2 + $0x97] sm:$0xff]
        %v3314 = vld [vmem:[#allocation2 + $0x9f] sm:$0xff]
        %v3315 = vld [vmem:[#allocation2 + $0xa7] sm:$0xff]
        %v3316 = vld [vmem:[#allocation2 + $0xaf] sm:$0xff]
        %v3317 = vld [vmem:[#allocation2 + $0xb7] sm:$0xff]
        %v3318 = vld [vmem:[#allocation2 + $0xbf] sm:$0xff]
        %v3319 = vld [vmem:[#allocation2 + $0xc7] sm:$0xff]
        %v3320 = vld [vmem:[#allocation2 + $0xcf] sm:$0xff]
        %v3321 = vld [vmem:[#allocation2 + $0xd7] sm:$0xff]
        %v3322 = vld [vmem:[#allocation2 + $0xdf] sm:$0xff]
        %v3323 = vld [vmem:[#allocation2 + $0xe7] sm:$0xff]
        %v3324 = vld [vmem:[#allocation2 + $0xef] sm:$0xff]
        %s3325 = scalar_lea.vmem [#allocation3], 192
        %v3326 = vld [vmem:[%s3325] sm:$0xff]
        %v3327 = vld [vmem:[%s3325 + $0x8] sm:$0xff]
        %v3328 = vld [vmem:[%s3325 + $0x10] sm:$0xff]
        %v3329 = vld [vmem:[%s3325 + $0x18] sm:$0xff]
        %v3330 = vld [vmem:[%s3325 + $0x20] sm:$0xff]
        %v3331 = vld [vmem:[%s3325 + $0x28] sm:$0xff]
        %v3332 = vld [vmem:[%s3325 + $0x30] sm:$0xff]
        %v3333 = vld [vmem:[%s3325 + $0x38] sm:$0xff]
        %v3335 = vsel %vm2229, %v3297, 0
        %v3338 = vsel %vm2229, %v3298, 0
        %v3341 = vsel %vm2229, %v3299, 0
        %v3344 = vsel %vm2229, %v3300, 0
        %v3347 = vsel %vm2229, %v3301, 0
        %v3350 = vsel %vm2229, %v3302, 0
        %v3353 = vsel %vm2229, %v3303, 0
        %v3356 = vsel %vm2229, %v3304, 0
        %v3359 = vsel %vm2229, %v3305, 0
        %v3362 = vsel %vm2229, %v3306, 0
        %v3365 = vsel %vm2229, %v3307, 0
        %v3368 = vsel %vm2229, %v3308, 0
        %v3371 = vsel %vm2229, %v3309, 0
        %v3374 = vsel %vm2229, %v3310, 0
        %v3377 = vsel %vm2229, %v3311, 0
        %v3380 = vsel %vm2229, %v3312, 0
        %v3383 = vsel %vm2229, %v3313, 0
        %v3386 = vsel %vm2229, %v3314, 0
        %v3389 = vsel %vm2229, %v3315, 0
        %v3392 = vsel %vm2229, %v3316, 0
        %v3395 = vsel %vm2229, %v3317, 0
        %v3398 = vsel %vm2229, %v3318, 0
        %v3401 = vsel %vm2229, %v3319, 0
        %v3404 = vsel %vm2229, %v3320, 0
        %v3407 = vsel %vm2229, %v3321, 0
        %v3410 = vsel %vm2229, %v3322, 0
        %v3413 = vsel %vm2229, %v3323, 0
        %v3416 = vsel %vm2229, %v3324, 0
        %3418 = vmatprep.subr.mxu0 0.0
        %3419 = vmatpush1.msra.mxu0 %v3326
        %3420 = vmatprep.subr.mxu0 0.0
        %3421 = vmatpush1.msra.mxu0 %v3327
        %3422 = vmatprep.subr.mxu0 0.0
        %3423 = vmatpush1.msra.mxu0 %v3328
        %3424 = vmatprep.subr.mxu0 0.0
        %3425 = vmatpush1.msra.mxu0 %v3329
        %3426 = vmatprep.subr.mxu0 0.0
        %3427 = vmatpush1.msra.mxu0 %v3330
        %3428 = vmatprep.subr.mxu0 0.0
        %3429 = vmatpush1.msra.mxu0 %v3331
        %3430 = vmatprep.subr.mxu0 0.0
        %3431 = vmatpush1.msra.mxu0 %v3332
        %3432 = vmatprep.subr.mxu0 0.0
        %3433 = vmatpush1.msra.mxu0 %v3333
        %3434 = vmatprep.subr.mxu0 0.0
        %3435 = vmatpush1.msra.mxu0 0.0
        %3436 = vmatprep.subr.mxu0 0.0
        %3437 = vmatpush1.msra.mxu0 0.0
        %3438 = vmatprep.subr.mxu0 0.0
        %3439 = vmatpush1.msra.mxu0 0.0
        %3440 = vmatprep.subr.mxu0 0.0
        %3441 = vmatpush1.msra.mxu0 0.0
        %3442 = vmatprep.subr.mxu0 0.0
        %3443 = vmatpush1.msra.mxu0 0.0
        %3444 = vmatprep.subr.mxu0 0.0
        %3445 = vmatpush1.msra.mxu0 0.0
        %3446 = vmatprep.subr.mxu0 0.0
        %3447 = vmatpush1.msra.mxu0 0.0
        %3448 = vmatprep.subr.mxu0 0.0
        %3449 = vmatpush1.msra.mxu0 0.0
        %3450 = vmatprep.subr.mxu0 0.0
        %3451 = vmatpush1.msra.mxu0 0.0
        %3452 = vmatprep.subr.mxu0 0.0
        %3453 = vmatpush1.msra.mxu0 0.0
        %3454 = vmatprep.subr.mxu0 0.0
        %3455 = vmatpush1.msra.mxu0 0.0
        %3456 = vmatprep.subr.mxu0 0.0
        %3457 = vmatpush1.msra.mxu0 0.0
        %3458 = vmatprep.subr.mxu0 0.0
        %3459 = vmatpush1.msra.mxu0 0.0
        %3460 = vmatprep.subr.mxu0 0.0
        %3461 = vmatpush1.msra.mxu0 0.0
        %3462 = vmatprep.subr.mxu0 0.0
        %3463 = vmatpush1.msra.mxu0 0.0
        %3464 = vmatprep.subr.mxu0 0.0
        %3465 = vmatpush1.msra.mxu0 0.0
        %3466 = vmatprep.subr.mxu0 0.0
        %3467 = vmatpush1.msra.mxu0 0.0
        %3468 = vmatprep.subr.mxu0 0.0
        %3469 = vmatpush1.msra.mxu0 0.0
        %3470 = vmatprep.subr.mxu0 0.0
        %3471 = vmatpush1.msra.mxu0 0.0
        %3472 = vmatprep.subr.mxu0 0.0
        %3473 = vmatpush1.msra.mxu0 0.0
        %3474 = vmatprep.subr.mxu0 0.0
        %3475 = vmatpush1.msra.mxu0 0.0
        %3476 = vmatprep.subr.mxu0 0.0
        %3477 = vmatpush1.msra.mxu0 0.0
        %3478 = vmatprep.subr.mxu0 0.0
        %3479 = vmatpush1.msra.mxu0 0.0
        %3480 = vmatprep.subr.mxu0 0.0
        %3481 = vmatpush1.msra.mxu0 0.0
        %3482 = vmatprep.mubr.f32.mxu0 0.0
        %3483 = vmatmul.mubr.f32.gmra.mrb[0].mxu0 %v3335
        %v3484 = vpop.f32.mrb[0].mxu0
        %v3485 = vadd.f32 0.0, %v3484
        %v3486 = vpop.f32.mrb[0].mxu0
        %3487 = vmatprep.mubr.f32.mxu0 0.0
        %3488 = vmatmul.mubr.f32.gmra.mrb[0].mxu0 %v3338
        %v3489 = vpop.f32.mrb[0].mxu0
        %v3490 = vadd.f32 0.0, %v3489
        %v3491 = vpop.f32.mrb[0].mxu0
        %3492 = vmatprep.mubr.f32.mxu0 0.0
        %3493 = vmatmul.mubr.f32.gmra.mrb[0].mxu0 %v3341
        %v3494 = vpop.f32.mrb[0].mxu0
        %v3495 = vadd.f32 0.0, %v3494
        %v3496 = vpop.f32.mrb[0].mxu0
        %3497 = vmatprep.mubr.f32.mxu0 0.0
        %3498 = vmatmul.mubr.f32.gmra.mrb[0].mxu0 %v3344
        %v3499 = vpop.f32.mrb[0].mxu0
        %v3500 = vadd.f32 0.0, %v3499
        %v3501 = vpop.f32.mrb[0].mxu0
        %3502 = vmatprep.mubr.f32.mxu0 0.0
        %3503 = vmatmul.mubr.f32.gmra.mrb[0].mxu0 %v3347
        %v3504 = vpop.f32.mrb[0].mxu0
        %v3505 = vadd.f32 0.0, %v3504
        %v3506 = vpop.f32.mrb[0].mxu0
        %3507 = vmatprep.mubr.f32.mxu0 0.0
        %3508 = vmatmul.mubr.f32.gmra.mrb[0].mxu0 %v3350
        %v3509 = vpop.f32.mrb[0].mxu0
        %v3510 = vadd.f32 0.0, %v3509
        %v3511 = vpop.f32.mrb[0].mxu0
        %3512 = vmatprep.mubr.f32.mxu0 0.0
        %3513 = vmatmul.mubr.f32.gmra.mrb[0].mxu0 %v3353
        %v3514 = vpop.f32.mrb[0].mxu0
        %v3515 = vadd.f32 0.0, %v3514
        %v3516 = vpop.f32.mrb[0].mxu0
        %3517 = vmatprep.mubr.f32.mxu0 0.0
        %3518 = vmatmul.mubr.f32.gmra.mrb[0].mxu0 %v3356
        %v3519 = vpop.f32.mrb[0].mxu0
        %v3520 = vadd.f32 0.0, %v3519
        %v3521 = vpop.f32.mrb[0].mxu0
        %3522 = vmatprep.mubr.f32.mxu0 0.0
        %3523 = vmatmul.mubr.f32.gmra.mrb[0].mxu0 %v3359
        %v3524 = vpop.f32.mrb[0].mxu0
        %v3525 = vadd.f32 0.0, %v3524
        %v3526 = vpop.f32.mrb[0].mxu0
        %3527 = vmatprep.mubr.f32.mxu0 0.0
        %3528 = vmatmul.mubr.f32.gmra.mrb[0].mxu0 %v3362
        %v3529 = vpop.f32.mrb[0].mxu0
        %v3530 = vadd.f32 0.0, %v3529
        %v3531 = vpop.f32.mrb[0].mxu0
        %3532 = vmatprep.mubr.f32.mxu0 0.0
        %3533 = vmatmul.mubr.f32.gmra.mrb[0].mxu0 %v3365
        %v3534 = vpop.f32.mrb[0].mxu0
        %v3535 = vadd.f32 0.0, %v3534
        %v3536 = vpop.f32.mrb[0].mxu0
        %3537 = vmatprep.mubr.f32.mxu0 0.0
        %3538 = vmatmul.mubr.f32.gmra.mrb[0].mxu0 %v3368
        %v3539 = vpop.f32.mrb[0].mxu0
        %v3540 = vadd.f32 0.0, %v3539
        %v3541 = vpop.f32.mrb[0].mxu0
        %3542 = vmatprep.mubr.f32.mxu0 0.0
        %3543 = vmatmul.mubr.f32.gmra.mrb[0].mxu0 %v3371
        %v3544 = vpop.f32.mrb[0].mxu0
        %v3545 = vadd.f32 0.0, %v3544
        %v3546 = vpop.f32.mrb[0].mxu0
        %3547 = vmatprep.mubr.f32.mxu0 0.0
        %3548 = vmatmul.mubr.f32.gmra.mrb[0].mxu0 %v3374
        %v3549 = vpop.f32.mrb[0].mxu0
        %v3550 = vadd.f32 0.0, %v3549
        %v3551 = vpop.f32.mrb[0].mxu0
        %3552 = vmatprep.mubr.f32.mxu0 0.0
        %3553 = vmatmul.mubr.f32.gmra.mrb[0].mxu0 %v3377
        %v3554 = vpop.f32.mrb[0].mxu0
        %v3555 = vadd.f32 0.0, %v3554
        %v3556 = vpop.f32.mrb[0].mxu0
        %3557 = vmatprep.mubr.f32.mxu0 0.0
        %3558 = vmatmul.mubr.f32.gmra.mrb[0].mxu0 %v3380
        %v3559 = vpop.f32.mrb[0].mxu0
        %v3560 = vadd.f32 0.0, %v3559
        %v3561 = vpop.f32.mrb[0].mxu0
        %3562 = vmatprep.mubr.f32.mxu0 0.0
        %3563 = vmatmul.mubr.f32.gmra.mrb[0].mxu0 %v3383
        %v3564 = vpop.f32.mrb[0].mxu0
        %v3565 = vadd.f32 0.0, %v3564
        %v3566 = vpop.f32.mrb[0].mxu0
        %3567 = vmatprep.mubr.f32.mxu0 0.0
        %3568 = vmatmul.mubr.f32.gmra.mrb[0].mxu0 %v3386
        %v3569 = vpop.f32.mrb[0].mxu0
        %v3570 = vadd.f32 0.0, %v3569
        %v3571 = vpop.f32.mrb[0].mxu0
        %3572 = vmatprep.mubr.f32.mxu0 0.0
        %3573 = vmatmul.mubr.f32.gmra.mrb[0].mxu0 %v3389
        %v3574 = vpop.f32.mrb[0].mxu0
        %v3575 = vadd.f32 0.0, %v3574
        %v3576 = vpop.f32.mrb[0].mxu0
        %3577 = vmatprep.mubr.f32.mxu0 0.0
        %3578 = vmatmul.mubr.f32.gmra.mrb[0].mxu0 %v3392
        %v3579 = vpop.f32.mrb[0].mxu0
        %v3580 = vadd.f32 0.0, %v3579
        %v3581 = vpop.f32.mrb[0].mxu0
        %3582 = vmatprep.mubr.f32.mxu0 0.0
        %3583 = vmatmul.mubr.f32.gmra.mrb[0].mxu0 %v3395
        %v3584 = vpop.f32.mrb[0].mxu0
        %v3585 = vadd.f32 0.0, %v3584
        %v3586 = vpop.f32.mrb[0].mxu0
        %3587 = vmatprep.mubr.f32.mxu0 0.0
        %3588 = vmatmul.mubr.f32.gmra.mrb[0].mxu0 %v3398
        %v3589 = vpop.f32.mrb[0].mxu0
        %v3590 = vadd.f32 0.0, %v3589
        %v3591 = vpop.f32.mrb[0].mxu0
        %3592 = vmatprep.mubr.f32.mxu0 0.0
        %3593 = vmatmul.mubr.f32.gmra.mrb[0].mxu0 %v3401
        %v3594 = vpop.f32.mrb[0].mxu0
        %v3595 = vadd.f32 0.0, %v3594
        %v3596 = vpop.f32.mrb[0].mxu0
        %3597 = vmatprep.mubr.f32.mxu0 0.0
        %3598 = vmatmul.mubr.f32.gmra.mrb[0].mxu0 %v3404
        %v3599 = vpop.f32.mrb[0].mxu0
        %v3600 = vadd.f32 0.0, %v3599
        %v3601 = vpop.f32.mrb[0].mxu0
        %3602 = vmatprep.mubr.f32.mxu0 0.0
        %3603 = vmatmul.mubr.f32.gmra.mrb[0].mxu0 %v3407
        %v3604 = vpop.f32.mrb[0].mxu0
        %v3605 = vadd.f32 0.0, %v3604
        %v3606 = vpop.f32.mrb[0].mxu0
        %3607 = vmatprep.mubr.f32.mxu0 0.0
        %3608 = vmatmul.mubr.f32.gmra.mrb[0].mxu0 %v3410
        %v3609 = vpop.f32.mrb[0].mxu0
        %v3610 = vadd.f32 0.0, %v3609
        %v3611 = vpop.f32.mrb[0].mxu0
        %3612 = vmatprep.mubr.f32.mxu0 0.0
        %3613 = vmatmul.mubr.f32.gmra.mrb[0].mxu0 %v3413
        %v3614 = vpop.f32.mrb[0].mxu0
        %v3615 = vadd.f32 0.0, %v3614
        %v3616 = vpop.f32.mrb[0].mxu0
        %3617 = vmatprep.mubr.f32.mxu0 0.0
        %3618 = vmatmul.mubr.f32.gmra.mrb[0].mxu0 %v3416
        %v3619 = vpop.f32.mrb[0].mxu0
        %v3620 = vadd.f32 0.0, %v3619
        %v3621 = vpop.f32.mrb[0].mxu0
        %3622 = vdwg.mxu0
        %v3623 = vadd.f32 %v3269, %v3485
        %v3624 = vadd.f32 %v3270, %v3490
        %v3625 = vadd.f32 %v3271, %v3495
        %v3626 = vadd.f32 %v3272, %v3500
        %v3627 = vadd.f32 %v3273, %v3505
        %v3628 = vadd.f32 %v3274, %v3510
        %v3629 = vadd.f32 %v3275, %v3515
        %v3630 = vadd.f32 %v3276, %v3520
        %v3631 = vadd.f32 %v3277, %v3525
        %v3632 = vadd.f32 %v3278, %v3530
        %v3633 = vadd.f32 %v3279, %v3535
        %v3634 = vadd.f32 %v3280, %v3540
        %v3635 = vadd.f32 %v3281, %v3545
        %v3636 = vadd.f32 %v3282, %v3550
        %v3637 = vadd.f32 %v3283, %v3555
        %v3638 = vadd.f32 %v3284, %v3560
        %v3639 = vadd.f32 %v3285, %v3565
        %v3640 = vadd.f32 %v3286, %v3570
        %v3641 = vadd.f32 %v3287, %v3575
        %v3642 = vadd.f32 %v3288, %v3580
        %v3643 = vadd.f32 %v3289, %v3585
        %v3644 = vadd.f32 %v3290, %v3590
        %v3645 = vadd.f32 %v3291, %v3595
        %v3646 = vadd.f32 %v3292, %v3600
        %v3647 = vadd.f32 %v3293, %v3605
        %v3648 = vadd.f32 %v3294, %v3610
        %v3649 = vadd.f32 %v3295, %v3615
        %v3650 = vadd.f32 %v3296, %v3620
        %v3651 = vld [vmem:[#allocation2 + $0x18] sm:$0xff]
        %v3652 = vld [vmem:[#allocation2 + $0x20] sm:$0xff]
        %v3653 = vld [vmem:[#allocation2 + $0x28] sm:$0xff]
        %v3654 = vld [vmem:[#allocation2 + $0x30] sm:$0xff]
        %v3655 = vld [vmem:[#allocation2 + $0x38] sm:$0xff]
        %v3656 = vld [vmem:[#allocation2 + $0x40] sm:$0xff]
        %v3657 = vld [vmem:[#allocation2 + $0x48] sm:$0xff]
        %v3658 = vld [vmem:[#allocation2 + $0x50] sm:$0xff]
        %v3659 = vld [vmem:[#allocation2 + $0x58] sm:$0xff]
        %v3660 = vld [vmem:[#allocation2 + $0x60] sm:$0xff]
        %v3661 = vld [vmem:[#allocation2 + $0x68] sm:$0xff]
        %v3662 = vld [vmem:[#allocation2 + $0x70] sm:$0xff]
        %v3663 = vld [vmem:[#allocation2 + $0x78] sm:$0xff]
        %v3664 = vld [vmem:[#allocation2 + $0x80] sm:$0xff]
        %v3665 = vld [vmem:[#allocation2 + $0x88] sm:$0xff]
        %v3666 = vld [vmem:[#allocation2 + $0x90] sm:$0xff]
        %v3667 = vld [vmem:[#allocation2 + $0x98] sm:$0xff]
        %v3668 = vld [vmem:[#allocation2 + $0xa0] sm:$0xff]
        %v3669 = vld [vmem:[#allocation2 + $0xa8] sm:$0xff]
        %v3670 = vld [vmem:[#allocation2 + $0xb0] sm:$0xff]
        %v3671 = vld [vmem:[#allocation2 + $0xb8] sm:$0xff]
        %v3672 = vld [vmem:[#allocation2 + $0xc0] sm:$0xff]
        %v3673 = vld [vmem:[#allocation2 + $0xc8] sm:$0xff]
        %v3674 = vld [vmem:[#allocation2 + $0xd0] sm:$0xff]
        %v3675 = vld [vmem:[#allocation2 + $0xd8] sm:$0xff]
        %v3676 = vld [vmem:[#allocation2 + $0xe0] sm:$0xff]
        %v3677 = vld [vmem:[#allocation2 + $0xe8] sm:$0xff]
        %v3678 = vld [vmem:[#allocation2 + $0xf0] sm:$0xff]
        %s3679 = scalar_lea.vmem [#allocation3], 256
        %v3680 = vld [vmem:[%s3679] sm:$0xff]
        %v3681 = vld [vmem:[%s3679 + $0x8] sm:$0xff]
        %v3682 = vld [vmem:[%s3679 + $0x10] sm:$0xff]
        %v3683 = vld [vmem:[%s3679 + $0x18] sm:$0xff]
        %v3684 = vld [vmem:[%s3679 + $0x20] sm:$0xff]
        %v3685 = vld [vmem:[%s3679 + $0x28] sm:$0xff]
        %v3686 = vld [vmem:[%s3679 + $0x30] sm:$0xff]
        %v3687 = vld [vmem:[%s3679 + $0x38] sm:$0xff]
        %v3689 = vsel %vm2229, %v3651, 0
        %v3692 = vsel %vm2229, %v3652, 0
        %v3695 = vsel %vm2229, %v3653, 0
        %v3698 = vsel %vm2229, %v3654, 0
        %v3701 = vsel %vm2229, %v3655, 0
        %v3704 = vsel %vm2229, %v3656, 0
        %v3707 = vsel %vm2229, %v3657, 0
        %v3710 = vsel %vm2229, %v3658, 0
        %v3713 = vsel %vm2229, %v3659, 0
        %v3716 = vsel %vm2229, %v3660, 0
        %v3719 = vsel %vm2229, %v3661, 0
        %v3722 = vsel %vm2229, %v3662, 0
        %v3725 = vsel %vm2229, %v3663, 0
        %v3728 = vsel %vm2229, %v3664, 0
        %v3731 = vsel %vm2229, %v3665, 0
        %v3734 = vsel %vm2229, %v3666, 0
        %v3737 = vsel %vm2229, %v3667, 0
        %v3740 = vsel %vm2229, %v3668, 0
        %v3743 = vsel %vm2229, %v3669, 0
        %v3746 = vsel %vm2229, %v3670, 0
        %v3749 = vsel %vm2229, %v3671, 0
        %v3752 = vsel %vm2229, %v3672, 0
        %v3755 = vsel %vm2229, %v3673, 0
        %v3758 = vsel %vm2229, %v3674, 0
        %v3761 = vsel %vm2229, %v3675, 0
        %v3764 = vsel %vm2229, %v3676, 0
        %v3767 = vsel %vm2229, %v3677, 0
        %v3770 = vsel %vm2229, %v3678, 0
        %3772 = vmatprep.subr.mxu0 0.0
        %3773 = vmatpush1.msra.mxu0 %v3680
        %3774 = vmatprep.subr.mxu0 0.0
        %3775 = vmatpush1.msra.mxu0 %v3681
        %3776 = vmatprep.subr.mxu0 0.0
        %3777 = vmatpush1.msra.mxu0 %v3682
        %3778 = vmatprep.subr.mxu0 0.0
        %3779 = vmatpush1.msra.mxu0 %v3683
        %3780 = vmatprep.subr.mxu0 0.0
        %3781 = vmatpush1.msra.mxu0 %v3684
        %3782 = vmatprep.subr.mxu0 0.0
        %3783 = vmatpush1.msra.mxu0 %v3685
        %3784 = vmatprep.subr.mxu0 0.0
        %3785 = vmatpush1.msra.mxu0 %v3686
        %3786 = vmatprep.subr.mxu0 0.0
        %3787 = vmatpush1.msra.mxu0 %v3687
        %3788 = vmatprep.subr.mxu0 0.0
        %3789 = vmatpush1.msra.mxu0 0.0
        %3790 = vmatprep.subr.mxu0 0.0
        %3791 = vmatpush1.msra.mxu0 0.0
        %3792 = vmatprep.subr.mxu0 0.0
        %3793 = vmatpush1.msra.mxu0 0.0
        %3794 = vmatprep.subr.mxu0 0.0
        %3795 = vmatpush1.msra.mxu0 0.0
        %3796 = vmatprep.subr.mxu0 0.0
        %3797 = vmatpush1.msra.mxu0 0.0
        %3798 = vmatprep.subr.mxu0 0.0
        %3799 = vmatpush1.msra.mxu0 0.0
        %3800 = vmatprep.subr.mxu0 0.0
        %3801 = vmatpush1.msra.mxu0 0.0
        %3802 = vmatprep.subr.mxu0 0.0
        %3803 = vmatpush1.msra.mxu0 0.0
        %3804 = vmatprep.subr.mxu0 0.0
        %3805 = vmatpush1.msra.mxu0 0.0
        %3806 = vmatprep.subr.mxu0 0.0
        %3807 = vmatpush1.msra.mxu0 0.0
        %3808 = vmatprep.subr.mxu0 0.0
        %3809 = vmatpush1.msra.mxu0 0.0
        %3810 = vmatprep.subr.mxu0 0.0
        %3811 = vmatpush1.msra.mxu0 0.0
        %3812 = vmatprep.subr.mxu0 0.0
        %3813 = vmatpush1.msra.mxu0 0.0
        %3814 = vmatprep.subr.mxu0 0.0
        %3815 = vmatpush1.msra.mxu0 0.0
        %3816 = vmatprep.subr.mxu0 0.0
        %3817 = vmatpush1.msra.mxu0 0.0
        %3818 = vmatprep.subr.mxu0 0.0
        %3819 = vmatpush1.msra.mxu0 0.0
        %3820 = vmatprep.subr.mxu0 0.0
        %3821 = vmatpush1.msra.mxu0 0.0
        %3822 = vmatprep.subr.mxu0 0.0
        %3823 = vmatpush1.msra.mxu0 0.0
        %3824 = vmatprep.subr.mxu0 0.0
        %3825 = vmatpush1.msra.mxu0 0.0
        %3826 = vmatprep.subr.mxu0 0.0
        %3827 = vmatpush1.msra.mxu0 0.0
        %3828 = vmatprep.subr.mxu0 0.0
        %3829 = vmatpush1.msra.mxu0 0.0
        %3830 = vmatprep.subr.mxu0 0.0
        %3831 = vmatpush1.msra.mxu0 0.0
        %3832 = vmatprep.subr.mxu0 0.0
        %3833 = vmatpush1.msra.mxu0 0.0
        %3834 = vmatprep.subr.mxu0 0.0
        %3835 = vmatpush1.msra.mxu0 0.0
        %3836 = vmatprep.mubr.f32.mxu0 0.0
        %3837 = vmatmul.mubr.f32.gmra.mrb[0].mxu0 %v3689
        %v3838 = vpop.f32.mrb[0].mxu0
        %v3839 = vadd.f32 0.0, %v3838
        %v3840 = vpop.f32.mrb[0].mxu0
        %3841 = vmatprep.mubr.f32.mxu0 0.0
        %3842 = vmatmul.mubr.f32.gmra.mrb[0].mxu0 %v3692
        %v3843 = vpop.f32.mrb[0].mxu0
        %v3844 = vadd.f32 0.0, %v3843
        %v3845 = vpop.f32.mrb[0].mxu0
        %3846 = vmatprep.mubr.f32.mxu0 0.0
        %3847 = vmatmul.mubr.f32.gmra.mrb[0].mxu0 %v3695
        %v3848 = vpop.f32.mrb[0].mxu0
        %v3849 = vadd.f32 0.0, %v3848
        %v3850 = vpop.f32.mrb[0].mxu0
        %3851 = vmatprep.mubr.f32.mxu0 0.0
        %3852 = vmatmul.mubr.f32.gmra.mrb[0].mxu0 %v3698
        %v3853 = vpop.f32.mrb[0].mxu0
        %v3854 = vadd.f32 0.0, %v3853
        %v3855 = vpop.f32.mrb[0].mxu0
        %3856 = vmatprep.mubr.f32.mxu0 0.0
        %3857 = vmatmul.mubr.f32.gmra.mrb[0].mxu0 %v3701
        %v3858 = vpop.f32.mrb[0].mxu0
        %v3859 = vadd.f32 0.0, %v3858
        %v3860 = vpop.f32.mrb[0].mxu0
        %3861 = vmatprep.mubr.f32.mxu0 0.0
        %3862 = vmatmul.mubr.f32.gmra.mrb[0].mxu0 %v3704
        %v3863 = vpop.f32.mrb[0].mxu0
        %v3864 = vadd.f32 0.0, %v3863
        %v3865 = vpop.f32.mrb[0].mxu0
        %3866 = vmatprep.mubr.f32.mxu0 0.0
        %3867 = vmatmul.mubr.f32.gmra.mrb[0].mxu0 %v3707
        %v3868 = vpop.f32.mrb[0].mxu0
        %v3869 = vadd.f32 0.0, %v3868
        %v3870 = vpop.f32.mrb[0].mxu0
        %3871 = vmatprep.mubr.f32.mxu0 0.0
        %3872 = vmatmul.mubr.f32.gmra.mrb[0].mxu0 %v3710
        %v3873 = vpop.f32.mrb[0].mxu0
        %v3874 = vadd.f32 0.0, %v3873
        %v3875 = vpop.f32.mrb[0].mxu0
        %3876 = vmatprep.mubr.f32.mxu0 0.0
        %3877 = vmatmul.mubr.f32.gmra.mrb[0].mxu0 %v3713
        %v3878 = vpop.f32.mrb[0].mxu0
        %v3879 = vadd.f32 0.0, %v3878
        %v3880 = vpop.f32.mrb[0].mxu0
        %3881 = vmatprep.mubr.f32.mxu0 0.0
        %3882 = vmatmul.mubr.f32.gmra.mrb[0].mxu0 %v3716
        %v3883 = vpop.f32.mrb[0].mxu0
        %v3884 = vadd.f32 0.0, %v3883
        %v3885 = vpop.f32.mrb[0].mxu0
        %3886 = vmatprep.mubr.f32.mxu0 0.0
        %3887 = vmatmul.mubr.f32.gmra.mrb[0].mxu0 %v3719
        %v3888 = vpop.f32.mrb[0].mxu0
        %v3889 = vadd.f32 0.0, %v3888
        %v3890 = vpop.f32.mrb[0].mxu0
        %3891 = vmatprep.mubr.f32.mxu0 0.0
        %3892 = vmatmul.mubr.f32.gmra.mrb[0].mxu0 %v3722
        %v3893 = vpop.f32.mrb[0].mxu0
        %v3894 = vadd.f32 0.0, %v3893
        %v3895 = vpop.f32.mrb[0].mxu0
        %3896 = vmatprep.mubr.f32.mxu0 0.0
        %3897 = vmatmul.mubr.f32.gmra.mrb[0].mxu0 %v3725
        %v3898 = vpop.f32.mrb[0].mxu0
        %v3899 = vadd.f32 0.0, %v3898
        %v3900 = vpop.f32.mrb[0].mxu0
        %3901 = vmatprep.mubr.f32.mxu0 0.0
        %3902 = vmatmul.mubr.f32.gmra.mrb[0].mxu0 %v3728
        %v3903 = vpop.f32.mrb[0].mxu0
        %v3904 = vadd.f32 0.0, %v3903
        %v3905 = vpop.f32.mrb[0].mxu0
        %3906 = vmatprep.mubr.f32.mxu0 0.0
        %3907 = vmatmul.mubr.f32.gmra.mrb[0].mxu0 %v3731
        %v3908 = vpop.f32.mrb[0].mxu0
        %v3909 = vadd.f32 0.0, %v3908
        %v3910 = vpop.f32.mrb[0].mxu0
        %3911 = vmatprep.mubr.f32.mxu0 0.0
        %3912 = vmatmul.mubr.f32.gmra.mrb[0].mxu0 %v3734
        %v3913 = vpop.f32.mrb[0].mxu0
        %v3914 = vadd.f32 0.0, %v3913
        %v3915 = vpop.f32.mrb[0].mxu0
        %3916 = vmatprep.mubr.f32.mxu0 0.0
        %3917 = vmatmul.mubr.f32.gmra.mrb[0].mxu0 %v3737
        %v3918 = vpop.f32.mrb[0].mxu0
        %v3919 = vadd.f32 0.0, %v3918
        %v3920 = vpop.f32.mrb[0].mxu0
        %3921 = vmatprep.mubr.f32.mxu0 0.0
        %3922 = vmatmul.mubr.f32.gmra.mrb[0].mxu0 %v3740
        %v3923 = vpop.f32.mrb[0].mxu0
        %v3924 = vadd.f32 0.0, %v3923
        %v3925 = vpop.f32.mrb[0].mxu0
        %3926 = vmatprep.mubr.f32.mxu0 0.0
        %3927 = vmatmul.mubr.f32.gmra.mrb[0].mxu0 %v3743
        %v3928 = vpop.f32.mrb[0].mxu0
        %v3929 = vadd.f32 0.0, %v3928
        %v3930 = vpop.f32.mrb[0].mxu0
        %3931 = vmatprep.mubr.f32.mxu0 0.0
        %3932 = vmatmul.mubr.f32.gmra.mrb[0].mxu0 %v3746
        %v3933 = vpop.f32.mrb[0].mxu0
        %v3934 = vadd.f32 0.0, %v3933
        %v3935 = vpop.f32.mrb[0].mxu0
        %3936 = vmatprep.mubr.f32.mxu0 0.0
        %3937 = vmatmul.mubr.f32.gmra.mrb[0].mxu0 %v3749
        %v3938 = vpop.f32.mrb[0].mxu0
        %v3939 = vadd.f32 0.0, %v3938
        %v3940 = vpop.f32.mrb[0].mxu0
        %3941 = vmatprep.mubr.f32.mxu0 0.0
        %3942 = vmatmul.mubr.f32.gmra.mrb[0].mxu0 %v3752
        %v3943 = vpop.f32.mrb[0].mxu0
        %v3944 = vadd.f32 0.0, %v3943
        %v3945 = vpop.f32.mrb[0].mxu0
        %3946 = vmatprep.mubr.f32.mxu0 0.0
        %3947 = vmatmul.mubr.f32.gmra.mrb[0].mxu0 %v3755
        %v3948 = vpop.f32.mrb[0].mxu0
        %v3949 = vadd.f32 0.0, %v3948
        %v3950 = vpop.f32.mrb[0].mxu0
        %3951 = vmatprep.mubr.f32.mxu0 0.0
        %3952 = vmatmul.mubr.f32.gmra.mrb[0].mxu0 %v3758
        %v3953 = vpop.f32.mrb[0].mxu0
        %v3954 = vadd.f32 0.0, %v3953
        %v3955 = vpop.f32.mrb[0].mxu0
        %3956 = vmatprep.mubr.f32.mxu0 0.0
        %3957 = vmatmul.mubr.f32.gmra.mrb[0].mxu0 %v3761
        %v3958 = vpop.f32.mrb[0].mxu0
        %v3959 = vadd.f32 0.0, %v3958
        %v3960 = vpop.f32.mrb[0].mxu0
        %3961 = vmatprep.mubr.f32.mxu0 0.0
        %3962 = vmatmul.mubr.f32.gmra.mrb[0].mxu0 %v3764
        %v3963 = vpop.f32.mrb[0].mxu0
        %v3964 = vadd.f32 0.0, %v3963
        %v3965 = vpop.f32.mrb[0].mxu0
        %3966 = vmatprep.mubr.f32.mxu0 0.0
        %3967 = vmatmul.mubr.f32.gmra.mrb[0].mxu0 %v3767
        %v3968 = vpop.f32.mrb[0].mxu0
        %v3969 = vadd.f32 0.0, %v3968
        %v3970 = vpop.f32.mrb[0].mxu0
        %3971 = vmatprep.mubr.f32.mxu0 0.0
        %3972 = vmatmul.mubr.f32.gmra.mrb[0].mxu0 %v3770
        %v3973 = vpop.f32.mrb[0].mxu0
        %v3974 = vadd.f32 0.0, %v3973
        %v3975 = vpop.f32.mrb[0].mxu0
        %3976 = vdwg.mxu0
        %v3977 = vadd.f32 %v3623, %v3839
        %v3978 = vadd.f32 %v3624, %v3844
        %v3979 = vadd.f32 %v3625, %v3849
        %v3980 = vadd.f32 %v3626, %v3854
        %v3981 = vadd.f32 %v3627, %v3859
        %v3982 = vadd.f32 %v3628, %v3864
        %v3983 = vadd.f32 %v3629, %v3869
        %v3984 = vadd.f32 %v3630, %v3874
        %v3985 = vadd.f32 %v3631, %v3879
        %v3986 = vadd.f32 %v3632, %v3884
        %v3987 = vadd.f32 %v3633, %v3889
        %v3988 = vadd.f32 %v3634, %v3894
        %v3989 = vadd.f32 %v3635, %v3899
        %v3990 = vadd.f32 %v3636, %v3904
        %v3991 = vadd.f32 %v3637, %v3909
        %v3992 = vadd.f32 %v3638, %v3914
        %v3993 = vadd.f32 %v3639, %v3919
        %v3994 = vadd.f32 %v3640, %v3924
        %v3995 = vadd.f32 %v3641, %v3929
        %v3996 = vadd.f32 %v3642, %v3934
        %v3997 = vadd.f32 %v3643, %v3939
        %v3998 = vadd.f32 %v3644, %v3944
        %v3999 = vadd.f32 %v3645, %v3949
        %v4000 = vadd.f32 %v3646, %v3954
        %v4001 = vadd.f32 %v3647, %v3959
        %v4002 = vadd.f32 %v3648, %v3964
        %v4003 = vadd.f32 %v3649, %v3969
        %v4004 = vadd.f32 %v3650, %v3974
        %v4005 = vld [vmem:[#allocation2 + $0x19] sm:$0xff]
        %v4006 = vld [vmem:[#allocation2 + $0x21] sm:$0xff]
        %v4007 = vld [vmem:[#allocation2 + $0x29] sm:$0xff]
        %v4008 = vld [vmem:[#allocation2 + $0x31] sm:$0xff]
        %v4009 = vld [vmem:[#allocation2 + $0x39] sm:$0xff]
        %v4010 = vld [vmem:[#allocation2 + $0x41] sm:$0xff]
        %v4011 = vld [vmem:[#allocation2 + $0x49] sm:$0xff]
        %v4012 = vld [vmem:[#allocation2 + $0x51] sm:$0xff]
        %v4013 = vld [vmem:[#allocation2 + $0x59] sm:$0xff]
        %v4014 = vld [vmem:[#allocation2 + $0x61] sm:$0xff]
        %v4015 = vld [vmem:[#allocation2 + $0x69] sm:$0xff]
        %v4016 = vld [vmem:[#allocation2 + $0x71] sm:$0xff]
        %v4017 = vld [vmem:[#allocation2 + $0x79] sm:$0xff]
        %v4018 = vld [vmem:[#allocation2 + $0x81] sm:$0xff]
        %v4019 = vld [vmem:[#allocation2 + $0x89] sm:$0xff]
        %v4020 = vld [vmem:[#allocation2 + $0x91] sm:$0xff]
        %v4021 = vld [vmem:[#allocation2 + $0x99] sm:$0xff]
        %v4022 = vld [vmem:[#allocation2 + $0xa1] sm:$0xff]
        %v4023 = vld [vmem:[#allocation2 + $0xa9] sm:$0xff]
        %v4024 = vld [vmem:[#allocation2 + $0xb1] sm:$0xff]
        %v4025 = vld [vmem:[#allocation2 + $0xb9] sm:$0xff]
        %v4026 = vld [vmem:[#allocation2 + $0xc1] sm:$0xff]
        %v4027 = vld [vmem:[#allocation2 + $0xc9] sm:$0xff]
        %v4028 = vld [vmem:[#allocation2 + $0xd1] sm:$0xff]
        %v4029 = vld [vmem:[#allocation2 + $0xd9] sm:$0xff]
        %v4030 = vld [vmem:[#allocation2 + $0xe1] sm:$0xff]
        %v4031 = vld [vmem:[#allocation2 + $0xe9] sm:$0xff]
        %v4032 = vld [vmem:[#allocation2 + $0xf1] sm:$0xff]
        %s4033 = scalar_lea.vmem [#allocation3], 320
        %v4034 = vld [vmem:[%s4033] sm:$0xff]
        %v4035 = vld [vmem:[%s4033 + $0x8] sm:$0xff]
        %v4036 = vld [vmem:[%s4033 + $0x10] sm:$0xff]
        %v4037 = vld [vmem:[%s4033 + $0x18] sm:$0xff]
        %v4038 = vld [vmem:[%s4033 + $0x20] sm:$0xff]
        %v4039 = vld [vmem:[%s4033 + $0x28] sm:$0xff]
        %v4040 = vld [vmem:[%s4033 + $0x30] sm:$0xff]
        %v4041 = vld [vmem:[%s4033 + $0x38] sm:$0xff]
        %v4043 = vsel %vm2229, %v4005, 0
        %v4046 = vsel %vm2229, %v4006, 0
        %v4049 = vsel %vm2229, %v4007, 0
        %v4052 = vsel %vm2229, %v4008, 0
        %v4055 = vsel %vm2229, %v4009, 0
        %v4058 = vsel %vm2229, %v4010, 0
        %v4061 = vsel %vm2229, %v4011, 0
        %v4064 = vsel %vm2229, %v4012, 0
        %v4067 = vsel %vm2229, %v4013, 0
        %v4070 = vsel %vm2229, %v4014, 0
        %v4073 = vsel %vm2229, %v4015, 0
        %v4076 = vsel %vm2229, %v4016, 0
        %v4079 = vsel %vm2229, %v4017, 0
        %v4082 = vsel %vm2229, %v4018, 0
        %v4085 = vsel %vm2229, %v4019, 0
        %v4088 = vsel %vm2229, %v4020, 0
        %v4091 = vsel %vm2229, %v4021, 0
        %v4094 = vsel %vm2229, %v4022, 0
        %v4097 = vsel %vm2229, %v4023, 0
        %v4100 = vsel %vm2229, %v4024, 0
        %v4103 = vsel %vm2229, %v4025, 0
        %v4106 = vsel %vm2229, %v4026, 0
        %v4109 = vsel %vm2229, %v4027, 0
        %v4112 = vsel %vm2229, %v4028, 0
        %v4115 = vsel %vm2229, %v4029, 0
        %v4118 = vsel %vm2229, %v4030, 0
        %v4121 = vsel %vm2229, %v4031, 0
        %v4124 = vsel %vm2229, %v4032, 0
        %4126 = vmatprep.subr.mxu0 0.0
        %4127 = vmatpush1.msra.mxu0 %v4034
        %4128 = vmatprep.subr.mxu0 0.0
        %4129 = vmatpush1.msra.mxu0 %v4035
        %4130 = vmatprep.subr.mxu0 0.0
        %4131 = vmatpush1.msra.mxu0 %v4036
        %4132 = vmatprep.subr.mxu0 0.0
        %4133 = vmatpush1.msra.mxu0 %v4037
        %4134 = vmatprep.subr.mxu0 0.0
        %4135 = vmatpush1.msra.mxu0 %v4038
        %4136 = vmatprep.subr.mxu0 0.0
        %4137 = vmatpush1.msra.mxu0 %v4039
        %4138 = vmatprep.subr.mxu0 0.0
        %4139 = vmatpush1.msra.mxu0 %v4040
        %4140 = vmatprep.subr.mxu0 0.0
        %4141 = vmatpush1.msra.mxu0 %v4041
        %4142 = vmatprep.subr.mxu0 0.0
        %4143 = vmatpush1.msra.mxu0 0.0
        %4144 = vmatprep.subr.mxu0 0.0
        %4145 = vmatpush1.msra.mxu0 0.0
        %4146 = vmatprep.subr.mxu0 0.0
        %4147 = vmatpush1.msra.mxu0 0.0
        %4148 = vmatprep.subr.mxu0 0.0
        %4149 = vmatpush1.msra.mxu0 0.0
        %4150 = vmatprep.subr.mxu0 0.0
        %4151 = vmatpush1.msra.mxu0 0.0
        %4152 = vmatprep.subr.mxu0 0.0
        %4153 = vmatpush1.msra.mxu0 0.0
        %4154 = vmatprep.subr.mxu0 0.0
        %4155 = vmatpush1.msra.mxu0 0.0
        %4156 = vmatprep.subr.mxu0 0.0
        %4157 = vmatpush1.msra.mxu0 0.0
        %4158 = vmatprep.subr.mxu0 0.0
        %4159 = vmatpush1.msra.mxu0 0.0
        %4160 = vmatprep.subr.mxu0 0.0
        %4161 = vmatpush1.msra.mxu0 0.0
        %4162 = vmatprep.subr.mxu0 0.0
        %4163 = vmatpush1.msra.mxu0 0.0
        %4164 = vmatprep.subr.mxu0 0.0
        %4165 = vmatpush1.msra.mxu0 0.0
        %4166 = vmatprep.subr.mxu0 0.0
        %4167 = vmatpush1.msra.mxu0 0.0
        %4168 = vmatprep.subr.mxu0 0.0
        %4169 = vmatpush1.msra.mxu0 0.0
        %4170 = vmatprep.subr.mxu0 0.0
        %4171 = vmatpush1.msra.mxu0 0.0
        %4172 = vmatprep.subr.mxu0 0.0
        %4173 = vmatpush1.msra.mxu0 0.0
        %4174 = vmatprep.subr.mxu0 0.0
        %4175 = vmatpush1.msra.mxu0 0.0
        %4176 = vmatprep.subr.mxu0 0.0
        %4177 = vmatpush1.msra.mxu0 0.0
        %4178 = vmatprep.subr.mxu0 0.0
        %4179 = vmatpush1.msra.mxu0 0.0
        %4180 = vmatprep.subr.mxu0 0.0
        %4181 = vmatpush1.msra.mxu0 0.0
        %4182 = vmatprep.subr.mxu0 0.0
        %4183 = vmatpush1.msra.mxu0 0.0
        %4184 = vmatprep.subr.mxu0 0.0
        %4185 = vmatpush1.msra.mxu0 0.0
        %4186 = vmatprep.subr.mxu0 0.0
        %4187 = vmatpush1.msra.mxu0 0.0
        %4188 = vmatprep.subr.mxu0 0.0
        %4189 = vmatpush1.msra.mxu0 0.0
        %4190 = vmatprep.mubr.f32.mxu0 0.0
        %4191 = vmatmul.mubr.f32.gmra.mrb[0].mxu0 %v4043
        %v4192 = vpop.f32.mrb[0].mxu0
        %v4193 = vadd.f32 0.0, %v4192
        %v4194 = vpop.f32.mrb[0].mxu0
        %4195 = vmatprep.mubr.f32.mxu0 0.0
        %4196 = vmatmul.mubr.f32.gmra.mrb[0].mxu0 %v4046
        %v4197 = vpop.f32.mrb[0].mxu0
        %v4198 = vadd.f32 0.0, %v4197
        %v4199 = vpop.f32.mrb[0].mxu0
        %4200 = vmatprep.mubr.f32.mxu0 0.0
        %4201 = vmatmul.mubr.f32.gmra.mrb[0].mxu0 %v4049
        %v4202 = vpop.f32.mrb[0].mxu0
        %v4203 = vadd.f32 0.0, %v4202
        %v4204 = vpop.f32.mrb[0].mxu0
        %4205 = vmatprep.mubr.f32.mxu0 0.0
        %4206 = vmatmul.mubr.f32.gmra.mrb[0].mxu0 %v4052
        %v4207 = vpop.f32.mrb[0].mxu0
        %v4208 = vadd.f32 0.0, %v4207
        %v4209 = vpop.f32.mrb[0].mxu0
        %4210 = vmatprep.mubr.f32.mxu0 0.0
        %4211 = vmatmul.mubr.f32.gmra.mrb[0].mxu0 %v4055
        %v4212 = vpop.f32.mrb[0].mxu0
        %v4213 = vadd.f32 0.0, %v4212
        %v4214 = vpop.f32.mrb[0].mxu0
        %4215 = vmatprep.mubr.f32.mxu0 0.0
        %4216 = vmatmul.mubr.f32.gmra.mrb[0].mxu0 %v4058
        %v4217 = vpop.f32.mrb[0].mxu0
        %v4218 = vadd.f32 0.0, %v4217
        %v4219 = vpop.f32.mrb[0].mxu0
        %4220 = vmatprep.mubr.f32.mxu0 0.0
        %4221 = vmatmul.mubr.f32.gmra.mrb[0].mxu0 %v4061
        %v4222 = vpop.f32.mrb[0].mxu0
        %v4223 = vadd.f32 0.0, %v4222
        %v4224 = vpop.f32.mrb[0].mxu0
        %4225 = vmatprep.mubr.f32.mxu0 0.0
        %4226 = vmatmul.mubr.f32.gmra.mrb[0].mxu0 %v4064
        %v4227 = vpop.f32.mrb[0].mxu0
        %v4228 = vadd.f32 0.0, %v4227
        %v4229 = vpop.f32.mrb[0].mxu0
        %4230 = vmatprep.mubr.f32.mxu0 0.0
        %4231 = vmatmul.mubr.f32.gmra.mrb[0].mxu0 %v4067
        %v4232 = vpop.f32.mrb[0].mxu0
        %v4233 = vadd.f32 0.0, %v4232
        %v4234 = vpop.f32.mrb[0].mxu0
        %4235 = vmatprep.mubr.f32.mxu0 0.0
        %4236 = vmatmul.mubr.f32.gmra.mrb[0].mxu0 %v4070
        %v4237 = vpop.f32.mrb[0].mxu0
        %v4238 = vadd.f32 0.0, %v4237
        %v4239 = vpop.f32.mrb[0].mxu0
        %4240 = vmatprep.mubr.f32.mxu0 0.0
        %4241 = vmatmul.mubr.f32.gmra.mrb[0].mxu0 %v4073
        %v4242 = vpop.f32.mrb[0].mxu0
        %v4243 = vadd.f32 0.0, %v4242
        %v4244 = vpop.f32.mrb[0].mxu0
        %4245 = vmatprep.mubr.f32.mxu0 0.0
        %4246 = vmatmul.mubr.f32.gmra.mrb[0].mxu0 %v4076
        %v4247 = vpop.f32.mrb[0].mxu0
        %v4248 = vadd.f32 0.0, %v4247
        %v4249 = vpop.f32.mrb[0].mxu0
        %4250 = vmatprep.mubr.f32.mxu0 0.0
        %4251 = vmatmul.mubr.f32.gmra.mrb[0].mxu0 %v4079
        %v4252 = vpop.f32.mrb[0].mxu0
        %v4253 = vadd.f32 0.0, %v4252
        %v4254 = vpop.f32.mrb[0].mxu0
        %4255 = vmatprep.mubr.f32.mxu0 0.0
        %4256 = vmatmul.mubr.f32.gmra.mrb[0].mxu0 %v4082
        %v4257 = vpop.f32.mrb[0].mxu0
        %v4258 = vadd.f32 0.0, %v4257
        %v4259 = vpop.f32.mrb[0].mxu0
        %4260 = vmatprep.mubr.f32.mxu0 0.0
        %4261 = vmatmul.mubr.f32.gmra.mrb[0].mxu0 %v4085
        %v4262 = vpop.f32.mrb[0].mxu0
        %v4263 = vadd.f32 0.0, %v4262
        %v4264 = vpop.f32.mrb[0].mxu0
        %4265 = vmatprep.mubr.f32.mxu0 0.0
        %4266 = vmatmul.mubr.f32.gmra.mrb[0].mxu0 %v4088
        %v4267 = vpop.f32.mrb[0].mxu0
        %v4268 = vadd.f32 0.0, %v4267
        %v4269 = vpop.f32.mrb[0].mxu0
        %4270 = vmatprep.mubr.f32.mxu0 0.0
        %4271 = vmatmul.mubr.f32.gmra.mrb[0].mxu0 %v4091
        %v4272 = vpop.f32.mrb[0].mxu0
        %v4273 = vadd.f32 0.0, %v4272
        %v4274 = vpop.f32.mrb[0].mxu0
        %4275 = vmatprep.mubr.f32.mxu0 0.0
        %4276 = vmatmul.mubr.f32.gmra.mrb[0].mxu0 %v4094
        %v4277 = vpop.f32.mrb[0].mxu0
        %v4278 = vadd.f32 0.0, %v4277
        %v4279 = vpop.f32.mrb[0].mxu0
        %4280 = vmatprep.mubr.f32.mxu0 0.0
        %4281 = vmatmul.mubr.f32.gmra.mrb[0].mxu0 %v4097
        %v4282 = vpop.f32.mrb[0].mxu0
        %v4283 = vadd.f32 0.0, %v4282
        %v4284 = vpop.f32.mrb[0].mxu0
        %4285 = vmatprep.mubr.f32.mxu0 0.0
        %4286 = vmatmul.mubr.f32.gmra.mrb[0].mxu0 %v4100
        %v4287 = vpop.f32.mrb[0].mxu0
        %v4288 = vadd.f32 0.0, %v4287
        %v4289 = vpop.f32.mrb[0].mxu0
        %4290 = vmatprep.mubr.f32.mxu0 0.0
        %4291 = vmatmul.mubr.f32.gmra.mrb[0].mxu0 %v4103
        %v4292 = vpop.f32.mrb[0].mxu0
        %v4293 = vadd.f32 0.0, %v4292
        %v4294 = vpop.f32.mrb[0].mxu0
        %4295 = vmatprep.mubr.f32.mxu0 0.0
        %4296 = vmatmul.mubr.f32.gmra.mrb[0].mxu0 %v4106
        %v4297 = vpop.f32.mrb[0].mxu0
        %v4298 = vadd.f32 0.0, %v4297
        %v4299 = vpop.f32.mrb[0].mxu0
        %4300 = vmatprep.mubr.f32.mxu0 0.0
        %4301 = vmatmul.mubr.f32.gmra.mrb[0].mxu0 %v4109
        %v4302 = vpop.f32.mrb[0].mxu0
        %v4303 = vadd.f32 0.0, %v4302
        %v4304 = vpop.f32.mrb[0].mxu0
        %4305 = vmatprep.mubr.f32.mxu0 0.0
        %4306 = vmatmul.mubr.f32.gmra.mrb[0].mxu0 %v4112
        %v4307 = vpop.f32.mrb[0].mxu0
        %v4308 = vadd.f32 0.0, %v4307
        %v4309 = vpop.f32.mrb[0].mxu0
        %4310 = vmatprep.mubr.f32.mxu0 0.0
        %4311 = vmatmul.mubr.f32.gmra.mrb[0].mxu0 %v4115
        %v4312 = vpop.f32.mrb[0].mxu0
        %v4313 = vadd.f32 0.0, %v4312
        %v4314 = vpop.f32.mrb[0].mxu0
        %4315 = vmatprep.mubr.f32.mxu0 0.0
        %4316 = vmatmul.mubr.f32.gmra.mrb[0].mxu0 %v4118
        %v4317 = vpop.f32.mrb[0].mxu0
        %v4318 = vadd.f32 0.0, %v4317
        %v4319 = vpop.f32.mrb[0].mxu0
        %4320 = vmatprep.mubr.f32.mxu0 0.0
        %4321 = vmatmul.mubr.f32.gmra.mrb[0].mxu0 %v4121
        %v4322 = vpop.f32.mrb[0].mxu0
        %v4323 = vadd.f32 0.0, %v4322
        %v4324 = vpop.f32.mrb[0].mxu0
        %4325 = vmatprep.mubr.f32.mxu0 0.0
        %4326 = vmatmul.mubr.f32.gmra.mrb[0].mxu0 %v4124
        %v4327 = vpop.f32.mrb[0].mxu0
        %v4328 = vadd.f32 0.0, %v4327
        %v4329 = vpop.f32.mrb[0].mxu0
        %4330 = vdwg.mxu0
        %v4331 = vadd.f32 %v3977, %v4193
        %v4332 = vadd.f32 %v3978, %v4198
        %v4333 = vadd.f32 %v3979, %v4203
        %v4334 = vadd.f32 %v3980, %v4208
        %v4335 = vadd.f32 %v3981, %v4213
        %v4336 = vadd.f32 %v3982, %v4218
        %v4337 = vadd.f32 %v3983, %v4223
        %v4338 = vadd.f32 %v3984, %v4228
        %v4339 = vadd.f32 %v3985, %v4233
        %v4340 = vadd.f32 %v3986, %v4238
        %v4341 = vadd.f32 %v3987, %v4243
        %v4342 = vadd.f32 %v3988, %v4248
        %v4343 = vadd.f32 %v3989, %v4253
        %v4344 = vadd.f32 %v3990, %v4258
        %v4345 = vadd.f32 %v3991, %v4263
        %v4346 = vadd.f32 %v3992, %v4268
        %v4347 = vadd.f32 %v3993, %v4273
        %v4348 = vadd.f32 %v3994, %v4278
        %v4349 = vadd.f32 %v3995, %v4283
        %v4350 = vadd.f32 %v3996, %v4288
        %v4351 = vadd.f32 %v3997, %v4293
        %v4352 = vadd.f32 %v3998, %v4298
        %v4353 = vadd.f32 %v3999, %v4303
        %v4354 = vadd.f32 %v4000, %v4308
        %v4355 = vadd.f32 %v4001, %v4313
        %v4356 = vadd.f32 %v4002, %v4318
        %v4357 = vadd.f32 %v4003, %v4323
        %v4358 = vadd.f32 %v4004, %v4328
        %v4359 = vld [vmem:[#allocation2 + $0x27] sm:$0xff]
        %v4360 = vld [vmem:[#allocation2 + $0x2f] sm:$0xff]
        %v4361 = vld [vmem:[#allocation2 + $0x37] sm:$0xff]
        %v4362 = vld [vmem:[#allocation2 + $0x3f] sm:$0xff]
        %v4363 = vld [vmem:[#allocation2 + $0x47] sm:$0xff]
        %v4364 = vld [vmem:[#allocation2 + $0x4f] sm:$0xff]
        %v4365 = vld [vmem:[#allocation2 + $0x57] sm:$0xff]
        %v4366 = vld [vmem:[#allocation2 + $0x5f] sm:$0xff]
        %v4367 = vld [vmem:[#allocation2 + $0x67] sm:$0xff]
        %v4368 = vld [vmem:[#allocation2 + $0x6f] sm:$0xff]
        %v4369 = vld [vmem:[#allocation2 + $0x77] sm:$0xff]
        %v4370 = vld [vmem:[#allocation2 + $0x7f] sm:$0xff]
        %v4371 = vld [vmem:[#allocation2 + $0x87] sm:$0xff]
        %v4372 = vld [vmem:[#allocation2 + $0x8f] sm:$0xff]
        %v4373 = vld [vmem:[#allocation2 + $0x97] sm:$0xff]
        %v4374 = vld [vmem:[#allocation2 + $0x9f] sm:$0xff]
        %v4375 = vld [vmem:[#allocation2 + $0xa7] sm:$0xff]
        %v4376 = vld [vmem:[#allocation2 + $0xaf] sm:$0xff]
        %v4377 = vld [vmem:[#allocation2 + $0xb7] sm:$0xff]
        %v4378 = vld [vmem:[#allocation2 + $0xbf] sm:$0xff]
        %v4379 = vld [vmem:[#allocation2 + $0xc7] sm:$0xff]
        %v4380 = vld [vmem:[#allocation2 + $0xcf] sm:$0xff]
        %v4381 = vld [vmem:[#allocation2 + $0xd7] sm:$0xff]
        %v4382 = vld [vmem:[#allocation2 + $0xdf] sm:$0xff]
        %v4383 = vld [vmem:[#allocation2 + $0xe7] sm:$0xff]
        %v4384 = vld [vmem:[#allocation2 + $0xef] sm:$0xff]
        %v4385 = vld [vmem:[#allocation2 + $0xf7] sm:$0xff]
        %v4386 = vld [vmem:[#allocation2 + $0xff] sm:$0xff]
        %s4387 = scalar_lea.vmem [#allocation3], 384
        %v4388 = vld [vmem:[%s4387] sm:$0xff]
        %v4389 = vld [vmem:[%s4387 + $0x8] sm:$0xff]
        %v4390 = vld [vmem:[%s4387 + $0x10] sm:$0xff]
        %v4391 = vld [vmem:[%s4387 + $0x18] sm:$0xff]
        %v4392 = vld [vmem:[%s4387 + $0x20] sm:$0xff]
        %v4393 = vld [vmem:[%s4387 + $0x28] sm:$0xff]
        %v4394 = vld [vmem:[%s4387 + $0x30] sm:$0xff]
        %v4395 = vld [vmem:[%s4387 + $0x38] sm:$0xff]
        %v4397 = vsel %vm2229, %v4359, 0
        %v4400 = vsel %vm2229, %v4360, 0
        %v4403 = vsel %vm2229, %v4361, 0
        %v4406 = vsel %vm2229, %v4362, 0
        %v4409 = vsel %vm2229, %v4363, 0
        %v4412 = vsel %vm2229, %v4364, 0
        %v4415 = vsel %vm2229, %v4365, 0
        %v4418 = vsel %vm2229, %v4366, 0
        %v4421 = vsel %vm2229, %v4367, 0
        %v4424 = vsel %vm2229, %v4368, 0
        %v4427 = vsel %vm2229, %v4369, 0
        %v4430 = vsel %vm2229, %v4370, 0
        %v4433 = vsel %vm2229, %v4371, 0
        %v4436 = vsel %vm2229, %v4372, 0
        %v4439 = vsel %vm2229, %v4373, 0
        %v4442 = vsel %vm2229, %v4374, 0
        %v4445 = vsel %vm2229, %v4375, 0
        %v4448 = vsel %vm2229, %v4376, 0
        %v4451 = vsel %vm2229, %v4377, 0
        %v4454 = vsel %vm2229, %v4378, 0
        %v4457 = vsel %vm2229, %v4379, 0
        %v4460 = vsel %vm2229, %v4380, 0
        %v4463 = vsel %vm2229, %v4381, 0
        %v4466 = vsel %vm2229, %v4382, 0
        %v4469 = vsel %vm2229, %v4383, 0
        %v4472 = vsel %vm2229, %v4384, 0
        %v4475 = vsel %vm2229, %v4385, 0
        %v4478 = vsel %vm2229, %v4386, 0
        %4480 = vmatprep.subr.mxu0 0.0
        %4481 = vmatpush1.msra.mxu0 %v4388
        %4482 = vmatprep.subr.mxu0 0.0
        %4483 = vmatpush1.msra.mxu0 %v4389
        %4484 = vmatprep.subr.mxu0 0.0
        %4485 = vmatpush1.msra.mxu0 %v4390
        %4486 = vmatprep.subr.mxu0 0.0
        %4487 = vmatpush1.msra.mxu0 %v4391
        %4488 = vmatprep.subr.mxu0 0.0
        %4489 = vmatpush1.msra.mxu0 %v4392
        %4490 = vmatprep.subr.mxu0 0.0
        %4491 = vmatpush1.msra.mxu0 %v4393
        %4492 = vmatprep.subr.mxu0 0.0
        %4493 = vmatpush1.msra.mxu0 %v4394
        %4494 = vmatprep.subr.mxu0 0.0
        %4495 = vmatpush1.msra.mxu0 %v4395
        %4496 = vmatprep.subr.mxu0 0.0
        %4497 = vmatpush1.msra.mxu0 0.0
        %4498 = vmatprep.subr.mxu0 0.0
        %4499 = vmatpush1.msra.mxu0 0.0
        %4500 = vmatprep.subr.mxu0 0.0
        %4501 = vmatpush1.msra.mxu0 0.0
        %4502 = vmatprep.subr.mxu0 0.0
        %4503 = vmatpush1.msra.mxu0 0.0
        %4504 = vmatprep.subr.mxu0 0.0
        %4505 = vmatpush1.msra.mxu0 0.0
        %4506 = vmatprep.subr.mxu0 0.0
        %4507 = vmatpush1.msra.mxu0 0.0
        %4508 = vmatprep.subr.mxu0 0.0
        %4509 = vmatpush1.msra.mxu0 0.0
        %4510 = vmatprep.subr.mxu0 0.0
        %4511 = vmatpush1.msra.mxu0 0.0
        %4512 = vmatprep.subr.mxu0 0.0
        %4513 = vmatpush1.msra.mxu0 0.0
        %4514 = vmatprep.subr.mxu0 0.0
        %4515 = vmatpush1.msra.mxu0 0.0
        %4516 = vmatprep.subr.mxu0 0.0
        %4517 = vmatpush1.msra.mxu0 0.0
        %4518 = vmatprep.subr.mxu0 0.0
        %4519 = vmatpush1.msra.mxu0 0.0
        %4520 = vmatprep.subr.mxu0 0.0
        %4521 = vmatpush1.msra.mxu0 0.0
        %4522 = vmatprep.subr.mxu0 0.0
        %4523 = vmatpush1.msra.mxu0 0.0
        %4524 = vmatprep.subr.mxu0 0.0
        %4525 = vmatpush1.msra.mxu0 0.0
        %4526 = vmatprep.subr.mxu0 0.0
        %4527 = vmatpush1.msra.mxu0 0.0
        %4528 = vmatprep.subr.mxu0 0.0
        %4529 = vmatpush1.msra.mxu0 0.0
        %4530 = vmatprep.subr.mxu0 0.0
        %4531 = vmatpush1.msra.mxu0 0.0
        %4532 = vmatprep.subr.mxu0 0.0
        %4533 = vmatpush1.msra.mxu0 0.0
        %4534 = vmatprep.subr.mxu0 0.0
        %4535 = vmatpush1.msra.mxu0 0.0
        %4536 = vmatprep.subr.mxu0 0.0
        %4537 = vmatpush1.msra.mxu0 0.0
        %4538 = vmatprep.subr.mxu0 0.0
        %4539 = vmatpush1.msra.mxu0 0.0
        %4540 = vmatprep.subr.mxu0 0.0
        %4541 = vmatpush1.msra.mxu0 0.0
        %4542 = vmatprep.subr.mxu0 0.0
        %4543 = vmatpush1.msra.mxu0 0.0
        %4544 = vmatprep.mubr.f32.mxu0 0.0
        %4545 = vmatmul.mubr.f32.gmra.mrb[0].mxu0 %v4397
        %v4546 = vpop.f32.mrb[0].mxu0
        %v4547 = vadd.f32 0.0, %v4546
        %v4548 = vpop.f32.mrb[0].mxu0
        %4549 = vmatprep.mubr.f32.mxu0 0.0
        %4550 = vmatmul.mubr.f32.gmra.mrb[0].mxu0 %v4400
        %v4551 = vpop.f32.mrb[0].mxu0
        %v4552 = vadd.f32 0.0, %v4551
        %v4553 = vpop.f32.mrb[0].mxu0
        %4554 = vmatprep.mubr.f32.mxu0 0.0
        %4555 = vmatmul.mubr.f32.gmra.mrb[0].mxu0 %v4403
        %v4556 = vpop.f32.mrb[0].mxu0
        %v4557 = vadd.f32 0.0, %v4556
        %v4558 = vpop.f32.mrb[0].mxu0
        %4559 = vmatprep.mubr.f32.mxu0 0.0
        %4560 = vmatmul.mubr.f32.gmra.mrb[0].mxu0 %v4406
        %v4561 = vpop.f32.mrb[0].mxu0
        %v4562 = vadd.f32 0.0, %v4561
        %v4563 = vpop.f32.mrb[0].mxu0
        %4564 = vmatprep.mubr.f32.mxu0 0.0
        %4565 = vmatmul.mubr.f32.gmra.mrb[0].mxu0 %v4409
        %v4566 = vpop.f32.mrb[0].mxu0
        %v4567 = vadd.f32 0.0, %v4566
        %v4568 = vpop.f32.mrb[0].mxu0
        %4569 = vmatprep.mubr.f32.mxu0 0.0
        %4570 = vmatmul.mubr.f32.gmra.mrb[0].mxu0 %v4412
        %v4571 = vpop.f32.mrb[0].mxu0
        %v4572 = vadd.f32 0.0, %v4571
        %v4573 = vpop.f32.mrb[0].mxu0
        %4574 = vmatprep.mubr.f32.mxu0 0.0
        %4575 = vmatmul.mubr.f32.gmra.mrb[0].mxu0 %v4415
        %v4576 = vpop.f32.mrb[0].mxu0
        %v4577 = vadd.f32 0.0, %v4576
        %v4578 = vpop.f32.mrb[0].mxu0
        %4579 = vmatprep.mubr.f32.mxu0 0.0
        %4580 = vmatmul.mubr.f32.gmra.mrb[0].mxu0 %v4418
        %v4581 = vpop.f32.mrb[0].mxu0
        %v4582 = vadd.f32 0.0, %v4581
        %v4583 = vpop.f32.mrb[0].mxu0
        %4584 = vmatprep.mubr.f32.mxu0 0.0
        %4585 = vmatmul.mubr.f32.gmra.mrb[0].mxu0 %v4421
        %v4586 = vpop.f32.mrb[0].mxu0
        %v4587 = vadd.f32 0.0, %v4586
        %v4588 = vpop.f32.mrb[0].mxu0
        %4589 = vmatprep.mubr.f32.mxu0 0.0
        %4590 = vmatmul.mubr.f32.gmra.mrb[0].mxu0 %v4424
        %v4591 = vpop.f32.mrb[0].mxu0
        %v4592 = vadd.f32 0.0, %v4591
        %v4593 = vpop.f32.mrb[0].mxu0
        %4594 = vmatprep.mubr.f32.mxu0 0.0
        %4595 = vmatmul.mubr.f32.gmra.mrb[0].mxu0 %v4427
        %v4596 = vpop.f32.mrb[0].mxu0
        %v4597 = vadd.f32 0.0, %v4596
        %v4598 = vpop.f32.mrb[0].mxu0
        %4599 = vmatprep.mubr.f32.mxu0 0.0
        %4600 = vmatmul.mubr.f32.gmra.mrb[0].mxu0 %v4430
        %v4601 = vpop.f32.mrb[0].mxu0
        %v4602 = vadd.f32 0.0, %v4601
        %v4603 = vpop.f32.mrb[0].mxu0
        %4604 = vmatprep.mubr.f32.mxu0 0.0
        %4605 = vmatmul.mubr.f32.gmra.mrb[0].mxu0 %v4433
        %v4606 = vpop.f32.mrb[0].mxu0
        %v4607 = vadd.f32 0.0, %v4606
        %v4608 = vpop.f32.mrb[0].mxu0
        %4609 = vmatprep.mubr.f32.mxu0 0.0
        %4610 = vmatmul.mubr.f32.gmra.mrb[0].mxu0 %v4436
        %v4611 = vpop.f32.mrb[0].mxu0
        %v4612 = vadd.f32 0.0, %v4611
        %v4613 = vpop.f32.mrb[0].mxu0
        %4614 = vmatprep.mubr.f32.mxu0 0.0
        %4615 = vmatmul.mubr.f32.gmra.mrb[0].mxu0 %v4439
        %v4616 = vpop.f32.mrb[0].mxu0
        %v4617 = vadd.f32 0.0, %v4616
        %v4618 = vpop.f32.mrb[0].mxu0
        %4619 = vmatprep.mubr.f32.mxu0 0.0
        %4620 = vmatmul.mubr.f32.gmra.mrb[0].mxu0 %v4442
        %v4621 = vpop.f32.mrb[0].mxu0
        %v4622 = vadd.f32 0.0, %v4621
        %v4623 = vpop.f32.mrb[0].mxu0
        %4624 = vmatprep.mubr.f32.mxu0 0.0
        %4625 = vmatmul.mubr.f32.gmra.mrb[0].mxu0 %v4445
        %v4626 = vpop.f32.mrb[0].mxu0
        %v4627 = vadd.f32 0.0, %v4626
        %v4628 = vpop.f32.mrb[0].mxu0
        %4629 = vmatprep.mubr.f32.mxu0 0.0
        %4630 = vmatmul.mubr.f32.gmra.mrb[0].mxu0 %v4448
        %v4631 = vpop.f32.mrb[0].mxu0
        %v4632 = vadd.f32 0.0, %v4631
        %v4633 = vpop.f32.mrb[0].mxu0
        %4634 = vmatprep.mubr.f32.mxu0 0.0
        %4635 = vmatmul.mubr.f32.gmra.mrb[0].mxu0 %v4451
        %v4636 = vpop.f32.mrb[0].mxu0
        %v4637 = vadd.f32 0.0, %v4636
        %v4638 = vpop.f32.mrb[0].mxu0
        %4639 = vmatprep.mubr.f32.mxu0 0.0
        %4640 = vmatmul.mubr.f32.gmra.mrb[0].mxu0 %v4454
        %v4641 = vpop.f32.mrb[0].mxu0
        %v4642 = vadd.f32 0.0, %v4641
        %v4643 = vpop.f32.mrb[0].mxu0
        %4644 = vmatprep.mubr.f32.mxu0 0.0
        %4645 = vmatmul.mubr.f32.gmra.mrb[0].mxu0 %v4457
        %v4646 = vpop.f32.mrb[0].mxu0
        %v4647 = vadd.f32 0.0, %v4646
        %v4648 = vpop.f32.mrb[0].mxu0
        %4649 = vmatprep.mubr.f32.mxu0 0.0
        %4650 = vmatmul.mubr.f32.gmra.mrb[0].mxu0 %v4460
        %v4651 = vpop.f32.mrb[0].mxu0
        %v4652 = vadd.f32 0.0, %v4651
        %v4653 = vpop.f32.mrb[0].mxu0
        %4654 = vmatprep.mubr.f32.mxu0 0.0
        %4655 = vmatmul.mubr.f32.gmra.mrb[0].mxu0 %v4463
        %v4656 = vpop.f32.mrb[0].mxu0
        %v4657 = vadd.f32 0.0, %v4656
        %v4658 = vpop.f32.mrb[0].mxu0
        %4659 = vmatprep.mubr.f32.mxu0 0.0
        %4660 = vmatmul.mubr.f32.gmra.mrb[0].mxu0 %v4466
        %v4661 = vpop.f32.mrb[0].mxu0
        %v4662 = vadd.f32 0.0, %v4661
        %v4663 = vpop.f32.mrb[0].mxu0
        %4664 = vmatprep.mubr.f32.mxu0 0.0
        %4665 = vmatmul.mubr.f32.gmra.mrb[0].mxu0 %v4469
        %v4666 = vpop.f32.mrb[0].mxu0
        %v4667 = vadd.f32 0.0, %v4666
        %v4668 = vpop.f32.mrb[0].mxu0
        %4669 = vmatprep.mubr.f32.mxu0 0.0
        %4670 = vmatmul.mubr.f32.gmra.mrb[0].mxu0 %v4472
        %v4671 = vpop.f32.mrb[0].mxu0
        %v4672 = vadd.f32 0.0, %v4671
        %v4673 = vpop.f32.mrb[0].mxu0
        %4674 = vmatprep.mubr.f32.mxu0 0.0
        %4675 = vmatmul.mubr.f32.gmra.mrb[0].mxu0 %v4475
        %v4676 = vpop.f32.mrb[0].mxu0
        %v4677 = vadd.f32 0.0, %v4676
        %v4678 = vpop.f32.mrb[0].mxu0
        %4679 = vmatprep.mubr.f32.mxu0 0.0
        %4680 = vmatmul.mubr.f32.gmra.mrb[0].mxu0 %v4478
        %v4681 = vpop.f32.mrb[0].mxu0
        %v4682 = vadd.f32 0.0, %v4681
        %v4683 = vpop.f32.mrb[0].mxu0
        %4684 = vdwg.mxu0
        %v4685 = vadd.f32 %v4331, %v4547
        %v4686 = vadd.f32 %v4332, %v4552
        %v4687 = vadd.f32 %v4333, %v4557
        %v4688 = vadd.f32 %v4334, %v4562
        %v4689 = vadd.f32 %v4335, %v4567
        %v4690 = vadd.f32 %v4336, %v4572
        %v4691 = vadd.f32 %v4337, %v4577
        %v4692 = vadd.f32 %v4338, %v4582
        %v4693 = vadd.f32 %v4339, %v4587
        %v4694 = vadd.f32 %v4340, %v4592
        %v4695 = vadd.f32 %v4341, %v4597
        %v4696 = vadd.f32 %v4342, %v4602
        %v4697 = vadd.f32 %v4343, %v4607
        %v4698 = vadd.f32 %v4344, %v4612
        %v4699 = vadd.f32 %v4345, %v4617
        %v4700 = vadd.f32 %v4346, %v4622
        %v4701 = vadd.f32 %v4347, %v4627
        %v4702 = vadd.f32 %v4348, %v4632
        %v4703 = vadd.f32 %v4349, %v4637
        %v4704 = vadd.f32 %v4350, %v4642
        %v4705 = vadd.f32 %v4351, %v4647
        %v4706 = vadd.f32 %v4352, %v4652
        %v4707 = vadd.f32 %v4353, %v4657
        %v4708 = vadd.f32 %v4354, %v4662
        %v4709 = vadd.f32 %v4355, %v4667
        %v4710 = vadd.f32 %v4356, %v4672
        %v4711 = vadd.f32 %v4357, %v4677
        %v4712 = vadd.f32 %v4358, %v4682
        %v4713 = vld [vmem:[#allocation2 + $0x28] sm:$0xff]
        %v4714 = vld [vmem:[#allocation2 + $0x30] sm:$0xff]
        %v4715 = vld [vmem:[#allocation2 + $0x38] sm:$0xff]
        %v4716 = vld [vmem:[#allocation2 + $0x40] sm:$0xff]
        %v4717 = vld [vmem:[#allocation2 + $0x48] sm:$0xff]
        %v4718 = vld [vmem:[#allocation2 + $0x50] sm:$0xff]
        %v4719 = vld [vmem:[#allocation2 + $0x58] sm:$0xff]
        %v4720 = vld [vmem:[#allocation2 + $0x60] sm:$0xff]
        %v4721 = vld [vmem:[#allocation2 + $0x68] sm:$0xff]
        %v4722 = vld [vmem:[#allocation2 + $0x70] sm:$0xff]
        %v4723 = vld [vmem:[#allocation2 + $0x78] sm:$0xff]
        %v4724 = vld [vmem:[#allocation2 + $0x80] sm:$0xff]
        %v4725 = vld [vmem:[#allocation2 + $0x88] sm:$0xff]
        %v4726 = vld [vmem:[#allocation2 + $0x90] sm:$0xff]
        %v4727 = vld [vmem:[#allocation2 + $0x98] sm:$0xff]
        %v4728 = vld [vmem:[#allocation2 + $0xa0] sm:$0xff]
        %v4729 = vld [vmem:[#allocation2 + $0xa8] sm:$0xff]
        %v4730 = vld [vmem:[#allocation2 + $0xb0] sm:$0xff]
        %v4731 = vld [vmem:[#allocation2 + $0xb8] sm:$0xff]
        %v4732 = vld [vmem:[#allocation2 + $0xc0] sm:$0xff]
        %v4733 = vld [vmem:[#allocation2 + $0xc8] sm:$0xff]
        %v4734 = vld [vmem:[#allocation2 + $0xd0] sm:$0xff]
        %v4735 = vld [vmem:[#allocation2 + $0xd8] sm:$0xff]
        %v4736 = vld [vmem:[#allocation2 + $0xe0] sm:$0xff]
        %v4737 = vld [vmem:[#allocation2 + $0xe8] sm:$0xff]
        %v4738 = vld [vmem:[#allocation2 + $0xf0] sm:$0xff]
        %v4739 = vld [vmem:[#allocation2 + $0xf8] sm:$0xff]
        %v4740 = vld [vmem:[#allocation2 + $0x100] sm:$0xff]
        %s4741 = scalar_lea.vmem [#allocation3], 448
        %v4742 = vld [vmem:[%s4741] sm:$0xff]
        %v4743 = vld [vmem:[%s4741 + $0x8] sm:$0xff]
        %v4744 = vld [vmem:[%s4741 + $0x10] sm:$0xff]
        %v4745 = vld [vmem:[%s4741 + $0x18] sm:$0xff]
        %v4746 = vld [vmem:[%s4741 + $0x20] sm:$0xff]
        %v4747 = vld [vmem:[%s4741 + $0x28] sm:$0xff]
        %v4748 = vld [vmem:[%s4741 + $0x30] sm:$0xff]
        %v4749 = vld [vmem:[%s4741 + $0x38] sm:$0xff]
        %v4751 = vsel %vm2229, %v4713, 0
        %v4754 = vsel %vm2229, %v4714, 0
        %v4757 = vsel %vm2229, %v4715, 0
        %v4760 = vsel %vm2229, %v4716, 0
        %v4763 = vsel %vm2229, %v4717, 0
        %v4766 = vsel %vm2229, %v4718, 0
        %v4769 = vsel %vm2229, %v4719, 0
        %v4772 = vsel %vm2229, %v4720, 0
        %v4775 = vsel %vm2229, %v4721, 0
        %v4778 = vsel %vm2229, %v4722, 0
        %v4781 = vsel %vm2229, %v4723, 0
        %v4784 = vsel %vm2229, %v4724, 0
        %v4787 = vsel %vm2229, %v4725, 0
        %v4790 = vsel %vm2229, %v4726, 0
        %v4793 = vsel %vm2229, %v4727, 0
        %v4796 = vsel %vm2229, %v4728, 0
        %v4799 = vsel %vm2229, %v4729, 0
        %v4802 = vsel %vm2229, %v4730, 0
        %v4805 = vsel %vm2229, %v4731, 0
        %v4808 = vsel %vm2229, %v4732, 0
        %v4811 = vsel %vm2229, %v4733, 0
        %v4814 = vsel %vm2229, %v4734, 0
        %v4817 = vsel %vm2229, %v4735, 0
        %v4820 = vsel %vm2229, %v4736, 0
        %v4823 = vsel %vm2229, %v4737, 0
        %v4826 = vsel %vm2229, %v4738, 0
        %v4829 = vsel %vm2229, %v4739, 0
        %v4832 = vsel %vm2229, %v4740, 0
        %4834 = vmatprep.subr.mxu0 0.0
        %4835 = vmatpush1.msra.mxu0 %v4742
        %4836 = vmatprep.subr.mxu0 0.0
        %4837 = vmatpush1.msra.mxu0 %v4743
        %4838 = vmatprep.subr.mxu0 0.0
        %4839 = vmatpush1.msra.mxu0 %v4744
        %4840 = vmatprep.subr.mxu0 0.0
        %4841 = vmatpush1.msra.mxu0 %v4745
        %4842 = vmatprep.subr.mxu0 0.0
        %4843 = vmatpush1.msra.mxu0 %v4746
        %4844 = vmatprep.subr.mxu0 0.0
        %4845 = vmatpush1.msra.mxu0 %v4747
        %4846 = vmatprep.subr.mxu0 0.0
        %4847 = vmatpush1.msra.mxu0 %v4748
        %4848 = vmatprep.subr.mxu0 0.0
        %4849 = vmatpush1.msra.mxu0 %v4749
        %4850 = vmatprep.subr.mxu0 0.0
        %4851 = vmatpush1.msra.mxu0 0.0
        %4852 = vmatprep.subr.mxu0 0.0
        %4853 = vmatpush1.msra.mxu0 0.0
        %4854 = vmatprep.subr.mxu0 0.0
        %4855 = vmatpush1.msra.mxu0 0.0
        %4856 = vmatprep.subr.mxu0 0.0
        %4857 = vmatpush1.msra.mxu0 0.0
        %4858 = vmatprep.subr.mxu0 0.0
        %4859 = vmatpush1.msra.mxu0 0.0
        %4860 = vmatprep.subr.mxu0 0.0
        %4861 = vmatpush1.msra.mxu0 0.0
        %4862 = vmatprep.subr.mxu0 0.0
        %4863 = vmatpush1.msra.mxu0 0.0
        %4864 = vmatprep.subr.mxu0 0.0
        %4865 = vmatpush1.msra.mxu0 0.0
        %4866 = vmatprep.subr.mxu0 0.0
        %4867 = vmatpush1.msra.mxu0 0.0
        %4868 = vmatprep.subr.mxu0 0.0
        %4869 = vmatpush1.msra.mxu0 0.0
        %4870 = vmatprep.subr.mxu0 0.0
        %4871 = vmatpush1.msra.mxu0 0.0
        %4872 = vmatprep.subr.mxu0 0.0
        %4873 = vmatpush1.msra.mxu0 0.0
        %4874 = vmatprep.subr.mxu0 0.0
        %4875 = vmatpush1.msra.mxu0 0.0
        %4876 = vmatprep.subr.mxu0 0.0
        %4877 = vmatpush1.msra.mxu0 0.0
        %4878 = vmatprep.subr.mxu0 0.0
        %4879 = vmatpush1.msra.mxu0 0.0
        %4880 = vmatprep.subr.mxu0 0.0
        %4881 = vmatpush1.msra.mxu0 0.0
        %4882 = vmatprep.subr.mxu0 0.0
        %4883 = vmatpush1.msra.mxu0 0.0
        %4884 = vmatprep.subr.mxu0 0.0
        %4885 = vmatpush1.msra.mxu0 0.0
        %4886 = vmatprep.subr.mxu0 0.0
        %4887 = vmatpush1.msra.mxu0 0.0
        %4888 = vmatprep.subr.mxu0 0.0
        %4889 = vmatpush1.msra.mxu0 0.0
        %4890 = vmatprep.subr.mxu0 0.0
        %4891 = vmatpush1.msra.mxu0 0.0
        %4892 = vmatprep.subr.mxu0 0.0
        %4893 = vmatpush1.msra.mxu0 0.0
        %4894 = vmatprep.subr.mxu0 0.0
        %4895 = vmatpush1.msra.mxu0 0.0
        %4896 = vmatprep.subr.mxu0 0.0
        %4897 = vmatpush1.msra.mxu0 0.0
        %4898 = vmatprep.mubr.f32.mxu0 0.0
        %4899 = vmatmul.mubr.f32.gmra.mrb[0].mxu0 %v4751
        %v4900 = vpop.f32.mrb[0].mxu0
        %v4901 = vadd.f32 0.0, %v4900
        %v4902 = vpop.f32.mrb[0].mxu0
        %4903 = vmatprep.mubr.f32.mxu0 0.0
        %4904 = vmatmul.mubr.f32.gmra.mrb[0].mxu0 %v4754
        %v4905 = vpop.f32.mrb[0].mxu0
        %v4906 = vadd.f32 0.0, %v4905
        %v4907 = vpop.f32.mrb[0].mxu0
        %4908 = vmatprep.mubr.f32.mxu0 0.0
        %4909 = vmatmul.mubr.f32.gmra.mrb[0].mxu0 %v4757
        %v4910 = vpop.f32.mrb[0].mxu0
        %v4911 = vadd.f32 0.0, %v4910
        %v4912 = vpop.f32.mrb[0].mxu0
        %4913 = vmatprep.mubr.f32.mxu0 0.0
        %4914 = vmatmul.mubr.f32.gmra.mrb[0].mxu0 %v4760
        %v4915 = vpop.f32.mrb[0].mxu0
        %v4916 = vadd.f32 0.0, %v4915
        %v4917 = vpop.f32.mrb[0].mxu0
        %4918 = vmatprep.mubr.f32.mxu0 0.0
        %4919 = vmatmul.mubr.f32.gmra.mrb[0].mxu0 %v4763
        %v4920 = vpop.f32.mrb[0].mxu0
        %v4921 = vadd.f32 0.0, %v4920
        %v4922 = vpop.f32.mrb[0].mxu0
        %4923 = vmatprep.mubr.f32.mxu0 0.0
        %4924 = vmatmul.mubr.f32.gmra.mrb[0].mxu0 %v4766
        %v4925 = vpop.f32.mrb[0].mxu0
        %v4926 = vadd.f32 0.0, %v4925
        %v4927 = vpop.f32.mrb[0].mxu0
        %4928 = vmatprep.mubr.f32.mxu0 0.0
        %4929 = vmatmul.mubr.f32.gmra.mrb[0].mxu0 %v4769
        %v4930 = vpop.f32.mrb[0].mxu0
        %v4931 = vadd.f32 0.0, %v4930
        %v4932 = vpop.f32.mrb[0].mxu0
        %4933 = vmatprep.mubr.f32.mxu0 0.0
        %4934 = vmatmul.mubr.f32.gmra.mrb[0].mxu0 %v4772
        %v4935 = vpop.f32.mrb[0].mxu0
        %v4936 = vadd.f32 0.0, %v4935
        %v4937 = vpop.f32.mrb[0].mxu0
        %4938 = vmatprep.mubr.f32.mxu0 0.0
        %4939 = vmatmul.mubr.f32.gmra.mrb[0].mxu0 %v4775
        %v4940 = vpop.f32.mrb[0].mxu0
        %v4941 = vadd.f32 0.0, %v4940
        %v4942 = vpop.f32.mrb[0].mxu0
        %4943 = vmatprep.mubr.f32.mxu0 0.0
        %4944 = vmatmul.mubr.f32.gmra.mrb[0].mxu0 %v4778
        %v4945 = vpop.f32.mrb[0].mxu0
        %v4946 = vadd.f32 0.0, %v4945
        %v4947 = vpop.f32.mrb[0].mxu0
        %4948 = vmatprep.mubr.f32.mxu0 0.0
        %4949 = vmatmul.mubr.f32.gmra.mrb[0].mxu0 %v4781
        %v4950 = vpop.f32.mrb[0].mxu0
        %v4951 = vadd.f32 0.0, %v4950
        %v4952 = vpop.f32.mrb[0].mxu0
        %4953 = vmatprep.mubr.f32.mxu0 0.0
        %4954 = vmatmul.mubr.f32.gmra.mrb[0].mxu0 %v4784
        %v4955 = vpop.f32.mrb[0].mxu0
        %v4956 = vadd.f32 0.0, %v4955
        %v4957 = vpop.f32.mrb[0].mxu0
        %4958 = vmatprep.mubr.f32.mxu0 0.0
        %4959 = vmatmul.mubr.f32.gmra.mrb[0].mxu0 %v4787
        %v4960 = vpop.f32.mrb[0].mxu0
        %v4961 = vadd.f32 0.0, %v4960
        %v4962 = vpop.f32.mrb[0].mxu0
        %4963 = vmatprep.mubr.f32.mxu0 0.0
        %4964 = vmatmul.mubr.f32.gmra.mrb[0].mxu0 %v4790
        %v4965 = vpop.f32.mrb[0].mxu0
        %v4966 = vadd.f32 0.0, %v4965
        %v4967 = vpop.f32.mrb[0].mxu0
        %4968 = vmatprep.mubr.f32.mxu0 0.0
        %4969 = vmatmul.mubr.f32.gmra.mrb[0].mxu0 %v4793
        %v4970 = vpop.f32.mrb[0].mxu0
        %v4971 = vadd.f32 0.0, %v4970
        %v4972 = vpop.f32.mrb[0].mxu0
        %4973 = vmatprep.mubr.f32.mxu0 0.0
        %4974 = vmatmul.mubr.f32.gmra.mrb[0].mxu0 %v4796
        %v4975 = vpop.f32.mrb[0].mxu0
        %v4976 = vadd.f32 0.0, %v4975
        %v4977 = vpop.f32.mrb[0].mxu0
        %4978 = vmatprep.mubr.f32.mxu0 0.0
        %4979 = vmatmul.mubr.f32.gmra.mrb[0].mxu0 %v4799
        %v4980 = vpop.f32.mrb[0].mxu0
        %v4981 = vadd.f32 0.0, %v4980
        %v4982 = vpop.f32.mrb[0].mxu0
        %4983 = vmatprep.mubr.f32.mxu0 0.0
        %4984 = vmatmul.mubr.f32.gmra.mrb[0].mxu0 %v4802
        %v4985 = vpop.f32.mrb[0].mxu0
        %v4986 = vadd.f32 0.0, %v4985
        %v4987 = vpop.f32.mrb[0].mxu0
        %4988 = vmatprep.mubr.f32.mxu0 0.0
        %4989 = vmatmul.mubr.f32.gmra.mrb[0].mxu0 %v4805
        %v4990 = vpop.f32.mrb[0].mxu0
        %v4991 = vadd.f32 0.0, %v4990
        %v4992 = vpop.f32.mrb[0].mxu0
        %4993 = vmatprep.mubr.f32.mxu0 0.0
        %4994 = vmatmul.mubr.f32.gmra.mrb[0].mxu0 %v4808
        %v4995 = vpop.f32.mrb[0].mxu0
        %v4996 = vadd.f32 0.0, %v4995
        %v4997 = vpop.f32.mrb[0].mxu0
        %4998 = vmatprep.mubr.f32.mxu0 0.0
        %4999 = vmatmul.mubr.f32.gmra.mrb[0].mxu0 %v4811
        %v5000 = vpop.f32.mrb[0].mxu0
        %v5001 = vadd.f32 0.0, %v5000
        %v5002 = vpop.f32.mrb[0].mxu0
        %5003 = vmatprep.mubr.f32.mxu0 0.0
        %5004 = vmatmul.mubr.f32.gmra.mrb[0].mxu0 %v4814
        %v5005 = vpop.f32.mrb[0].mxu0
        %v5006 = vadd.f32 0.0, %v5005
        %v5007 = vpop.f32.mrb[0].mxu0
        %5008 = vmatprep.mubr.f32.mxu0 0.0
        %5009 = vmatmul.mubr.f32.gmra.mrb[0].mxu0 %v4817
        %v5010 = vpop.f32.mrb[0].mxu0
        %v5011 = vadd.f32 0.0, %v5010
        %v5012 = vpop.f32.mrb[0].mxu0
        %5013 = vmatprep.mubr.f32.mxu0 0.0
        %5014 = vmatmul.mubr.f32.gmra.mrb[0].mxu0 %v4820
        %v5015 = vpop.f32.mrb[0].mxu0
        %v5016 = vadd.f32 0.0, %v5015
        %v5017 = vpop.f32.mrb[0].mxu0
        %5018 = vmatprep.mubr.f32.mxu0 0.0
        %5019 = vmatmul.mubr.f32.gmra.mrb[0].mxu0 %v4823
        %v5020 = vpop.f32.mrb[0].mxu0
        %v5021 = vadd.f32 0.0, %v5020
        %v5022 = vpop.f32.mrb[0].mxu0
        %5023 = vmatprep.mubr.f32.mxu0 0.0
        %5024 = vmatmul.mubr.f32.gmra.mrb[0].mxu0 %v4826
        %v5025 = vpop.f32.mrb[0].mxu0
        %v5026 = vadd.f32 0.0, %v5025
        %v5027 = vpop.f32.mrb[0].mxu0
        %5028 = vmatprep.mubr.f32.mxu0 0.0
        %5029 = vmatmul.mubr.f32.gmra.mrb[0].mxu0 %v4829
        %v5030 = vpop.f32.mrb[0].mxu0
        %v5031 = vadd.f32 0.0, %v5030
        %v5032 = vpop.f32.mrb[0].mxu0
        %5033 = vmatprep.mubr.f32.mxu0 0.0
        %5034 = vmatmul.mubr.f32.gmra.mrb[0].mxu0 %v4832
        %v5035 = vpop.f32.mrb[0].mxu0
        %v5036 = vadd.f32 0.0, %v5035
        %v5037 = vpop.f32.mrb[0].mxu0
        %5038 = vdwg.mxu0
        %v5039 = vadd.f32 %v4685, %v4901
        %v5040 = vadd.f32 %v4686, %v4906
        %v5041 = vadd.f32 %v4687, %v4911
        %v5042 = vadd.f32 %v4688, %v4916
        %v5043 = vadd.f32 %v4689, %v4921
        %v5044 = vadd.f32 %v4690, %v4926
        %v5045 = vadd.f32 %v4691, %v4931
        %v5046 = vadd.f32 %v4692, %v4936
        %v5047 = vadd.f32 %v4693, %v4941
        %v5048 = vadd.f32 %v4694, %v4946
        %v5049 = vadd.f32 %v4695, %v4951
        %v5050 = vadd.f32 %v4696, %v4956
        %v5051 = vadd.f32 %v4697, %v4961
        %v5052 = vadd.f32 %v4698, %v4966
        %v5053 = vadd.f32 %v4699, %v4971
        %v5054 = vadd.f32 %v4700, %v4976
        %v5055 = vadd.f32 %v4701, %v4981
        %v5056 = vadd.f32 %v4702, %v4986
        %v5057 = vadd.f32 %v4703, %v4991
        %v5058 = vadd.f32 %v4704, %v4996
        %v5059 = vadd.f32 %v4705, %v5001
        %v5060 = vadd.f32 %v4706, %v5006
        %v5061 = vadd.f32 %v4707, %v5011
        %v5062 = vadd.f32 %v4708, %v5016
        %v5063 = vadd.f32 %v4709, %v5021
        %v5064 = vadd.f32 %v4710, %v5026
        %v5065 = vadd.f32 %v4711, %v5031
        %v5066 = vadd.f32 %v4712, %v5036
        %v5067 = vld [vmem:[#allocation2 + $0x29] sm:$0xff]
        %v5068 = vld [vmem:[#allocation2 + $0x31] sm:$0xff]
        %v5069 = vld [vmem:[#allocation2 + $0x39] sm:$0xff]
        %v5070 = vld [vmem:[#allocation2 + $0x41] sm:$0xff]
        %v5071 = vld [vmem:[#allocation2 + $0x49] sm:$0xff]
        %v5072 = vld [vmem:[#allocation2 + $0x51] sm:$0xff]
        %v5073 = vld [vmem:[#allocation2 + $0x59] sm:$0xff]
        %v5074 = vld [vmem:[#allocation2 + $0x61] sm:$0xff]
        %v5075 = vld [vmem:[#allocation2 + $0x69] sm:$0xff]
        %v5076 = vld [vmem:[#allocation2 + $0x71] sm:$0xff]
        %v5077 = vld [vmem:[#allocation2 + $0x79] sm:$0xff]
        %v5078 = vld [vmem:[#allocation2 + $0x81] sm:$0xff]
        %v5079 = vld [vmem:[#allocation2 + $0x89] sm:$0xff]
        %v5080 = vld [vmem:[#allocation2 + $0x91] sm:$0xff]
        %v5081 = vld [vmem:[#allocation2 + $0x99] sm:$0xff]
        %v5082 = vld [vmem:[#allocation2 + $0xa1] sm:$0xff]
        %v5083 = vld [vmem:[#allocation2 + $0xa9] sm:$0xff]
        %v5084 = vld [vmem:[#allocation2 + $0xb1] sm:$0xff]
        %v5085 = vld [vmem:[#allocation2 + $0xb9] sm:$0xff]
        %v5086 = vld [vmem:[#allocation2 + $0xc1] sm:$0xff]
        %v5087 = vld [vmem:[#allocation2 + $0xc9] sm:$0xff]
        %v5088 = vld [vmem:[#allocation2 + $0xd1] sm:$0xff]
        %v5089 = vld [vmem:[#allocation2 + $0xd9] sm:$0xff]
        %v5090 = vld [vmem:[#allocation2 + $0xe1] sm:$0xff]
        %v5091 = vld [vmem:[#allocation2 + $0xe9] sm:$0xff]
        %v5092 = vld [vmem:[#allocation2 + $0xf1] sm:$0xff]
        %v5093 = vld [vmem:[#allocation2 + $0xf9] sm:$0xff]
        %v5094 = vld [vmem:[#allocation2 + $0x101] sm:$0xff]
        %s5095 = scalar_lea.vmem [#allocation3], 512
        %v5096 = vld [vmem:[%s5095] sm:$0xff]
        %v5097 = vld [vmem:[%s5095 + $0x8] sm:$0xff]
        %v5098 = vld [vmem:[%s5095 + $0x10] sm:$0xff]
        %v5099 = vld [vmem:[%s5095 + $0x18] sm:$0xff]
        %v5100 = vld [vmem:[%s5095 + $0x20] sm:$0xff]
        %v5101 = vld [vmem:[%s5095 + $0x28] sm:$0xff]
        %v5102 = vld [vmem:[%s5095 + $0x30] sm:$0xff]
        %v5103 = vld [vmem:[%s5095 + $0x38] sm:$0xff]
        %v5105 = vsel %vm2229, %v5067, 0
        %v5108 = vsel %vm2229, %v5068, 0
        %v5111 = vsel %vm2229, %v5069, 0
        %v5114 = vsel %vm2229, %v5070, 0
        %v5117 = vsel %vm2229, %v5071, 0
        %v5120 = vsel %vm2229, %v5072, 0
        %v5123 = vsel %vm2229, %v5073, 0
        %v5126 = vsel %vm2229, %v5074, 0
        %v5129 = vsel %vm2229, %v5075, 0
        %v5132 = vsel %vm2229, %v5076, 0
        %v5135 = vsel %vm2229, %v5077, 0
        %v5138 = vsel %vm2229, %v5078, 0
        %v5141 = vsel %vm2229, %v5079, 0
        %v5144 = vsel %vm2229, %v5080, 0
        %v5147 = vsel %vm2229, %v5081, 0
        %v5150 = vsel %vm2229, %v5082, 0
        %v5153 = vsel %vm2229, %v5083, 0
        %v5156 = vsel %vm2229, %v5084, 0
        %v5159 = vsel %vm2229, %v5085, 0
        %v5162 = vsel %vm2229, %v5086, 0
        %v5165 = vsel %vm2229, %v5087, 0
        %v5168 = vsel %vm2229, %v5088, 0
        %v5171 = vsel %vm2229, %v5089, 0
        %v5174 = vsel %vm2229, %v5090, 0
        %v5177 = vsel %vm2229, %v5091, 0
        %v5180 = vsel %vm2229, %v5092, 0
        %v5183 = vsel %vm2229, %v5093, 0
        %v5186 = vsel %vm2229, %v5094, 0
        %5188 = vmatprep.subr.mxu0 0.0
        %5189 = vmatpush1.msra.mxu0 %v5096
        %5190 = vmatprep.subr.mxu0 0.0
        %5191 = vmatpush1.msra.mxu0 %v5097
        %5192 = vmatprep.subr.mxu0 0.0
        %5193 = vmatpush1.msra.mxu0 %v5098
        %5194 = vmatprep.subr.mxu0 0.0
        %5195 = vmatpush1.msra.mxu0 %v5099
        %5196 = vmatprep.subr.mxu0 0.0
        %5197 = vmatpush1.msra.mxu0 %v5100
        %5198 = vmatprep.subr.mxu0 0.0
        %5199 = vmatpush1.msra.mxu0 %v5101
        %5200 = vmatprep.subr.mxu0 0.0
        %5201 = vmatpush1.msra.mxu0 %v5102
        %5202 = vmatprep.subr.mxu0 0.0
        %5203 = vmatpush1.msra.mxu0 %v5103
        %5204 = vmatprep.subr.mxu0 0.0
        %5205 = vmatpush1.msra.mxu0 0.0
        %5206 = vmatprep.subr.mxu0 0.0
        %5207 = vmatpush1.msra.mxu0 0.0
        %5208 = vmatprep.subr.mxu0 0.0
        %5209 = vmatpush1.msra.mxu0 0.0
        %5210 = vmatprep.subr.mxu0 0.0
        %5211 = vmatpush1.msra.mxu0 0.0
        %5212 = vmatprep.subr.mxu0 0.0
        %5213 = vmatpush1.msra.mxu0 0.0
        %5214 = vmatprep.subr.mxu0 0.0
        %5215 = vmatpush1.msra.mxu0 0.0
        %5216 = vmatprep.subr.mxu0 0.0
        %5217 = vmatpush1.msra.mxu0 0.0
        %5218 = vmatprep.subr.mxu0 0.0
        %5219 = vmatpush1.msra.mxu0 0.0
        %5220 = vmatprep.subr.mxu0 0.0
        %5221 = vmatpush1.msra.mxu0 0.0
        %5222 = vmatprep.subr.mxu0 0.0
        %5223 = vmatpush1.msra.mxu0 0.0
        %5224 = vmatprep.subr.mxu0 0.0
        %5225 = vmatpush1.msra.mxu0 0.0
        %5226 = vmatprep.subr.mxu0 0.0
        %5227 = vmatpush1.msra.mxu0 0.0
        %5228 = vmatprep.subr.mxu0 0.0
        %5229 = vmatpush1.msra.mxu0 0.0
        %5230 = vmatprep.subr.mxu0 0.0
        %5231 = vmatpush1.msra.mxu0 0.0
        %5232 = vmatprep.subr.mxu0 0.0
        %5233 = vmatpush1.msra.mxu0 0.0
        %5234 = vmatprep.subr.mxu0 0.0
        %5235 = vmatpush1.msra.mxu0 0.0
        %5236 = vmatprep.subr.mxu0 0.0
        %5237 = vmatpush1.msra.mxu0 0.0
        %5238 = vmatprep.subr.mxu0 0.0
        %5239 = vmatpush1.msra.mxu0 0.0
        %5240 = vmatprep.subr.mxu0 0.0
        %5241 = vmatpush1.msra.mxu0 0.0
        %5242 = vmatprep.subr.mxu0 0.0
        %5243 = vmatpush1.msra.mxu0 0.0
        %5244 = vmatprep.subr.mxu0 0.0
        %5245 = vmatpush1.msra.mxu0 0.0
        %5246 = vmatprep.subr.mxu0 0.0
        %5247 = vmatpush1.msra.mxu0 0.0
        %5248 = vmatprep.subr.mxu0 0.0
        %5249 = vmatpush1.msra.mxu0 0.0
        %5250 = vmatprep.subr.mxu0 0.0
        %5251 = vmatpush1.msra.mxu0 0.0
        %5252 = vmatprep.mubr.f32.mxu0 0.0
        %5253 = vmatmul.mubr.f32.gmra.mrb[0].mxu0 %v5105
        %v5254 = vpop.f32.mrb[0].mxu0
        %v5255 = vadd.f32 0.0, %v5254
        %v5256 = vpop.f32.mrb[0].mxu0
        %5257 = vmatprep.mubr.f32.mxu0 0.0
        %5258 = vmatmul.mubr.f32.gmra.mrb[0].mxu0 %v5108
        %v5259 = vpop.f32.mrb[0].mxu0
        %v5260 = vadd.f32 0.0, %v5259
        %v5261 = vpop.f32.mrb[0].mxu0
        %5262 = vmatprep.mubr.f32.mxu0 0.0
        %5263 = vmatmul.mubr.f32.gmra.mrb[0].mxu0 %v5111
        %v5264 = vpop.f32.mrb[0].mxu0
        %v5265 = vadd.f32 0.0, %v5264
        %v5266 = vpop.f32.mrb[0].mxu0
        %5267 = vmatprep.mubr.f32.mxu0 0.0
        %5268 = vmatmul.mubr.f32.gmra.mrb[0].mxu0 %v5114
        %v5269 = vpop.f32.mrb[0].mxu0
        %v5270 = vadd.f32 0.0, %v5269
        %v5271 = vpop.f32.mrb[0].mxu0
        %5272 = vmatprep.mubr.f32.mxu0 0.0
        %5273 = vmatmul.mubr.f32.gmra.mrb[0].mxu0 %v5117
        %v5274 = vpop.f32.mrb[0].mxu0
        %v5275 = vadd.f32 0.0, %v5274
        %v5276 = vpop.f32.mrb[0].mxu0
        %5277 = vmatprep.mubr.f32.mxu0 0.0
        %5278 = vmatmul.mubr.f32.gmra.mrb[0].mxu0 %v5120
        %v5279 = vpop.f32.mrb[0].mxu0
        %v5280 = vadd.f32 0.0, %v5279
        %v5281 = vpop.f32.mrb[0].mxu0
        %5282 = vmatprep.mubr.f32.mxu0 0.0
        %5283 = vmatmul.mubr.f32.gmra.mrb[0].mxu0 %v5123
        %v5284 = vpop.f32.mrb[0].mxu0
        %v5285 = vadd.f32 0.0, %v5284
        %v5286 = vpop.f32.mrb[0].mxu0
        %5287 = vmatprep.mubr.f32.mxu0 0.0
        %5288 = vmatmul.mubr.f32.gmra.mrb[0].mxu0 %v5126
        %v5289 = vpop.f32.mrb[0].mxu0
        %v5290 = vadd.f32 0.0, %v5289
        %v5291 = vpop.f32.mrb[0].mxu0
        %5292 = vmatprep.mubr.f32.mxu0 0.0
        %5293 = vmatmul.mubr.f32.gmra.mrb[0].mxu0 %v5129
        %v5294 = vpop.f32.mrb[0].mxu0
        %v5295 = vadd.f32 0.0, %v5294
        %v5296 = vpop.f32.mrb[0].mxu0
        %5297 = vmatprep.mubr.f32.mxu0 0.0
        %5298 = vmatmul.mubr.f32.gmra.mrb[0].mxu0 %v5132
        %v5299 = vpop.f32.mrb[0].mxu0
        %v5300 = vadd.f32 0.0, %v5299
        %v5301 = vpop.f32.mrb[0].mxu0
        %5302 = vmatprep.mubr.f32.mxu0 0.0
        %5303 = vmatmul.mubr.f32.gmra.mrb[0].mxu0 %v5135
        %v5304 = vpop.f32.mrb[0].mxu0
        %v5305 = vadd.f32 0.0, %v5304
        %v5306 = vpop.f32.mrb[0].mxu0
        %5307 = vmatprep.mubr.f32.mxu0 0.0
        %5308 = vmatmul.mubr.f32.gmra.mrb[0].mxu0 %v5138
        %v5309 = vpop.f32.mrb[0].mxu0
        %v5310 = vadd.f32 0.0, %v5309
        %v5311 = vpop.f32.mrb[0].mxu0
        %5312 = vmatprep.mubr.f32.mxu0 0.0
        %5313 = vmatmul.mubr.f32.gmra.mrb[0].mxu0 %v5141
        %v5314 = vpop.f32.mrb[0].mxu0
        %v5315 = vadd.f32 0.0, %v5314
        %v5316 = vpop.f32.mrb[0].mxu0
        %5317 = vmatprep.mubr.f32.mxu0 0.0
        %5318 = vmatmul.mubr.f32.gmra.mrb[0].mxu0 %v5144
        %v5319 = vpop.f32.mrb[0].mxu0
        %v5320 = vadd.f32 0.0, %v5319
        %v5321 = vpop.f32.mrb[0].mxu0
        %5322 = vmatprep.mubr.f32.mxu0 0.0
        %5323 = vmatmul.mubr.f32.gmra.mrb[0].mxu0 %v5147
        %v5324 = vpop.f32.mrb[0].mxu0
        %v5325 = vadd.f32 0.0, %v5324
        %v5326 = vpop.f32.mrb[0].mxu0
        %5327 = vmatprep.mubr.f32.mxu0 0.0
        %5328 = vmatmul.mubr.f32.gmra.mrb[0].mxu0 %v5150
        %v5329 = vpop.f32.mrb[0].mxu0
        %v5330 = vadd.f32 0.0, %v5329
        %v5331 = vpop.f32.mrb[0].mxu0
        %5332 = vmatprep.mubr.f32.mxu0 0.0
        %5333 = vmatmul.mubr.f32.gmra.mrb[0].mxu0 %v5153
        %v5334 = vpop.f32.mrb[0].mxu0
        %v5335 = vadd.f32 0.0, %v5334
        %v5336 = vpop.f32.mrb[0].mxu0
        %5337 = vmatprep.mubr.f32.mxu0 0.0
        %5338 = vmatmul.mubr.f32.gmra.mrb[0].mxu0 %v5156
        %v5339 = vpop.f32.mrb[0].mxu0
        %v5340 = vadd.f32 0.0, %v5339
        %v5341 = vpop.f32.mrb[0].mxu0
        %5342 = vmatprep.mubr.f32.mxu0 0.0
        %5343 = vmatmul.mubr.f32.gmra.mrb[0].mxu0 %v5159
        %v5344 = vpop.f32.mrb[0].mxu0
        %v5345 = vadd.f32 0.0, %v5344
        %v5346 = vpop.f32.mrb[0].mxu0
        %5347 = vmatprep.mubr.f32.mxu0 0.0
        %5348 = vmatmul.mubr.f32.gmra.mrb[0].mxu0 %v5162
        %v5349 = vpop.f32.mrb[0].mxu0
        %v5350 = vadd.f32 0.0, %v5349
        %v5351 = vpop.f32.mrb[0].mxu0
        %5352 = vmatprep.mubr.f32.mxu0 0.0
        %5353 = vmatmul.mubr.f32.gmra.mrb[0].mxu0 %v5165
        %v5354 = vpop.f32.mrb[0].mxu0
        %v5355 = vadd.f32 0.0, %v5354
        %v5356 = vpop.f32.mrb[0].mxu0
        %5357 = vmatprep.mubr.f32.mxu0 0.0
        %5358 = vmatmul.mubr.f32.gmra.mrb[0].mxu0 %v5168
        %v5359 = vpop.f32.mrb[0].mxu0
        %v5360 = vadd.f32 0.0, %v5359
        %v5361 = vpop.f32.mrb[0].mxu0
        %5362 = vmatprep.mubr.f32.mxu0 0.0
        %5363 = vmatmul.mubr.f32.gmra.mrb[0].mxu0 %v5171
        %v5364 = vpop.f32.mrb[0].mxu0
        %v5365 = vadd.f32 0.0, %v5364
        %v5366 = vpop.f32.mrb[0].mxu0
        %5367 = vmatprep.mubr.f32.mxu0 0.0
        %5368 = vmatmul.mubr.f32.gmra.mrb[0].mxu0 %v5174
        %v5369 = vpop.f32.mrb[0].mxu0
        %v5370 = vadd.f32 0.0, %v5369
        %v5371 = vpop.f32.mrb[0].mxu0
        %5372 = vmatprep.mubr.f32.mxu0 0.0
        %5373 = vmatmul.mubr.f32.gmra.mrb[0].mxu0 %v5177
        %v5374 = vpop.f32.mrb[0].mxu0
        %v5375 = vadd.f32 0.0, %v5374
        %v5376 = vpop.f32.mrb[0].mxu0
        %5377 = vmatprep.mubr.f32.mxu0 0.0
        %5378 = vmatmul.mubr.f32.gmra.mrb[0].mxu0 %v5180
        %v5379 = vpop.f32.mrb[0].mxu0
        %v5380 = vadd.f32 0.0, %v5379
        %v5381 = vpop.f32.mrb[0].mxu0
        %5382 = vmatprep.mubr.f32.mxu0 0.0
        %5383 = vmatmul.mubr.f32.gmra.mrb[0].mxu0 %v5183
        %v5384 = vpop.f32.mrb[0].mxu0
        %v5385 = vadd.f32 0.0, %v5384
        %v5386 = vpop.f32.mrb[0].mxu0
        %5387 = vmatprep.mubr.f32.mxu0 0.0
        %5388 = vmatmul.mubr.f32.gmra.mrb[0].mxu0 %v5186
        %v5389 = vpop.f32.mrb[0].mxu0
        %v5390 = vadd.f32 0.0, %v5389
        %v5391 = vpop.f32.mrb[0].mxu0
        %5392 = vdwg.mxu0
        %v5393 = vadd.f32 %v5039, %v5255
        %v5394 = vadd.f32 %v5040, %v5260
        %v5395 = vadd.f32 %v5041, %v5265
        %v5396 = vadd.f32 %v5042, %v5270
        %v5397 = vadd.f32 %v5043, %v5275
        %v5398 = vadd.f32 %v5044, %v5280
        %v5399 = vadd.f32 %v5045, %v5285
        %v5400 = vadd.f32 %v5046, %v5290
        %v5401 = vadd.f32 %v5047, %v5295
        %v5402 = vadd.f32 %v5048, %v5300
        %v5403 = vadd.f32 %v5049, %v5305
        %v5404 = vadd.f32 %v5050, %v5310
        %v5405 = vadd.f32 %v5051, %v5315
        %v5406 = vadd.f32 %v5052, %v5320
        %v5407 = vadd.f32 %v5053, %v5325
        %v5408 = vadd.f32 %v5054, %v5330
        %v5409 = vadd.f32 %v5055, %v5335
        %v5410 = vadd.f32 %v5056, %v5340
        %v5411 = vadd.f32 %v5057, %v5345
        %v5412 = vadd.f32 %v5058, %v5350
        %v5413 = vadd.f32 %v5059, %v5355
        %v5414 = vadd.f32 %v5060, %v5360
        %v5415 = vadd.f32 %v5061, %v5365
        %v5416 = vadd.f32 %v5062, %v5370
        %v5417 = vadd.f32 %v5063, %v5375
        %v5418 = vadd.f32 %v5064, %v5380
        %v5419 = vadd.f32 %v5065, %v5385
        %v5420 = vadd.f32 %v5066, %v5390
        %v5421 = vld [vmem:[%s6] sm:$0x1]
        %v5423 = vlaneseq
        %v5424 = vshrl.u32 %v5423, 7
        %v5425 = vsub.s32 0, %v5424
        %v5426 = vrot.slane %v5421, %v5425
        %v5428 = vmul.f32 %v5393, %v5426
        %v5429 = vmul.f32 %v5394, %v5426
        %v5430 = vmul.f32 %v5395, %v5426
        %v5431 = vmul.f32 %v5396, %v5426
        %v5432 = vmul.f32 %v5397, %v5426
        %v5433 = vmul.f32 %v5398, %v5426
        %v5434 = vmul.f32 %v5399, %v5426
        %v5435 = vmul.f32 %v5400, %v5426
        %v5436 = vmul.f32 %v5401, %v5426
        %v5437 = vmul.f32 %v5402, %v5426
        %v5438 = vmul.f32 %v5403, %v5426
        %v5439 = vmul.f32 %v5404, %v5426
        %v5440 = vmul.f32 %v5405, %v5426
        %v5441 = vmul.f32 %v5406, %v5426
        %v5442 = vmul.f32 %v5407, %v5426
        %v5443 = vmul.f32 %v5408, %v5426
        %v5444 = vmul.f32 %v5409, %v5426
        %v5445 = vmul.f32 %v5410, %v5426
        %v5446 = vmul.f32 %v5411, %v5426
        %v5447 = vmul.f32 %v5412, %v5426
        %v5448 = vmul.f32 %v5413, %v5426
        %v5449 = vmul.f32 %v5414, %v5426
        %v5450 = vmul.f32 %v5415, %v5426
        %v5451 = vmul.f32 %v5416, %v5426
        %v5452 = vmul.f32 %v5417, %v5426
        %v5453 = vmul.f32 %v5418, %v5426
        %v5454 = vmul.f32 %v5419, %v5426
        %v5455 = vmul.f32 %v5420, %v5426
        %v5456 = vld [vmem:[%s7] sm:$0x1]
        %v5458 = vlaneseq
        %v5459 = vshrl.u32 %v5458, 7
        %v5460 = vsub.s32 0, %v5459
        %v5461 = vrot.slane %v5456, %v5460
        %v5463 = vadd.f32 %v5428, %v5461
        %v5464 = vadd.f32 %v5429, %v5461
        %v5465 = vadd.f32 %v5430, %v5461
        %v5466 = vadd.f32 %v5431, %v5461
        %v5467 = vadd.f32 %v5432, %v5461
        %v5468 = vadd.f32 %v5433, %v5461
        %v5469 = vadd.f32 %v5434, %v5461
        %v5470 = vadd.f32 %v5435, %v5461
        %v5471 = vadd.f32 %v5436, %v5461
        %v5472 = vadd.f32 %v5437, %v5461
        %v5473 = vadd.f32 %v5438, %v5461
        %v5474 = vadd.f32 %v5439, %v5461
        %v5475 = vadd.f32 %v5440, %v5461
        %v5476 = vadd.f32 %v5441, %v5461
        %v5477 = vadd.f32 %v5442, %v5461
        %v5478 = vadd.f32 %v5443, %v5461
        %v5479 = vadd.f32 %v5444, %v5461
        %v5480 = vadd.f32 %v5445, %v5461
        %v5481 = vadd.f32 %v5446, %v5461
        %v5482 = vadd.f32 %v5447, %v5461
        %v5483 = vadd.f32 %v5448, %v5461
        %v5484 = vadd.f32 %v5449, %v5461
        %v5485 = vadd.f32 %v5450, %v5461
        %v5486 = vadd.f32 %v5451, %v5461
        %v5487 = vadd.f32 %v5452, %v5461
        %v5488 = vadd.f32 %v5453, %v5461
        %v5489 = vadd.f32 %v5454, %v5461
        %v5490 = vadd.f32 %v5455, %v5461
        %v5491 = vmax.f32 %v5463, 0.0
        %v5492 = vmax.f32 %v5464, 0.0
        %v5493 = vmax.f32 %v5465, 0.0
        %v5494 = vmax.f32 %v5466, 0.0
        %v5495 = vmax.f32 %v5467, 0.0
        %v5496 = vmax.f32 %v5468, 0.0
        %v5497 = vmax.f32 %v5469, 0.0
        %v5498 = vmax.f32 %v5470, 0.0
        %v5499 = vmax.f32 %v5471, 0.0
        %v5500 = vmax.f32 %v5472, 0.0
        %v5501 = vmax.f32 %v5473, 0.0
        %v5502 = vmax.f32 %v5474, 0.0
        %v5503 = vmax.f32 %v5475, 0.0
        %v5504 = vmax.f32 %v5476, 0.0
        %v5505 = vmax.f32 %v5477, 0.0
        %v5506 = vmax.f32 %v5478, 0.0
        %v5507 = vmax.f32 %v5479, 0.0
        %v5508 = vmax.f32 %v5480, 0.0
        %v5509 = vmax.f32 %v5481, 0.0
        %v5510 = vmax.f32 %v5482, 0.0
        %v5511 = vmax.f32 %v5483, 0.0
        %v5512 = vmax.f32 %v5484, 0.0
        %v5513 = vmax.f32 %v5485, 0.0
        %v5514 = vmax.f32 %v5486, 0.0
        %v5515 = vmax.f32 %v5487, 0.0
        %v5516 = vmax.f32 %v5488, 0.0
        %v5517 = vmax.f32 %v5489, 0.0
        %v5518 = vmax.f32 %v5490, 0.0
        %5519 = vst [vmem:[%s320] sm:$0xff] 0.0
        %5520 = vst [vmem:[%s320 + $0x8] sm:$0xff] 0.0
        %5521 = vst [vmem:[%s320 + $0x10] sm:$0xff] 0.0
        %5522 = vst [vmem:[%s320 + $0x18] sm:$0xff] 0.0
        %5523 = vst [vmem:[%s320 + $0x20] sm:$0xff] 0.0
        %5524 = vst [vmem:[%s320 + $0x28] sm:$0xff] 0.0
        %5525 = vst [vmem:[%s320 + $0x30] sm:$0xff] 0.0
        %5526 = vst [vmem:[%s320 + $0x38] sm:$0xff] 0.0
        %5527 = vst [vmem:[%s320 + $0x40] sm:$0xff] 0.0
        %5528 = vst [vmem:[%s320 + $0x48] sm:$0xff] 0.0
        %5529 = vst [vmem:[%s320 + $0x50] sm:$0xff] 0.0
        %5530 = vst [vmem:[%s320 + $0x58] sm:$0xff] 0.0
        %5531 = vst [vmem:[%s320 + $0x60] sm:$0xff] 0.0
        %5532 = vst [vmem:[%s320 + $0x68] sm:$0xff] 0.0
        %v5533 = vmax.f32 %v5491, %v5493
        %v5534 = vmax.f32 %v5492, %v5494
        %vm5537 = vcmask 1046528
        %v5538 = vrot.slane %v5533, 1
        %v5539 = vrot.slane %v5534, 1
        %v5540 = vsel %vm5537, %v5538, %v5539
        %v5543 = vmax.f32 %v5533, %v5540
        %v5544 = vmax.f32 %v5534, %v5539
        %5545 = vst [vmem:[%s320 - $0x1] sm:$0xfe] %v5543
        %5546 = vst [vmem:[%s320 + $0x7] sm:$0x7f] %v5544
        %v5547 = vmax.f32 %v5495, %v5497
        %v5548 = vmax.f32 %v5496, %v5498
        %v5551 = vrot.slane %v5547, 1
        %v5552 = vrot.slane %v5548, 1
        %v5553 = vsel %vm5537, %v5551, %v5552
        %v5556 = vmax.f32 %v5547, %v5553
        %v5557 = vmax.f32 %v5548, %v5552
        %5558 = vst [vmem:[%s320 + $0xf] sm:$0xfe] %v5556
        %5559 = vst [vmem:[%s320 + $0x17] sm:$0x7f] %v5557
        %v5560 = vmax.f32 %v5499, %v5501
        %v5561 = vmax.f32 %v5500, %v5502
        %v5564 = vrot.slane %v5560, 1
        %v5565 = vrot.slane %v5561, 1
        %v5566 = vsel %vm5537, %v5564, %v5565
        %v5569 = vmax.f32 %v5560, %v5566
        %v5570 = vmax.f32 %v5561, %v5565
        %5571 = vst [vmem:[%s320 + $0x1f] sm:$0xfe] %v5569
        %5572 = vst [vmem:[%s320 + $0x27] sm:$0x7f] %v5570
        %v5573 = vmax.f32 %v5503, %v5505
        %v5574 = vmax.f32 %v5504, %v5506
        %v5577 = vrot.slane %v5573, 1
        %v5578 = vrot.slane %v5574, 1
        %v5579 = vsel %vm5537, %v5577, %v5578
        %v5582 = vmax.f32 %v5573, %v5579
        %v5583 = vmax.f32 %v5574, %v5578
        %5584 = vst [vmem:[%s320 + $0x2f] sm:$0xfe] %v5582
        %5585 = vst [vmem:[%s320 + $0x37] sm:$0x7f] %v5583
        %v5586 = vmax.f32 %v5507, %v5509
        %v5587 = vmax.f32 %v5508, %v5510
        %v5590 = vrot.slane %v5586, 1
        %v5591 = vrot.slane %v5587, 1
        %v5592 = vsel %vm5537, %v5590, %v5591
        %v5595 = vmax.f32 %v5586, %v5592
        %v5596 = vmax.f32 %v5587, %v5591
        %5597 = vst [vmem:[%s320 + $0x3f] sm:$0xfe] %v5595
        %5598 = vst [vmem:[%s320 + $0x47] sm:$0x7f] %v5596
        %v5599 = vmax.f32 %v5511, %v5513
        %v5600 = vmax.f32 %v5512, %v5514
        %v5603 = vrot.slane %v5599, 1
        %v5604 = vrot.slane %v5600, 1
        %v5605 = vsel %vm5537, %v5603, %v5604
        %v5608 = vmax.f32 %v5599, %v5605
        %v5609 = vmax.f32 %v5600, %v5604
        %5610 = vst [vmem:[%s320 + $0x4f] sm:$0xfe] %v5608
        %5611 = vst [vmem:[%s320 + $0x57] sm:$0x7f] %v5609
        %v5612 = vmax.f32 %v5515, %v5517
        %v5613 = vmax.f32 %v5516, %v5518
        %v5616 = vrot.slane %v5612, 1
        %v5617 = vrot.slane %v5613, 1
        %v5618 = vsel %vm5537, %v5616, %v5617
        %v5621 = vmax.f32 %v5612, %v5618
        %v5622 = vmax.f32 %v5613, %v5617
        %5623 = vst [vmem:[%s320 + $0x5f] sm:$0xfe] %v5621
        %5624 = vst [vmem:[%s320 + $0x67] sm:$0x7f] %v5622
        %p5625 = scmp.lt.s32.totalorder %s20, 1
        %s5626 = scalar_select %p5625, %s20, 1
        %s5627 = smul.addr %s5626, 14
        %s5628 = smul.addr %s5627, 8
        %s5629 = scalar_lea.vmem %s8, %s5628
        // Predicated region
        $region57: #{method_cnn_forward.2} parent=51 // pred_check
          %p5630 = pneg %p211
        $region58: #{method_cnn_forward.2} parent=51 // pred_check_branch
          %5632 = sbr.rel (%p5630) target = $region60
        $region59: #{method_cnn_forward.2} parent=51 // pred_region
          _
        $region60: #{method_cnn_forward.2} parent=51 // pred_fallthru
          _
      $region52: #{method_cnn_forward.2} parent=5 // pred_fallthru
        _
      %p5633 = scmp.le.s32.totalorder 2, %s15
      // Predicated region
      $region61: #{method_cnn_forward.2} parent=5 // pred_check
        %p5634 = pneg %p5633
      $region62: #{method_cnn_forward.2} parent=5 // pred_check_branch
        %5636 = sbr.rel (%p5634) target = $region64
      $region63: #{method_cnn_forward.2} parent=5 // pred_region
        %s5637 = ssub.s32 %s15, 2
        // Predicated region
        $region65: #{method_cnn_forward.2} parent=63 // pred_check
          %p5638 = pneg %p217
        $region66: #{method_cnn_forward.2} parent=63 // pred_check_branch
          %5640 = sbr.rel (%p5638) target = $region68
        $region67: #{method_cnn_forward.2} parent=63 // pred_region
          %p5641 = scmp.lt.s32.totalorder %s21, 1
          %s5642 = scalar_select %p5641, %s21, 1
          %s5643 = smul.addr %s5642, 14
          %s5644 = smul.addr %s5643, 8
          %s5645 = scalar_lea.vmem %s8, %s5644
        $region68: #{method_cnn_forward.2} parent=63 // pred_fallthru
          _
      $region64: #{method_cnn_forward.2} parent=5 // pred_fallthru
        _
    $region6: #{method_cnn_forward.2} parent=1 // loop_footer
      %s19 = sadd.s32 1, %s15
    $region7: #{method_cnn_forward.2} parent=1 // loop_footer_branch
      %14 = sbr.rel target = $region3
    $region8: #{method_cnn_forward.2} parent=1 // loop_exit
      _
    %5646 = vsyncpa [#allocation4], 1
    %s5647 = scalar_lea.sflag [#allocation4], 1
    %5648 = vsyncpa %s5647, 1

// kernel: method_cnn_forward.3
$region0: #{method_cnn_forward.3}
  #allocation0 [shape = 'u32[]', space=smem, size = 0x4, offset = 0x4, fixed_abs, tag = 'smem constant byte address 0x4 - core index']
  #allocation1 [shape = 'u32[144,128]{1,0:T(1,128)}', space=vmem, size = 0x12000, scoped, tag = 'internal scratch']
  %s0 = inlined_call_operand.vmem [shape: f32[2,6272], index: 0, kind: input, shape index: {}]
  %s1 = inlined_call_operand.vmem [shape: bf16[6272,256], index: 1, kind: input, shape index: {}]
  %s2 = inlined_call_operand.vmem [shape: f32[1,256], index: 2, kind: input, shape index: {}]
  %s3 = inlined_call_operand.vmem [shape: bf16[256,128], index: 3, kind: input, shape index: {}]
  %s4 = inlined_call_operand.vmem [shape: f32[1,128], index: 4, kind: input, shape index: {}]
  %s5 = inlined_call_operand.vmem [shape: bf16[128,10], index: 5, kind: input, shape index: {}]
  %s6 = inlined_call_operand.vmem [shape: f32[1,10], index: 6, kind: input, shape index: {}]
  %s7 = inlined_call_operand.hbm [shape: f32[2,10], index: 7, kind: output, shape index: {}]
  %s8 = sld [smem:[#allocation0]]
  $region38: #{method_cnn_forward.3} parent=0
    _
  %s10 = ssub.s32 1, %s8
  %s11 = scalar_select 0, %s10, %s8
  $region1: #{method_cnn_forward.3} parent=0
    #allocation2 [shape = 'u8[1024]{0}', space=vmem, size = 0x400, scoped, tag = 'output window, operand 0, single buffered']
    #allocation3 [shape = 's32[1]{0}', space=sflag, size = 0x4, scoped, tag = 'scoped memory for method_cnn_forward.3']
    %12 = vsyncpa [#allocation3], 0
    // Predicated region
    $region2: #{method_cnn_forward.3} parent=1 // pred_check
      _
    $region3: #{method_cnn_forward.3} parent=1 // pred_check_branch
      %14 = sbr.rel (0) target = $region5
    $region4: #{method_cnn_forward.3} parent=1 // pred_region
      _
    $region5: #{method_cnn_forward.3} parent=1 // pred_fallthru
      _
    // Predicated region
    $region6: #{method_cnn_forward.3} parent=1 // pred_check
      _
    $region7: #{method_cnn_forward.3} parent=1 // pred_check_branch
      %16 = sbr.rel (0) target = $region9
    $region8: #{method_cnn_forward.3} parent=1 // pred_region
      _
    $region9: #{method_cnn_forward.3} parent=1 // pred_fallthru
      _
    // Predicated region
    $region10: #{method_cnn_forward.3} parent=1 // pred_check
      _
    $region11: #{method_cnn_forward.3} parent=1 // pred_check_branch
      %18 = sbr.rel (0) target = $region13
    $region12: #{method_cnn_forward.3} parent=1 // pred_region
      _
    $region13: #{method_cnn_forward.3} parent=1 // pred_fallthru
      _
    // Predicated region
    $region14: #{method_cnn_forward.3} parent=1 // pred_check
      _
    $region15: #{method_cnn_forward.3} parent=1 // pred_check_branch
      %20 = sbr.rel (0) target = $region17
    $region16: #{method_cnn_forward.3} parent=1 // pred_region
      _
    $region17: #{method_cnn_forward.3} parent=1 // pred_fallthru
      _
    // Predicated region
    $region18: #{method_cnn_forward.3} parent=1 // pred_check
      _
    $region19: #{method_cnn_forward.3} parent=1 // pred_check_branch
      %22 = sbr.rel (0) target = $region21
    $region20: #{method_cnn_forward.3} parent=1 // pred_region
      _
    $region21: #{method_cnn_forward.3} parent=1 // pred_fallthru
      _
    // Predicated region
    $region22: #{method_cnn_forward.3} parent=1 // pred_check
      _
    $region23: #{method_cnn_forward.3} parent=1 // pred_check_branch
      %24 = sbr.rel (0) target = $region25
    $region24: #{method_cnn_forward.3} parent=1 // pred_region
      _
    $region25: #{method_cnn_forward.3} parent=1 // pred_fallthru
      _
    // Predicated region
    $region26: #{method_cnn_forward.3} parent=1 // pred_check
      _
    $region27: #{method_cnn_forward.3} parent=1 // pred_check_branch
      %26 = sbr.rel (0) target = $region29
    $region28: #{method_cnn_forward.3} parent=1 // pred_region
      _
    $region29: #{method_cnn_forward.3} parent=1 // pred_fallthru
      _
    %v28 = vld [vmem:[%s0] sm:$0xff]
    %v29 = vld [vmem:[%s0 + $0x8] sm:$0xff]
    %v30 = vld [vmem:[%s0 + $0x10] sm:$0xff]
    %v31 = vld [vmem:[%s0 + $0x18] sm:$0xff]
    %v32 = vld [vmem:[%s0 + $0x20] sm:$0xff]
    %v33 = vld [vmem:[%s0 + $0x28] sm:$0xff]
    %v34 = vld [vmem:[%s0 + $0x30] sm:$0xff]
    %v35 = vld [vmem:[%s0 + $0x38] sm:$0xff]
    %v36 = vld [vmem:[%s0 + $0x40] sm:$0xff]
    %v37 = vld [vmem:[%s0 + $0x48] sm:$0xff]
    %v38 = vld [vmem:[%s0 + $0x50] sm:$0xff]
    %v39 = vld [vmem:[%s0 + $0x58] sm:$0xff]
    %v40 = vld [vmem:[%s0 + $0x60] sm:$0x3]
    %v54 = vcombine.high %v28, %v28
    %v56 = vunpack.c.l.s4 1983009808
    %v57 = vunpack.c.0.s8 %v56
    %v58 = vlaneseq
    %v59 = vshrl.u32 %v58, 7
    %v60 = vsub.s32 %v57, %v59
    %v61 = vrot.slane %v28, %v60
    %v63 = vunpack.c.l.s4 1983009808
    %v64 = vunpack.c.0.s8 %v63
    %v65 = vlaneseq
    %v66 = vshrl.u32 %v65, 7
    %v67 = vsub.s32 %v64, %v66
    %v68 = vrot.slane %v54, %v67
    %v69 = vcombine.high %v61, %v61
    %v70 = vcombine.high %v68, %v68
    %v71 = vcombine.high %v29, %v29
    %v73 = vunpack.c.l.s4 1983009808
    %v74 = vunpack.c.0.s8 %v73
    %v75 = vlaneseq
    %v76 = vshrl.u32 %v75, 7
    %v77 = vsub.s32 %v74, %v76
    %v78 = vrot.slane %v29, %v77
    %v80 = vunpack.c.l.s4 1983009808
    %v81 = vunpack.c.0.s8 %v80
    %v82 = vlaneseq
    %v83 = vshrl.u32 %v82, 7
    %v84 = vsub.s32 %v81, %v83
    %v85 = vrot.slane %v71, %v84
    %v86 = vcombine.high %v78, %v78
    %v87 = vcombine.high %v85, %v85
    %v88 = vcombine.high %v30, %v30
    %v90 = vunpack.c.l.s4 1983009808
    %v91 = vunpack.c.0.s8 %v90
    %v92 = vlaneseq
    %v93 = vshrl.u32 %v92, 7
    %v94 = vsub.s32 %v91, %v93
    %v95 = vrot.slane %v30, %v94
    %v97 = vunpack.c.l.s4 1983009808
    %v98 = vunpack.c.0.s8 %v97
    %v99 = vlaneseq
    %v100 = vshrl.u32 %v99, 7
    %v101 = vsub.s32 %v98, %v100
    %v102 = vrot.slane %v88, %v101
    %v103 = vcombine.high %v95, %v95
    %v104 = vcombine.high %v102, %v102
    %v105 = vcombine.high %v31, %v31
    %v107 = vunpack.c.l.s4 1983009808
    %v108 = vunpack.c.0.s8 %v107
    %v109 = vlaneseq
    %v110 = vshrl.u32 %v109, 7
    %v111 = vsub.s32 %v108, %v110
    %v112 = vrot.slane %v31, %v111
    %v114 = vunpack.c.l.s4 1983009808
    %v115 = vunpack.c.0.s8 %v114
    %v116 = vlaneseq
    %v117 = vshrl.u32 %v116, 7
    %v118 = vsub.s32 %v115, %v117
    %v119 = vrot.slane %v105, %v118
    %v120 = vcombine.high %v112, %v112
    %v121 = vcombine.high %v119, %v119
    %v122 = vcombine.high %v32, %v32
    %v124 = vunpack.c.l.s4 1983009808
    %v125 = vunpack.c.0.s8 %v124
    %v126 = vlaneseq
    %v127 = vshrl.u32 %v126, 7
    %v128 = vsub.s32 %v125, %v127
    %v129 = vrot.slane %v32, %v128
    %v131 = vunpack.c.l.s4 1983009808
    %v132 = vunpack.c.0.s8 %v131
    %v133 = vlaneseq
    %v134 = vshrl.u32 %v133, 7
    %v135 = vsub.s32 %v132, %v134
    %v136 = vrot.slane %v122, %v135
    %v137 = vcombine.high %v129, %v129
    %v138 = vcombine.high %v136, %v136
    %v139 = vcombine.high %v33, %v33
    %v141 = vunpack.c.l.s4 1983009808
    %v142 = vunpack.c.0.s8 %v141
    %v143 = vlaneseq
    %v144 = vshrl.u32 %v143, 7
    %v145 = vsub.s32 %v142, %v144
    %v146 = vrot.slane %v33, %v145
    %v148 = vunpack.c.l.s4 1983009808
    %v149 = vunpack.c.0.s8 %v148
    %v150 = vlaneseq
    %v151 = vshrl.u32 %v150, 7
    %v152 = vsub.s32 %v149, %v151
    %v153 = vrot.slane %v139, %v152
    %v154 = vcombine.high %v146, %v146
    %v155 = vcombine.high %v153, %v153
    %v156 = vcombine.high %v34, %v34
    %v158 = vunpack.c.l.s4 1983009808
    %v159 = vunpack.c.0.s8 %v158
    %v160 = vlaneseq
    %v161 = vshrl.u32 %v160, 7
    %v162 = vsub.s32 %v159, %v161
    %v163 = vrot.slane %v34, %v162
    %v165 = vunpack.c.l.s4 1983009808
    %v166 = vunpack.c.0.s8 %v165
    %v167 = vlaneseq
    %v168 = vshrl.u32 %v167, 7
    %v169 = vsub.s32 %v166, %v168
    %v170 = vrot.slane %v156, %v169
    %v171 = vcombine.high %v163, %v163
    %v172 = vcombine.high %v170, %v170
    %v173 = vcombine.high %v35, %v35
    %v175 = vunpack.c.l.s4 1983009808
    %v176 = vunpack.c.0.s8 %v175
    %v177 = vlaneseq
    %v178 = vshrl.u32 %v177, 7
    %v179 = vsub.s32 %v176, %v178
    %v180 = vrot.slane %v35, %v179
    %v182 = vunpack.c.l.s4 1983009808
    %v183 = vunpack.c.0.s8 %v182
    %v184 = vlaneseq
    %v185 = vshrl.u32 %v184, 7
    %v186 = vsub.s32 %v183, %v185
    %v187 = vrot.slane %v173, %v186
    %v188 = vcombine.high %v180, %v180
    %v189 = vcombine.high %v187, %v187
    %v190 = vcombine.high %v36, %v36
    %v192 = vunpack.c.l.s4 1983009808
    %v193 = vunpack.c.0.s8 %v192
    %v194 = vlaneseq
    %v195 = vshrl.u32 %v194, 7
    %v196 = vsub.s32 %v193, %v195
    %v197 = vrot.slane %v36, %v196
    %v199 = vunpack.c.l.s4 1983009808
    %v200 = vunpack.c.0.s8 %v199
    %v201 = vlaneseq
    %v202 = vshrl.u32 %v201, 7
    %v203 = vsub.s32 %v200, %v202
    %v204 = vrot.slane %v190, %v203
    %v205 = vcombine.high %v197, %v197
    %v206 = vcombine.high %v204, %v204
    %v207 = vcombine.high %v37, %v37
    %v209 = vunpack.c.l.s4 1983009808
    %v210 = vunpack.c.0.s8 %v209
    %v211 = vlaneseq
    %v212 = vshrl.u32 %v211, 7
    %v213 = vsub.s32 %v210, %v212
    %v214 = vrot.slane %v37, %v213
    %v216 = vunpack.c.l.s4 1983009808
    %v217 = vunpack.c.0.s8 %v216
    %v218 = vlaneseq
    %v219 = vshrl.u32 %v218, 7
    %v220 = vsub.s32 %v217, %v219
    %v221 = vrot.slane %v207, %v220
    %v222 = vcombine.high %v214, %v214
    %v223 = vcombine.high %v221, %v221
    %v224 = vcombine.high %v38, %v38
    %v226 = vunpack.c.l.s4 1983009808
    %v227 = vunpack.c.0.s8 %v226
    %v228 = vlaneseq
    %v229 = vshrl.u32 %v228, 7
    %v230 = vsub.s32 %v227, %v229
    %v231 = vrot.slane %v38, %v230
    %v233 = vunpack.c.l.s4 1983009808
    %v234 = vunpack.c.0.s8 %v233
    %v235 = vlaneseq
    %v236 = vshrl.u32 %v235, 7
    %v237 = vsub.s32 %v234, %v236
    %v238 = vrot.slane %v224, %v237
    %v239 = vcombine.high %v231, %v231
    %v240 = vcombine.high %v238, %v238
    %v241 = vcombine.high %v39, %v39
    %v243 = vunpack.c.l.s4 1983009808
    %v244 = vunpack.c.0.s8 %v243
    %v245 = vlaneseq
    %v246 = vshrl.u32 %v245, 7
    %v247 = vsub.s32 %v244, %v246
    %v248 = vrot.slane %v39, %v247
    %v250 = vunpack.c.l.s4 1983009808
    %v251 = vunpack.c.0.s8 %v250
    %v252 = vlaneseq
    %v253 = vshrl.u32 %v252, 7
    %v254 = vsub.s32 %v251, %v253
    %v255 = vrot.slane %v241, %v254
    %v256 = vcombine.high %v248, %v248
    %v257 = vcombine.high %v255, %v255
    %v259 = vunpack.c.l.s4 1983009808
    %v260 = vunpack.c.0.s8 %v259
    %v261 = vlaneseq
    %v262 = vshrl.u32 %v261, 7
    %v263 = vsub.s32 %v260, %v262
    %v264 = vrot.slane %v40, %v263
    %v314 = vpack.c.bf16 %v61, %v61
    %v315 = vpack.c.bf16 %v69, %v69
    %v316 = vpack.c.bf16 %v68, %v68
    %v317 = vpack.c.bf16 %v70, %v70
    %v318 = vpack.c.bf16 %v78, %v78
    %v319 = vpack.c.bf16 %v86, %v86
    %v320 = vpack.c.bf16 %v85, %v85
    %v321 = vpack.c.bf16 %v87, %v87
    %v322 = vpack.c.bf16 %v95, %v95
    %v323 = vpack.c.bf16 %v103, %v103
    %v324 = vpack.c.bf16 %v102, %v102
    %v325 = vpack.c.bf16 %v104, %v104
    %v326 = vpack.c.bf16 %v112, %v112
    %v327 = vpack.c.bf16 %v120, %v120
    %v328 = vpack.c.bf16 %v119, %v119
    %v329 = vpack.c.bf16 %v121, %v121
    %v330 = vpack.c.bf16 %v129, %v129
    %v331 = vpack.c.bf16 %v137, %v137
    %v332 = vpack.c.bf16 %v136, %v136
    %v333 = vpack.c.bf16 %v138, %v138
    %v334 = vpack.c.bf16 %v146, %v146
    %v335 = vpack.c.bf16 %v154, %v154
    %v336 = vpack.c.bf16 %v153, %v153
    %v337 = vpack.c.bf16 %v155, %v155
    %v338 = vpack.c.bf16 %v163, %v163
    %v339 = vpack.c.bf16 %v171, %v171
    %v340 = vpack.c.bf16 %v170, %v170
    %v341 = vpack.c.bf16 %v172, %v172
    %v342 = vpack.c.bf16 %v180, %v180
    %v343 = vpack.c.bf16 %v188, %v188
    %v344 = vpack.c.bf16 %v187, %v187
    %v345 = vpack.c.bf16 %v189, %v189
    %v346 = vpack.c.bf16 %v197, %v197
    %v347 = vpack.c.bf16 %v205, %v205
    %v348 = vpack.c.bf16 %v204, %v204
    %v349 = vpack.c.bf16 %v206, %v206
    %v350 = vpack.c.bf16 %v214, %v214
    %v351 = vpack.c.bf16 %v222, %v222
    %v352 = vpack.c.bf16 %v221, %v221
    %v353 = vpack.c.bf16 %v223, %v223
    %v354 = vpack.c.bf16 %v231, %v231
    %v355 = vpack.c.bf16 %v239, %v239
    %v356 = vpack.c.bf16 %v238, %v238
    %v357 = vpack.c.bf16 %v240, %v240
    %v358 = vpack.c.bf16 %v248, %v248
    %v359 = vpack.c.bf16 %v256, %v256
    %v360 = vpack.c.bf16 %v255, %v255
    %v361 = vpack.c.bf16 %v257, %v257
    %v362 = vpack.c.bf16 %v264, %v264
    %v363 = vld [vmem:[%s1] sm:$0xff]
    %v364 = vld [vmem:[%s1 + $0x8] sm:$0xff]
    %v365 = vld [vmem:[%s1 + $0x10] sm:$0xff]
    %v366 = vld [vmem:[%s1 + $0x18] sm:$0xff]
    %v367 = vld [vmem:[%s1 + $0x20] sm:$0xff]
    %v368 = vld [vmem:[%s1 + $0x28] sm:$0xff]
    %v369 = vld [vmem:[%s1 + $0x30] sm:$0xff]
    %v370 = vld [vmem:[%s1 + $0x38] sm:$0xff]
    %v371 = vld [vmem:[%s1 + $0x40] sm:$0xff]
    %v372 = vld [vmem:[%s1 + $0x48] sm:$0xff]
    %v373 = vld [vmem:[%s1 + $0x50] sm:$0xff]
    %v374 = vld [vmem:[%s1 + $0x58] sm:$0xff]
    %v375 = vld [vmem:[%s1 + $0x60] sm:$0xff]
    %v376 = vld [vmem:[%s1 + $0x68] sm:$0xff]
    %v377 = vld [vmem:[%s1 + $0x70] sm:$0xff]
    %v378 = vld [vmem:[%s1 + $0x78] sm:$0xff]
    %v379 = vld [vmem:[%s1 + $0x80] sm:$0xff]
    %v380 = vld [vmem:[%s1 + $0x88] sm:$0xff]
    %v381 = vld [vmem:[%s1 + $0x90] sm:$0xff]
    %v382 = vld [vmem:[%s1 + $0x98] sm:$0xff]
    %v383 = vld [vmem:[%s1 + $0xa0] sm:$0xff]
    %v384 = vld [vmem:[%s1 + $0xa8] sm:$0xff]
    %v385 = vld [vmem:[%s1 + $0xb0] sm:$0xff]
    %v386 = vld [vmem:[%s1 + $0xb8] sm:$0xff]
    %v387 = vld [vmem:[%s1 + $0xc0] sm:$0xff]
    %v388 = vld [vmem:[%s1 + $0xc8] sm:$0xff]
    %v389 = vld [vmem:[%s1 + $0xd0] sm:$0xff]
    %v390 = vld [vmem:[%s1 + $0xd8] sm:$0xff]
    %v391 = vld [vmem:[%s1 + $0xe0] sm:$0xff]
    %v392 = vld [vmem:[%s1 + $0xe8] sm:$0xff]
    %v393 = vld [vmem:[%s1 + $0xf0] sm:$0xff]
    %v394 = vld [vmem:[%s1 + $0xf8] sm:$0xff]
    %v395 = vld [vmem:[%s1 + $0x100] sm:$0xff]
    %v396 = vld [vmem:[%s1 + $0x108] sm:$0xff]
    %v397 = vld [vmem:[%s1 + $0x110] sm:$0xff]
    %v398 = vld [vmem:[%s1 + $0x118] sm:$0xff]
    %v399 = vld [vmem:[%s1 + $0x120] sm:$0xff]
    %v400 = vld [vmem:[%s1 + $0x128] sm:$0xff]
    %v401 = vld [vmem:[%s1 + $0x130] sm:$0xff]
    %v402 = vld [vmem:[%s1 + $0x138] sm:$0xff]
    %v403 = vld [vmem:[%s1 + $0x140] sm:$0xff]
    %v404 = vld [vmem:[%s1 + $0x148] sm:$0xff]
    %v405 = vld [vmem:[%s1 + $0x150] sm:$0xff]
    %v406 = vld [vmem:[%s1 + $0x158] sm:$0xff]
    %v407 = vld [vmem:[%s1 + $0x160] sm:$0xff]
    %v408 = vld [vmem:[%s1 + $0x168] sm:$0xff]
    %v409 = vld [vmem:[%s1 + $0x170] sm:$0xff]
    %v410 = vld [vmem:[%s1 + $0x178] sm:$0xff]
    %v411 = vld [vmem:[%s1 + $0x180] sm:$0xff]
    %v412 = vld [vmem:[%s1 + $0x188] sm:$0xff]
    %v413 = vld [vmem:[%s1 + $0x190] sm:$0xff]
    %v414 = vld [vmem:[%s1 + $0x198] sm:$0xff]
    %v415 = vld [vmem:[%s1 + $0x1a0] sm:$0xff]
    %v416 = vld [vmem:[%s1 + $0x1a8] sm:$0xff]
    %v417 = vld [vmem:[%s1 + $0x1b0] sm:$0xff]
    %v418 = vld [vmem:[%s1 + $0x1b8] sm:$0xff]
    %v419 = vld [vmem:[%s1 + $0x1c0] sm:$0xff]
    %v420 = vld [vmem:[%s1 + $0x1c8] sm:$0xff]
    %v421 = vld [vmem:[%s1 + $0x1d0] sm:$0xff]
    %v422 = vld [vmem:[%s1 + $0x1d8] sm:$0xff]
    %v423 = vld [vmem:[%s1 + $0x1e0] sm:$0xff]
    %v424 = vld [vmem:[%s1 + $0x1e8] sm:$0xff]
    %v425 = vld [vmem:[%s1 + $0x1f0] sm:$0xff]
    %v426 = vld [vmem:[%s1 + $0x1f8] sm:$0xff]
    %v427 = vld [vmem:[%s1 + $0x200] sm:$0xff]
    %v428 = vld [vmem:[%s1 + $0x208] sm:$0xff]
    %v429 = vld [vmem:[%s1 + $0x210] sm:$0xff]
    %v430 = vld [vmem:[%s1 + $0x218] sm:$0xff]
    %v431 = vld [vmem:[%s1 + $0x220] sm:$0xff]
    %v432 = vld [vmem:[%s1 + $0x228] sm:$0xff]
    %v433 = vld [vmem:[%s1 + $0x230] sm:$0xff]
    %v434 = vld [vmem:[%s1 + $0x238] sm:$0xff]
    %v435 = vld [vmem:[%s1 + $0x240] sm:$0xff]
    %v436 = vld [vmem:[%s1 + $0x248] sm:$0xff]
    %v437 = vld [vmem:[%s1 + $0x250] sm:$0xff]
    %v438 = vld [vmem:[%s1 + $0x258] sm:$0xff]
    %v439 = vld [vmem:[%s1 + $0x260] sm:$0xff]
    %v440 = vld [vmem:[%s1 + $0x268] sm:$0xff]
    %v441 = vld [vmem:[%s1 + $0x270] sm:$0xff]
    %v442 = vld [vmem:[%s1 + $0x278] sm:$0xff]
    %v443 = vld [vmem:[%s1 + $0x280] sm:$0xff]
    %v444 = vld [vmem:[%s1 + $0x288] sm:$0xff]
    %v445 = vld [vmem:[%s1 + $0x290] sm:$0xff]
    %v446 = vld [vmem:[%s1 + $0x298] sm:$0xff]
    %v447 = vld [vmem:[%s1 + $0x2a0] sm:$0xff]
    %v448 = vld [vmem:[%s1 + $0x2a8] sm:$0xff]
    %v449 = vld [vmem:[%s1 + $0x2b0] sm:$0xff]
    %v450 = vld [vmem:[%s1 + $0x2b8] sm:$0xff]
    %v451 = vld [vmem:[%s1 + $0x2c0] sm:$0xff]
    %v452 = vld [vmem:[%s1 + $0x2c8] sm:$0xff]
    %v453 = vld [vmem:[%s1 + $0x2d0] sm:$0xff]
    %v454 = vld [vmem:[%s1 + $0x2d8] sm:$0xff]
    %v455 = vld [vmem:[%s1 + $0x2e0] sm:$0xff]
    %v456 = vld [vmem:[%s1 + $0x2e8] sm:$0xff]
    %v457 = vld [vmem:[%s1 + $0x2f0] sm:$0xff]
    %v458 = vld [vmem:[%s1 + $0x2f8] sm:$0xff]
    %v459 = vld [vmem:[%s1 + $0x300] sm:$0xff]
    %v460 = vld [vmem:[%s1 + $0x308] sm:$0xff]
    %v461 = vld [vmem:[%s1 + $0x310] sm:$0xff]
    %v462 = vld [vmem:[%s1 + $0x318] sm:$0xff]
    %v463 = vld [vmem:[%s1 + $0x320] sm:$0xff]
    %v464 = vld [vmem:[%s1 + $0x328] sm:$0xff]
    %v465 = vld [vmem:[%s1 + $0x330] sm:$0xff]
    %v466 = vld [vmem:[%s1 + $0x338] sm:$0xff]
    %v467 = vld [vmem:[%s1 + $0x340] sm:$0xff]
    %v468 = vld [vmem:[%s1 + $0x348] sm:$0xff]
    %v469 = vld [vmem:[%s1 + $0x350] sm:$0xff]
    %v470 = vld [vmem:[%s1 + $0x358] sm:$0xff]
    %v471 = vld [vmem:[%s1 + $0x360] sm:$0xff]
    %v472 = vld [vmem:[%s1 + $0x368] sm:$0xff]
    %v473 = vld [vmem:[%s1 + $0x370] sm:$0xff]
    %v474 = vld [vmem:[%s1 + $0x378] sm:$0xff]
    %v475 = vld [vmem:[%s1 + $0x380] sm:$0xff]
    %v476 = vld [vmem:[%s1 + $0x388] sm:$0xff]
    %v477 = vld [vmem:[%s1 + $0x390] sm:$0xff]
    %v478 = vld [vmem:[%s1 + $0x398] sm:$0xff]
    %v479 = vld [vmem:[%s1 + $0x3a0] sm:$0xff]
    %v480 = vld [vmem:[%s1 + $0x3a8] sm:$0xff]
    %v481 = vld [vmem:[%s1 + $0x3b0] sm:$0xff]
    %v482 = vld [vmem:[%s1 + $0x3b8] sm:$0xff]
    %v483 = vld [vmem:[%s1 + $0x3c0] sm:$0xff]
    %v484 = vld [vmem:[%s1 + $0x3c8] sm:$0xff]
    %v485 = vld [vmem:[%s1 + $0x3d0] sm:$0xff]
    %v486 = vld [vmem:[%s1 + $0x3d8] sm:$0xff]
    %v487 = vld [vmem:[%s1 + $0x3e0] sm:$0xff]
    %v488 = vld [vmem:[%s1 + $0x3e8] sm:$0xff]
    %v489 = vld [vmem:[%s1 + $0x3f0] sm:$0xff]
    %v490 = vld [vmem:[%s1 + $0x3f8] sm:$0xff]
    %v491 = vld [vmem:[%s1 + $0x400] sm:$0xff]
    %v492 = vld [vmem:[%s1 + $0x408] sm:$0xff]
    %v493 = vld [vmem:[%s1 + $0x410] sm:$0xff]
    %v494 = vld [vmem:[%s1 + $0x418] sm:$0xff]
    %v495 = vld [vmem:[%s1 + $0x420] sm:$0xff]
    %v496 = vld [vmem:[%s1 + $0x428] sm:$0xff]
    %v497 = vld [vmem:[%s1 + $0x430] sm:$0xff]
    %v498 = vld [vmem:[%s1 + $0x438] sm:$0xff]
    %v499 = vld [vmem:[%s1 + $0x440] sm:$0xff]
    %v500 = vld [vmem:[%s1 + $0x448] sm:$0xff]
    %v501 = vld [vmem:[%s1 + $0x450] sm:$0xff]
    %v502 = vld [vmem:[%s1 + $0x458] sm:$0xff]
    %v503 = vld [vmem:[%s1 + $0x460] sm:$0xff]
    %v504 = vld [vmem:[%s1 + $0x468] sm:$0xff]
    %v505 = vld [vmem:[%s1 + $0x470] sm:$0xff]
    %v506 = vld [vmem:[%s1 + $0x478] sm:$0xff]
    %v507 = vld [vmem:[%s1 + $0x480] sm:$0xff]
    %v508 = vld [vmem:[%s1 + $0x488] sm:$0xff]
    %v509 = vld [vmem:[%s1 + $0x490] sm:$0xff]
    %v510 = vld [vmem:[%s1 + $0x498] sm:$0xff]
    %v511 = vld [vmem:[%s1 + $0x4a0] sm:$0xff]
    %v512 = vld [vmem:[%s1 + $0x4a8] sm:$0xff]
    %v513 = vld [vmem:[%s1 + $0x4b0] sm:$0xff]
    %v514 = vld [vmem:[%s1 + $0x4b8] sm:$0xff]
    %v515 = vld [vmem:[%s1 + $0x4c0] sm:$0xff]
    %v516 = vld [vmem:[%s1 + $0x4c8] sm:$0xff]
    %v517 = vld [vmem:[%s1 + $0x4d0] sm:$0xff]
    %v518 = vld [vmem:[%s1 + $0x4d8] sm:$0xff]
    %v519 = vld [vmem:[%s1 + $0x4e0] sm:$0xff]
    %v520 = vld [vmem:[%s1 + $0x4e8] sm:$0xff]
    %v521 = vld [vmem:[%s1 + $0x4f0] sm:$0xff]
    %v522 = vld [vmem:[%s1 + $0x4f8] sm:$0xff]
    %v523 = vld [vmem:[%s1 + $0x500] sm:$0xff]
    %v524 = vld [vmem:[%s1 + $0x508] sm:$0xff]
    %v525 = vld [vmem:[%s1 + $0x510] sm:$0xff]
    %v526 = vld [vmem:[%s1 + $0x518] sm:$0xff]
    %v527 = vld [vmem:[%s1 + $0x520] sm:$0xff]
    %v528 = vld [vmem:[%s1 + $0x528] sm:$0xff]
    %v529 = vld [vmem:[%s1 + $0x530] sm:$0xff]
    %v530 = vld [vmem:[%s1 + $0x538] sm:$0xff]
    %v531 = vld [vmem:[%s1 + $0x540] sm:$0xff]
    %v532 = vld [vmem:[%s1 + $0x548] sm:$0xff]
    %v533 = vld [vmem:[%s1 + $0x550] sm:$0xff]
    %v534 = vld [vmem:[%s1 + $0x558] sm:$0xff]
    %v535 = vld [vmem:[%s1 + $0x560] sm:$0xff]
    %v536 = vld [vmem:[%s1 + $0x568] sm:$0xff]
    %v537 = vld [vmem:[%s1 + $0x570] sm:$0xff]
    %v538 = vld [vmem:[%s1 + $0x578] sm:$0xff]
    %v539 = vld [vmem:[%s1 + $0x580] sm:$0xff]
    %v540 = vld [vmem:[%s1 + $0x588] sm:$0xff]
    %v541 = vld [vmem:[%s1 + $0x590] sm:$0xff]
    %v542 = vld [vmem:[%s1 + $0x598] sm:$0xff]
    %v543 = vld [vmem:[%s1 + $0x5a0] sm:$0xff]
    %v544 = vld [vmem:[%s1 + $0x5a8] sm:$0xff]
    %v545 = vld [vmem:[%s1 + $0x5b0] sm:$0xff]
    %v546 = vld [vmem:[%s1 + $0x5b8] sm:$0xff]
    %v547 = vld [vmem:[%s1 + $0x5c0] sm:$0xff]
    %v548 = vld [vmem:[%s1 + $0x5c8] sm:$0xff]
    %v549 = vld [vmem:[%s1 + $0x5d0] sm:$0xff]
    %v550 = vld [vmem:[%s1 + $0x5d8] sm:$0xff]
    %v551 = vld [vmem:[%s1 + $0x5e0] sm:$0xff]
    %v552 = vld [vmem:[%s1 + $0x5e8] sm:$0xff]
    %v553 = vld [vmem:[%s1 + $0x5f0] sm:$0xff]
    %v554 = vld [vmem:[%s1 + $0x5f8] sm:$0xff]
    %v555 = vld [vmem:[%s1 + $0x600] sm:$0xff]
    %v556 = vld [vmem:[%s1 + $0x608] sm:$0xff]
    %v557 = vld [vmem:[%s1 + $0x610] sm:$0xff]
    %v558 = vld [vmem:[%s1 + $0x618] sm:$0xff]
    %v559 = vld [vmem:[%s1 + $0x620] sm:$0xff]
    %v560 = vld [vmem:[%s1 + $0x628] sm:$0xff]
    %v561 = vld [vmem:[%s1 + $0x630] sm:$0xff]
    %v562 = vld [vmem:[%s1 + $0x638] sm:$0xff]
    %v563 = vld [vmem:[%s1 + $0x640] sm:$0xff]
    %v564 = vld [vmem:[%s1 + $0x648] sm:$0xff]
    %v565 = vld [vmem:[%s1 + $0x650] sm:$0xff]
    %v566 = vld [vmem:[%s1 + $0x658] sm:$0xff]
    %v567 = vld [vmem:[%s1 + $0x660] sm:$0xff]
    %v568 = vld [vmem:[%s1 + $0x668] sm:$0xff]
    %v569 = vld [vmem:[%s1 + $0x670] sm:$0xff]
    %v570 = vld [vmem:[%s1 + $0x678] sm:$0xff]
    %v571 = vld [vmem:[%s1 + $0x680] sm:$0xff]
    %v572 = vld [vmem:[%s1 + $0x688] sm:$0xff]
    %v573 = vld [vmem:[%s1 + $0x690] sm:$0xff]
    %v574 = vld [vmem:[%s1 + $0x698] sm:$0xff]
    %v575 = vld [vmem:[%s1 + $0x6a0] sm:$0xff]
    %v576 = vld [vmem:[%s1 + $0x6a8] sm:$0xff]
    %v577 = vld [vmem:[%s1 + $0x6b0] sm:$0xff]
    %v578 = vld [vmem:[%s1 + $0x6b8] sm:$0xff]
    %v579 = vld [vmem:[%s1 + $0x6c0] sm:$0xff]
    %v580 = vld [vmem:[%s1 + $0x6c8] sm:$0xff]
    %v581 = vld [vmem:[%s1 + $0x6d0] sm:$0xff]
    %v582 = vld [vmem:[%s1 + $0x6d8] sm:$0xff]
    %v583 = vld [vmem:[%s1 + $0x6e0] sm:$0xff]
    %v584 = vld [vmem:[%s1 + $0x6e8] sm:$0xff]
    %v585 = vld [vmem:[%s1 + $0x6f0] sm:$0xff]
    %v586 = vld [vmem:[%s1 + $0x6f8] sm:$0xff]
    %v587 = vld [vmem:[%s1 + $0x700] sm:$0xff]
    %v588 = vld [vmem:[%s1 + $0x708] sm:$0xff]
    %v589 = vld [vmem:[%s1 + $0x710] sm:$0xff]
    %v590 = vld [vmem:[%s1 + $0x718] sm:$0xff]
    %v591 = vld [vmem:[%s1 + $0x720] sm:$0xff]
    %v592 = vld [vmem:[%s1 + $0x728] sm:$0xff]
    %v593 = vld [vmem:[%s1 + $0x730] sm:$0xff]
    %v594 = vld [vmem:[%s1 + $0x738] sm:$0xff]
    %v595 = vld [vmem:[%s1 + $0x740] sm:$0xff]
    %v596 = vld [vmem:[%s1 + $0x748] sm:$0xff]
    %v597 = vld [vmem:[%s1 + $0x750] sm:$0xff]
    %v598 = vld [vmem:[%s1 + $0x758] sm:$0xff]
    %v599 = vld [vmem:[%s1 + $0x760] sm:$0xff]
    %v600 = vld [vmem:[%s1 + $0x768] sm:$0xff]
    %v601 = vld [vmem:[%s1 + $0x770] sm:$0xff]
    %v602 = vld [vmem:[%s1 + $0x778] sm:$0xff]
    %v603 = vld [vmem:[%s1 + $0x780] sm:$0xff]
    %v604 = vld [vmem:[%s1 + $0x788] sm:$0xff]
    %v605 = vld [vmem:[%s1 + $0x790] sm:$0xff]
    %v606 = vld [vmem:[%s1 + $0x798] sm:$0xff]
    %v607 = vld [vmem:[%s1 + $0x7a0] sm:$0xff]
    %v608 = vld [vmem:[%s1 + $0x7a8] sm:$0xff]
    %v609 = vld [vmem:[%s1 + $0x7b0] sm:$0xff]
    %v610 = vld [vmem:[%s1 + $0x7b8] sm:$0xff]
    %v611 = vld [vmem:[%s1 + $0x7c0] sm:$0xff]
    %v612 = vld [vmem:[%s1 + $0x7c8] sm:$0xff]
    %v613 = vld [vmem:[%s1 + $0x7d0] sm:$0xff]
    %v614 = vld [vmem:[%s1 + $0x7d8] sm:$0xff]
    %v615 = vld [vmem:[%s1 + $0x7e0] sm:$0xff]
    %v616 = vld [vmem:[%s1 + $0x7e8] sm:$0xff]
    %v617 = vld [vmem:[%s1 + $0x7f0] sm:$0xff]
    %v618 = vld [vmem:[%s1 + $0x7f8] sm:$0xff]
    %v619 = vld [vmem:[%s1 + $0x800] sm:$0xff]
    %v620 = vld [vmem:[%s1 + $0x808] sm:$0xff]
    %v621 = vld [vmem:[%s1 + $0x810] sm:$0xff]
    %v622 = vld [vmem:[%s1 + $0x818] sm:$0xff]
    %v623 = vld [vmem:[%s1 + $0x820] sm:$0xff]
    %v624 = vld [vmem:[%s1 + $0x828] sm:$0xff]
    %v625 = vld [vmem:[%s1 + $0x830] sm:$0xff]
    %v626 = vld [vmem:[%s1 + $0x838] sm:$0xff]
    %v627 = vld [vmem:[%s1 + $0x840] sm:$0xff]
    %v628 = vld [vmem:[%s1 + $0x848] sm:$0xff]
    %v629 = vld [vmem:[%s1 + $0x850] sm:$0xff]
    %v630 = vld [vmem:[%s1 + $0x858] sm:$0xff]
    %v631 = vld [vmem:[%s1 + $0x860] sm:$0xff]
    %v632 = vld [vmem:[%s1 + $0x868] sm:$0xff]
    %v633 = vld [vmem:[%s1 + $0x870] sm:$0xff]
    %v634 = vld [vmem:[%s1 + $0x878] sm:$0xff]
    %v635 = vld [vmem:[%s1 + $0x880] sm:$0xff]
    %v636 = vld [vmem:[%s1 + $0x888] sm:$0xff]
    %v637 = vld [vmem:[%s1 + $0x890] sm:$0xff]
    %v638 = vld [vmem:[%s1 + $0x898] sm:$0xff]
    %v639 = vld [vmem:[%s1 + $0x8a0] sm:$0xff]
    %v640 = vld [vmem:[%s1 + $0x8a8] sm:$0xff]
    %v641 = vld [vmem:[%s1 + $0x8b0] sm:$0xff]
    %v642 = vld [vmem:[%s1 + $0x8b8] sm:$0xff]
    %v643 = vld [vmem:[%s1 + $0x8c0] sm:$0xff]
    %v644 = vld [vmem:[%s1 + $0x8c8] sm:$0xff]
    %v645 = vld [vmem:[%s1 + $0x8d0] sm:$0xff]
    %v646 = vld [vmem:[%s1 + $0x8d8] sm:$0xff]
    %v647 = vld [vmem:[%s1 + $0x8e0] sm:$0xff]
    %v648 = vld [vmem:[%s1 + $0x8e8] sm:$0xff]
    %v649 = vld [vmem:[%s1 + $0x8f0] sm:$0xff]
    %v650 = vld [vmem:[%s1 + $0x8f8] sm:$0xff]
    %v651 = vld [vmem:[%s1 + $0x900] sm:$0xff]
    %v652 = vld [vmem:[%s1 + $0x908] sm:$0xff]
    %v653 = vld [vmem:[%s1 + $0x910] sm:$0xff]
    %v654 = vld [vmem:[%s1 + $0x918] sm:$0xff]
    %v655 = vld [vmem:[%s1 + $0x920] sm:$0xff]
    %v656 = vld [vmem:[%s1 + $0x928] sm:$0xff]
    %v657 = vld [vmem:[%s1 + $0x930] sm:$0xff]
    %v658 = vld [vmem:[%s1 + $0x938] sm:$0xff]
    %v659 = vld [vmem:[%s1 + $0x940] sm:$0xff]
    %v660 = vld [vmem:[%s1 + $0x948] sm:$0xff]
    %v661 = vld [vmem:[%s1 + $0x950] sm:$0xff]
    %v662 = vld [vmem:[%s1 + $0x958] sm:$0xff]
    %v663 = vld [vmem:[%s1 + $0x960] sm:$0xff]
    %v664 = vld [vmem:[%s1 + $0x968] sm:$0xff]
    %v665 = vld [vmem:[%s1 + $0x970] sm:$0xff]
    %v666 = vld [vmem:[%s1 + $0x978] sm:$0xff]
    %v667 = vld [vmem:[%s1 + $0x980] sm:$0xff]
    %v668 = vld [vmem:[%s1 + $0x988] sm:$0xff]
    %v669 = vld [vmem:[%s1 + $0x990] sm:$0xff]
    %v670 = vld [vmem:[%s1 + $0x998] sm:$0xff]
    %v671 = vld [vmem:[%s1 + $0x9a0] sm:$0xff]
    %v672 = vld [vmem:[%s1 + $0x9a8] sm:$0xff]
    %v673 = vld [vmem:[%s1 + $0x9b0] sm:$0xff]
    %v674 = vld [vmem:[%s1 + $0x9b8] sm:$0xff]
    %v675 = vld [vmem:[%s1 + $0x9c0] sm:$0xff]
    %v676 = vld [vmem:[%s1 + $0x9c8] sm:$0xff]
    %v677 = vld [vmem:[%s1 + $0x9d0] sm:$0xff]
    %v678 = vld [vmem:[%s1 + $0x9d8] sm:$0xff]
    %v679 = vld [vmem:[%s1 + $0x9e0] sm:$0xff]
    %v680 = vld [vmem:[%s1 + $0x9e8] sm:$0xff]
    %v681 = vld [vmem:[%s1 + $0x9f0] sm:$0xff]
    %v682 = vld [vmem:[%s1 + $0x9f8] sm:$0xff]
    %v683 = vld [vmem:[%s1 + $0xa00] sm:$0xff]
    %v684 = vld [vmem:[%s1 + $0xa08] sm:$0xff]
    %v685 = vld [vmem:[%s1 + $0xa10] sm:$0xff]
    %v686 = vld [vmem:[%s1 + $0xa18] sm:$0xff]
    %v687 = vld [vmem:[%s1 + $0xa20] sm:$0xff]
    %v688 = vld [vmem:[%s1 + $0xa28] sm:$0xff]
    %v689 = vld [vmem:[%s1 + $0xa30] sm:$0xff]
    %v690 = vld [vmem:[%s1 + $0xa38] sm:$0xff]
    %v691 = vld [vmem:[%s1 + $0xa40] sm:$0xff]
    %v692 = vld [vmem:[%s1 + $0xa48] sm:$0xff]
    %v693 = vld [vmem:[%s1 + $0xa50] sm:$0xff]
    %v694 = vld [vmem:[%s1 + $0xa58] sm:$0xff]
    %v695 = vld [vmem:[%s1 + $0xa60] sm:$0xff]
    %v696 = vld [vmem:[%s1 + $0xa68] sm:$0xff]
    %v697 = vld [vmem:[%s1 + $0xa70] sm:$0xff]
    %v698 = vld [vmem:[%s1 + $0xa78] sm:$0xff]
    %v699 = vld [vmem:[%s1 + $0xa80] sm:$0xff]
    %v700 = vld [vmem:[%s1 + $0xa88] sm:$0xff]
    %v701 = vld [vmem:[%s1 + $0xa90] sm:$0xff]
    %v702 = vld [vmem:[%s1 + $0xa98] sm:$0xff]
    %v703 = vld [vmem:[%s1 + $0xaa0] sm:$0xff]
    %v704 = vld [vmem:[%s1 + $0xaa8] sm:$0xff]
    %v705 = vld [vmem:[%s1 + $0xab0] sm:$0xff]
    %v706 = vld [vmem:[%s1 + $0xab8] sm:$0xff]
    %v707 = vld [vmem:[%s1 + $0xac0] sm:$0xff]
    %v708 = vld [vmem:[%s1 + $0xac8] sm:$0xff]
    %v709 = vld [vmem:[%s1 + $0xad0] sm:$0xff]
    %v710 = vld [vmem:[%s1 + $0xad8] sm:$0xff]
    %v711 = vld [vmem:[%s1 + $0xae0] sm:$0xff]
    %v712 = vld [vmem:[%s1 + $0xae8] sm:$0xff]
    %v713 = vld [vmem:[%s1 + $0xaf0] sm:$0xff]
    %v714 = vld [vmem:[%s1 + $0xaf8] sm:$0xff]
    %v715 = vld [vmem:[%s1 + $0xb00] sm:$0xff]
    %v716 = vld [vmem:[%s1 + $0xb08] sm:$0xff]
    %v717 = vld [vmem:[%s1 + $0xb10] sm:$0xff]
    %v718 = vld [vmem:[%s1 + $0xb18] sm:$0xff]
    %v719 = vld [vmem:[%s1 + $0xb20] sm:$0xff]
    %v720 = vld [vmem:[%s1 + $0xb28] sm:$0xff]
    %v721 = vld [vmem:[%s1 + $0xb30] sm:$0xff]
    %v722 = vld [vmem:[%s1 + $0xb38] sm:$0xff]
    %v723 = vld [vmem:[%s1 + $0xb40] sm:$0xff]
    %v724 = vld [vmem:[%s1 + $0xb48] sm:$0xff]
    %v725 = vld [vmem:[%s1 + $0xb50] sm:$0xff]
    %v726 = vld [vmem:[%s1 + $0xb58] sm:$0xff]
    %v727 = vld [vmem:[%s1 + $0xb60] sm:$0xff]
    %v728 = vld [vmem:[%s1 + $0xb68] sm:$0xff]
    %v729 = vld [vmem:[%s1 + $0xb70] sm:$0xff]
    %v730 = vld [vmem:[%s1 + $0xb78] sm:$0xff]
    %v731 = vld [vmem:[%s1 + $0xb80] sm:$0xff]
    %v732 = vld [vmem:[%s1 + $0xb88] sm:$0xff]
    %v733 = vld [vmem:[%s1 + $0xb90] sm:$0xff]
    %v734 = vld [vmem:[%s1 + $0xb98] sm:$0xff]
    %v735 = vld [vmem:[%s1 + $0xba0] sm:$0xff]
    %v736 = vld [vmem:[%s1 + $0xba8] sm:$0xff]
    %v737 = vld [vmem:[%s1 + $0xbb0] sm:$0xff]
    %v738 = vld [vmem:[%s1 + $0xbb8] sm:$0xff]
    %v739 = vld [vmem:[%s1 + $0xbc0] sm:$0xff]
    %v740 = vld [vmem:[%s1 + $0xbc8] sm:$0xff]
    %v741 = vld [vmem:[%s1 + $0xbd0] sm:$0xff]
    %v742 = vld [vmem:[%s1 + $0xbd8] sm:$0xff]
    %v743 = vld [vmem:[%s1 + $0xbe0] sm:$0xff]
    %v744 = vld [vmem:[%s1 + $0xbe8] sm:$0xff]
    %v745 = vld [vmem:[%s1 + $0xbf0] sm:$0xff]
    %v746 = vld [vmem:[%s1 + $0xbf8] sm:$0xff]
    %v747 = vld [vmem:[%s1 + $0xc00] sm:$0xff]
    %v748 = vld [vmem:[%s1 + $0xc08] sm:$0xff]
    %v749 = vld [vmem:[%s1 + $0xc10] sm:$0xff]
    %v750 = vld [vmem:[%s1 + $0xc18] sm:$0xff]
    %v751 = vld [vmem:[%s1 + $0xc20] sm:$0xff]
    %v752 = vld [vmem:[%s1 + $0xc28] sm:$0xff]
    %v753 = vld [vmem:[%s1 + $0xc30] sm:$0xff]
    %v754 = vld [vmem:[%s1 + $0xc38] sm:$0xff]
    %v755 = vld [vmem:[%s1 + $0xc40] sm:$0xff]
    %v756 = vld [vmem:[%s1 + $0xc48] sm:$0xff]
    %v757 = vld [vmem:[%s1 + $0xc50] sm:$0xff]
    %v758 = vld [vmem:[%s1 + $0xc58] sm:$0xff]
    %v759 = vld [vmem:[%s1 + $0xc60] sm:$0xff]
    %v760 = vld [vmem:[%s1 + $0xc68] sm:$0xff]
    %v761 = vld [vmem:[%s1 + $0xc70] sm:$0xff]
    %v762 = vld [vmem:[%s1 + $0xc78] sm:$0xff]
    %v763 = vld [vmem:[%s1 + $0xc80] sm:$0xff]
    %v764 = vld [vmem:[%s1 + $0xc88] sm:$0xff]
    %v765 = vld [vmem:[%s1 + $0xc90] sm:$0xff]
    %v766 = vld [vmem:[%s1 + $0xc98] sm:$0xff]
    %v767 = vld [vmem:[%s1 + $0xca0] sm:$0xff]
    %v768 = vld [vmem:[%s1 + $0xca8] sm:$0xff]
    %v769 = vld [vmem:[%s1 + $0xcb0] sm:$0xff]
    %v770 = vld [vmem:[%s1 + $0xcb8] sm:$0xff]
    %v771 = vld [vmem:[%s1 + $0xcc0] sm:$0xff]
    %v772 = vld [vmem:[%s1 + $0xcc8] sm:$0xff]
    %v773 = vld [vmem:[%s1 + $0xcd0] sm:$0xff]
    %v774 = vld [vmem:[%s1 + $0xcd8] sm:$0xff]
    %v775 = vld [vmem:[%s1 + $0xce0] sm:$0xff]
    %v776 = vld [vmem:[%s1 + $0xce8] sm:$0xff]
    %v777 = vld [vmem:[%s1 + $0xcf0] sm:$0xff]
    %v778 = vld [vmem:[%s1 + $0xcf8] sm:$0xff]
    %v779 = vld [vmem:[%s1 + $0xd00] sm:$0xff]
    %v780 = vld [vmem:[%s1 + $0xd08] sm:$0xff]
    %v781 = vld [vmem:[%s1 + $0xd10] sm:$0xff]
    %v782 = vld [vmem:[%s1 + $0xd18] sm:$0xff]
    %v783 = vld [vmem:[%s1 + $0xd20] sm:$0xff]
    %v784 = vld [vmem:[%s1 + $0xd28] sm:$0xff]
    %v785 = vld [vmem:[%s1 + $0xd30] sm:$0xff]
    %v786 = vld [vmem:[%s1 + $0xd38] sm:$0xff]
    %v787 = vld [vmem:[%s1 + $0xd40] sm:$0xff]
    %v788 = vld [vmem:[%s1 + $0xd48] sm:$0xff]
    %v789 = vld [vmem:[%s1 + $0xd50] sm:$0xff]
    %v790 = vld [vmem:[%s1 + $0xd58] sm:$0xff]
    %v791 = vld [vmem:[%s1 + $0xd60] sm:$0xff]
    %v792 = vld [vmem:[%s1 + $0xd68] sm:$0xff]
    %v793 = vld [vmem:[%s1 + $0xd70] sm:$0xff]
    %v794 = vld [vmem:[%s1 + $0xd78] sm:$0xff]
    %v795 = vld [vmem:[%s1 + $0xd80] sm:$0xff]
    %v796 = vld [vmem:[%s1 + $0xd88] sm:$0xff]
    %v797 = vld [vmem:[%s1 + $0xd90] sm:$0xff]
    %v798 = vld [vmem:[%s1 + $0xd98] sm:$0xff]
    %v799 = vld [vmem:[%s1 + $0xda0] sm:$0xff]
    %v800 = vld [vmem:[%s1 + $0xda8] sm:$0xff]
    %v801 = vld [vmem:[%s1 + $0xdb0] sm:$0xff]
    %v802 = vld [vmem:[%s1 + $0xdb8] sm:$0xff]
    %v803 = vld [vmem:[%s1 + $0xdc0] sm:$0xff]
    %v804 = vld [vmem:[%s1 + $0xdc8] sm:$0xff]
    %v805 = vld [vmem:[%s1 + $0xdd0] sm:$0xff]
    %v806 = vld [vmem:[%s1 + $0xdd8] sm:$0xff]
    %v807 = vld [vmem:[%s1 + $0xde0] sm:$0xff]
    %v808 = vld [vmem:[%s1 + $0xde8] sm:$0xff]
    %v809 = vld [vmem:[%s1 + $0xdf0] sm:$0xff]
    %v810 = vld [vmem:[%s1 + $0xdf8] sm:$0xff]
    %v811 = vld [vmem:[%s1 + $0xe00] sm:$0xff]
    %v812 = vld [vmem:[%s1 + $0xe08] sm:$0xff]
    %v813 = vld [vmem:[%s1 + $0xe10] sm:$0xff]
    %v814 = vld [vmem:[%s1 + $0xe18] sm:$0xff]
    %v815 = vld [vmem:[%s1 + $0xe20] sm:$0xff]
    %v816 = vld [vmem:[%s1 + $0xe28] sm:$0xff]
    %v817 = vld [vmem:[%s1 + $0xe30] sm:$0xff]
    %v818 = vld [vmem:[%s1 + $0xe38] sm:$0xff]
    %v819 = vld [vmem:[%s1 + $0xe40] sm:$0xff]
    %v820 = vld [vmem:[%s1 + $0xe48] sm:$0xff]
    %v821 = vld [vmem:[%s1 + $0xe50] sm:$0xff]
    %v822 = vld [vmem:[%s1 + $0xe58] sm:$0xff]
    %v823 = vld [vmem:[%s1 + $0xe60] sm:$0xff]
    %v824 = vld [vmem:[%s1 + $0xe68] sm:$0xff]
    %v825 = vld [vmem:[%s1 + $0xe70] sm:$0xff]
    %v826 = vld [vmem:[%s1 + $0xe78] sm:$0xff]
    %v827 = vld [vmem:[%s1 + $0xe80] sm:$0xff]
    %v828 = vld [vmem:[%s1 + $0xe88] sm:$0xff]
    %v829 = vld [vmem:[%s1 + $0xe90] sm:$0xff]
    %v830 = vld [vmem:[%s1 + $0xe98] sm:$0xff]
    %v831 = vld [vmem:[%s1 + $0xea0] sm:$0xff]
    %v832 = vld [vmem:[%s1 + $0xea8] sm:$0xff]
    %v833 = vld [vmem:[%s1 + $0xeb0] sm:$0xff]
    %v834 = vld [vmem:[%s1 + $0xeb8] sm:$0xff]
    %v835 = vld [vmem:[%s1 + $0xec0] sm:$0xff]
    %v836 = vld [vmem:[%s1 + $0xec8] sm:$0xff]
    %v837 = vld [vmem:[%s1 + $0xed0] sm:$0xff]
    %v838 = vld [vmem:[%s1 + $0xed8] sm:$0xff]
    %v839 = vld [vmem:[%s1 + $0xee0] sm:$0xff]
    %v840 = vld [vmem:[%s1 + $0xee8] sm:$0xff]
    %v841 = vld [vmem:[%s1 + $0xef0] sm:$0xff]
    %v842 = vld [vmem:[%s1 + $0xef8] sm:$0xff]
    %v843 = vld [vmem:[%s1 + $0xf00] sm:$0xff]
    %v844 = vld [vmem:[%s1 + $0xf08] sm:$0xff]
    %v845 = vld [vmem:[%s1 + $0xf10] sm:$0xff]
    %v846 = vld [vmem:[%s1 + $0xf18] sm:$0xff]
    %v847 = vld [vmem:[%s1 + $0xf20] sm:$0xff]
    %v848 = vld [vmem:[%s1 + $0xf28] sm:$0xff]
    %v849 = vld [vmem:[%s1 + $0xf30] sm:$0xff]
    %v850 = vld [vmem:[%s1 + $0xf38] sm:$0xff]
    %v851 = vld [vmem:[%s1 + $0xf40] sm:$0xff]
    %v852 = vld [vmem:[%s1 + $0xf48] sm:$0xff]
    %v853 = vld [vmem:[%s1 + $0xf50] sm:$0xff]
    %v854 = vld [vmem:[%s1 + $0xf58] sm:$0xff]
    %v855 = vld [vmem:[%s1 + $0xf60] sm:$0xff]
    %v856 = vld [vmem:[%s1 + $0xf68] sm:$0xff]
    %v857 = vld [vmem:[%s1 + $0xf70] sm:$0xff]
    %v858 = vld [vmem:[%s1 + $0xf78] sm:$0xff]
    %v859 = vld [vmem:[%s1 + $0xf80] sm:$0xff]
    %v860 = vld [vmem:[%s1 + $0xf88] sm:$0xff]
    %v861 = vld [vmem:[%s1 + $0xf90] sm:$0xff]
    %v862 = vld [vmem:[%s1 + $0xf98] sm:$0xff]
    %v863 = vld [vmem:[%s1 + $0xfa0] sm:$0xff]
    %v864 = vld [vmem:[%s1 + $0xfa8] sm:$0xff]
    %v865 = vld [vmem:[%s1 + $0xfb0] sm:$0xff]
    %v866 = vld [vmem:[%s1 + $0xfb8] sm:$0xff]
    %v867 = vld [vmem:[%s1 + $0xfc0] sm:$0xff]
    %v868 = vld [vmem:[%s1 + $0xfc8] sm:$0xff]
    %v869 = vld [vmem:[%s1 + $0xfd0] sm:$0xff]
    %v870 = vld [vmem:[%s1 + $0xfd8] sm:$0xff]
    %v871 = vld [vmem:[%s1 + $0xfe0] sm:$0xff]
    %v872 = vld [vmem:[%s1 + $0xfe8] sm:$0xff]
    %v873 = vld [vmem:[%s1 + $0xff0] sm:$0xff]
    %v874 = vld [vmem:[%s1 + $0xff8] sm:$0xff]
    %v875 = vld [vmem:[%s1 + $0x1000] sm:$0xff]
    %v876 = vld [vmem:[%s1 + $0x1008] sm:$0xff]
    %v877 = vld [vmem:[%s1 + $0x1010] sm:$0xff]
    %v878 = vld [vmem:[%s1 + $0x1018] sm:$0xff]
    %v879 = vld [vmem:[%s1 + $0x1020] sm:$0xff]
    %v880 = vld [vmem:[%s1 + $0x1028] sm:$0xff]
    %v881 = vld [vmem:[%s1 + $0x1030] sm:$0xff]
    %v882 = vld [vmem:[%s1 + $0x1038] sm:$0xff]
    %v883 = vld [vmem:[%s1 + $0x1040] sm:$0xff]
    %v884 = vld [vmem:[%s1 + $0x1048] sm:$0xff]
    %v885 = vld [vmem:[%s1 + $0x1050] sm:$0xff]
    %v886 = vld [vmem:[%s1 + $0x1058] sm:$0xff]
    %v887 = vld [vmem:[%s1 + $0x1060] sm:$0xff]
    %v888 = vld [vmem:[%s1 + $0x1068] sm:$0xff]
    %v889 = vld [vmem:[%s1 + $0x1070] sm:$0xff]
    %v890 = vld [vmem:[%s1 + $0x1078] sm:$0xff]
    %v891 = vld [vmem:[%s1 + $0x1080] sm:$0xff]
    %v892 = vld [vmem:[%s1 + $0x1088] sm:$0xff]
    %v893 = vld [vmem:[%s1 + $0x1090] sm:$0xff]
    %v894 = vld [vmem:[%s1 + $0x1098] sm:$0xff]
    %v895 = vld [vmem:[%s1 + $0x10a0] sm:$0xff]
    %v896 = vld [vmem:[%s1 + $0x10a8] sm:$0xff]
    %v897 = vld [vmem:[%s1 + $0x10b0] sm:$0xff]
    %v898 = vld [vmem:[%s1 + $0x10b8] sm:$0xff]
    %v899 = vld [vmem:[%s1 + $0x10c0] sm:$0xff]
    %v900 = vld [vmem:[%s1 + $0x10c8] sm:$0xff]
    %v901 = vld [vmem:[%s1 + $0x10d0] sm:$0xff]
    %v902 = vld [vmem:[%s1 + $0x10d8] sm:$0xff]
    %v903 = vld [vmem:[%s1 + $0x10e0] sm:$0xff]
    %v904 = vld [vmem:[%s1 + $0x10e8] sm:$0xff]
    %v905 = vld [vmem:[%s1 + $0x10f0] sm:$0xff]
    %v906 = vld [vmem:[%s1 + $0x10f8] sm:$0xff]
    %v907 = vld [vmem:[%s1 + $0x1100] sm:$0xff]
    %v908 = vld [vmem:[%s1 + $0x1108] sm:$0xff]
    %v909 = vld [vmem:[%s1 + $0x1110] sm:$0xff]
    %v910 = vld [vmem:[%s1 + $0x1118] sm:$0xff]
    %v911 = vld [vmem:[%s1 + $0x1120] sm:$0xff]
    %v912 = vld [vmem:[%s1 + $0x1128] sm:$0xff]
    %v913 = vld [vmem:[%s1 + $0x1130] sm:$0xff]
    %v914 = vld [vmem:[%s1 + $0x1138] sm:$0xff]
    %v915 = vld [vmem:[%s1 + $0x1140] sm:$0xff]
    %v916 = vld [vmem:[%s1 + $0x1148] sm:$0xff]
    %v917 = vld [vmem:[%s1 + $0x1150] sm:$0xff]
    %v918 = vld [vmem:[%s1 + $0x1158] sm:$0xff]
    %v919 = vld [vmem:[%s1 + $0x1160] sm:$0xff]
    %v920 = vld [vmem:[%s1 + $0x1168] sm:$0xff]
    %v921 = vld [vmem:[%s1 + $0x1170] sm:$0xff]
    %v922 = vld [vmem:[%s1 + $0x1178] sm:$0xff]
    %v923 = vld [vmem:[%s1 + $0x1180] sm:$0xff]
    %v924 = vld [vmem:[%s1 + $0x1188] sm:$0xff]
    %v925 = vld [vmem:[%s1 + $0x1190] sm:$0xff]
    %v926 = vld [vmem:[%s1 + $0x1198] sm:$0xff]
    %v927 = vld [vmem:[%s1 + $0x11a0] sm:$0xff]
    %v928 = vld [vmem:[%s1 + $0x11a8] sm:$0xff]
    %v929 = vld [vmem:[%s1 + $0x11b0] sm:$0xff]
    %v930 = vld [vmem:[%s1 + $0x11b8] sm:$0xff]
    %v931 = vld [vmem:[%s1 + $0x11c0] sm:$0xff]
    %v932 = vld [vmem:[%s1 + $0x11c8] sm:$0xff]
    %v933 = vld [vmem:[%s1 + $0x11d0] sm:$0xff]
    %v934 = vld [vmem:[%s1 + $0x11d8] sm:$0xff]
    %v935 = vld [vmem:[%s1 + $0x11e0] sm:$0xff]
    %v936 = vld [vmem:[%s1 + $0x11e8] sm:$0xff]
    %v937 = vld [vmem:[%s1 + $0x11f0] sm:$0xff]
    %v938 = vld [vmem:[%s1 + $0x11f8] sm:$0xff]
    %v939 = vld [vmem:[%s1 + $0x1200] sm:$0xff]
    %v940 = vld [vmem:[%s1 + $0x1208] sm:$0xff]
    %v941 = vld [vmem:[%s1 + $0x1210] sm:$0xff]
    %v942 = vld [vmem:[%s1 + $0x1218] sm:$0xff]
    %v943 = vld [vmem:[%s1 + $0x1220] sm:$0xff]
    %v944 = vld [vmem:[%s1 + $0x1228] sm:$0xff]
    %v945 = vld [vmem:[%s1 + $0x1230] sm:$0xff]
    %v946 = vld [vmem:[%s1 + $0x1238] sm:$0xff]
    %v947 = vld [vmem:[%s1 + $0x1240] sm:$0xff]
    %v948 = vld [vmem:[%s1 + $0x1248] sm:$0xff]
    %v949 = vld [vmem:[%s1 + $0x1250] sm:$0xff]
    %v950 = vld [vmem:[%s1 + $0x1258] sm:$0xff]
    %v951 = vld [vmem:[%s1 + $0x1260] sm:$0xff]
    %v952 = vld [vmem:[%s1 + $0x1268] sm:$0xff]
    %v953 = vld [vmem:[%s1 + $0x1270] sm:$0xff]
    %v954 = vld [vmem:[%s1 + $0x1278] sm:$0xff]
    %v955 = vld [vmem:[%s1 + $0x1280] sm:$0xff]
    %v956 = vld [vmem:[%s1 + $0x1288] sm:$0xff]
    %v957 = vld [vmem:[%s1 + $0x1290] sm:$0xff]
    %v958 = vld [vmem:[%s1 + $0x1298] sm:$0xff]
    %v959 = vld [vmem:[%s1 + $0x12a0] sm:$0xff]
    %v960 = vld [vmem:[%s1 + $0x12a8] sm:$0xff]
    %v961 = vld [vmem:[%s1 + $0x12b0] sm:$0xff]
    %v962 = vld [vmem:[%s1 + $0x12b8] sm:$0xff]
    %v963 = vld [vmem:[%s1 + $0x12c0] sm:$0xff]
    %v964 = vld [vmem:[%s1 + $0x12c8] sm:$0xff]
    %v965 = vld [vmem:[%s1 + $0x12d0] sm:$0xff]
    %v966 = vld [vmem:[%s1 + $0x12d8] sm:$0xff]
    %v967 = vld [vmem:[%s1 + $0x12e0] sm:$0xff]
    %v968 = vld [vmem:[%s1 + $0x12e8] sm:$0xff]
    %v969 = vld [vmem:[%s1 + $0x12f0] sm:$0xff]
    %v970 = vld [vmem:[%s1 + $0x12f8] sm:$0xff]
    %v971 = vld [vmem:[%s1 + $0x1300] sm:$0xff]
    %v972 = vld [vmem:[%s1 + $0x1308] sm:$0xff]
    %v973 = vld [vmem:[%s1 + $0x1310] sm:$0xff]
    %v974 = vld [vmem:[%s1 + $0x1318] sm:$0xff]
    %v975 = vld [vmem:[%s1 + $0x1320] sm:$0xff]
    %v976 = vld [vmem:[%s1 + $0x1328] sm:$0xff]
    %v977 = vld [vmem:[%s1 + $0x1330] sm:$0xff]
    %v978 = vld [vmem:[%s1 + $0x1338] sm:$0xff]
    %v979 = vld [vmem:[%s1 + $0x1340] sm:$0xff]
    %v980 = vld [vmem:[%s1 + $0x1348] sm:$0xff]
    %v981 = vld [vmem:[%s1 + $0x1350] sm:$0xff]
    %v982 = vld [vmem:[%s1 + $0x1358] sm:$0xff]
    %v983 = vld [vmem:[%s1 + $0x1360] sm:$0xff]
    %v984 = vld [vmem:[%s1 + $0x1368] sm:$0xff]
    %v985 = vld [vmem:[%s1 + $0x1370] sm:$0xff]
    %v986 = vld [vmem:[%s1 + $0x1378] sm:$0xff]
    %v987 = vld [vmem:[%s1 + $0x1380] sm:$0xff]
    %v988 = vld [vmem:[%s1 + $0x1388] sm:$0xff]
    %v989 = vld [vmem:[%s1 + $0x1390] sm:$0xff]
    %v990 = vld [vmem:[%s1 + $0x1398] sm:$0xff]
    %v991 = vld [vmem:[%s1 + $0x13a0] sm:$0xff]
    %v992 = vld [vmem:[%s1 + $0x13a8] sm:$0xff]
    %v993 = vld [vmem:[%s1 + $0x13b0] sm:$0xff]
    %v994 = vld [vmem:[%s1 + $0x13b8] sm:$0xff]
    %v995 = vld [vmem:[%s1 + $0x13c0] sm:$0xff]
    %v996 = vld [vmem:[%s1 + $0x13c8] sm:$0xff]
    %v997 = vld [vmem:[%s1 + $0x13d0] sm:$0xff]
    %v998 = vld [vmem:[%s1 + $0x13d8] sm:$0xff]
    %v999 = vld [vmem:[%s1 + $0x13e0] sm:$0xff]
    %v1000 = vld [vmem:[%s1 + $0x13e8] sm:$0xff]
    %v1001 = vld [vmem:[%s1 + $0x13f0] sm:$0xff]
    %v1002 = vld [vmem:[%s1 + $0x13f8] sm:$0xff]
    %v1003 = vld [vmem:[%s1 + $0x1400] sm:$0xff]
    %v1004 = vld [vmem:[%s1 + $0x1408] sm:$0xff]
    %v1005 = vld [vmem:[%s1 + $0x1410] sm:$0xff]
    %v1006 = vld [vmem:[%s1 + $0x1418] sm:$0xff]
    %v1007 = vld [vmem:[%s1 + $0x1420] sm:$0xff]
    %v1008 = vld [vmem:[%s1 + $0x1428] sm:$0xff]
    %v1009 = vld [vmem:[%s1 + $0x1430] sm:$0xff]
    %v1010 = vld [vmem:[%s1 + $0x1438] sm:$0xff]
    %v1011 = vld [vmem:[%s1 + $0x1440] sm:$0xff]
    %v1012 = vld [vmem:[%s1 + $0x1448] sm:$0xff]
    %v1013 = vld [vmem:[%s1 + $0x1450] sm:$0xff]
    %v1014 = vld [vmem:[%s1 + $0x1458] sm:$0xff]
    %v1015 = vld [vmem:[%s1 + $0x1460] sm:$0xff]
    %v1016 = vld [vmem:[%s1 + $0x1468] sm:$0xff]
    %v1017 = vld [vmem:[%s1 + $0x1470] sm:$0xff]
    %v1018 = vld [vmem:[%s1 + $0x1478] sm:$0xff]
    %v1019 = vld [vmem:[%s1 + $0x1480] sm:$0xff]
    %v1020 = vld [vmem:[%s1 + $0x1488] sm:$0xff]
    %v1021 = vld [vmem:[%s1 + $0x1490] sm:$0xff]
    %v1022 = vld [vmem:[%s1 + $0x1498] sm:$0xff]
    %v1023 = vld [vmem:[%s1 + $0x14a0] sm:$0xff]
    %v1024 = vld [vmem:[%s1 + $0x14a8] sm:$0xff]
    %v1025 = vld [vmem:[%s1 + $0x14b0] sm:$0xff]
    %v1026 = vld [vmem:[%s1 + $0x14b8] sm:$0xff]
    %v1027 = vld [vmem:[%s1 + $0x14c0] sm:$0xff]
    %v1028 = vld [vmem:[%s1 + $0x14c8] sm:$0xff]
    %v1029 = vld [vmem:[%s1 + $0x14d0] sm:$0xff]
    %v1030 = vld [vmem:[%s1 + $0x14d8] sm:$0xff]
    %v1031 = vld [vmem:[%s1 + $0x14e0] sm:$0xff]
    %v1032 = vld [vmem:[%s1 + $0x14e8] sm:$0xff]
    %v1033 = vld [vmem:[%s1 + $0x14f0] sm:$0xff]
    %v1034 = vld [vmem:[%s1 + $0x14f8] sm:$0xff]
    %v1035 = vld [vmem:[%s1 + $0x1500] sm:$0xff]
    %v1036 = vld [vmem:[%s1 + $0x1508] sm:$0xff]
    %v1037 = vld [vmem:[%s1 + $0x1510] sm:$0xff]
    %v1038 = vld [vmem:[%s1 + $0x1518] sm:$0xff]
    %v1039 = vld [vmem:[%s1 + $0x1520] sm:$0xff]
    %v1040 = vld [vmem:[%s1 + $0x1528] sm:$0xff]
    %v1041 = vld [vmem:[%s1 + $0x1530] sm:$0xff]
    %v1042 = vld [vmem:[%s1 + $0x1538] sm:$0xff]
    %v1043 = vld [vmem:[%s1 + $0x1540] sm:$0xff]
    %v1044 = vld [vmem:[%s1 + $0x1548] sm:$0xff]
    %v1045 = vld [vmem:[%s1 + $0x1550] sm:$0xff]
    %v1046 = vld [vmem:[%s1 + $0x1558] sm:$0xff]
    %v1047 = vld [vmem:[%s1 + $0x1560] sm:$0xff]
    %v1048 = vld [vmem:[%s1 + $0x1568] sm:$0xff]
    %v1049 = vld [vmem:[%s1 + $0x1570] sm:$0xff]
    %v1050 = vld [vmem:[%s1 + $0x1578] sm:$0xff]
    %v1051 = vld [vmem:[%s1 + $0x1580] sm:$0xff]
    %v1052 = vld [vmem:[%s1 + $0x1588] sm:$0xff]
    %v1053 = vld [vmem:[%s1 + $0x1590] sm:$0xff]
    %v1054 = vld [vmem:[%s1 + $0x1598] sm:$0xff]
    %v1055 = vld [vmem:[%s1 + $0x15a0] sm:$0xff]
    %v1056 = vld [vmem:[%s1 + $0x15a8] sm:$0xff]
    %v1057 = vld [vmem:[%s1 + $0x15b0] sm:$0xff]
    %v1058 = vld [vmem:[%s1 + $0x15b8] sm:$0xff]
    %v1059 = vld [vmem:[%s1 + $0x15c0] sm:$0xff]
    %v1060 = vld [vmem:[%s1 + $0x15c8] sm:$0xff]
    %v1061 = vld [vmem:[%s1 + $0x15d0] sm:$0xff]
    %v1062 = vld [vmem:[%s1 + $0x15d8] sm:$0xff]
    %v1063 = vld [vmem:[%s1 + $0x15e0] sm:$0xff]
    %v1064 = vld [vmem:[%s1 + $0x15e8] sm:$0xff]
    %v1065 = vld [vmem:[%s1 + $0x15f0] sm:$0xff]
    %v1066 = vld [vmem:[%s1 + $0x15f8] sm:$0xff]
    %v1067 = vld [vmem:[%s1 + $0x1600] sm:$0xff]
    %v1068 = vld [vmem:[%s1 + $0x1608] sm:$0xff]
    %v1069 = vld [vmem:[%s1 + $0x1610] sm:$0xff]
    %v1070 = vld [vmem:[%s1 + $0x1618] sm:$0xff]
    %v1071 = vld [vmem:[%s1 + $0x1620] sm:$0xff]
    %v1072 = vld [vmem:[%s1 + $0x1628] sm:$0xff]
    %v1073 = vld [vmem:[%s1 + $0x1630] sm:$0xff]
    %v1074 = vld [vmem:[%s1 + $0x1638] sm:$0xff]
    %v1075 = vld [vmem:[%s1 + $0x1640] sm:$0xff]
    %v1076 = vld [vmem:[%s1 + $0x1648] sm:$0xff]
    %v1077 = vld [vmem:[%s1 + $0x1650] sm:$0xff]
    %v1078 = vld [vmem:[%s1 + $0x1658] sm:$0xff]
    %v1079 = vld [vmem:[%s1 + $0x1660] sm:$0xff]
    %v1080 = vld [vmem:[%s1 + $0x1668] sm:$0xff]
    %v1081 = vld [vmem:[%s1 + $0x1670] sm:$0xff]
    %v1082 = vld [vmem:[%s1 + $0x1678] sm:$0xff]
    %v1083 = vld [vmem:[%s1 + $0x1680] sm:$0xff]
    %v1084 = vld [vmem:[%s1 + $0x1688] sm:$0xff]
    %v1085 = vld [vmem:[%s1 + $0x1690] sm:$0xff]
    %v1086 = vld [vmem:[%s1 + $0x1698] sm:$0xff]
    %v1087 = vld [vmem:[%s1 + $0x16a0] sm:$0xff]
    %v1088 = vld [vmem:[%s1 + $0x16a8] sm:$0xff]
    %v1089 = vld [vmem:[%s1 + $0x16b0] sm:$0xff]
    %v1090 = vld [vmem:[%s1 + $0x16b8] sm:$0xff]
    %v1091 = vld [vmem:[%s1 + $0x16c0] sm:$0xff]
    %v1092 = vld [vmem:[%s1 + $0x16c8] sm:$0xff]
    %v1093 = vld [vmem:[%s1 + $0x16d0] sm:$0xff]
    %v1094 = vld [vmem:[%s1 + $0x16d8] sm:$0xff]
    %v1095 = vld [vmem:[%s1 + $0x16e0] sm:$0xff]
    %v1096 = vld [vmem:[%s1 + $0x16e8] sm:$0xff]
    %v1097 = vld [vmem:[%s1 + $0x16f0] sm:$0xff]
    %v1098 = vld [vmem:[%s1 + $0x16f8] sm:$0xff]
    %v1099 = vld [vmem:[%s1 + $0x1700] sm:$0xff]
    %v1100 = vld [vmem:[%s1 + $0x1708] sm:$0xff]
    %v1101 = vld [vmem:[%s1 + $0x1710] sm:$0xff]
    %v1102 = vld [vmem:[%s1 + $0x1718] sm:$0xff]
    %v1103 = vld [vmem:[%s1 + $0x1720] sm:$0xff]
    %v1104 = vld [vmem:[%s1 + $0x1728] sm:$0xff]
    %v1105 = vld [vmem:[%s1 + $0x1730] sm:$0xff]
    %v1106 = vld [vmem:[%s1 + $0x1738] sm:$0xff]
    %v1107 = vld [vmem:[%s1 + $0x1740] sm:$0xff]
    %v1108 = vld [vmem:[%s1 + $0x1748] sm:$0xff]
    %v1109 = vld [vmem:[%s1 + $0x1750] sm:$0xff]
    %v1110 = vld [vmem:[%s1 + $0x1758] sm:$0xff]
    %v1111 = vld [vmem:[%s1 + $0x1760] sm:$0xff]
    %v1112 = vld [vmem:[%s1 + $0x1768] sm:$0xff]
    %v1113 = vld [vmem:[%s1 + $0x1770] sm:$0xff]
    %v1114 = vld [vmem:[%s1 + $0x1778] sm:$0xff]
    %v1115 = vld [vmem:[%s1 + $0x1780] sm:$0xff]
    %v1116 = vld [vmem:[%s1 + $0x1788] sm:$0xff]
    %v1117 = vld [vmem:[%s1 + $0x1790] sm:$0xff]
    %v1118 = vld [vmem:[%s1 + $0x1798] sm:$0xff]
    %v1119 = vld [vmem:[%s1 + $0x17a0] sm:$0xff]
    %v1120 = vld [vmem:[%s1 + $0x17a8] sm:$0xff]
    %v1121 = vld [vmem:[%s1 + $0x17b0] sm:$0xff]
    %v1122 = vld [vmem:[%s1 + $0x17b8] sm:$0xff]
    %v1123 = vld [vmem:[%s1 + $0x17c0] sm:$0xff]
    %v1124 = vld [vmem:[%s1 + $0x17c8] sm:$0xff]
    %v1125 = vld [vmem:[%s1 + $0x17d0] sm:$0xff]
    %v1126 = vld [vmem:[%s1 + $0x17d8] sm:$0xff]
    %v1127 = vld [vmem:[%s1 + $0x17e0] sm:$0xff]
    %v1128 = vld [vmem:[%s1 + $0x17e8] sm:$0xff]
    %v1129 = vld [vmem:[%s1 + $0x17f0] sm:$0xff]
    %v1130 = vld [vmem:[%s1 + $0x17f8] sm:$0xff]
    %v1131 = vld [vmem:[%s1 + $0x1800] sm:$0xff]
    %v1132 = vld [vmem:[%s1 + $0x1808] sm:$0xff]
    %v1133 = vld [vmem:[%s1 + $0x1810] sm:$0xff]
    %v1134 = vld [vmem:[%s1 + $0x1818] sm:$0xff]
    %v1135 = vld [vmem:[%s1 + $0x1820] sm:$0xff]
    %v1136 = vld [vmem:[%s1 + $0x1828] sm:$0xff]
    %v1137 = vld [vmem:[%s1 + $0x1830] sm:$0xff]
    %v1138 = vld [vmem:[%s1 + $0x1838] sm:$0xff]
    %v1139 = vld [vmem:[%s1 + $0x1840] sm:$0xff]
    %v1140 = vld [vmem:[%s1 + $0x1848] sm:$0xff]
    %v1141 = vld [vmem:[%s1 + $0x1850] sm:$0xff]
    %v1142 = vld [vmem:[%s1 + $0x1858] sm:$0xff]
    %v1143 = vld [vmem:[%s1 + $0x1860] sm:$0xff]
    %v1144 = vld [vmem:[%s1 + $0x1868] sm:$0xff]
    %v1145 = vld [vmem:[%s1 + $0x1870] sm:$0xff]
    %v1146 = vld [vmem:[%s1 + $0x1878] sm:$0xff]
    %v1147 = vld [vmem:[%s2] sm:$0x3]
    %v1149 = vlaneseq
    %v1150 = vshrl.u32 %v1149, 7
    %v1151 = vsub.s32 0, %v1150
    %v1152 = vrot.slane %v1147, %v1151
    %v1153 = vlaneseq
    %v1154 = vshrl.u32 %v1153, 7
    %v1155 = vsub.s32 1, %v1154
    %v1156 = vrot.slane %v1147, %v1155
    %v1943 = vunpack.c.l.b16 %v363
    %v1944 = vunpack.c.h.b16 %v363
    %v1945 = vunpack.c.l.b16 %v364
    %v1946 = vunpack.c.h.b16 %v364
    %v1947 = vunpack.c.l.b16 %v365
    %v1948 = vunpack.c.h.b16 %v365
    %v1949 = vunpack.c.l.b16 %v366
    %v1950 = vunpack.c.h.b16 %v366
    %v1951 = vunpack.c.l.b16 %v367
    %v1952 = vunpack.c.h.b16 %v367
    %v1953 = vunpack.c.l.b16 %v368
    %v1954 = vunpack.c.h.b16 %v368
    %v1955 = vunpack.c.l.b16 %v369
    %v1956 = vunpack.c.h.b16 %v369
    %v1957 = vunpack.c.l.b16 %v370
    %v1958 = vunpack.c.h.b16 %v370
    %v1959 = vunpack.c.l.b16 %v371
    %v1960 = vunpack.c.h.b16 %v371
    %v1961 = vunpack.c.l.b16 %v372
    %v1962 = vunpack.c.h.b16 %v372
    %v1963 = vunpack.c.l.b16 %v373
    %v1964 = vunpack.c.h.b16 %v373
    %v1965 = vunpack.c.l.b16 %v374
    %v1966 = vunpack.c.h.b16 %v374
    %v1967 = vunpack.c.l.b16 %v375
    %v1968 = vunpack.c.h.b16 %v375
    %v1969 = vunpack.c.l.b16 %v376
    %v1970 = vunpack.c.h.b16 %v376
    %v1971 = vunpack.c.l.b16 %v377
    %v1972 = vunpack.c.h.b16 %v377
    %v1973 = vunpack.c.l.b16 %v378
    %v1974 = vunpack.c.h.b16 %v378
    %v1975 = vunpack.c.l.b16 %v379
    %v1976 = vunpack.c.h.b16 %v379
    %v1977 = vunpack.c.l.b16 %v380
    %v1978 = vunpack.c.h.b16 %v380
    %v1979 = vunpack.c.l.b16 %v381
    %v1980 = vunpack.c.h.b16 %v381
    %v1981 = vunpack.c.l.b16 %v382
    %v1982 = vunpack.c.h.b16 %v382
    %v1983 = vunpack.c.l.b16 %v383
    %v1984 = vunpack.c.h.b16 %v383
    %v1985 = vunpack.c.l.b16 %v384
    %v1986 = vunpack.c.h.b16 %v384
    %v1987 = vunpack.c.l.b16 %v385
    %v1988 = vunpack.c.h.b16 %v385
    %v1989 = vunpack.c.l.b16 %v386
    %v1990 = vunpack.c.h.b16 %v386
    %v1991 = vunpack.c.l.b16 %v387
    %v1992 = vunpack.c.h.b16 %v387
    %v1993 = vunpack.c.l.b16 %v388
    %v1994 = vunpack.c.h.b16 %v388
    %v1995 = vunpack.c.l.b16 %v389
    %v1996 = vunpack.c.h.b16 %v389
    %v1997 = vunpack.c.l.b16 %v390
    %v1998 = vunpack.c.h.b16 %v390
    %v1999 = vunpack.c.l.b16 %v391
    %v2000 = vunpack.c.h.b16 %v391
    %v2001 = vunpack.c.l.b16 %v392
    %v2002 = vunpack.c.h.b16 %v392
    %v2003 = vunpack.c.l.b16 %v393
    %v2004 = vunpack.c.h.b16 %v393
    %v2005 = vunpack.c.l.b16 %v394
    %v2006 = vunpack.c.h.b16 %v394
    %v2007 = vunpack.c.l.b16 %v395
    %v2008 = vunpack.c.h.b16 %v395
    %v2009 = vunpack.c.l.b16 %v396
    %v2010 = vunpack.c.h.b16 %v396
    %v2011 = vunpack.c.l.b16 %v397
    %v2012 = vunpack.c.h.b16 %v397
    %v2013 = vunpack.c.l.b16 %v398
    %v2014 = vunpack.c.h.b16 %v398
    %v2015 = vunpack.c.l.b16 %v399
    %v2016 = vunpack.c.h.b16 %v399
    %v2017 = vunpack.c.l.b16 %v400
    %v2018 = vunpack.c.h.b16 %v400
    %v2019 = vunpack.c.l.b16 %v401
    %v2020 = vunpack.c.h.b16 %v401
    %v2021 = vunpack.c.l.b16 %v402
    %v2022 = vunpack.c.h.b16 %v402
    %v2023 = vunpack.c.l.b16 %v403
    %v2024 = vunpack.c.h.b16 %v403
    %v2025 = vunpack.c.l.b16 %v404
    %v2026 = vunpack.c.h.b16 %v404
    %v2027 = vunpack.c.l.b16 %v405
    %v2028 = vunpack.c.h.b16 %v405
    %v2029 = vunpack.c.l.b16 %v406
    %v2030 = vunpack.c.h.b16 %v406
    %v2031 = vunpack.c.l.b16 %v407
    %v2032 = vunpack.c.h.b16 %v407
    %v2033 = vunpack.c.l.b16 %v408
    %v2034 = vunpack.c.h.b16 %v408
    %v2035 = vunpack.c.l.b16 %v409
    %v2036 = vunpack.c.h.b16 %v409
    %v2037 = vunpack.c.l.b16 %v410
    %v2038 = vunpack.c.h.b16 %v410
    %v2039 = vunpack.c.l.b16 %v411
    %v2040 = vunpack.c.h.b16 %v411
    %v2041 = vunpack.c.l.b16 %v412
    %v2042 = vunpack.c.h.b16 %v412
    %v2043 = vunpack.c.l.b16 %v413
    %v2044 = vunpack.c.h.b16 %v413
    %v2045 = vunpack.c.l.b16 %v414
    %v2046 = vunpack.c.h.b16 %v414
    %v2047 = vunpack.c.l.b16 %v415
    %v2048 = vunpack.c.h.b16 %v415
    %v2049 = vunpack.c.l.b16 %v416
    %v2050 = vunpack.c.h.b16 %v416
    %v2051 = vunpack.c.l.b16 %v417
    %v2052 = vunpack.c.h.b16 %v417
    %v2053 = vunpack.c.l.b16 %v418
    %v2054 = vunpack.c.h.b16 %v418
    %v2055 = vunpack.c.l.b16 %v419
    %v2056 = vunpack.c.h.b16 %v419
    %v2057 = vunpack.c.l.b16 %v420
    %v2058 = vunpack.c.h.b16 %v420
    %v2059 = vunpack.c.l.b16 %v421
    %v2060 = vunpack.c.h.b16 %v421
    %v2061 = vunpack.c.l.b16 %v422
    %v2062 = vunpack.c.h.b16 %v422
    %v2063 = vunpack.c.l.b16 %v423
    %v2064 = vunpack.c.h.b16 %v423
    %v2065 = vunpack.c.l.b16 %v424
    %v2066 = vunpack.c.h.b16 %v424
    %v2067 = vunpack.c.l.b16 %v425
    %v2068 = vunpack.c.h.b16 %v425
    %v2069 = vunpack.c.l.b16 %v426
    %v2070 = vunpack.c.h.b16 %v426
    %v2071 = vunpack.c.l.b16 %v427
    %v2072 = vunpack.c.h.b16 %v427
    %v2073 = vunpack.c.l.b16 %v428
    %v2074 = vunpack.c.h.b16 %v428
    %v2075 = vunpack.c.l.b16 %v429
    %v2076 = vunpack.c.h.b16 %v429
    %v2077 = vunpack.c.l.b16 %v430
    %v2078 = vunpack.c.h.b16 %v430
    %v2079 = vunpack.c.l.b16 %v431
    %v2080 = vunpack.c.h.b16 %v431
    %v2081 = vunpack.c.l.b16 %v432
    %v2082 = vunpack.c.h.b16 %v432
    %v2083 = vunpack.c.l.b16 %v433
    %v2084 = vunpack.c.h.b16 %v433
    %v2085 = vunpack.c.l.b16 %v434
    %v2086 = vunpack.c.h.b16 %v434
    %v2087 = vunpack.c.l.b16 %v435
    %v2088 = vunpack.c.h.b16 %v435
    %v2089 = vunpack.c.l.b16 %v436
    %v2090 = vunpack.c.h.b16 %v436
    %v2091 = vunpack.c.l.b16 %v437
    %v2092 = vunpack.c.h.b16 %v437
    %v2093 = vunpack.c.l.b16 %v438
    %v2094 = vunpack.c.h.b16 %v438
    %v2095 = vunpack.c.l.b16 %v439
    %v2096 = vunpack.c.h.b16 %v439
    %v2097 = vunpack.c.l.b16 %v440
    %v2098 = vunpack.c.h.b16 %v440
    %v2099 = vunpack.c.l.b16 %v441
    %v2100 = vunpack.c.h.b16 %v441
    %v2101 = vunpack.c.l.b16 %v442
    %v2102 = vunpack.c.h.b16 %v442
    %v2103 = vunpack.c.l.b16 %v443
    %v2104 = vunpack.c.h.b16 %v443
    %v2105 = vunpack.c.l.b16 %v444
    %v2106 = vunpack.c.h.b16 %v444
    %v2107 = vunpack.c.l.b16 %v445
    %v2108 = vunpack.c.h.b16 %v445
    %v2109 = vunpack.c.l.b16 %v446
    %v2110 = vunpack.c.h.b16 %v446
    %v2111 = vunpack.c.l.b16 %v447
    %v2112 = vunpack.c.h.b16 %v447
    %v2113 = vunpack.c.l.b16 %v448
    %v2114 = vunpack.c.h.b16 %v448
    %v2115 = vunpack.c.l.b16 %v449
    %v2116 = vunpack.c.h.b16 %v449
    %v2117 = vunpack.c.l.b16 %v450
    %v2118 = vunpack.c.h.b16 %v450
    %v2119 = vunpack.c.l.b16 %v451
    %v2120 = vunpack.c.h.b16 %v451
    %v2121 = vunpack.c.l.b16 %v452
    %v2122 = vunpack.c.h.b16 %v452
    %v2123 = vunpack.c.l.b16 %v453
    %v2124 = vunpack.c.h.b16 %v453
    %v2125 = vunpack.c.l.b16 %v454
    %v2126 = vunpack.c.h.b16 %v454
    %v2127 = vunpack.c.l.b16 %v455
    %v2128 = vunpack.c.h.b16 %v455
    %v2129 = vunpack.c.l.b16 %v456
    %v2130 = vunpack.c.h.b16 %v456
    %v2131 = vunpack.c.l.b16 %v457
    %v2132 = vunpack.c.h.b16 %v457
    %v2133 = vunpack.c.l.b16 %v458
    %v2134 = vunpack.c.h.b16 %v458
    %v2135 = vunpack.c.l.b16 %v459
    %v2136 = vunpack.c.h.b16 %v459
    %v2137 = vunpack.c.l.b16 %v460
    %v2138 = vunpack.c.h.b16 %v460
    %v2139 = vunpack.c.l.b16 %v461
    %v2140 = vunpack.c.h.b16 %v461
    %v2141 = vunpack.c.l.b16 %v462
    %v2142 = vunpack.c.h.b16 %v462
    %v2143 = vunpack.c.l.b16 %v463
    %v2144 = vunpack.c.h.b16 %v463
    %v2145 = vunpack.c.l.b16 %v464
    %v2146 = vunpack.c.h.b16 %v464
    %v2147 = vunpack.c.l.b16 %v465
    %v2148 = vunpack.c.h.b16 %v465
    %v2149 = vunpack.c.l.b16 %v466
    %v2150 = vunpack.c.h.b16 %v466
    %v2151 = vunpack.c.l.b16 %v467
    %v2152 = vunpack.c.h.b16 %v467
    %v2153 = vunpack.c.l.b16 %v468
    %v2154 = vunpack.c.h.b16 %v468
    %v2155 = vunpack.c.l.b16 %v469
    %v2156 = vunpack.c.h.b16 %v469
    %v2157 = vunpack.c.l.b16 %v470
    %v2158 = vunpack.c.h.b16 %v470
    %v2159 = vunpack.c.l.b16 %v471
    %v2160 = vunpack.c.h.b16 %v471
    %v2161 = vunpack.c.l.b16 %v472
    %v2162 = vunpack.c.h.b16 %v472
    %v2163 = vunpack.c.l.b16 %v473
    %v2164 = vunpack.c.h.b16 %v473
    %v2165 = vunpack.c.l.b16 %v474
    %v2166 = vunpack.c.h.b16 %v474
    %v2167 = vunpack.c.l.b16 %v475
    %v2168 = vunpack.c.h.b16 %v475
    %v2169 = vunpack.c.l.b16 %v476
    %v2170 = vunpack.c.h.b16 %v476
    %v2171 = vunpack.c.l.b16 %v477
    %v2172 = vunpack.c.h.b16 %v477
    %v2173 = vunpack.c.l.b16 %v478
    %v2174 = vunpack.c.h.b16 %v478
    %v2175 = vunpack.c.l.b16 %v479
    %v2176 = vunpack.c.h.b16 %v479
    %v2177 = vunpack.c.l.b16 %v480
    %v2178 = vunpack.c.h.b16 %v480
    %v2179 = vunpack.c.l.b16 %v481
    %v2180 = vunpack.c.h.b16 %v481
    %v2181 = vunpack.c.l.b16 %v482
    %v2182 = vunpack.c.h.b16 %v482
    %v2183 = vunpack.c.l.b16 %v483
    %v2184 = vunpack.c.h.b16 %v483
    %v2185 = vunpack.c.l.b16 %v484
    %v2186 = vunpack.c.h.b16 %v484
    %v2187 = vunpack.c.l.b16 %v485
    %v2188 = vunpack.c.h.b16 %v485
    %v2189 = vunpack.c.l.b16 %v486
    %v2190 = vunpack.c.h.b16 %v486
    %v2191 = vunpack.c.l.b16 %v487
    %v2192 = vunpack.c.h.b16 %v487
    %v2193 = vunpack.c.l.b16 %v488
    %v2194 = vunpack.c.h.b16 %v488
    %v2195 = vunpack.c.l.b16 %v489
    %v2196 = vunpack.c.h.b16 %v489
    %v2197 = vunpack.c.l.b16 %v490
    %v2198 = vunpack.c.h.b16 %v490
    %v2199 = vunpack.c.l.b16 %v491
    %v2200 = vunpack.c.h.b16 %v491
    %v2201 = vunpack.c.l.b16 %v492
    %v2202 = vunpack.c.h.b16 %v492
    %v2203 = vunpack.c.l.b16 %v493
    %v2204 = vunpack.c.h.b16 %v493
    %v2205 = vunpack.c.l.b16 %v494
    %v2206 = vunpack.c.h.b16 %v494
    %v2207 = vunpack.c.l.b16 %v495
    %v2208 = vunpack.c.h.b16 %v495
    %v2209 = vunpack.c.l.b16 %v496
    %v2210 = vunpack.c.h.b16 %v496
    %v2211 = vunpack.c.l.b16 %v497
    %v2212 = vunpack.c.h.b16 %v497
    %v2213 = vunpack.c.l.b16 %v498
    %v2214 = vunpack.c.h.b16 %v498
    %v2215 = vunpack.c.l.b16 %v499
    %v2216 = vunpack.c.h.b16 %v499
    %v2217 = vunpack.c.l.b16 %v500
    %v2218 = vunpack.c.h.b16 %v500
    %v2219 = vunpack.c.l.b16 %v501
    %v2220 = vunpack.c.h.b16 %v501
    %v2221 = vunpack.c.l.b16 %v502
    %v2222 = vunpack.c.h.b16 %v502
    %v2223 = vunpack.c.l.b16 %v503
    %v2224 = vunpack.c.h.b16 %v503
    %v2225 = vunpack.c.l.b16 %v504
    %v2226 = vunpack.c.h.b16 %v504
    %v2227 = vunpack.c.l.b16 %v505
    %v2228 = vunpack.c.h.b16 %v505
    %v2229 = vunpack.c.l.b16 %v506
    %v2230 = vunpack.c.h.b16 %v506
    %v2231 = vunpack.c.l.b16 %v507
    %v2232 = vunpack.c.h.b16 %v507
    %v2233 = vunpack.c.l.b16 %v508
    %v2234 = vunpack.c.h.b16 %v508
    %v2235 = vunpack.c.l.b16 %v509
    %v2236 = vunpack.c.h.b16 %v509
    %v2237 = vunpack.c.l.b16 %v510
    %v2238 = vunpack.c.h.b16 %v510
    %v2239 = vunpack.c.l.b16 %v511
    %v2240 = vunpack.c.h.b16 %v511
    %v2241 = vunpack.c.l.b16 %v512
    %v2242 = vunpack.c.h.b16 %v512
    %v2243 = vunpack.c.l.b16 %v513
    %v2244 = vunpack.c.h.b16 %v513
    %v2245 = vunpack.c.l.b16 %v514
    %v2246 = vunpack.c.h.b16 %v514
    %v2247 = vunpack.c.l.b16 %v515
    %v2248 = vunpack.c.h.b16 %v515
    %v2249 = vunpack.c.l.b16 %v516
    %v2250 = vunpack.c.h.b16 %v516
    %v2251 = vunpack.c.l.b16 %v517
    %v2252 = vunpack.c.h.b16 %v517
    %v2253 = vunpack.c.l.b16 %v518
    %v2254 = vunpack.c.h.b16 %v518
    %v2255 = vunpack.c.l.b16 %v519
    %v2256 = vunpack.c.h.b16 %v519
    %v2257 = vunpack.c.l.b16 %v520
    %v2258 = vunpack.c.h.b16 %v520
    %v2259 = vunpack.c.l.b16 %v521
    %v2260 = vunpack.c.h.b16 %v521
    %v2261 = vunpack.c.l.b16 %v522
    %v2262 = vunpack.c.h.b16 %v522
    %v2263 = vunpack.c.l.b16 %v523
    %v2264 = vunpack.c.h.b16 %v523
    %v2265 = vunpack.c.l.b16 %v524
    %v2266 = vunpack.c.h.b16 %v524
    %v2267 = vunpack.c.l.b16 %v525
    %v2268 = vunpack.c.h.b16 %v525
    %v2269 = vunpack.c.l.b16 %v526
    %v2270 = vunpack.c.h.b16 %v526
    %v2271 = vunpack.c.l.b16 %v527
    %v2272 = vunpack.c.h.b16 %v527
    %v2273 = vunpack.c.l.b16 %v528
    %v2274 = vunpack.c.h.b16 %v528
    %v2275 = vunpack.c.l.b16 %v529
    %v2276 = vunpack.c.h.b16 %v529
    %v2277 = vunpack.c.l.b16 %v530
    %v2278 = vunpack.c.h.b16 %v530
    %v2279 = vunpack.c.l.b16 %v531
    %v2280 = vunpack.c.h.b16 %v531
    %v2281 = vunpack.c.l.b16 %v532
    %v2282 = vunpack.c.h.b16 %v532
    %v2283 = vunpack.c.l.b16 %v533
    %v2284 = vunpack.c.h.b16 %v533
    %v2285 = vunpack.c.l.b16 %v534
    %v2286 = vunpack.c.h.b16 %v534
    %v2287 = vunpack.c.l.b16 %v535
    %v2288 = vunpack.c.h.b16 %v535
    %v2289 = vunpack.c.l.b16 %v536
    %v2290 = vunpack.c.h.b16 %v536
    %v2291 = vunpack.c.l.b16 %v537
    %v2292 = vunpack.c.h.b16 %v537
    %v2293 = vunpack.c.l.b16 %v538
    %v2294 = vunpack.c.h.b16 %v538
    %v2295 = vunpack.c.l.b16 %v539
    %v2296 = vunpack.c.h.b16 %v539
    %v2297 = vunpack.c.l.b16 %v540
    %v2298 = vunpack.c.h.b16 %v540
    %v2299 = vunpack.c.l.b16 %v541
    %v2300 = vunpack.c.h.b16 %v541
    %v2301 = vunpack.c.l.b16 %v542
    %v2302 = vunpack.c.h.b16 %v542
    %v2303 = vunpack.c.l.b16 %v543
    %v2304 = vunpack.c.h.b16 %v543
    %v2305 = vunpack.c.l.b16 %v544
    %v2306 = vunpack.c.h.b16 %v544
    %v2307 = vunpack.c.l.b16 %v545
    %v2308 = vunpack.c.h.b16 %v545
    %v2309 = vunpack.c.l.b16 %v546
    %v2310 = vunpack.c.h.b16 %v546
    %v2311 = vunpack.c.l.b16 %v547
    %v2312 = vunpack.c.h.b16 %v547
    %v2313 = vunpack.c.l.b16 %v548
    %v2314 = vunpack.c.h.b16 %v548
    %v2315 = vunpack.c.l.b16 %v549
    %v2316 = vunpack.c.h.b16 %v549
    %v2317 = vunpack.c.l.b16 %v550
    %v2318 = vunpack.c.h.b16 %v550
    %v2319 = vunpack.c.l.b16 %v551
    %v2320 = vunpack.c.h.b16 %v551
    %v2321 = vunpack.c.l.b16 %v552
    %v2322 = vunpack.c.h.b16 %v552
    %v2323 = vunpack.c.l.b16 %v553
    %v2324 = vunpack.c.h.b16 %v553
    %v2325 = vunpack.c.l.b16 %v554
    %v2326 = vunpack.c.h.b16 %v554
    %v2327 = vunpack.c.l.b16 %v555
    %v2328 = vunpack.c.h.b16 %v555
    %v2329 = vunpack.c.l.b16 %v556
    %v2330 = vunpack.c.h.b16 %v556
    %v2331 = vunpack.c.l.b16 %v557
    %v2332 = vunpack.c.h.b16 %v557
    %v2333 = vunpack.c.l.b16 %v558
    %v2334 = vunpack.c.h.b16 %v558
    %v2335 = vunpack.c.l.b16 %v559
    %v2336 = vunpack.c.h.b16 %v559
    %v2337 = vunpack.c.l.b16 %v560
    %v2338 = vunpack.c.h.b16 %v560
    %v2339 = vunpack.c.l.b16 %v561
    %v2340 = vunpack.c.h.b16 %v561
    %v2341 = vunpack.c.l.b16 %v562
    %v2342 = vunpack.c.h.b16 %v562
    %v2343 = vunpack.c.l.b16 %v563
    %v2344 = vunpack.c.h.b16 %v563
    %v2345 = vunpack.c.l.b16 %v564
    %v2346 = vunpack.c.h.b16 %v564
    %v2347 = vunpack.c.l.b16 %v565
    %v2348 = vunpack.c.h.b16 %v565
    %v2349 = vunpack.c.l.b16 %v566
    %v2350 = vunpack.c.h.b16 %v566
    %v2351 = vunpack.c.l.b16 %v567
    %v2352 = vunpack.c.h.b16 %v567
    %v2353 = vunpack.c.l.b16 %v568
    %v2354 = vunpack.c.h.b16 %v568
    %v2355 = vunpack.c.l.b16 %v569
    %v2356 = vunpack.c.h.b16 %v569
    %v2357 = vunpack.c.l.b16 %v570
    %v2358 = vunpack.c.h.b16 %v570
    %v2359 = vunpack.c.l.b16 %v571
    %v2360 = vunpack.c.h.b16 %v571
    %v2361 = vunpack.c.l.b16 %v572
    %v2362 = vunpack.c.h.b16 %v572
    %v2363 = vunpack.c.l.b16 %v573
    %v2364 = vunpack.c.h.b16 %v573
    %v2365 = vunpack.c.l.b16 %v574
    %v2366 = vunpack.c.h.b16 %v574
    %v2367 = vunpack.c.l.b16 %v575
    %v2368 = vunpack.c.h.b16 %v575
    %v2369 = vunpack.c.l.b16 %v576
    %v2370 = vunpack.c.h.b16 %v576
    %v2371 = vunpack.c.l.b16 %v577
    %v2372 = vunpack.c.h.b16 %v577
    %v2373 = vunpack.c.l.b16 %v578
    %v2374 = vunpack.c.h.b16 %v578
    %v2375 = vunpack.c.l.b16 %v579
    %v2376 = vunpack.c.h.b16 %v579
    %v2377 = vunpack.c.l.b16 %v580
    %v2378 = vunpack.c.h.b16 %v580
    %v2379 = vunpack.c.l.b16 %v581
    %v2380 = vunpack.c.h.b16 %v581
    %v2381 = vunpack.c.l.b16 %v582
    %v2382 = vunpack.c.h.b16 %v582
    %v2383 = vunpack.c.l.b16 %v583
    %v2384 = vunpack.c.h.b16 %v583
    %v2385 = vunpack.c.l.b16 %v584
    %v2386 = vunpack.c.h.b16 %v584
    %v2387 = vunpack.c.l.b16 %v585
    %v2388 = vunpack.c.h.b16 %v585
    %v2389 = vunpack.c.l.b16 %v586
    %v2390 = vunpack.c.h.b16 %v586
    %v2391 = vunpack.c.l.b16 %v587
    %v2392 = vunpack.c.h.b16 %v587
    %v2393 = vunpack.c.l.b16 %v588
    %v2394 = vunpack.c.h.b16 %v588
    %v2395 = vunpack.c.l.b16 %v589
    %v2396 = vunpack.c.h.b16 %v589
    %v2397 = vunpack.c.l.b16 %v590
    %v2398 = vunpack.c.h.b16 %v590
    %v2399 = vunpack.c.l.b16 %v591
    %v2400 = vunpack.c.h.b16 %v591
    %v2401 = vunpack.c.l.b16 %v592
    %v2402 = vunpack.c.h.b16 %v592
    %v2403 = vunpack.c.l.b16 %v593
    %v2404 = vunpack.c.h.b16 %v593
    %v2405 = vunpack.c.l.b16 %v594
    %v2406 = vunpack.c.h.b16 %v594
    %v2407 = vunpack.c.l.b16 %v595
    %v2408 = vunpack.c.h.b16 %v595
    %v2409 = vunpack.c.l.b16 %v596
    %v2410 = vunpack.c.h.b16 %v596
    %v2411 = vunpack.c.l.b16 %v597
    %v2412 = vunpack.c.h.b16 %v597
    %v2413 = vunpack.c.l.b16 %v598
    %v2414 = vunpack.c.h.b16 %v598
    %v2415 = vunpack.c.l.b16 %v599
    %v2416 = vunpack.c.h.b16 %v599
    %v2417 = vunpack.c.l.b16 %v600
    %v2418 = vunpack.c.h.b16 %v600
    %v2419 = vunpack.c.l.b16 %v601
    %v2420 = vunpack.c.h.b16 %v601
    %v2421 = vunpack.c.l.b16 %v602
    %v2422 = vunpack.c.h.b16 %v602
    %v2423 = vunpack.c.l.b16 %v603
    %v2424 = vunpack.c.h.b16 %v603
    %v2425 = vunpack.c.l.b16 %v604
    %v2426 = vunpack.c.h.b16 %v604
    %v2427 = vunpack.c.l.b16 %v605
    %v2428 = vunpack.c.h.b16 %v605
    %v2429 = vunpack.c.l.b16 %v606
    %v2430 = vunpack.c.h.b16 %v606
    %v2431 = vunpack.c.l.b16 %v607
    %v2432 = vunpack.c.h.b16 %v607
    %v2433 = vunpack.c.l.b16 %v608
    %v2434 = vunpack.c.h.b16 %v608
    %v2435 = vunpack.c.l.b16 %v609
    %v2436 = vunpack.c.h.b16 %v609
    %v2437 = vunpack.c.l.b16 %v610
    %v2438 = vunpack.c.h.b16 %v610
    %v2439 = vunpack.c.l.b16 %v611
    %v2440 = vunpack.c.h.b16 %v611
    %v2441 = vunpack.c.l.b16 %v612
    %v2442 = vunpack.c.h.b16 %v612
    %v2443 = vunpack.c.l.b16 %v613
    %v2444 = vunpack.c.h.b16 %v613
    %v2445 = vunpack.c.l.b16 %v614
    %v2446 = vunpack.c.h.b16 %v614
    %v2447 = vunpack.c.l.b16 %v615
    %v2448 = vunpack.c.h.b16 %v615
    %v2449 = vunpack.c.l.b16 %v616
    %v2450 = vunpack.c.h.b16 %v616
    %v2451 = vunpack.c.l.b16 %v617
    %v2452 = vunpack.c.h.b16 %v617
    %v2453 = vunpack.c.l.b16 %v618
    %v2454 = vunpack.c.h.b16 %v618
    %v2455 = vunpack.c.l.b16 %v619
    %v2456 = vunpack.c.h.b16 %v619
    %v2457 = vunpack.c.l.b16 %v620
    %v2458 = vunpack.c.h.b16 %v620
    %v2459 = vunpack.c.l.b16 %v621
    %v2460 = vunpack.c.h.b16 %v621
    %v2461 = vunpack.c.l.b16 %v622
    %v2462 = vunpack.c.h.b16 %v622
    %v2463 = vunpack.c.l.b16 %v623
    %v2464 = vunpack.c.h.b16 %v623
    %v2465 = vunpack.c.l.b16 %v624
    %v2466 = vunpack.c.h.b16 %v624
    %v2467 = vunpack.c.l.b16 %v625
    %v2468 = vunpack.c.h.b16 %v625
    %v2469 = vunpack.c.l.b16 %v626
    %v2470 = vunpack.c.h.b16 %v626
    %v2471 = vunpack.c.l.b16 %v627
    %v2472 = vunpack.c.h.b16 %v627
    %v2473 = vunpack.c.l.b16 %v628
    %v2474 = vunpack.c.h.b16 %v628
    %v2475 = vunpack.c.l.b16 %v629
    %v2476 = vunpack.c.h.b16 %v629
    %v2477 = vunpack.c.l.b16 %v630
    %v2478 = vunpack.c.h.b16 %v630
    %v2479 = vunpack.c.l.b16 %v631
    %v2480 = vunpack.c.h.b16 %v631
    %v2481 = vunpack.c.l.b16 %v632
    %v2482 = vunpack.c.h.b16 %v632
    %v2483 = vunpack.c.l.b16 %v633
    %v2484 = vunpack.c.h.b16 %v633
    %v2485 = vunpack.c.l.b16 %v634
    %v2486 = vunpack.c.h.b16 %v634
    %v2487 = vunpack.c.l.b16 %v635
    %v2488 = vunpack.c.h.b16 %v635
    %v2489 = vunpack.c.l.b16 %v636
    %v2490 = vunpack.c.h.b16 %v636
    %v2491 = vunpack.c.l.b16 %v637
    %v2492 = vunpack.c.h.b16 %v637
    %v2493 = vunpack.c.l.b16 %v638
    %v2494 = vunpack.c.h.b16 %v638
    %v2495 = vunpack.c.l.b16 %v639
    %v2496 = vunpack.c.h.b16 %v639
    %v2497 = vunpack.c.l.b16 %v640
    %v2498 = vunpack.c.h.b16 %v640
    %v2499 = vunpack.c.l.b16 %v641
    %v2500 = vunpack.c.h.b16 %v641
    %v2501 = vunpack.c.l.b16 %v642
    %v2502 = vunpack.c.h.b16 %v642
    %v2503 = vunpack.c.l.b16 %v643
    %v2504 = vunpack.c.h.b16 %v643
    %v2505 = vunpack.c.l.b16 %v644
    %v2506 = vunpack.c.h.b16 %v644
    %v2507 = vunpack.c.l.b16 %v645
    %v2508 = vunpack.c.h.b16 %v645
    %v2509 = vunpack.c.l.b16 %v646
    %v2510 = vunpack.c.h.b16 %v646
    %v2511 = vunpack.c.l.b16 %v647
    %v2512 = vunpack.c.h.b16 %v647
    %v2513 = vunpack.c.l.b16 %v648
    %v2514 = vunpack.c.h.b16 %v648
    %v2515 = vunpack.c.l.b16 %v649
    %v2516 = vunpack.c.h.b16 %v649
    %v2517 = vunpack.c.l.b16 %v650
    %v2518 = vunpack.c.h.b16 %v650
    %v2519 = vunpack.c.l.b16 %v651
    %v2520 = vunpack.c.h.b16 %v651
    %v2521 = vunpack.c.l.b16 %v652
    %v2522 = vunpack.c.h.b16 %v652
    %v2523 = vunpack.c.l.b16 %v653
    %v2524 = vunpack.c.h.b16 %v653
    %v2525 = vunpack.c.l.b16 %v654
    %v2526 = vunpack.c.h.b16 %v654
    %v2527 = vunpack.c.l.b16 %v655
    %v2528 = vunpack.c.h.b16 %v655
    %v2529 = vunpack.c.l.b16 %v656
    %v2530 = vunpack.c.h.b16 %v656
    %v2531 = vunpack.c.l.b16 %v657
    %v2532 = vunpack.c.h.b16 %v657
    %v2533 = vunpack.c.l.b16 %v658
    %v2534 = vunpack.c.h.b16 %v658
    %v2535 = vunpack.c.l.b16 %v659
    %v2536 = vunpack.c.h.b16 %v659
    %v2537 = vunpack.c.l.b16 %v660
    %v2538 = vunpack.c.h.b16 %v660
    %v2539 = vunpack.c.l.b16 %v661
    %v2540 = vunpack.c.h.b16 %v661
    %v2541 = vunpack.c.l.b16 %v662
    %v2542 = vunpack.c.h.b16 %v662
    %v2543 = vunpack.c.l.b16 %v663
    %v2544 = vunpack.c.h.b16 %v663
    %v2545 = vunpack.c.l.b16 %v664
    %v2546 = vunpack.c.h.b16 %v664
    %v2547 = vunpack.c.l.b16 %v665
    %v2548 = vunpack.c.h.b16 %v665
    %v2549 = vunpack.c.l.b16 %v666
    %v2550 = vunpack.c.h.b16 %v666
    %v2551 = vunpack.c.l.b16 %v667
    %v2552 = vunpack.c.h.b16 %v667
    %v2553 = vunpack.c.l.b16 %v668
    %v2554 = vunpack.c.h.b16 %v668
    %v2555 = vunpack.c.l.b16 %v669
    %v2556 = vunpack.c.h.b16 %v669
    %v2557 = vunpack.c.l.b16 %v670
    %v2558 = vunpack.c.h.b16 %v670
    %v2559 = vunpack.c.l.b16 %v671
    %v2560 = vunpack.c.h.b16 %v671
    %v2561 = vunpack.c.l.b16 %v672
    %v2562 = vunpack.c.h.b16 %v672
    %v2563 = vunpack.c.l.b16 %v673
    %v2564 = vunpack.c.h.b16 %v673
    %v2565 = vunpack.c.l.b16 %v674
    %v2566 = vunpack.c.h.b16 %v674
    %v2567 = vunpack.c.l.b16 %v675
    %v2568 = vunpack.c.h.b16 %v675
    %v2569 = vunpack.c.l.b16 %v676
    %v2570 = vunpack.c.h.b16 %v676
    %v2571 = vunpack.c.l.b16 %v677
    %v2572 = vunpack.c.h.b16 %v677
    %v2573 = vunpack.c.l.b16 %v678
    %v2574 = vunpack.c.h.b16 %v678
    %v2575 = vunpack.c.l.b16 %v679
    %v2576 = vunpack.c.h.b16 %v679
    %v2577 = vunpack.c.l.b16 %v680
    %v2578 = vunpack.c.h.b16 %v680
    %v2579 = vunpack.c.l.b16 %v681
    %v2580 = vunpack.c.h.b16 %v681
    %v2581 = vunpack.c.l.b16 %v682
    %v2582 = vunpack.c.h.b16 %v682
    %v2583 = vunpack.c.l.b16 %v683
    %v2584 = vunpack.c.h.b16 %v683
    %v2585 = vunpack.c.l.b16 %v684
    %v2586 = vunpack.c.h.b16 %v684
    %v2587 = vunpack.c.l.b16 %v685
    %v2588 = vunpack.c.h.b16 %v685
    %v2589 = vunpack.c.l.b16 %v686
    %v2590 = vunpack.c.h.b16 %v686
    %v2591 = vunpack.c.l.b16 %v687
    %v2592 = vunpack.c.h.b16 %v687
    %v2593 = vunpack.c.l.b16 %v688
    %v2594 = vunpack.c.h.b16 %v688
    %v2595 = vunpack.c.l.b16 %v689
    %v2596 = vunpack.c.h.b16 %v689
    %v2597 = vunpack.c.l.b16 %v690
    %v2598 = vunpack.c.h.b16 %v690
    %v2599 = vunpack.c.l.b16 %v691
    %v2600 = vunpack.c.h.b16 %v691
    %v2601 = vunpack.c.l.b16 %v692
    %v2602 = vunpack.c.h.b16 %v692
    %v2603 = vunpack.c.l.b16 %v693
    %v2604 = vunpack.c.h.b16 %v693
    %v2605 = vunpack.c.l.b16 %v694
    %v2606 = vunpack.c.h.b16 %v694
    %v2607 = vunpack.c.l.b16 %v695
    %v2608 = vunpack.c.h.b16 %v695
    %v2609 = vunpack.c.l.b16 %v696
    %v2610 = vunpack.c.h.b16 %v696
    %v2611 = vunpack.c.l.b16 %v697
    %v2612 = vunpack.c.h.b16 %v697
    %v2613 = vunpack.c.l.b16 %v698
    %v2614 = vunpack.c.h.b16 %v698
    %v2615 = vunpack.c.l.b16 %v699
    %v2616 = vunpack.c.h.b16 %v699
    %v2617 = vunpack.c.l.b16 %v700
    %v2618 = vunpack.c.h.b16 %v700
    %v2619 = vunpack.c.l.b16 %v701
    %v2620 = vunpack.c.h.b16 %v701
    %v2621 = vunpack.c.l.b16 %v702
    %v2622 = vunpack.c.h.b16 %v702
    %v2623 = vunpack.c.l.b16 %v703
    %v2624 = vunpack.c.h.b16 %v703
    %v2625 = vunpack.c.l.b16 %v704
    %v2626 = vunpack.c.h.b16 %v704
    %v2627 = vunpack.c.l.b16 %v705
    %v2628 = vunpack.c.h.b16 %v705
    %v2629 = vunpack.c.l.b16 %v706
    %v2630 = vunpack.c.h.b16 %v706
    %v2631 = vunpack.c.l.b16 %v707
    %v2632 = vunpack.c.h.b16 %v707
    %v2633 = vunpack.c.l.b16 %v708
    %v2634 = vunpack.c.h.b16 %v708
    %v2635 = vunpack.c.l.b16 %v709
    %v2636 = vunpack.c.h.b16 %v709
    %v2637 = vunpack.c.l.b16 %v710
    %v2638 = vunpack.c.h.b16 %v710
    %v2639 = vunpack.c.l.b16 %v711
    %v2640 = vunpack.c.h.b16 %v711
    %v2641 = vunpack.c.l.b16 %v712
    %v2642 = vunpack.c.h.b16 %v712
    %v2643 = vunpack.c.l.b16 %v713
    %v2644 = vunpack.c.h.b16 %v713
    %v2645 = vunpack.c.l.b16 %v714
    %v2646 = vunpack.c.h.b16 %v714
    %v2647 = vunpack.c.l.b16 %v715
    %v2648 = vunpack.c.h.b16 %v715
    %v2649 = vunpack.c.l.b16 %v716
    %v2650 = vunpack.c.h.b16 %v716
    %v2651 = vunpack.c.l.b16 %v717
    %v2652 = vunpack.c.h.b16 %v717
    %v2653 = vunpack.c.l.b16 %v718
    %v2654 = vunpack.c.h.b16 %v718
    %v2655 = vunpack.c.l.b16 %v719
    %v2656 = vunpack.c.h.b16 %v719
    %v2657 = vunpack.c.l.b16 %v720
    %v2658 = vunpack.c.h.b16 %v720
    %v2659 = vunpack.c.l.b16 %v721
    %v2660 = vunpack.c.h.b16 %v721
    %v2661 = vunpack.c.l.b16 %v722
    %v2662 = vunpack.c.h.b16 %v722
    %v2663 = vunpack.c.l.b16 %v723
    %v2664 = vunpack.c.h.b16 %v723
    %v2665 = vunpack.c.l.b16 %v724
    %v2666 = vunpack.c.h.b16 %v724
    %v2667 = vunpack.c.l.b16 %v725
    %v2668 = vunpack.c.h.b16 %v725
    %v2669 = vunpack.c.l.b16 %v726
    %v2670 = vunpack.c.h.b16 %v726
    %v2671 = vunpack.c.l.b16 %v727
    %v2672 = vunpack.c.h.b16 %v727
    %v2673 = vunpack.c.l.b16 %v728
    %v2674 = vunpack.c.h.b16 %v728
    %v2675 = vunpack.c.l.b16 %v729
    %v2676 = vunpack.c.h.b16 %v729
    %v2677 = vunpack.c.l.b16 %v730
    %v2678 = vunpack.c.h.b16 %v730
    %v2679 = vunpack.c.l.b16 %v731
    %v2680 = vunpack.c.h.b16 %v731
    %v2681 = vunpack.c.l.b16 %v732
    %v2682 = vunpack.c.h.b16 %v732
    %v2683 = vunpack.c.l.b16 %v733
    %v2684 = vunpack.c.h.b16 %v733
    %v2685 = vunpack.c.l.b16 %v734
    %v2686 = vunpack.c.h.b16 %v734
    %v2687 = vunpack.c.l.b16 %v735
    %v2688 = vunpack.c.h.b16 %v735
    %v2689 = vunpack.c.l.b16 %v736
    %v2690 = vunpack.c.h.b16 %v736
    %v2691 = vunpack.c.l.b16 %v737
    %v2692 = vunpack.c.h.b16 %v737
    %v2693 = vunpack.c.l.b16 %v738
    %v2694 = vunpack.c.h.b16 %v738
    %v2695 = vunpack.c.l.b16 %v739
    %v2696 = vunpack.c.h.b16 %v739
    %v2697 = vunpack.c.l.b16 %v740
    %v2698 = vunpack.c.h.b16 %v740
    %v2699 = vunpack.c.l.b16 %v741
    %v2700 = vunpack.c.h.b16 %v741
    %v2701 = vunpack.c.l.b16 %v742
    %v2702 = vunpack.c.h.b16 %v742
    %v2703 = vunpack.c.l.b16 %v743
    %v2704 = vunpack.c.h.b16 %v743
    %v2705 = vunpack.c.l.b16 %v744
    %v2706 = vunpack.c.h.b16 %v744
    %v2707 = vunpack.c.l.b16 %v745
    %v2708 = vunpack.c.h.b16 %v745
    %v2709 = vunpack.c.l.b16 %v746
    %v2710 = vunpack.c.h.b16 %v746
    %v2711 = vunpack.c.l.b16 %v747
    %v2712 = vunpack.c.h.b16 %v747
    %v2713 = vunpack.c.l.b16 %v748
    %v2714 = vunpack.c.h.b16 %v748
    %v2715 = vunpack.c.l.b16 %v749
    %v2716 = vunpack.c.h.b16 %v749
    %v2717 = vunpack.c.l.b16 %v750
    %v2718 = vunpack.c.h.b16 %v750
    %v2719 = vunpack.c.l.b16 %v751
    %v2720 = vunpack.c.h.b16 %v751
    %v2721 = vunpack.c.l.b16 %v752
    %v2722 = vunpack.c.h.b16 %v752
    %v2723 = vunpack.c.l.b16 %v753
    %v2724 = vunpack.c.h.b16 %v753
    %v2725 = vunpack.c.l.b16 %v754
    %v2726 = vunpack.c.h.b16 %v754
    %v2727 = vunpack.c.l.b16 %v755
    %v2728 = vunpack.c.h.b16 %v755
    %v2729 = vunpack.c.l.b16 %v756
    %v2730 = vunpack.c.h.b16 %v756
    %v2731 = vunpack.c.l.b16 %v757
    %v2732 = vunpack.c.h.b16 %v757
    %v2733 = vunpack.c.l.b16 %v758
    %v2734 = vunpack.c.h.b16 %v758
    %v2735 = vunpack.c.l.b16 %v759
    %v2736 = vunpack.c.h.b16 %v759
    %v2737 = vunpack.c.l.b16 %v760
    %v2738 = vunpack.c.h.b16 %v760
    %v2739 = vunpack.c.l.b16 %v761
    %v2740 = vunpack.c.h.b16 %v761
    %v2741 = vunpack.c.l.b16 %v762
    %v2742 = vunpack.c.h.b16 %v762
    %v2743 = vunpack.c.l.b16 %v763
    %v2744 = vunpack.c.h.b16 %v763
    %v2745 = vunpack.c.l.b16 %v764
    %v2746 = vunpack.c.h.b16 %v764
    %v2747 = vunpack.c.l.b16 %v765
    %v2748 = vunpack.c.h.b16 %v765
    %v2749 = vunpack.c.l.b16 %v766
    %v2750 = vunpack.c.h.b16 %v766
    %v2751 = vunpack.c.l.b16 %v767
    %v2752 = vunpack.c.h.b16 %v767
    %v2753 = vunpack.c.l.b16 %v768
    %v2754 = vunpack.c.h.b16 %v768
    %v2755 = vunpack.c.l.b16 %v769
    %v2756 = vunpack.c.h.b16 %v769
    %v2757 = vunpack.c.l.b16 %v770
    %v2758 = vunpack.c.h.b16 %v770
    %v2759 = vunpack.c.l.b16 %v771
    %v2760 = vunpack.c.h.b16 %v771
    %v2761 = vunpack.c.l.b16 %v772
    %v2762 = vunpack.c.h.b16 %v772
    %v2763 = vunpack.c.l.b16 %v773
    %v2764 = vunpack.c.h.b16 %v773
    %v2765 = vunpack.c.l.b16 %v774
    %v2766 = vunpack.c.h.b16 %v774
    %v2767 = vunpack.c.l.b16 %v775
    %v2768 = vunpack.c.h.b16 %v775
    %v2769 = vunpack.c.l.b16 %v776
    %v2770 = vunpack.c.h.b16 %v776
    %v2771 = vunpack.c.l.b16 %v777
    %v2772 = vunpack.c.h.b16 %v777
    %v2773 = vunpack.c.l.b16 %v778
    %v2774 = vunpack.c.h.b16 %v778
    %v2775 = vunpack.c.l.b16 %v779
    %v2776 = vunpack.c.h.b16 %v779
    %v2777 = vunpack.c.l.b16 %v780
    %v2778 = vunpack.c.h.b16 %v780
    %v2779 = vunpack.c.l.b16 %v781
    %v2780 = vunpack.c.h.b16 %v781
    %v2781 = vunpack.c.l.b16 %v782
    %v2782 = vunpack.c.h.b16 %v782
    %v2783 = vunpack.c.l.b16 %v783
    %v2784 = vunpack.c.h.b16 %v783
    %v2785 = vunpack.c.l.b16 %v784
    %v2786 = vunpack.c.h.b16 %v784
    %v2787 = vunpack.c.l.b16 %v785
    %v2788 = vunpack.c.h.b16 %v785
    %v2789 = vunpack.c.l.b16 %v786
    %v2790 = vunpack.c.h.b16 %v786
    %v2791 = vunpack.c.l.b16 %v787
    %v2792 = vunpack.c.h.b16 %v787
    %v2793 = vunpack.c.l.b16 %v788
    %v2794 = vunpack.c.h.b16 %v788
    %v2795 = vunpack.c.l.b16 %v789
    %v2796 = vunpack.c.h.b16 %v789
    %v2797 = vunpack.c.l.b16 %v790
    %v2798 = vunpack.c.h.b16 %v790
    %v2799 = vunpack.c.l.b16 %v791
    %v2800 = vunpack.c.h.b16 %v791
    %v2801 = vunpack.c.l.b16 %v792
    %v2802 = vunpack.c.h.b16 %v792
    %v2803 = vunpack.c.l.b16 %v793
    %v2804 = vunpack.c.h.b16 %v793
    %v2805 = vunpack.c.l.b16 %v794
    %v2806 = vunpack.c.h.b16 %v794
    %v2807 = vunpack.c.l.b16 %v795
    %v2808 = vunpack.c.h.b16 %v795
    %v2809 = vunpack.c.l.b16 %v796
    %v2810 = vunpack.c.h.b16 %v796
    %v2811 = vunpack.c.l.b16 %v797
    %v2812 = vunpack.c.h.b16 %v797
    %v2813 = vunpack.c.l.b16 %v798
    %v2814 = vunpack.c.h.b16 %v798
    %v2815 = vunpack.c.l.b16 %v799
    %v2816 = vunpack.c.h.b16 %v799
    %v2817 = vunpack.c.l.b16 %v800
    %v2818 = vunpack.c.h.b16 %v800
    %v2819 = vunpack.c.l.b16 %v801
    %v2820 = vunpack.c.h.b16 %v801
    %v2821 = vunpack.c.l.b16 %v802
    %v2822 = vunpack.c.h.b16 %v802
    %v2823 = vunpack.c.l.b16 %v803
    %v2824 = vunpack.c.h.b16 %v803
    %v2825 = vunpack.c.l.b16 %v804
    %v2826 = vunpack.c.h.b16 %v804
    %v2827 = vunpack.c.l.b16 %v805
    %v2828 = vunpack.c.h.b16 %v805
    %v2829 = vunpack.c.l.b16 %v806
    %v2830 = vunpack.c.h.b16 %v806
    %v2831 = vunpack.c.l.b16 %v807
    %v2832 = vunpack.c.h.b16 %v807
    %v2833 = vunpack.c.l.b16 %v808
    %v2834 = vunpack.c.h.b16 %v808
    %v2835 = vunpack.c.l.b16 %v809
    %v2836 = vunpack.c.h.b16 %v809
    %v2837 = vunpack.c.l.b16 %v810
    %v2838 = vunpack.c.h.b16 %v810
    %v2839 = vunpack.c.l.b16 %v811
    %v2840 = vunpack.c.h.b16 %v811
    %v2841 = vunpack.c.l.b16 %v812
    %v2842 = vunpack.c.h.b16 %v812
    %v2843 = vunpack.c.l.b16 %v813
    %v2844 = vunpack.c.h.b16 %v813
    %v2845 = vunpack.c.l.b16 %v814
    %v2846 = vunpack.c.h.b16 %v814
    %v2847 = vunpack.c.l.b16 %v815
    %v2848 = vunpack.c.h.b16 %v815
    %v2849 = vunpack.c.l.b16 %v816
    %v2850 = vunpack.c.h.b16 %v816
    %v2851 = vunpack.c.l.b16 %v817
    %v2852 = vunpack.c.h.b16 %v817
    %v2853 = vunpack.c.l.b16 %v818
    %v2854 = vunpack.c.h.b16 %v818
    %v2855 = vunpack.c.l.b16 %v819
    %v2856 = vunpack.c.h.b16 %v819
    %v2857 = vunpack.c.l.b16 %v820
    %v2858 = vunpack.c.h.b16 %v820
    %v2859 = vunpack.c.l.b16 %v821
    %v2860 = vunpack.c.h.b16 %v821
    %v2861 = vunpack.c.l.b16 %v822
    %v2862 = vunpack.c.h.b16 %v822
    %v2863 = vunpack.c.l.b16 %v823
    %v2864 = vunpack.c.h.b16 %v823
    %v2865 = vunpack.c.l.b16 %v824
    %v2866 = vunpack.c.h.b16 %v824
    %v2867 = vunpack.c.l.b16 %v825
    %v2868 = vunpack.c.h.b16 %v825
    %v2869 = vunpack.c.l.b16 %v826
    %v2870 = vunpack.c.h.b16 %v826
    %v2871 = vunpack.c.l.b16 %v827
    %v2872 = vunpack.c.h.b16 %v827
    %v2873 = vunpack.c.l.b16 %v828
    %v2874 = vunpack.c.h.b16 %v828
    %v2875 = vunpack.c.l.b16 %v829
    %v2876 = vunpack.c.h.b16 %v829
    %v2877 = vunpack.c.l.b16 %v830
    %v2878 = vunpack.c.h.b16 %v830
    %v2879 = vunpack.c.l.b16 %v831
    %v2880 = vunpack.c.h.b16 %v831
    %v2881 = vunpack.c.l.b16 %v832
    %v2882 = vunpack.c.h.b16 %v832
    %v2883 = vunpack.c.l.b16 %v833
    %v2884 = vunpack.c.h.b16 %v833
    %v2885 = vunpack.c.l.b16 %v834
    %v2886 = vunpack.c.h.b16 %v834
    %v2887 = vunpack.c.l.b16 %v835
    %v2888 = vunpack.c.h.b16 %v835
    %v2889 = vunpack.c.l.b16 %v836
    %v2890 = vunpack.c.h.b16 %v836
    %v2891 = vunpack.c.l.b16 %v837
    %v2892 = vunpack.c.h.b16 %v837
    %v2893 = vunpack.c.l.b16 %v838
    %v2894 = vunpack.c.h.b16 %v838
    %v2895 = vunpack.c.l.b16 %v839
    %v2896 = vunpack.c.h.b16 %v839
    %v2897 = vunpack.c.l.b16 %v840
    %v2898 = vunpack.c.h.b16 %v840
    %v2899 = vunpack.c.l.b16 %v841
    %v2900 = vunpack.c.h.b16 %v841
    %v2901 = vunpack.c.l.b16 %v842
    %v2902 = vunpack.c.h.b16 %v842
    %v2903 = vunpack.c.l.b16 %v843
    %v2904 = vunpack.c.h.b16 %v843
    %v2905 = vunpack.c.l.b16 %v844
    %v2906 = vunpack.c.h.b16 %v844
    %v2907 = vunpack.c.l.b16 %v845
    %v2908 = vunpack.c.h.b16 %v845
    %v2909 = vunpack.c.l.b16 %v846
    %v2910 = vunpack.c.h.b16 %v846
    %v2911 = vunpack.c.l.b16 %v847
    %v2912 = vunpack.c.h.b16 %v847
    %v2913 = vunpack.c.l.b16 %v848
    %v2914 = vunpack.c.h.b16 %v848
    %v2915 = vunpack.c.l.b16 %v849
    %v2916 = vunpack.c.h.b16 %v849
    %v2917 = vunpack.c.l.b16 %v850
    %v2918 = vunpack.c.h.b16 %v850
    %v2919 = vunpack.c.l.b16 %v851
    %v2920 = vunpack.c.h.b16 %v851
    %v2921 = vunpack.c.l.b16 %v852
    %v2922 = vunpack.c.h.b16 %v852
    %v2923 = vunpack.c.l.b16 %v853
    %v2924 = vunpack.c.h.b16 %v853
    %v2925 = vunpack.c.l.b16 %v854
    %v2926 = vunpack.c.h.b16 %v854
    %v2927 = vunpack.c.l.b16 %v855
    %v2928 = vunpack.c.h.b16 %v855
    %v2929 = vunpack.c.l.b16 %v856
    %v2930 = vunpack.c.h.b16 %v856
    %v2931 = vunpack.c.l.b16 %v857
    %v2932 = vunpack.c.h.b16 %v857
    %v2933 = vunpack.c.l.b16 %v858
    %v2934 = vunpack.c.h.b16 %v858
    %v2935 = vunpack.c.l.b16 %v859
    %v2936 = vunpack.c.h.b16 %v859
    %v2937 = vunpack.c.l.b16 %v860
    %v2938 = vunpack.c.h.b16 %v860
    %v2939 = vunpack.c.l.b16 %v861
    %v2940 = vunpack.c.h.b16 %v861
    %v2941 = vunpack.c.l.b16 %v862
    %v2942 = vunpack.c.h.b16 %v862
    %v2943 = vunpack.c.l.b16 %v863
    %v2944 = vunpack.c.h.b16 %v863
    %v2945 = vunpack.c.l.b16 %v864
    %v2946 = vunpack.c.h.b16 %v864
    %v2947 = vunpack.c.l.b16 %v865
    %v2948 = vunpack.c.h.b16 %v865
    %v2949 = vunpack.c.l.b16 %v866
    %v2950 = vunpack.c.h.b16 %v866
    %v2951 = vunpack.c.l.b16 %v867
    %v2952 = vunpack.c.h.b16 %v867
    %v2953 = vunpack.c.l.b16 %v868
    %v2954 = vunpack.c.h.b16 %v868
    %v2955 = vunpack.c.l.b16 %v869
    %v2956 = vunpack.c.h.b16 %v869
    %v2957 = vunpack.c.l.b16 %v870
    %v2958 = vunpack.c.h.b16 %v870
    %v2959 = vunpack.c.l.b16 %v871
    %v2960 = vunpack.c.h.b16 %v871
    %v2961 = vunpack.c.l.b16 %v872
    %v2962 = vunpack.c.h.b16 %v872
    %v2963 = vunpack.c.l.b16 %v873
    %v2964 = vunpack.c.h.b16 %v873
    %v2965 = vunpack.c.l.b16 %v874
    %v2966 = vunpack.c.h.b16 %v874
    %v2967 = vunpack.c.l.b16 %v875
    %v2968 = vunpack.c.h.b16 %v875
    %v2969 = vunpack.c.l.b16 %v876
    %v2970 = vunpack.c.h.b16 %v876
    %v2971 = vunpack.c.l.b16 %v877
    %v2972 = vunpack.c.h.b16 %v877
    %v2973 = vunpack.c.l.b16 %v878
    %v2974 = vunpack.c.h.b16 %v878
    %v2975 = vunpack.c.l.b16 %v879
    %v2976 = vunpack.c.h.b16 %v879
    %v2977 = vunpack.c.l.b16 %v880
    %v2978 = vunpack.c.h.b16 %v880
    %v2979 = vunpack.c.l.b16 %v881
    %v2980 = vunpack.c.h.b16 %v881
    %v2981 = vunpack.c.l.b16 %v882
    %v2982 = vunpack.c.h.b16 %v882
    %v2983 = vunpack.c.l.b16 %v883
    %v2984 = vunpack.c.h.b16 %v883
    %v2985 = vunpack.c.l.b16 %v884
    %v2986 = vunpack.c.h.b16 %v884
    %v2987 = vunpack.c.l.b16 %v885
    %v2988 = vunpack.c.h.b16 %v885
    %v2989 = vunpack.c.l.b16 %v886
    %v2990 = vunpack.c.h.b16 %v886
    %v2991 = vunpack.c.l.b16 %v887
    %v2992 = vunpack.c.h.b16 %v887
    %v2993 = vunpack.c.l.b16 %v888
    %v2994 = vunpack.c.h.b16 %v888
    %v2995 = vunpack.c.l.b16 %v889
    %v2996 = vunpack.c.h.b16 %v889
    %v2997 = vunpack.c.l.b16 %v890
    %v2998 = vunpack.c.h.b16 %v890
    %v2999 = vunpack.c.l.b16 %v891
    %v3000 = vunpack.c.h.b16 %v891
    %v3001 = vunpack.c.l.b16 %v892
    %v3002 = vunpack.c.h.b16 %v892
    %v3003 = vunpack.c.l.b16 %v893
    %v3004 = vunpack.c.h.b16 %v893
    %v3005 = vunpack.c.l.b16 %v894
    %v3006 = vunpack.c.h.b16 %v894
    %v3007 = vunpack.c.l.b16 %v895
    %v3008 = vunpack.c.h.b16 %v895
    %v3009 = vunpack.c.l.b16 %v896
    %v3010 = vunpack.c.h.b16 %v896
    %v3011 = vunpack.c.l.b16 %v897
    %v3012 = vunpack.c.h.b16 %v897
    %v3013 = vunpack.c.l.b16 %v898
    %v3014 = vunpack.c.h.b16 %v898
    %v3015 = vunpack.c.l.b16 %v899
    %v3016 = vunpack.c.h.b16 %v899
    %v3017 = vunpack.c.l.b16 %v900
    %v3018 = vunpack.c.h.b16 %v900
    %v3019 = vunpack.c.l.b16 %v901
    %v3020 = vunpack.c.h.b16 %v901
    %v3021 = vunpack.c.l.b16 %v902
    %v3022 = vunpack.c.h.b16 %v902
    %v3023 = vunpack.c.l.b16 %v903
    %v3024 = vunpack.c.h.b16 %v903
    %v3025 = vunpack.c.l.b16 %v904
    %v3026 = vunpack.c.h.b16 %v904
    %v3027 = vunpack.c.l.b16 %v905
    %v3028 = vunpack.c.h.b16 %v905
    %v3029 = vunpack.c.l.b16 %v906
    %v3030 = vunpack.c.h.b16 %v906
    %v3031 = vunpack.c.l.b16 %v907
    %v3032 = vunpack.c.h.b16 %v907
    %v3033 = vunpack.c.l.b16 %v908
    %v3034 = vunpack.c.h.b16 %v908
    %v3035 = vunpack.c.l.b16 %v909
    %v3036 = vunpack.c.h.b16 %v909
    %v3037 = vunpack.c.l.b16 %v910
    %v3038 = vunpack.c.h.b16 %v910
    %v3039 = vunpack.c.l.b16 %v911
    %v3040 = vunpack.c.h.b16 %v911
    %v3041 = vunpack.c.l.b16 %v912
    %v3042 = vunpack.c.h.b16 %v912
    %v3043 = vunpack.c.l.b16 %v913
    %v3044 = vunpack.c.h.b16 %v913
    %v3045 = vunpack.c.l.b16 %v914
    %v3046 = vunpack.c.h.b16 %v914
    %v3047 = vunpack.c.l.b16 %v915
    %v3048 = vunpack.c.h.b16 %v915
    %v3049 = vunpack.c.l.b16 %v916
    %v3050 = vunpack.c.h.b16 %v916
    %v3051 = vunpack.c.l.b16 %v917
    %v3052 = vunpack.c.h.b16 %v917
    %v3053 = vunpack.c.l.b16 %v918
    %v3054 = vunpack.c.h.b16 %v918
    %v3055 = vunpack.c.l.b16 %v919
    %v3056 = vunpack.c.h.b16 %v919
    %v3057 = vunpack.c.l.b16 %v920
    %v3058 = vunpack.c.h.b16 %v920
    %v3059 = vunpack.c.l.b16 %v921
    %v3060 = vunpack.c.h.b16 %v921
    %v3061 = vunpack.c.l.b16 %v922
    %v3062 = vunpack.c.h.b16 %v922
    %v3063 = vunpack.c.l.b16 %v923
    %v3064 = vunpack.c.h.b16 %v923
    %v3065 = vunpack.c.l.b16 %v924
    %v3066 = vunpack.c.h.b16 %v924
    %v3067 = vunpack.c.l.b16 %v925
    %v3068 = vunpack.c.h.b16 %v925
    %v3069 = vunpack.c.l.b16 %v926
    %v3070 = vunpack.c.h.b16 %v926
    %v3071 = vunpack.c.l.b16 %v927
    %v3072 = vunpack.c.h.b16 %v927
    %v3073 = vunpack.c.l.b16 %v928
    %v3074 = vunpack.c.h.b16 %v928
    %v3075 = vunpack.c.l.b16 %v929
    %v3076 = vunpack.c.h.b16 %v929
    %v3077 = vunpack.c.l.b16 %v930
    %v3078 = vunpack.c.h.b16 %v930
    %v3079 = vunpack.c.l.b16 %v931
    %v3080 = vunpack.c.h.b16 %v931
    %v3081 = vunpack.c.l.b16 %v932
    %v3082 = vunpack.c.h.b16 %v932
    %v3083 = vunpack.c.l.b16 %v933
    %v3084 = vunpack.c.h.b16 %v933
    %v3085 = vunpack.c.l.b16 %v934
    %v3086 = vunpack.c.h.b16 %v934
    %v3087 = vunpack.c.l.b16 %v935
    %v3088 = vunpack.c.h.b16 %v935
    %v3089 = vunpack.c.l.b16 %v936
    %v3090 = vunpack.c.h.b16 %v936
    %v3091 = vunpack.c.l.b16 %v937
    %v3092 = vunpack.c.h.b16 %v937
    %v3093 = vunpack.c.l.b16 %v938
    %v3094 = vunpack.c.h.b16 %v938
    %v3095 = vunpack.c.l.b16 %v939
    %v3096 = vunpack.c.h.b16 %v939
    %v3097 = vunpack.c.l.b16 %v940
    %v3098 = vunpack.c.h.b16 %v940
    %v3099 = vunpack.c.l.b16 %v941
    %v3100 = vunpack.c.h.b16 %v941
    %v3101 = vunpack.c.l.b16 %v942
    %v3102 = vunpack.c.h.b16 %v942
    %v3103 = vunpack.c.l.b16 %v943
    %v3104 = vunpack.c.h.b16 %v943
    %v3105 = vunpack.c.l.b16 %v944
    %v3106 = vunpack.c.h.b16 %v944
    %v3107 = vunpack.c.l.b16 %v945
    %v3108 = vunpack.c.h.b16 %v945
    %v3109 = vunpack.c.l.b16 %v946
    %v3110 = vunpack.c.h.b16 %v946
    %v3111 = vunpack.c.l.b16 %v947
    %v3112 = vunpack.c.h.b16 %v947
    %v3113 = vunpack.c.l.b16 %v948
    %v3114 = vunpack.c.h.b16 %v948
    %v3115 = vunpack.c.l.b16 %v949
    %v3116 = vunpack.c.h.b16 %v949
    %v3117 = vunpack.c.l.b16 %v950
    %v3118 = vunpack.c.h.b16 %v950
    %v3119 = vunpack.c.l.b16 %v951
    %v3120 = vunpack.c.h.b16 %v951
    %v3121 = vunpack.c.l.b16 %v952
    %v3122 = vunpack.c.h.b16 %v952
    %v3123 = vunpack.c.l.b16 %v953
    %v3124 = vunpack.c.h.b16 %v953
    %v3125 = vunpack.c.l.b16 %v954
    %v3126 = vunpack.c.h.b16 %v954
    %v3127 = vunpack.c.l.b16 %v955
    %v3128 = vunpack.c.h.b16 %v955
    %v3129 = vunpack.c.l.b16 %v956
    %v3130 = vunpack.c.h.b16 %v956
    %v3131 = vunpack.c.l.b16 %v957
    %v3132 = vunpack.c.h.b16 %v957
    %v3133 = vunpack.c.l.b16 %v958
    %v3134 = vunpack.c.h.b16 %v958
    %v3135 = vunpack.c.l.b16 %v959
    %v3136 = vunpack.c.h.b16 %v959
    %v3137 = vunpack.c.l.b16 %v960
    %v3138 = vunpack.c.h.b16 %v960
    %v3139 = vunpack.c.l.b16 %v961
    %v3140 = vunpack.c.h.b16 %v961
    %v3141 = vunpack.c.l.b16 %v962
    %v3142 = vunpack.c.h.b16 %v962
    %v3143 = vunpack.c.l.b16 %v963
    %v3144 = vunpack.c.h.b16 %v963
    %v3145 = vunpack.c.l.b16 %v964
    %v3146 = vunpack.c.h.b16 %v964
    %v3147 = vunpack.c.l.b16 %v965
    %v3148 = vunpack.c.h.b16 %v965
    %v3149 = vunpack.c.l.b16 %v966
    %v3150 = vunpack.c.h.b16 %v966
    %v3151 = vunpack.c.l.b16 %v967
    %v3152 = vunpack.c.h.b16 %v967
    %v3153 = vunpack.c.l.b16 %v968
    %v3154 = vunpack.c.h.b16 %v968
    %v3155 = vunpack.c.l.b16 %v969
    %v3156 = vunpack.c.h.b16 %v969
    %v3157 = vunpack.c.l.b16 %v970
    %v3158 = vunpack.c.h.b16 %v970
    %v3159 = vunpack.c.l.b16 %v971
    %v3160 = vunpack.c.h.b16 %v971
    %v3161 = vunpack.c.l.b16 %v972
    %v3162 = vunpack.c.h.b16 %v972
    %v3163 = vunpack.c.l.b16 %v973
    %v3164 = vunpack.c.h.b16 %v973
    %v3165 = vunpack.c.l.b16 %v974
    %v3166 = vunpack.c.h.b16 %v974
    %v3167 = vunpack.c.l.b16 %v975
    %v3168 = vunpack.c.h.b16 %v975
    %v3169 = vunpack.c.l.b16 %v976
    %v3170 = vunpack.c.h.b16 %v976
    %v3171 = vunpack.c.l.b16 %v977
    %v3172 = vunpack.c.h.b16 %v977
    %v3173 = vunpack.c.l.b16 %v978
    %v3174 = vunpack.c.h.b16 %v978
    %v3175 = vunpack.c.l.b16 %v979
    %v3176 = vunpack.c.h.b16 %v979
    %v3177 = vunpack.c.l.b16 %v980
    %v3178 = vunpack.c.h.b16 %v980
    %v3179 = vunpack.c.l.b16 %v981
    %v3180 = vunpack.c.h.b16 %v981
    %v3181 = vunpack.c.l.b16 %v982
    %v3182 = vunpack.c.h.b16 %v982
    %v3183 = vunpack.c.l.b16 %v983
    %v3184 = vunpack.c.h.b16 %v983
    %v3185 = vunpack.c.l.b16 %v984
    %v3186 = vunpack.c.h.b16 %v984
    %v3187 = vunpack.c.l.b16 %v985
    %v3188 = vunpack.c.h.b16 %v985
    %v3189 = vunpack.c.l.b16 %v986
    %v3190 = vunpack.c.h.b16 %v986
    %v3191 = vunpack.c.l.b16 %v987
    %v3192 = vunpack.c.h.b16 %v987
    %v3193 = vunpack.c.l.b16 %v988
    %v3194 = vunpack.c.h.b16 %v988
    %v3195 = vunpack.c.l.b16 %v989
    %v3196 = vunpack.c.h.b16 %v989
    %v3197 = vunpack.c.l.b16 %v990
    %v3198 = vunpack.c.h.b16 %v990
    %v3199 = vunpack.c.l.b16 %v991
    %v3200 = vunpack.c.h.b16 %v991
    %v3201 = vunpack.c.l.b16 %v992
    %v3202 = vunpack.c.h.b16 %v992
    %v3203 = vunpack.c.l.b16 %v993
    %v3204 = vunpack.c.h.b16 %v993
    %v3205 = vunpack.c.l.b16 %v994
    %v3206 = vunpack.c.h.b16 %v994
    %v3207 = vunpack.c.l.b16 %v995
    %v3208 = vunpack.c.h.b16 %v995
    %v3209 = vunpack.c.l.b16 %v996
    %v3210 = vunpack.c.h.b16 %v996
    %v3211 = vunpack.c.l.b16 %v997
    %v3212 = vunpack.c.h.b16 %v997
    %v3213 = vunpack.c.l.b16 %v998
    %v3214 = vunpack.c.h.b16 %v998
    %v3215 = vunpack.c.l.b16 %v999
    %v3216 = vunpack.c.h.b16 %v999
    %v3217 = vunpack.c.l.b16 %v1000
    %v3218 = vunpack.c.h.b16 %v1000
    %v3219 = vunpack.c.l.b16 %v1001
    %v3220 = vunpack.c.h.b16 %v1001
    %v3221 = vunpack.c.l.b16 %v1002
    %v3222 = vunpack.c.h.b16 %v1002
    %v3223 = vunpack.c.l.b16 %v1003
    %v3224 = vunpack.c.h.b16 %v1003
    %v3225 = vunpack.c.l.b16 %v1004
    %v3226 = vunpack.c.h.b16 %v1004
    %v3227 = vunpack.c.l.b16 %v1005
    %v3228 = vunpack.c.h.b16 %v1005
    %v3229 = vunpack.c.l.b16 %v1006
    %v3230 = vunpack.c.h.b16 %v1006
    %v3231 = vunpack.c.l.b16 %v1007
    %v3232 = vunpack.c.h.b16 %v1007
    %v3233 = vunpack.c.l.b16 %v1008
    %v3234 = vunpack.c.h.b16 %v1008
    %v3235 = vunpack.c.l.b16 %v1009
    %v3236 = vunpack.c.h.b16 %v1009
    %v3237 = vunpack.c.l.b16 %v1010
    %v3238 = vunpack.c.h.b16 %v1010
    %v3239 = vunpack.c.l.b16 %v1011
    %v3240 = vunpack.c.h.b16 %v1011
    %v3241 = vunpack.c.l.b16 %v1012
    %v3242 = vunpack.c.h.b16 %v1012
    %v3243 = vunpack.c.l.b16 %v1013
    %v3244 = vunpack.c.h.b16 %v1013
    %v3245 = vunpack.c.l.b16 %v1014
    %v3246 = vunpack.c.h.b16 %v1014
    %v3247 = vunpack.c.l.b16 %v1015
    %v3248 = vunpack.c.h.b16 %v1015
    %v3249 = vunpack.c.l.b16 %v1016
    %v3250 = vunpack.c.h.b16 %v1016
    %v3251 = vunpack.c.l.b16 %v1017
    %v3252 = vunpack.c.h.b16 %v1017
    %v3253 = vunpack.c.l.b16 %v1018
    %v3254 = vunpack.c.h.b16 %v1018
    %v3255 = vunpack.c.l.b16 %v1019
    %v3256 = vunpack.c.h.b16 %v1019
    %v3257 = vunpack.c.l.b16 %v1020
    %v3258 = vunpack.c.h.b16 %v1020
    %v3259 = vunpack.c.l.b16 %v1021
    %v3260 = vunpack.c.h.b16 %v1021
    %v3261 = vunpack.c.l.b16 %v1022
    %v3262 = vunpack.c.h.b16 %v1022
    %v3263 = vunpack.c.l.b16 %v1023
    %v3264 = vunpack.c.h.b16 %v1023
    %v3265 = vunpack.c.l.b16 %v1024
    %v3266 = vunpack.c.h.b16 %v1024
    %v3267 = vunpack.c.l.b16 %v1025
    %v3268 = vunpack.c.h.b16 %v1025
    %v3269 = vunpack.c.l.b16 %v1026
    %v3270 = vunpack.c.h.b16 %v1026
    %v3271 = vunpack.c.l.b16 %v1027
    %v3272 = vunpack.c.h.b16 %v1027
    %v3273 = vunpack.c.l.b16 %v1028
    %v3274 = vunpack.c.h.b16 %v1028
    %v3275 = vunpack.c.l.b16 %v1029
    %v3276 = vunpack.c.h.b16 %v1029
    %v3277 = vunpack.c.l.b16 %v1030
    %v3278 = vunpack.c.h.b16 %v1030
    %v3279 = vunpack.c.l.b16 %v1031
    %v3280 = vunpack.c.h.b16 %v1031
    %v3281 = vunpack.c.l.b16 %v1032
    %v3282 = vunpack.c.h.b16 %v1032
    %v3283 = vunpack.c.l.b16 %v1033
    %v3284 = vunpack.c.h.b16 %v1033
    %v3285 = vunpack.c.l.b16 %v1034
    %v3286 = vunpack.c.h.b16 %v1034
    %v3287 = vunpack.c.l.b16 %v1035
    %v3288 = vunpack.c.h.b16 %v1035
    %v3289 = vunpack.c.l.b16 %v1036
    %v3290 = vunpack.c.h.b16 %v1036
    %v3291 = vunpack.c.l.b16 %v1037
    %v3292 = vunpack.c.h.b16 %v1037
    %v3293 = vunpack.c.l.b16 %v1038
    %v3294 = vunpack.c.h.b16 %v1038
    %v3295 = vunpack.c.l.b16 %v1039
    %v3296 = vunpack.c.h.b16 %v1039
    %v3297 = vunpack.c.l.b16 %v1040
    %v3298 = vunpack.c.h.b16 %v1040
    %v3299 = vunpack.c.l.b16 %v1041
    %v3300 = vunpack.c.h.b16 %v1041
    %v3301 = vunpack.c.l.b16 %v1042
    %v3302 = vunpack.c.h.b16 %v1042
    %v3303 = vunpack.c.l.b16 %v1043
    %v3304 = vunpack.c.h.b16 %v1043
    %v3305 = vunpack.c.l.b16 %v1044
    %v3306 = vunpack.c.h.b16 %v1044
    %v3307 = vunpack.c.l.b16 %v1045
    %v3308 = vunpack.c.h.b16 %v1045
    %v3309 = vunpack.c.l.b16 %v1046
    %v3310 = vunpack.c.h.b16 %v1046
    %v3311 = vunpack.c.l.b16 %v1047
    %v3312 = vunpack.c.h.b16 %v1047
    %v3313 = vunpack.c.l.b16 %v1048
    %v3314 = vunpack.c.h.b16 %v1048
    %v3315 = vunpack.c.l.b16 %v1049
    %v3316 = vunpack.c.h.b16 %v1049
    %v3317 = vunpack.c.l.b16 %v1050
    %v3318 = vunpack.c.h.b16 %v1050
    %v3319 = vunpack.c.l.b16 %v1051
    %v3320 = vunpack.c.h.b16 %v1051
    %v3321 = vunpack.c.l.b16 %v1052
    %v3322 = vunpack.c.h.b16 %v1052
    %v3323 = vunpack.c.l.b16 %v1053
    %v3324 = vunpack.c.h.b16 %v1053
    %v3325 = vunpack.c.l.b16 %v1054
    %v3326 = vunpack.c.h.b16 %v1054
    %v3327 = vunpack.c.l.b16 %v1055
    %v3328 = vunpack.c.h.b16 %v1055
    %v3329 = vunpack.c.l.b16 %v1056
    %v3330 = vunpack.c.h.b16 %v1056
    %v3331 = vunpack.c.l.b16 %v1057
    %v3332 = vunpack.c.h.b16 %v1057
    %v3333 = vunpack.c.l.b16 %v1058
    %v3334 = vunpack.c.h.b16 %v1058
    %v3335 = vunpack.c.l.b16 %v1059
    %v3336 = vunpack.c.h.b16 %v1059
    %v3337 = vunpack.c.l.b16 %v1060
    %v3338 = vunpack.c.h.b16 %v1060
    %v3339 = vunpack.c.l.b16 %v1061
    %v3340 = vunpack.c.h.b16 %v1061
    %v3341 = vunpack.c.l.b16 %v1062
    %v3342 = vunpack.c.h.b16 %v1062
    %v3343 = vunpack.c.l.b16 %v1063
    %v3344 = vunpack.c.h.b16 %v1063
    %v3345 = vunpack.c.l.b16 %v1064
    %v3346 = vunpack.c.h.b16 %v1064
    %v3347 = vunpack.c.l.b16 %v1065
    %v3348 = vunpack.c.h.b16 %v1065
    %v3349 = vunpack.c.l.b16 %v1066
    %v3350 = vunpack.c.h.b16 %v1066
    %v3351 = vunpack.c.l.b16 %v1067
    %v3352 = vunpack.c.h.b16 %v1067
    %v3353 = vunpack.c.l.b16 %v1068
    %v3354 = vunpack.c.h.b16 %v1068
    %v3355 = vunpack.c.l.b16 %v1069
    %v3356 = vunpack.c.h.b16 %v1069
    %v3357 = vunpack.c.l.b16 %v1070
    %v3358 = vunpack.c.h.b16 %v1070
    %v3359 = vunpack.c.l.b16 %v1071
    %v3360 = vunpack.c.h.b16 %v1071
    %v3361 = vunpack.c.l.b16 %v1072
    %v3362 = vunpack.c.h.b16 %v1072
    %v3363 = vunpack.c.l.b16 %v1073
    %v3364 = vunpack.c.h.b16 %v1073
    %v3365 = vunpack.c.l.b16 %v1074
    %v3366 = vunpack.c.h.b16 %v1074
    %v3367 = vunpack.c.l.b16 %v1075
    %v3368 = vunpack.c.h.b16 %v1075
    %v3369 = vunpack.c.l.b16 %v1076
    %v3370 = vunpack.c.h.b16 %v1076
    %v3371 = vunpack.c.l.b16 %v1077
    %v3372 = vunpack.c.h.b16 %v1077
    %v3373 = vunpack.c.l.b16 %v1078
    %v3374 = vunpack.c.h.b16 %v1078
    %v3375 = vunpack.c.l.b16 %v1079
    %v3376 = vunpack.c.h.b16 %v1079
    %v3377 = vunpack.c.l.b16 %v1080
    %v3378 = vunpack.c.h.b16 %v1080
    %v3379 = vunpack.c.l.b16 %v1081
    %v3380 = vunpack.c.h.b16 %v1081
    %v3381 = vunpack.c.l.b16 %v1082
    %v3382 = vunpack.c.h.b16 %v1082
    %v3383 = vunpack.c.l.b16 %v1083
    %v3384 = vunpack.c.h.b16 %v1083
    %v3385 = vunpack.c.l.b16 %v1084
    %v3386 = vunpack.c.h.b16 %v1084
    %v3387 = vunpack.c.l.b16 %v1085
    %v3388 = vunpack.c.h.b16 %v1085
    %v3389 = vunpack.c.l.b16 %v1086
    %v3390 = vunpack.c.h.b16 %v1086
    %v3391 = vunpack.c.l.b16 %v1087
    %v3392 = vunpack.c.h.b16 %v1087
    %v3393 = vunpack.c.l.b16 %v1088
    %v3394 = vunpack.c.h.b16 %v1088
    %v3395 = vunpack.c.l.b16 %v1089
    %v3396 = vunpack.c.h.b16 %v1089
    %v3397 = vunpack.c.l.b16 %v1090
    %v3398 = vunpack.c.h.b16 %v1090
    %v3399 = vunpack.c.l.b16 %v1091
    %v3400 = vunpack.c.h.b16 %v1091
    %v3401 = vunpack.c.l.b16 %v1092
    %v3402 = vunpack.c.h.b16 %v1092
    %v3403 = vunpack.c.l.b16 %v1093
    %v3404 = vunpack.c.h.b16 %v1093
    %v3405 = vunpack.c.l.b16 %v1094
    %v3406 = vunpack.c.h.b16 %v1094
    %v3407 = vunpack.c.l.b16 %v1095
    %v3408 = vunpack.c.h.b16 %v1095
    %v3409 = vunpack.c.l.b16 %v1096
    %v3410 = vunpack.c.h.b16 %v1096
    %v3411 = vunpack.c.l.b16 %v1097
    %v3412 = vunpack.c.h.b16 %v1097
    %v3413 = vunpack.c.l.b16 %v1098
    %v3414 = vunpack.c.h.b16 %v1098
    %v3415 = vunpack.c.l.b16 %v1099
    %v3416 = vunpack.c.h.b16 %v1099
    %v3417 = vunpack.c.l.b16 %v1100
    %v3418 = vunpack.c.h.b16 %v1100
    %v3419 = vunpack.c.l.b16 %v1101
    %v3420 = vunpack.c.h.b16 %v1101
    %v3421 = vunpack.c.l.b16 %v1102
    %v3422 = vunpack.c.h.b16 %v1102
    %v3423 = vunpack.c.l.b16 %v1103
    %v3424 = vunpack.c.h.b16 %v1103
    %v3425 = vunpack.c.l.b16 %v1104
    %v3426 = vunpack.c.h.b16 %v1104
    %v3427 = vunpack.c.l.b16 %v1105
    %v3428 = vunpack.c.h.b16 %v1105
    %v3429 = vunpack.c.l.b16 %v1106
    %v3430 = vunpack.c.h.b16 %v1106
    %v3431 = vunpack.c.l.b16 %v1107
    %v3432 = vunpack.c.h.b16 %v1107
    %v3433 = vunpack.c.l.b16 %v1108
    %v3434 = vunpack.c.h.b16 %v1108
    %v3435 = vunpack.c.l.b16 %v1109
    %v3436 = vunpack.c.h.b16 %v1109
    %v3437 = vunpack.c.l.b16 %v1110
    %v3438 = vunpack.c.h.b16 %v1110
    %v3439 = vunpack.c.l.b16 %v1111
    %v3440 = vunpack.c.h.b16 %v1111
    %v3441 = vunpack.c.l.b16 %v1112
    %v3442 = vunpack.c.h.b16 %v1112
    %v3443 = vunpack.c.l.b16 %v1113
    %v3444 = vunpack.c.h.b16 %v1113
    %v3445 = vunpack.c.l.b16 %v1114
    %v3446 = vunpack.c.h.b16 %v1114
    %v3447 = vunpack.c.l.b16 %v1115
    %v3448 = vunpack.c.h.b16 %v1115
    %v3449 = vunpack.c.l.b16 %v1116
    %v3450 = vunpack.c.h.b16 %v1116
    %v3451 = vunpack.c.l.b16 %v1117
    %v3452 = vunpack.c.h.b16 %v1117
    %v3453 = vunpack.c.l.b16 %v1118
    %v3454 = vunpack.c.h.b16 %v1118
    %v3455 = vunpack.c.l.b16 %v1119
    %v3456 = vunpack.c.h.b16 %v1119
    %v3457 = vunpack.c.l.b16 %v1120
    %v3458 = vunpack.c.h.b16 %v1120
    %v3459 = vunpack.c.l.b16 %v1121
    %v3460 = vunpack.c.h.b16 %v1121
    %v3461 = vunpack.c.l.b16 %v1122
    %v3462 = vunpack.c.h.b16 %v1122
    %v3463 = vunpack.c.l.b16 %v1123
    %v3464 = vunpack.c.h.b16 %v1123
    %v3465 = vunpack.c.l.b16 %v1124
    %v3466 = vunpack.c.h.b16 %v1124
    %v3467 = vunpack.c.l.b16 %v1125
    %v3468 = vunpack.c.h.b16 %v1125
    %v3469 = vunpack.c.l.b16 %v1126
    %v3470 = vunpack.c.h.b16 %v1126
    %v3471 = vunpack.c.l.b16 %v1127
    %v3472 = vunpack.c.h.b16 %v1127
    %v3473 = vunpack.c.l.b16 %v1128
    %v3474 = vunpack.c.h.b16 %v1128
    %v3475 = vunpack.c.l.b16 %v1129
    %v3476 = vunpack.c.h.b16 %v1129
    %v3477 = vunpack.c.l.b16 %v1130
    %v3478 = vunpack.c.h.b16 %v1130
    %v3479 = vunpack.c.l.b16 %v1131
    %v3480 = vunpack.c.h.b16 %v1131
    %v3481 = vunpack.c.l.b16 %v1132
    %v3482 = vunpack.c.h.b16 %v1132
    %v3483 = vunpack.c.l.b16 %v1133
    %v3484 = vunpack.c.h.b16 %v1133
    %v3485 = vunpack.c.l.b16 %v1134
    %v3486 = vunpack.c.h.b16 %v1134
    %v3487 = vunpack.c.l.b16 %v1135
    %v3488 = vunpack.c.h.b16 %v1135
    %v3489 = vunpack.c.l.b16 %v1136
    %v3490 = vunpack.c.h.b16 %v1136
    %v3491 = vunpack.c.l.b16 %v1137
    %v3492 = vunpack.c.h.b16 %v1137
    %v3493 = vunpack.c.l.b16 %v1138
    %v3494 = vunpack.c.h.b16 %v1138
    %v3495 = vunpack.c.l.b16 %v1139
    %v3496 = vunpack.c.h.b16 %v1139
    %v3497 = vunpack.c.l.b16 %v1140
    %v3498 = vunpack.c.h.b16 %v1140
    %v3499 = vunpack.c.l.b16 %v1141
    %v3500 = vunpack.c.h.b16 %v1141
    %v3501 = vunpack.c.l.b16 %v1142
    %v3502 = vunpack.c.h.b16 %v1142
    %v3503 = vunpack.c.l.b16 %v1143
    %v3504 = vunpack.c.h.b16 %v1143
    %v3505 = vunpack.c.l.b16 %v1144
    %v3506 = vunpack.c.h.b16 %v1144
    %v3507 = vunpack.c.l.b16 %v1145
    %v3508 = vunpack.c.h.b16 %v1145
    %v3509 = vunpack.c.l.b16 %v1146
    %v3510 = vunpack.c.h.b16 %v1146
    %v3511 = vpack.c.b16 %v1945, %v1943
    %v3512 = vpack.c.b16 %v1946, %v1944
    %v3513 = vpack.c.b16 %v1949, %v1947
    %v3514 = vpack.c.b16 %v1950, %v1948
    %v3515 = vpack.c.b16 %v1953, %v1951
    %v3516 = vpack.c.b16 %v1954, %v1952
    %v3517 = vpack.c.b16 %v1957, %v1955
    %v3518 = vpack.c.b16 %v1958, %v1956
    %v3519 = vpack.c.b16 %v1961, %v1959
    %v3520 = vpack.c.b16 %v1962, %v1960
    %v3521 = vpack.c.b16 %v1965, %v1963
    %v3522 = vpack.c.b16 %v1966, %v1964
    %v3523 = vpack.c.b16 %v1969, %v1967
    %v3524 = vpack.c.b16 %v1970, %v1968
    %v3525 = vpack.c.b16 %v1973, %v1971
    %v3526 = vpack.c.b16 %v1974, %v1972
    %v3527 = vpack.c.b16 %v1977, %v1975
    %v3528 = vpack.c.b16 %v1978, %v1976
    %v3529 = vpack.c.b16 %v1981, %v1979
    %v3530 = vpack.c.b16 %v1982, %v1980
    %v3531 = vpack.c.b16 %v1985, %v1983
    %v3532 = vpack.c.b16 %v1986, %v1984
    %v3533 = vpack.c.b16 %v1989, %v1987
    %v3534 = vpack.c.b16 %v1990, %v1988
    %v3535 = vpack.c.b16 %v1993, %v1991
    %v3536 = vpack.c.b16 %v1994, %v1992
    %v3537 = vpack.c.b16 %v1997, %v1995
    %v3538 = vpack.c.b16 %v1998, %v1996
    %v3539 = vpack.c.b16 %v2001, %v1999
    %v3540 = vpack.c.b16 %v2002, %v2000
    %v3541 = vpack.c.b16 %v2005, %v2003
    %v3542 = vpack.c.b16 %v2006, %v2004
    %v3543 = vpack.c.b16 %v2009, %v2007
    %v3544 = vpack.c.b16 %v2010, %v2008
    %v3545 = vpack.c.b16 %v2013, %v2011
    %v3546 = vpack.c.b16 %v2014, %v2012
    %v3547 = vpack.c.b16 %v2017, %v2015
    %v3548 = vpack.c.b16 %v2018, %v2016
    %v3549 = vpack.c.b16 %v2021, %v2019
    %v3550 = vpack.c.b16 %v2022, %v2020
    %v3551 = vpack.c.b16 %v2025, %v2023
    %v3552 = vpack.c.b16 %v2026, %v2024
    %v3553 = vpack.c.b16 %v2029, %v2027
    %v3554 = vpack.c.b16 %v2030, %v2028
    %v3555 = vpack.c.b16 %v2033, %v2031
    %v3556 = vpack.c.b16 %v2034, %v2032
    %v3557 = vpack.c.b16 %v2037, %v2035
    %v3558 = vpack.c.b16 %v2038, %v2036
    %v3559 = vpack.c.b16 %v2041, %v2039
    %v3560 = vpack.c.b16 %v2042, %v2040
    %v3561 = vpack.c.b16 %v2045, %v2043
    %v3562 = vpack.c.b16 %v2046, %v2044
    %v3563 = vpack.c.b16 %v2049, %v2047
    %v3564 = vpack.c.b16 %v2050, %v2048
    %v3565 = vpack.c.b16 %v2053, %v2051
    %v3566 = vpack.c.b16 %v2054, %v2052
    %v3567 = vpack.c.b16 %v2057, %v2055
    %v3568 = vpack.c.b16 %v2058, %v2056
    %v3569 = vpack.c.b16 %v2061, %v2059
    %v3570 = vpack.c.b16 %v2062, %v2060
    %v3571 = vpack.c.b16 %v2065, %v2063
    %v3572 = vpack.c.b16 %v2066, %v2064
    %v3573 = vpack.c.b16 %v2069, %v2067
    %v3574 = vpack.c.b16 %v2070, %v2068
    %v3575 = vpack.c.b16 %v2073, %v2071
    %v3576 = vpack.c.b16 %v2074, %v2072
    %v3577 = vpack.c.b16 %v2077, %v2075
    %v3578 = vpack.c.b16 %v2078, %v2076
    %v3579 = vpack.c.b16 %v2081, %v2079
    %v3580 = vpack.c.b16 %v2082, %v2080
    %v3581 = vpack.c.b16 %v2085, %v2083
    %v3582 = vpack.c.b16 %v2086, %v2084
    %v3583 = vpack.c.b16 %v2089, %v2087
    %v3584 = vpack.c.b16 %v2090, %v2088
    %v3585 = vpack.c.b16 %v2093, %v2091
    %v3586 = vpack.c.b16 %v2094, %v2092
    %v3587 = vpack.c.b16 %v2097, %v2095
    %v3588 = vpack.c.b16 %v2098, %v2096
    %v3589 = vpack.c.b16 %v2101, %v2099
    %v3590 = vpack.c.b16 %v2102, %v2100
    %v3591 = vpack.c.b16 %v2105, %v2103
    %v3592 = vpack.c.b16 %v2106, %v2104
    %v3593 = vpack.c.b16 %v2109, %v2107
    %v3594 = vpack.c.b16 %v2110, %v2108
    %v3595 = vpack.c.b16 %v2113, %v2111
    %v3596 = vpack.c.b16 %v2114, %v2112
    %v3597 = vpack.c.b16 %v2117, %v2115
    %v3598 = vpack.c.b16 %v2118, %v2116
    %v3599 = vpack.c.b16 %v2121, %v2119
    %v3600 = vpack.c.b16 %v2122, %v2120
    %v3601 = vpack.c.b16 %v2125, %v2123
    %v3602 = vpack.c.b16 %v2126, %v2124
    %v3603 = vpack.c.b16 %v2129, %v2127
    %v3604 = vpack.c.b16 %v2130, %v2128
    %v3605 = vpack.c.b16 %v2133, %v2131
    %v3606 = vpack.c.b16 %v2134, %v2132
    %v3607 = vpack.c.b16 %v2137, %v2135
    %v3608 = vpack.c.b16 %v2138, %v2136
    %v3609 = vpack.c.b16 %v2141, %v2139
    %v3610 = vpack.c.b16 %v2142, %v2140
    %v3611 = vpack.c.b16 %v2145, %v2143
    %v3612 = vpack.c.b16 %v2146, %v2144
    %v3613 = vpack.c.b16 %v2149, %v2147
    %v3614 = vpack.c.b16 %v2150, %v2148
    %v3615 = vpack.c.b16 %v2153, %v2151
    %v3616 = vpack.c.b16 %v2154, %v2152
    %v3617 = vpack.c.b16 %v2157, %v2155
    %v3618 = vpack.c.b16 %v2158, %v2156
    %v3619 = vpack.c.b16 %v2161, %v2159
    %v3620 = vpack.c.b16 %v2162, %v2160
    %v3621 = vpack.c.b16 %v2165, %v2163
    %v3622 = vpack.c.b16 %v2166, %v2164
    %v3623 = vpack.c.b16 %v2169, %v2167
    %v3624 = vpack.c.b16 %v2170, %v2168
    %v3625 = vpack.c.b16 %v2173, %v2171
    %v3626 = vpack.c.b16 %v2174, %v2172
    %v3627 = vpack.c.b16 %v2177, %v2175
    %v3628 = vpack.c.b16 %v2178, %v2176
    %v3629 = vpack.c.b16 %v2181, %v2179
    %v3630 = vpack.c.b16 %v2182, %v2180
    %v3631 = vpack.c.b16 %v2185, %v2183
    %v3632 = vpack.c.b16 %v2186, %v2184
    %v3633 = vpack.c.b16 %v2189, %v2187
    %v3634 = vpack.c.b16 %v2190, %v2188
    %v3635 = vpack.c.b16 %v2193, %v2191
    %v3636 = vpack.c.b16 %v2194, %v2192
    %v3637 = vpack.c.b16 %v2197, %v2195
    %v3638 = vpack.c.b16 %v2198, %v2196
    %v3639 = vpack.c.b16 %v2201, %v2199
    %v3640 = vpack.c.b16 %v2202, %v2200
    %v3641 = vpack.c.b16 %v2205, %v2203
    %v3642 = vpack.c.b16 %v2206, %v2204
    %v3643 = vpack.c.b16 %v2209, %v2207
    %v3644 = vpack.c.b16 %v2210, %v2208
    %v3645 = vpack.c.b16 %v2213, %v2211
    %v3646 = vpack.c.b16 %v2214, %v2212
    %v3647 = vpack.c.b16 %v2217, %v2215
    %v3648 = vpack.c.b16 %v2218, %v2216
    %v3649 = vpack.c.b16 %v2221, %v2219
    %v3650 = vpack.c.b16 %v2222, %v2220
    %v3651 = vpack.c.b16 %v2225, %v2223
    %v3652 = vpack.c.b16 %v2226, %v2224
    %v3653 = vpack.c.b16 %v2229, %v2227
    %v3654 = vpack.c.b16 %v2230, %v2228
    %v3655 = vpack.c.b16 %v2233, %v2231
    %v3656 = vpack.c.b16 %v2234, %v2232
    %v3657 = vpack.c.b16 %v2237, %v2235
    %v3658 = vpack.c.b16 %v2238, %v2236
    %v3659 = vpack.c.b16 %v2241, %v2239
    %v3660 = vpack.c.b16 %v2242, %v2240
    %v3661 = vpack.c.b16 %v2245, %v2243
    %v3662 = vpack.c.b16 %v2246, %v2244
    %v3663 = vpack.c.b16 %v2249, %v2247
    %v3664 = vpack.c.b16 %v2250, %v2248
    %v3665 = vpack.c.b16 %v2253, %v2251
    %v3666 = vpack.c.b16 %v2254, %v2252
    %v3667 = vpack.c.b16 %v2257, %v2255
    %v3668 = vpack.c.b16 %v2258, %v2256
    %v3669 = vpack.c.b16 %v2261, %v2259
    %v3670 = vpack.c.b16 %v2262, %v2260
    %v3671 = vpack.c.b16 %v2265, %v2263
    %v3672 = vpack.c.b16 %v2266, %v2264
    %v3673 = vpack.c.b16 %v2269, %v2267
    %v3674 = vpack.c.b16 %v2270, %v2268
    %v3675 = vpack.c.b16 %v2273, %v2271
    %v3676 = vpack.c.b16 %v2274, %v2272
    %v3677 = vpack.c.b16 %v2277, %v2275
    %v3678 = vpack.c.b16 %v2278, %v2276
    %v3679 = vpack.c.b16 %v2281, %v2279
    %v3680 = vpack.c.b16 %v2282, %v2280
    %v3681 = vpack.c.b16 %v2285, %v2283
    %v3682 = vpack.c.b16 %v2286, %v2284
    %v3683 = vpack.c.b16 %v2289, %v2287
    %v3684 = vpack.c.b16 %v2290, %v2288
    %v3685 = vpack.c.b16 %v2293, %v2291
    %v3686 = vpack.c.b16 %v2294, %v2292
    %v3687 = vpack.c.b16 %v2297, %v2295
    %v3688 = vpack.c.b16 %v2298, %v2296
    %v3689 = vpack.c.b16 %v2301, %v2299
    %v3690 = vpack.c.b16 %v2302, %v2300
    %v3691 = vpack.c.b16 %v2305, %v2303
    %v3692 = vpack.c.b16 %v2306, %v2304
    %v3693 = vpack.c.b16 %v2309, %v2307
    %v3694 = vpack.c.b16 %v2310, %v2308
    %v3695 = vpack.c.b16 %v2313, %v2311
    %v3696 = vpack.c.b16 %v2314, %v2312
    %v3697 = vpack.c.b16 %v2317, %v2315
    %v3698 = vpack.c.b16 %v2318, %v2316
    %v3699 = vpack.c.b16 %v2321, %v2319
    %v3700 = vpack.c.b16 %v2322, %v2320
    %v3701 = vpack.c.b16 %v2325, %v2323
    %v3702 = vpack.c.b16 %v2326, %v2324
    %v3703 = vpack.c.b16 %v2329, %v2327
    %v3704 = vpack.c.b16 %v2330, %v2328
    %v3705 = vpack.c.b16 %v2333, %v2331
    %v3706 = vpack.c.b16 %v2334, %v2332
    %v3707 = vpack.c.b16 %v2337, %v2335
    %v3708 = vpack.c.b16 %v2338, %v2336
    %v3709 = vpack.c.b16 %v2341, %v2339
    %v3710 = vpack.c.b16 %v2342, %v2340
    %v3711 = vpack.c.b16 %v2345, %v2343
    %v3712 = vpack.c.b16 %v2346, %v2344
    %v3713 = vpack.c.b16 %v2349, %v2347
    %v3714 = vpack.c.b16 %v2350, %v2348
    %v3715 = vpack.c.b16 %v2353, %v2351
    %v3716 = vpack.c.b16 %v2354, %v2352
    %v3717 = vpack.c.b16 %v2357, %v2355
    %v3718 = vpack.c.b16 %v2358, %v2356
    %v3719 = vpack.c.b16 %v2361, %v2359
    %v3720 = vpack.c.b16 %v2362, %v2360
    %v3721 = vpack.c.b16 %v2365, %v2363
    %v3722 = vpack.c.b16 %v2366, %v2364
    %v3723 = vpack.c.b16 %v2369, %v2367
    %v3724 = vpack.c.b16 %v2370, %v2368
    %v3725 = vpack.c.b16 %v2373, %v2371
    %v3726 = vpack.c.b16 %v2374, %v2372
    %v3727 = vpack.c.b16 %v2377, %v2375
    %v3728 = vpack.c.b16 %v2378, %v2376
    %v3729 = vpack.c.b16 %v2381, %v2379
    %v3730 = vpack.c.b16 %v2382, %v2380
    %v3731 = vpack.c.b16 %v2385, %v2383
    %v3732 = vpack.c.b16 %v2386, %v2384
    %v3733 = vpack.c.b16 %v2389, %v2387
    %v3734 = vpack.c.b16 %v2390, %v2388
    %v3735 = vpack.c.b16 %v2393, %v2391
    %v3736 = vpack.c.b16 %v2394, %v2392
    %v3737 = vpack.c.b16 %v2397, %v2395
    %v3738 = vpack.c.b16 %v2398, %v2396
    %v3739 = vpack.c.b16 %v2401, %v2399
    %v3740 = vpack.c.b16 %v2402, %v2400
    %v3741 = vpack.c.b16 %v2405, %v2403
    %v3742 = vpack.c.b16 %v2406, %v2404
    %v3743 = vpack.c.b16 %v2409, %v2407
    %v3744 = vpack.c.b16 %v2410, %v2408
    %v3745 = vpack.c.b16 %v2413, %v2411
    %v3746 = vpack.c.b16 %v2414, %v2412
    %v3747 = vpack.c.b16 %v2417, %v2415
    %v3748 = vpack.c.b16 %v2418, %v2416
    %v3749 = vpack.c.b16 %v2421, %v2419
    %v3750 = vpack.c.b16 %v2422, %v2420
    %v3751 = vpack.c.b16 %v2425, %v2423
    %v3752 = vpack.c.b16 %v2426, %v2424
    %v3753 = vpack.c.b16 %v2429, %v2427
    %v3754 = vpack.c.b16 %v2430, %v2428
    %v3755 = vpack.c.b16 %v2433, %v2431
    %v3756 = vpack.c.b16 %v2434, %v2432
    %v3757 = vpack.c.b16 %v2437, %v2435
    %v3758 = vpack.c.b16 %v2438, %v2436
    %v3759 = vpack.c.b16 %v2441, %v2439
    %v3760 = vpack.c.b16 %v2442, %v2440
    %v3761 = vpack.c.b16 %v2445, %v2443
    %v3762 = vpack.c.b16 %v2446, %v2444
    %v3763 = vpack.c.b16 %v2449, %v2447
    %v3764 = vpack.c.b16 %v2450, %v2448
    %v3765 = vpack.c.b16 %v2453, %v2451
    %v3766 = vpack.c.b16 %v2454, %v2452
    %v3767 = vpack.c.b16 %v2457, %v2455
    %v3768 = vpack.c.b16 %v2458, %v2456
    %v3769 = vpack.c.b16 %v2461, %v2459
    %v3770 = vpack.c.b16 %v2462, %v2460
    %v3771 = vpack.c.b16 %v2465, %v2463
    %v3772 = vpack.c.b16 %v2466, %v2464
    %v3773 = vpack.c.b16 %v2469, %v2467
    %v3774 = vpack.c.b16 %v2470, %v2468
    %v3775 = vpack.c.b16 %v2473, %v2471
    %v3776 = vpack.c.b16 %v2474, %v2472
    %v3777 = vpack.c.b16 %v2477, %v2475
    %v3778 = vpack.c.b16 %v2478, %v2476
    %v3779 = vpack.c.b16 %v2481, %v2479
    %v3780 = vpack.c.b16 %v2482, %v2480
    %v3781 = vpack.c.b16 %v2485, %v2483
    %v3782 = vpack.c.b16 %v2486, %v2484
    %v3783 = vpack.c.b16 %v2489, %v2487
    %v3784 = vpack.c.b16 %v2490, %v2488
    %v3785 = vpack.c.b16 %v2493, %v2491
    %v3786 = vpack.c.b16 %v2494, %v2492
    %v3787 = vpack.c.b16 %v2497, %v2495
    %v3788 = vpack.c.b16 %v2498, %v2496
    %v3789 = vpack.c.b16 %v2501, %v2499
    %v3790 = vpack.c.b16 %v2502, %v2500
    %v3791 = vpack.c.b16 %v2505, %v2503
    %v3792 = vpack.c.b16 %v2506, %v2504
    %v3793 = vpack.c.b16 %v2509, %v2507
    %v3794 = vpack.c.b16 %v2510, %v2508
    %v3795 = vpack.c.b16 %v2513, %v2511
    %v3796 = vpack.c.b16 %v2514, %v2512
    %v3797 = vpack.c.b16 %v2517, %v2515
    %v3798 = vpack.c.b16 %v2518, %v2516
    %v3799 = vpack.c.b16 %v2521, %v2519
    %v3800 = vpack.c.b16 %v2522, %v2520
    %v3801 = vpack.c.b16 %v2525, %v2523
    %v3802 = vpack.c.b16 %v2526, %v2524
    %v3803 = vpack.c.b16 %v2529, %v2527
    %v3804 = vpack.c.b16 %v2530, %v2528
    %v3805 = vpack.c.b16 %v2533, %v2531
    %v3806 = vpack.c.b16 %v2534, %v2532
    %v3807 = vpack.c.b16 %v2537, %v2535
    %v3808 = vpack.c.b16 %v2538, %v2536
    %v3809 = vpack.c.b16 %v2541, %v2539
    %v3810 = vpack.c.b16 %v2542, %v2540
    %v3811 = vpack.c.b16 %v2545, %v2543
    %v3812 = vpack.c.b16 %v2546, %v2544
    %v3813 = vpack.c.b16 %v2549, %v2547
    %v3814 = vpack.c.b16 %v2550, %v2548
    %v3815 = vpack.c.b16 %v2553, %v2551
    %v3816 = vpack.c.b16 %v2554, %v2552
    %v3817 = vpack.c.b16 %v2557, %v2555
    %v3818 = vpack.c.b16 %v2558, %v2556
    %v3819 = vpack.c.b16 %v2561, %v2559
    %v3820 = vpack.c.b16 %v2562, %v2560
    %v3821 = vpack.c.b16 %v2565, %v2563
    %v3822 = vpack.c.b16 %v2566, %v2564
    %v3823 = vpack.c.b16 %v2569, %v2567
    %v3824 = vpack.c.b16 %v2570, %v2568
    %v3825 = vpack.c.b16 %v2573, %v2571
    %v3826 = vpack.c.b16 %v2574, %v2572
    %v3827 = vpack.c.b16 %v2577, %v2575
    %v3828 = vpack.c.b16 %v2578, %v2576
    %v3829 = vpack.c.b16 %v2581, %v2579
    %v3830 = vpack.c.b16 %v2582, %v2580
    %v3831 = vpack.c.b16 %v2585, %v2583
    %v3832 = vpack.c.b16 %v2586, %v2584
    %v3833 = vpack.c.b16 %v2589, %v2587
    %v3834 = vpack.c.b16 %v2590, %v2588
    %v3835 = vpack.c.b16 %v2593, %v2591
    %v3836 = vpack.c.b16 %v2594, %v2592
    %v3837 = vpack.c.b16 %v2597, %v2595
    %v3838 = vpack.c.b16 %v2598, %v2596
    %v3839 = vpack.c.b16 %v2601, %v2599
    %v3840 = vpack.c.b16 %v2602, %v2600
    %v3841 = vpack.c.b16 %v2605, %v2603
    %v3842 = vpack.c.b16 %v2606, %v2604
    %v3843 = vpack.c.b16 %v2609, %v2607
    %v3844 = vpack.c.b16 %v2610, %v2608
    %v3845 = vpack.c.b16 %v2613, %v2611
    %v3846 = vpack.c.b16 %v2614, %v2612
    %v3847 = vpack.c.b16 %v2617, %v2615
    %v3848 = vpack.c.b16 %v2618, %v2616
    %v3849 = vpack.c.b16 %v2621, %v2619
    %v3850 = vpack.c.b16 %v2622, %v2620
    %v3851 = vpack.c.b16 %v2625, %v2623
    %v3852 = vpack.c.b16 %v2626, %v2624
    %v3853 = vpack.c.b16 %v2629, %v2627
    %v3854 = vpack.c.b16 %v2630, %v2628
    %v3855 = vpack.c.b16 %v2633, %v2631
    %v3856 = vpack.c.b16 %v2634, %v2632
    %v3857 = vpack.c.b16 %v2637, %v2635
    %v3858 = vpack.c.b16 %v2638, %v2636
    %v3859 = vpack.c.b16 %v2641, %v2639
    %v3860 = vpack.c.b16 %v2642, %v2640
    %v3861 = vpack.c.b16 %v2645, %v2643
    %v3862 = vpack.c.b16 %v2646, %v2644
    %v3863 = vpack.c.b16 %v2649, %v2647
    %v3864 = vpack.c.b16 %v2650, %v2648
    %v3865 = vpack.c.b16 %v2653, %v2651
    %v3866 = vpack.c.b16 %v2654, %v2652
    %v3867 = vpack.c.b16 %v2657, %v2655
    %v3868 = vpack.c.b16 %v2658, %v2656
    %v3869 = vpack.c.b16 %v2661, %v2659
    %v3870 = vpack.c.b16 %v2662, %v2660
    %v3871 = vpack.c.b16 %v2665, %v2663
    %v3872 = vpack.c.b16 %v2666, %v2664
    %v3873 = vpack.c.b16 %v2669, %v2667
    %v3874 = vpack.c.b16 %v2670, %v2668
    %v3875 = vpack.c.b16 %v2673, %v2671
    %v3876 = vpack.c.b16 %v2674, %v2672
    %v3877 = vpack.c.b16 %v2677, %v2675
    %v3878 = vpack.c.b16 %v2678, %v2676
    %v3879 = vpack.c.b16 %v2681, %v2679
    %v3880 = vpack.c.b16 %v2682, %v2680
    %v3881 = vpack.c.b16 %v2685, %v2683
    %v3882 = vpack.c.b16 %v2686, %v2684
    %v3883 = vpack.c.b16 %v2689, %v2687
    %v3884 = vpack.c.b16 %v2690, %v2688
    %v3885 = vpack.c.b16 %v2693, %v2691
    %v3886 = vpack.c.b16 %v2694, %v2692
    %v3887 = vpack.c.b16 %v2697, %v2695
    %v3888 = vpack.c.b16 %v2698, %v2696
    %v3889 = vpack.c.b16 %v2701, %v2699
    %v3890 = vpack.c.b16 %v2702, %v2700
    %v3891 = vpack.c.b16 %v2705, %v2703
    %v3892 = vpack.c.b16 %v2706, %v2704
    %v3893 = vpack.c.b16 %v2709, %v2707
    %v3894 = vpack.c.b16 %v2710, %v2708
    %v3895 = vpack.c.b16 %v2713, %v2711
    %v3896 = vpack.c.b16 %v2714, %v2712
    %v3897 = vpack.c.b16 %v2717, %v2715
    %v3898 = vpack.c.b16 %v2718, %v2716
    %v3899 = vpack.c.b16 %v2721, %v2719
    %v3900 = vpack.c.b16 %v2722, %v2720
    %v3901 = vpack.c.b16 %v2725, %v2723
    %v3902 = vpack.c.b16 %v2726, %v2724
    %v3903 = vpack.c.b16 %v2729, %v2727
    %v3904 = vpack.c.b16 %v2730, %v2728
    %v3905 = vpack.c.b16 %v2733, %v2731
    %v3906 = vpack.c.b16 %v2734, %v2732
    %v3907 = vpack.c.b16 %v2737, %v2735
    %v3908 = vpack.c.b16 %v2738, %v2736
    %v3909 = vpack.c.b16 %v2741, %v2739
    %v3910 = vpack.c.b16 %v2742, %v2740
    %v3911 = vpack.c.b16 %v2745, %v2743
    %v3912 = vpack.c.b16 %v2746, %v2744
    %v3913 = vpack.c.b16 %v2749, %v2747
    %v3914 = vpack.c.b16 %v2750, %v2748
    %v3915 = vpack.c.b16 %v2753, %v2751
    %v3916 = vpack.c.b16 %v2754, %v2752
    %v3917 = vpack.c.b16 %v2757, %v2755
    %v3918 = vpack.c.b16 %v2758, %v2756
    %v3919 = vpack.c.b16 %v2761, %v2759
    %v3920 = vpack.c.b16 %v2762, %v2760
    %v3921 = vpack.c.b16 %v2765, %v2763
    %v3922 = vpack.c.b16 %v2766, %v2764
    %v3923 = vpack.c.b16 %v2769, %v2767
    %v3924 = vpack.c.b16 %v2770, %v2768
    %v3925 = vpack.c.b16 %v2773, %v2771
    %v3926 = vpack.c.b16 %v2774, %v2772
    %v3927 = vpack.c.b16 %v2777, %v2775
    %v3928 = vpack.c.b16 %v2778, %v2776
    %v3929 = vpack.c.b16 %v2781, %v2779
    %v3930 = vpack.c.b16 %v2782, %v2780
    %v3931 = vpack.c.b16 %v2785, %v2783
    %v3932 = vpack.c.b16 %v2786, %v2784
    %v3933 = vpack.c.b16 %v2789, %v2787
    %v3934 = vpack.c.b16 %v2790, %v2788
    %v3935 = vpack.c.b16 %v2793, %v2791
    %v3936 = vpack.c.b16 %v2794, %v2792
    %v3937 = vpack.c.b16 %v2797, %v2795
    %v3938 = vpack.c.b16 %v2798, %v2796
    %v3939 = vpack.c.b16 %v2801, %v2799
    %v3940 = vpack.c.b16 %v2802, %v2800
    %v3941 = vpack.c.b16 %v2805, %v2803
    %v3942 = vpack.c.b16 %v2806, %v2804
    %v3943 = vpack.c.b16 %v2809, %v2807
    %v3944 = vpack.c.b16 %v2810, %v2808
    %v3945 = vpack.c.b16 %v2813, %v2811
    %v3946 = vpack.c.b16 %v2814, %v2812
    %v3947 = vpack.c.b16 %v2817, %v2815
    %v3948 = vpack.c.b16 %v2818, %v2816
    %v3949 = vpack.c.b16 %v2821, %v2819
    %v3950 = vpack.c.b16 %v2822, %v2820
    %v3951 = vpack.c.b16 %v2825, %v2823
    %v3952 = vpack.c.b16 %v2826, %v2824
    %v3953 = vpack.c.b16 %v2829, %v2827
    %v3954 = vpack.c.b16 %v2830, %v2828
    %v3955 = vpack.c.b16 %v2833, %v2831
    %v3956 = vpack.c.b16 %v2834, %v2832
    %v3957 = vpack.c.b16 %v2837, %v2835
    %v3958 = vpack.c.b16 %v2838, %v2836
    %v3959 = vpack.c.b16 %v2841, %v2839
    %v3960 = vpack.c.b16 %v2842, %v2840
    %v3961 = vpack.c.b16 %v2845, %v2843
    %v3962 = vpack.c.b16 %v2846, %v2844
    %v3963 = vpack.c.b16 %v2849, %v2847
    %v3964 = vpack.c.b16 %v2850, %v2848
    %v3965 = vpack.c.b16 %v2853, %v2851
    %v3966 = vpack.c.b16 %v2854, %v2852
    %v3967 = vpack.c.b16 %v2857, %v2855
    %v3968 = vpack.c.b16 %v2858, %v2856
    %v3969 = vpack.c.b16 %v2861, %v2859
    %v3970 = vpack.c.b16 %v2862, %v2860
    %v3971 = vpack.c.b16 %v2865, %v2863
    %v3972 = vpack.c.b16 %v2866, %v2864
    %v3973 = vpack.c.b16 %v2869, %v2867
    %v3974 = vpack.c.b16 %v2870, %v2868
    %v3975 = vpack.c.b16 %v2873, %v2871
    %v3976 = vpack.c.b16 %v2874, %v2872
    %v3977 = vpack.c.b16 %v2877, %v2875
    %v3978 = vpack.c.b16 %v2878, %v2876
    %v3979 = vpack.c.b16 %v2881, %v2879
    %v3980 = vpack.c.b16 %v2882, %v2880
    %v3981 = vpack.c.b16 %v2885, %v2883
    %v3982 = vpack.c.b16 %v2886, %v2884
    %v3983 = vpack.c.b16 %v2889, %v2887
    %v3984 = vpack.c.b16 %v2890, %v2888
    %v3985 = vpack.c.b16 %v2893, %v2891
    %v3986 = vpack.c.b16 %v2894, %v2892
    %v3987 = vpack.c.b16 %v2897, %v2895
    %v3988 = vpack.c.b16 %v2898, %v2896
    %v3989 = vpack.c.b16 %v2901, %v2899
    %v3990 = vpack.c.b16 %v2902, %v2900
    %v3991 = vpack.c.b16 %v2905, %v2903
    %v3992 = vpack.c.b16 %v2906, %v2904
    %v3993 = vpack.c.b16 %v2909, %v2907
    %v3994 = vpack.c.b16 %v2910, %v2908
    %v3995 = vpack.c.b16 %v2913, %v2911
    %v3996 = vpack.c.b16 %v2914, %v2912
    %v3997 = vpack.c.b16 %v2917, %v2915
    %v3998 = vpack.c.b16 %v2918, %v2916
    %v3999 = vpack.c.b16 %v2921, %v2919
    %v4000 = vpack.c.b16 %v2922, %v2920
    %v4001 = vpack.c.b16 %v2925, %v2923
    %v4002 = vpack.c.b16 %v2926, %v2924
    %v4003 = vpack.c.b16 %v2929, %v2927
    %v4004 = vpack.c.b16 %v2930, %v2928
    %v4005 = vpack.c.b16 %v2933, %v2931
    %v4006 = vpack.c.b16 %v2934, %v2932
    %v4007 = vpack.c.b16 %v2937, %v2935
    %v4008 = vpack.c.b16 %v2938, %v2936
    %v4009 = vpack.c.b16 %v2941, %v2939
    %v4010 = vpack.c.b16 %v2942, %v2940
    %v4011 = vpack.c.b16 %v2945, %v2943
    %v4012 = vpack.c.b16 %v2946, %v2944
    %v4013 = vpack.c.b16 %v2949, %v2947
    %v4014 = vpack.c.b16 %v2950, %v2948
    %v4015 = vpack.c.b16 %v2953, %v2951
    %v4016 = vpack.c.b16 %v2954, %v2952
    %v4017 = vpack.c.b16 %v2957, %v2955
    %v4018 = vpack.c.b16 %v2958, %v2956
    %v4019 = vpack.c.b16 %v2961, %v2959
    %v4020 = vpack.c.b16 %v2962, %v2960
    %v4021 = vpack.c.b16 %v2965, %v2963
    %v4022 = vpack.c.b16 %v2966, %v2964
    %v4023 = vpack.c.b16 %v2969, %v2967
    %v4024 = vpack.c.b16 %v2970, %v2968
    %v4025 = vpack.c.b16 %v2973, %v2971
    %v4026 = vpack.c.b16 %v2974, %v2972
    %v4027 = vpack.c.b16 %v2977, %v2975
    %v4028 = vpack.c.b16 %v2978, %v2976
    %v4029 = vpack.c.b16 %v2981, %v2979
    %v4030 = vpack.c.b16 %v2982, %v2980
    %v4031 = vpack.c.b16 %v2985, %v2983
    %v4032 = vpack.c.b16 %v2986, %v2984
    %v4033 = vpack.c.b16 %v2989, %v2987
    %v4034 = vpack.c.b16 %v2990, %v2988
    %v4035 = vpack.c.b16 %v2993, %v2991
    %v4036 = vpack.c.b16 %v2994, %v2992
    %v4037 = vpack.c.b16 %v2997, %v2995
    %v4038 = vpack.c.b16 %v2998, %v2996
    %v4039 = vpack.c.b16 %v3001, %v2999
    %v4040 = vpack.c.b16 %v3002, %v3000
    %v4041 = vpack.c.b16 %v3005, %v3003
    %v4042 = vpack.c.b16 %v3006, %v3004
    %v4043 = vpack.c.b16 %v3009, %v3007
    %v4044 = vpack.c.b16 %v3010, %v3008
    %v4045 = vpack.c.b16 %v3013, %v3011
    %v4046 = vpack.c.b16 %v3014, %v3012
    %v4047 = vpack.c.b16 %v3017, %v3015
    %v4048 = vpack.c.b16 %v3018, %v3016
    %v4049 = vpack.c.b16 %v3021, %v3019
    %v4050 = vpack.c.b16 %v3022, %v3020
    %v4051 = vpack.c.b16 %v3025, %v3023
    %v4052 = vpack.c.b16 %v3026, %v3024
    %v4053 = vpack.c.b16 %v3029, %v3027
    %v4054 = vpack.c.b16 %v3030, %v3028
    %v4055 = vpack.c.b16 %v3033, %v3031
    %v4056 = vpack.c.b16 %v3034, %v3032
    %v4057 = vpack.c.b16 %v3037, %v3035
    %v4058 = vpack.c.b16 %v3038, %v3036
    %v4059 = vpack.c.b16 %v3041, %v3039
    %v4060 = vpack.c.b16 %v3042, %v3040
    %v4061 = vpack.c.b16 %v3045, %v3043
    %v4062 = vpack.c.b16 %v3046, %v3044
    %v4063 = vpack.c.b16 %v3049, %v3047
    %v4064 = vpack.c.b16 %v3050, %v3048
    %v4065 = vpack.c.b16 %v3053, %v3051
    %v4066 = vpack.c.b16 %v3054, %v3052
    %v4067 = vpack.c.b16 %v3057, %v3055
    %v4068 = vpack.c.b16 %v3058, %v3056
    %v4069 = vpack.c.b16 %v3061, %v3059
    %v4070 = vpack.c.b16 %v3062, %v3060
    %v4071 = vpack.c.b16 %v3065, %v3063
    %v4072 = vpack.c.b16 %v3066, %v3064
    %v4073 = vpack.c.b16 %v3069, %v3067
    %v4074 = vpack.c.b16 %v3070, %v3068
    %v4075 = vpack.c.b16 %v3073, %v3071
    %v4076 = vpack.c.b16 %v3074, %v3072
    %v4077 = vpack.c.b16 %v3077, %v3075
    %v4078 = vpack.c.b16 %v3078, %v3076
    %v4079 = vpack.c.b16 %v3081, %v3079
    %v4080 = vpack.c.b16 %v3082, %v3080
    %v4081 = vpack.c.b16 %v3085, %v3083
    %v4082 = vpack.c.b16 %v3086, %v3084
    %v4083 = vpack.c.b16 %v3089, %v3087
    %v4084 = vpack.c.b16 %v3090, %v3088
    %v4085 = vpack.c.b16 %v3093, %v3091
    %v4086 = vpack.c.b16 %v3094, %v3092
    %v4087 = vpack.c.b16 %v3097, %v3095
    %v4088 = vpack.c.b16 %v3098, %v3096
    %v4089 = vpack.c.b16 %v3101, %v3099
    %v4090 = vpack.c.b16 %v3102, %v3100
    %v4091 = vpack.c.b16 %v3105, %v3103
    %v4092 = vpack.c.b16 %v3106, %v3104
    %v4093 = vpack.c.b16 %v3109, %v3107
    %v4094 = vpack.c.b16 %v3110, %v3108
    %v4095 = vpack.c.b16 %v3113, %v3111
    %v4096 = vpack.c.b16 %v3114, %v3112
    %v4097 = vpack.c.b16 %v3117, %v3115
    %v4098 = vpack.c.b16 %v3118, %v3116
    %v4099 = vpack.c.b16 %v3121, %v3119
    %v4100 = vpack.c.b16 %v3122, %v3120
    %v4101 = vpack.c.b16 %v3125, %v3123
    %v4102 = vpack.c.b16 %v3126, %v3124
    %v4103 = vpack.c.b16 %v3129, %v3127
    %v4104 = vpack.c.b16 %v3130, %v3128
    %v4105 = vpack.c.b16 %v3133, %v3131
    %v4106 = vpack.c.b16 %v3134, %v3132
    %v4107 = vpack.c.b16 %v3137, %v3135
    %v4108 = vpack.c.b16 %v3138, %v3136
    %v4109 = vpack.c.b16 %v3141, %v3139
    %v4110 = vpack.c.b16 %v3142, %v3140
    %v4111 = vpack.c.b16 %v3145, %v3143
    %v4112 = vpack.c.b16 %v3146, %v3144
    %v4113 = vpack.c.b16 %v3149, %v3147
    %v4114 = vpack.c.b16 %v3150, %v3148
    %v4115 = vpack.c.b16 %v3153, %v3151
    %v4116 = vpack.c.b16 %v3154, %v3152
    %v4117 = vpack.c.b16 %v3157, %v3155
    %v4118 = vpack.c.b16 %v3158, %v3156
    %v4119 = vpack.c.b16 %v3161, %v3159
    %v4120 = vpack.c.b16 %v3162, %v3160
    %v4121 = vpack.c.b16 %v3165, %v3163
    %v4122 = vpack.c.b16 %v3166, %v3164
    %v4123 = vpack.c.b16 %v3169, %v3167
    %v4124 = vpack.c.b16 %v3170, %v3168
    %v4125 = vpack.c.b16 %v3173, %v3171
    %v4126 = vpack.c.b16 %v3174, %v3172
    %v4127 = vpack.c.b16 %v3177, %v3175
    %v4128 = vpack.c.b16 %v3178, %v3176
    %v4129 = vpack.c.b16 %v3181, %v3179
    %v4130 = vpack.c.b16 %v3182, %v3180
    %v4131 = vpack.c.b16 %v3185, %v3183
    %v4132 = vpack.c.b16 %v3186, %v3184
    %v4133 = vpack.c.b16 %v3189, %v3187
    %v4134 = vpack.c.b16 %v3190, %v3188
    %v4135 = vpack.c.b16 %v3193, %v3191
    %v4136 = vpack.c.b16 %v3194, %v3192
    %v4137 = vpack.c.b16 %v3197, %v3195
    %v4138 = vpack.c.b16 %v3198, %v3196
    %v4139 = vpack.c.b16 %v3201, %v3199
    %v4140 = vpack.c.b16 %v3202, %v3200
    %v4141 = vpack.c.b16 %v3205, %v3203
    %v4142 = vpack.c.b16 %v3206, %v3204
    %v4143 = vpack.c.b16 %v3209, %v3207
    %v4144 = vpack.c.b16 %v3210, %v3208
    %v4145 = vpack.c.b16 %v3213, %v3211
    %v4146 = vpack.c.b16 %v3214, %v3212
    %v4147 = vpack.c.b16 %v3217, %v3215
    %v4148 = vpack.c.b16 %v3218, %v3216
    %v4149 = vpack.c.b16 %v3221, %v3219
    %v4150 = vpack.c.b16 %v3222, %v3220
    %v4151 = vpack.c.b16 %v3225, %v3223
    %v4152 = vpack.c.b16 %v3226, %v3224
    %v4153 = vpack.c.b16 %v3229, %v3227
    %v4154 = vpack.c.b16 %v3230, %v3228
    %v4155 = vpack.c.b16 %v3233, %v3231
    %v4156 = vpack.c.b16 %v3234, %v3232
    %v4157 = vpack.c.b16 %v3237, %v3235
    %v4158 = vpack.c.b16 %v3238, %v3236
    %v4159 = vpack.c.b16 %v3241, %v3239
    %v4160 = vpack.c.b16 %v3242, %v3240
    %v4161 = vpack.c.b16 %v3245, %v3243
    %v4162 = vpack.c.b16 %v3246, %v3244
    %v4163 = vpack.c.b16 %v3249, %v3247
    %v4164 = vpack.c.b16 %v3250, %v3248
    %v4165 = vpack.c.b16 %v3253, %v3251
    %v4166 = vpack.c.b16 %v3254, %v3252
    %v4167 = vpack.c.b16 %v3257, %v3255
    %v4168 = vpack.c.b16 %v3258, %v3256
    %v4169 = vpack.c.b16 %v3261, %v3259
    %v4170 = vpack.c.b16 %v3262, %v3260
    %v4171 = vpack.c.b16 %v3265, %v3263
    %v4172 = vpack.c.b16 %v3266, %v3264
    %v4173 = vpack.c.b16 %v3269, %v3267
    %v4174 = vpack.c.b16 %v3270, %v3268
    %v4175 = vpack.c.b16 %v3273, %v3271
    %v4176 = vpack.c.b16 %v3274, %v3272
    %v4177 = vpack.c.b16 %v3277, %v3275
    %v4178 = vpack.c.b16 %v3278, %v3276
    %v4179 = vpack.c.b16 %v3281, %v3279
    %v4180 = vpack.c.b16 %v3282, %v3280
    %v4181 = vpack.c.b16 %v3285, %v3283
    %v4182 = vpack.c.b16 %v3286, %v3284
    %v4183 = vpack.c.b16 %v3289, %v3287
    %v4184 = vpack.c.b16 %v3290, %v3288
    %v4185 = vpack.c.b16 %v3293, %v3291
    %v4186 = vpack.c.b16 %v3294, %v3292
    %v4187 = vpack.c.b16 %v3297, %v3295
    %v4188 = vpack.c.b16 %v3298, %v3296
    %v4189 = vpack.c.b16 %v3301, %v3299
    %v4190 = vpack.c.b16 %v3302, %v3300
    %v4191 = vpack.c.b16 %v3305, %v3303
    %v4192 = vpack.c.b16 %v3306, %v3304
    %v4193 = vpack.c.b16 %v3309, %v3307
    %v4194 = vpack.c.b16 %v3310, %v3308
    %v4195 = vpack.c.b16 %v3313, %v3311
    %v4196 = vpack.c.b16 %v3314, %v3312
    %v4197 = vpack.c.b16 %v3317, %v3315
    %v4198 = vpack.c.b16 %v3318, %v3316
    %v4199 = vpack.c.b16 %v3321, %v3319
    %v4200 = vpack.c.b16 %v3322, %v3320
    %v4201 = vpack.c.b16 %v3325, %v3323
    %v4202 = vpack.c.b16 %v3326, %v3324
    %v4203 = vpack.c.b16 %v3329, %v3327
    %v4204 = vpack.c.b16 %v3330, %v3328
    %v4205 = vpack.c.b16 %v3333, %v3331
    %v4206 = vpack.c.b16 %v3334, %v3332
    %v4207 = vpack.c.b16 %v3337, %v3335
    %v4208 = vpack.c.b16 %v3338, %v3336
    %v4209 = vpack.c.b16 %v3341, %v3339
    %v4210 = vpack.c.b16 %v3342, %v3340
    %v4211 = vpack.c.b16 %v3345, %v3343
    %v4212 = vpack.c.b16 %v3346, %v3344
    %v4213 = vpack.c.b16 %v3349, %v3347
    %v4214 = vpack.c.b16 %v3350, %v3348
    %v4215 = vpack.c.b16 %v3353, %v3351
    %v4216 = vpack.c.b16 %v3354, %v3352
    %v4217 = vpack.c.b16 %v3357, %v3355
    %v4218 = vpack.c.b16 %v3358, %v3356
    %v4219 = vpack.c.b16 %v3361, %v3359
    %v4220 = vpack.c.b16 %v3362, %v3360
    %v4221 = vpack.c.b16 %v3365, %v3363
    %v4222 = vpack.c.b16 %v3366, %v3364
    %v4223 = vpack.c.b16 %v3369, %v3367
    %v4224 = vpack.c.b16 %v3370, %v3368
    %v4225 = vpack.c.b16 %v3373, %v3371
    %v4226 = vpack.c.b16 %v3374, %v3372
    %v4227 = vpack.c.b16 %v3377, %v3375
    %v4228 = vpack.c.b16 %v3378, %v3376
    %v4229 = vpack.c.b16 %v3381, %v3379
    %v4230 = vpack.c.b16 %v3382, %v3380
    %v4231 = vpack.c.b16 %v3385, %v3383
    %v4232 = vpack.c.b16 %v3386, %v3384
    %v4233 = vpack.c.b16 %v3389, %v3387
    %v4234 = vpack.c.b16 %v3390, %v3388
    %v4235 = vpack.c.b16 %v3393, %v3391
    %v4236 = vpack.c.b16 %v3394, %v3392
    %v4237 = vpack.c.b16 %v3397, %v3395
    %v4238 = vpack.c.b16 %v3398, %v3396
    %v4239 = vpack.c.b16 %v3401, %v3399
    %v4240 = vpack.c.b16 %v3402, %v3400
    %v4241 = vpack.c.b16 %v3405, %v3403
    %v4242 = vpack.c.b16 %v3406, %v3404
    %v4243 = vpack.c.b16 %v3409, %v3407
    %v4244 = vpack.c.b16 %v3410, %v3408
    %v4245 = vpack.c.b16 %v3413, %v3411
    %v4246 = vpack.c.b16 %v3414, %v3412
    %v4247 = vpack.c.b16 %v3417, %v3415
    %v4248 = vpack.c.b16 %v3418, %v3416
    %v4249 = vpack.c.b16 %v3421, %v3419
    %v4250 = vpack.c.b16 %v3422, %v3420
    %v4251 = vpack.c.b16 %v3425, %v3423
    %v4252 = vpack.c.b16 %v3426, %v3424
    %v4253 = vpack.c.b16 %v3429, %v3427
    %v4254 = vpack.c.b16 %v3430, %v3428
    %v4255 = vpack.c.b16 %v3433, %v3431
    %v4256 = vpack.c.b16 %v3434, %v3432
    %v4257 = vpack.c.b16 %v3437, %v3435
    %v4258 = vpack.c.b16 %v3438, %v3436
    %v4259 = vpack.c.b16 %v3441, %v3439
    %v4260 = vpack.c.b16 %v3442, %v3440
    %v4261 = vpack.c.b16 %v3445, %v3443
    %v4262 = vpack.c.b16 %v3446, %v3444
    %v4263 = vpack.c.b16 %v3449, %v3447
    %v4264 = vpack.c.b16 %v3450, %v3448
    %v4265 = vpack.c.b16 %v3453, %v3451
    %v4266 = vpack.c.b16 %v3454, %v3452
    %v4267 = vpack.c.b16 %v3457, %v3455
    %v4268 = vpack.c.b16 %v3458, %v3456
    %v4269 = vpack.c.b16 %v3461, %v3459
    %v4270 = vpack.c.b16 %v3462, %v3460
    %v4271 = vpack.c.b16 %v3465, %v3463
    %v4272 = vpack.c.b16 %v3466, %v3464
    %v4273 = vpack.c.b16 %v3469, %v3467
    %v4274 = vpack.c.b16 %v3470, %v3468
    %v4275 = vpack.c.b16 %v3473, %v3471
    %v4276 = vpack.c.b16 %v3474, %v3472
    %v4277 = vpack.c.b16 %v3477, %v3475
    %v4278 = vpack.c.b16 %v3478, %v3476
    %v4279 = vpack.c.b16 %v3481, %v3479
    %v4280 = vpack.c.b16 %v3482, %v3480
    %v4281 = vpack.c.b16 %v3485, %v3483
    %v4282 = vpack.c.b16 %v3486, %v3484
    %v4283 = vpack.c.b16 %v3489, %v3487
    %v4284 = vpack.c.b16 %v3490, %v3488
    %v4285 = vpack.c.b16 %v3493, %v3491
    %v4286 = vpack.c.b16 %v3494, %v3492
    %v4287 = vpack.c.b16 %v3497, %v3495
    %v4288 = vpack.c.b16 %v3498, %v3496
    %v4289 = vpack.c.b16 %v3501, %v3499
    %v4290 = vpack.c.b16 %v3502, %v3500
    %v4291 = vpack.c.b16 %v3505, %v3503
    %v4292 = vpack.c.b16 %v3506, %v3504
    %v4293 = vpack.c.b16 %v3509, %v3507
    %v4294 = vpack.c.b16 %v3510, %v3508
    %5079 = vmatprep.subr.bf16.mxu0 %v3512
    %5080 = vmatpush1.bf16.msra.mxu0 %v3511
    %5081 = vmatprep.subr.bf16.mxu0 %v3514
    %5082 = vmatpush1.bf16.msra.mxu0 %v3513
    %5083 = vmatprep.subr.bf16.mxu0 %v3516
    %5084 = vmatpush1.bf16.msra.mxu0 %v3515
    %5085 = vmatprep.subr.bf16.mxu0 %v3518
    %5086 = vmatpush1.bf16.msra.mxu0 %v3517
    %5087 = vmatprep.subr.bf16.mxu0 %v3520
    %5088 = vmatpush1.bf16.msra.mxu0 %v3519
    %5089 = vmatprep.subr.bf16.mxu0 %v3522
    %5090 = vmatpush1.bf16.msra.mxu0 %v3521
    %5091 = vmatprep.subr.bf16.mxu0 %v3524
    %5092 = vmatpush1.bf16.msra.mxu0 %v3523
    %5093 = vmatprep.subr.bf16.mxu0 %v3526
    %5094 = vmatpush1.bf16.msra.mxu0 %v3525
    %5095 = vmatprep.subr.bf16.mxu0 %v3528
    %5096 = vmatpush1.bf16.msra.mxu0 %v3527
    %5097 = vmatprep.subr.bf16.mxu0 %v3530
    %5098 = vmatpush1.bf16.msra.mxu0 %v3529
    %5099 = vmatprep.subr.bf16.mxu0 %v3532
    %5100 = vmatpush1.bf16.msra.mxu0 %v3531
    %5101 = vmatprep.subr.bf16.mxu0 %v3534
    %5102 = vmatpush1.bf16.msra.mxu0 %v3533
    %5103 = vmatprep.subr.bf16.mxu0 %v3536
    %5104 = vmatpush1.bf16.msra.mxu0 %v3535
    %5105 = vmatprep.subr.bf16.mxu0 %v3538
    %5106 = vmatpush1.bf16.msra.mxu0 %v3537
    %5107 = vmatprep.subr.bf16.mxu0 %v3540
    %5108 = vmatpush1.bf16.msra.mxu0 %v3539
    %5109 = vmatprep.subr.bf16.mxu0 %v3542
    %5110 = vmatpush1.bf16.msra.mxu0 %v3541
    %5111 = vmatprep.mubr.bf16.mxu0 %v315
    %5112 = vmatmul.mubr.bf16.gmra.mrb[0].mxu0 %v314
    %v5113 = vpop.f32.mrb[0].mxu0
    %v5114 = vadd.f32 %v1152, %v5113
    %v5115 = vpop.f32.mrb[0].mxu0
    %v5116 = vadd.f32 %v1156, %v5115
    %v5117 = vpop.f32.mrb[0].mxu0
    %v5118 = vpop.f32.mrb[0].mxu0
    %5119 = vdwg.mxu0
    %5120 = vmatprep.subr.bf16.mxu0 %v3544
    %5121 = vmatpush1.bf16.msra.mxu0 %v3543
    %5122 = vmatprep.subr.bf16.mxu0 %v3546
    %5123 = vmatpush1.bf16.msra.mxu0 %v3545
    %5124 = vmatprep.subr.bf16.mxu0 %v3548
    %5125 = vmatpush1.bf16.msra.mxu0 %v3547
    %5126 = vmatprep.subr.bf16.mxu0 %v3550
    %5127 = vmatpush1.bf16.msra.mxu0 %v3549
    %5128 = vmatprep.subr.bf16.mxu0 %v3552
    %5129 = vmatpush1.bf16.msra.mxu0 %v3551
    %5130 = vmatprep.subr.bf16.mxu0 %v3554
    %5131 = vmatpush1.bf16.msra.mxu0 %v3553
    %5132 = vmatprep.subr.bf16.mxu0 %v3556
    %5133 = vmatpush1.bf16.msra.mxu0 %v3555
    %5134 = vmatprep.subr.bf16.mxu0 %v3558
    %5135 = vmatpush1.bf16.msra.mxu0 %v3557
    %5136 = vmatprep.subr.bf16.mxu0 %v3560
    %5137 = vmatpush1.bf16.msra.mxu0 %v3559
    %5138 = vmatprep.subr.bf16.mxu0 %v3562
    %5139 = vmatpush1.bf16.msra.mxu0 %v3561
    %5140 = vmatprep.subr.bf16.mxu0 %v3564
    %5141 = vmatpush1.bf16.msra.mxu0 %v3563
    %5142 = vmatprep.subr.bf16.mxu0 %v3566
    %5143 = vmatpush1.bf16.msra.mxu0 %v3565
    %5144 = vmatprep.subr.bf16.mxu0 %v3568
    %5145 = vmatpush1.bf16.msra.mxu0 %v3567
    %5146 = vmatprep.subr.bf16.mxu0 %v3570
    %5147 = vmatpush1.bf16.msra.mxu0 %v3569
    %5148 = vmatprep.subr.bf16.mxu0 %v3572
    %5149 = vmatpush1.bf16.msra.mxu0 %v3571
    %5150 = vmatprep.subr.bf16.mxu0 %v3574
    %5151 = vmatpush1.bf16.msra.mxu0 %v3573
    %5152 = vmatprep.mubr.bf16.mxu0 %v317
    %5153 = vmatmul.mubr.bf16.gmra.mrb[0].mxu0 %v316
    %v5154 = vpop.f32.mrb[0].mxu0
    %v5155 = vadd.f32 %v5114, %v5154
    %v5156 = vpop.f32.mrb[0].mxu0
    %v5157 = vadd.f32 %v5116, %v5156
    %v5158 = vpop.f32.mrb[0].mxu0
    %v5159 = vpop.f32.mrb[0].mxu0
    %5160 = vdwg.mxu0
    %5161 = vmatprep.subr.bf16.mxu0 %v3576
    %5162 = vmatpush1.bf16.msra.mxu0 %v3575
    %5163 = vmatprep.subr.bf16.mxu0 %v3578
    %5164 = vmatpush1.bf16.msra.mxu0 %v3577
    %5165 = vmatprep.subr.bf16.mxu0 %v3580
    %5166 = vmatpush1.bf16.msra.mxu0 %v3579
    %5167 = vmatprep.subr.bf16.mxu0 %v3582
    %5168 = vmatpush1.bf16.msra.mxu0 %v3581
    %5169 = vmatprep.subr.bf16.mxu0 %v3584
    %5170 = vmatpush1.bf16.msra.mxu0 %v3583
    %5171 = vmatprep.subr.bf16.mxu0 %v3586
    %5172 = vmatpush1.bf16.msra.mxu0 %v3585
    %5173 = vmatprep.subr.bf16.mxu0 %v3588
    %5174 = vmatpush1.bf16.msra.mxu0 %v3587
    %5175 = vmatprep.subr.bf16.mxu0 %v3590
    %5176 = vmatpush1.bf16.msra.mxu0 %v3589
    %5177 = vmatprep.subr.bf16.mxu0 %v3592
    %5178 = vmatpush1.bf16.msra.mxu0 %v3591
    %5179 = vmatprep.subr.bf16.mxu0 %v3594
    %5180 = vmatpush1.bf16.msra.mxu0 %v3593
    %5181 = vmatprep.subr.bf16.mxu0 %v3596
    %5182 = vmatpush1.bf16.msra.mxu0 %v3595
    %5183 = vmatprep.subr.bf16.mxu0 %v3598
    %5184 = vmatpush1.bf16.msra.mxu0 %v3597
    %5185 = vmatprep.subr.bf16.mxu0 %v3600
    %5186 = vmatpush1.bf16.msra.mxu0 %v3599
    %5187 = vmatprep.subr.bf16.mxu0 %v3602
    %5188 = vmatpush1.bf16.msra.mxu0 %v3601
    %5189 = vmatprep.subr.bf16.mxu0 %v3604
    %5190 = vmatpush1.bf16.msra.mxu0 %v3603
    %5191 = vmatprep.subr.bf16.mxu0 %v3606
    %5192 = vmatpush1.bf16.msra.mxu0 %v3605
    %5193 = vmatprep.mubr.bf16.mxu0 %v319
    %5194 = vmatmul.mubr.bf16.gmra.mrb[0].mxu0 %v318
    %v5195 = vpop.f32.mrb[0].mxu0
    %v5196 = vadd.f32 %v5155, %v5195
    %v5197 = vpop.f32.mrb[0].mxu0
    %v5198 = vadd.f32 %v5157, %v5197
    %v5199 = vpop.f32.mrb[0].mxu0
    %v5200 = vpop.f32.mrb[0].mxu0
    %5201 = vdwg.mxu0
    %5202 = vmatprep.subr.bf16.mxu0 %v3608
    %5203 = vmatpush1.bf16.msra.mxu0 %v3607
    %5204 = vmatprep.subr.bf16.mxu0 %v3610
    %5205 = vmatpush1.bf16.msra.mxu0 %v3609
    %5206 = vmatprep.subr.bf16.mxu0 %v3612
    %5207 = vmatpush1.bf16.msra.mxu0 %v3611
    %5208 = vmatprep.subr.bf16.mxu0 %v3614
    %5209 = vmatpush1.bf16.msra.mxu0 %v3613
    %5210 = vmatprep.subr.bf16.mxu0 %v3616
    %5211 = vmatpush1.bf16.msra.mxu0 %v3615
    %5212 = vmatprep.subr.bf16.mxu0 %v3618
    %5213 = vmatpush1.bf16.msra.mxu0 %v3617
    %5214 = vmatprep.subr.bf16.mxu0 %v3620
    %5215 = vmatpush1.bf16.msra.mxu0 %v3619
    %5216 = vmatprep.subr.bf16.mxu0 %v3622
    %5217 = vmatpush1.bf16.msra.mxu0 %v3621
    %5218 = vmatprep.subr.bf16.mxu0 %v3624
    %5219 = vmatpush1.bf16.msra.mxu0 %v3623
    %5220 = vmatprep.subr.bf16.mxu0 %v3626
    %5221 = vmatpush1.bf16.msra.mxu0 %v3625
    %5222 = vmatprep.subr.bf16.mxu0 %v3628
    %5223 = vmatpush1.bf16.msra.mxu0 %v3627
    %5224 = vmatprep.subr.bf16.mxu0 %v3630
    %5225 = vmatpush1.bf16.msra.mxu0 %v3629
    %5226 = vmatprep.subr.bf16.mxu0 %v3632
    %5227 = vmatpush1.bf16.msra.mxu0 %v3631
    %5228 = vmatprep.subr.bf16.mxu0 %v3634
    %5229 = vmatpush1.bf16.msra.mxu0 %v3633
    %5230 = vmatprep.subr.bf16.mxu0 %v3636
    %5231 = vmatpush1.bf16.msra.mxu0 %v3635
    %5232 = vmatprep.subr.bf16.mxu0 %v3638
    %5233 = vmatpush1.bf16.msra.mxu0 %v3637
    %5234 = vmatprep.mubr.bf16.mxu0 %v321
    %5235 = vmatmul.mubr.bf16.gmra.mrb[0].mxu0 %v320
    %v5236 = vpop.f32.mrb[0].mxu0
    %v5237 = vadd.f32 %v5196, %v5236
    %v5238 = vpop.f32.mrb[0].mxu0
    %v5239 = vadd.f32 %v5198, %v5238
    %v5240 = vpop.f32.mrb[0].mxu0
    %v5241 = vpop.f32.mrb[0].mxu0
    %5242 = vdwg.mxu0
    %5243 = vmatprep.subr.bf16.mxu0 %v3640
    %5244 = vmatpush1.bf16.msra.mxu0 %v3639
    %5245 = vmatprep.subr.bf16.mxu0 %v3642
    %5246 = vmatpush1.bf16.msra.mxu0 %v3641
    %5247 = vmatprep.subr.bf16.mxu0 %v3644
    %5248 = vmatpush1.bf16.msra.mxu0 %v3643
    %5249 = vmatprep.subr.bf16.mxu0 %v3646
    %5250 = vmatpush1.bf16.msra.mxu0 %v3645
    %5251 = vmatprep.subr.bf16.mxu0 %v3648
    %5252 = vmatpush1.bf16.msra.mxu0 %v3647
    %5253 = vmatprep.subr.bf16.mxu0 %v3650
    %5254 = vmatpush1.bf16.msra.mxu0 %v3649
    %5255 = vmatprep.subr.bf16.mxu0 %v3652
    %5256 = vmatpush1.bf16.msra.mxu0 %v3651
    %5257 = vmatprep.subr.bf16.mxu0 %v3654
    %5258 = vmatpush1.bf16.msra.mxu0 %v3653
    %5259 = vmatprep.subr.bf16.mxu0 %v3656
    %5260 = vmatpush1.bf16.msra.mxu0 %v3655
    %5261 = vmatprep.subr.bf16.mxu0 %v3658
    %5262 = vmatpush1.bf16.msra.mxu0 %v3657
    %5263 = vmatprep.subr.bf16.mxu0 %v3660
    %5264 = vmatpush1.bf16.msra.mxu0 %v3659
    %5265 = vmatprep.subr.bf16.mxu0 %v3662
    %5266 = vmatpush1.bf16.msra.mxu0 %v3661
    %5267 = vmatprep.subr.bf16.mxu0 %v3664
    %5268 = vmatpush1.bf16.msra.mxu0 %v3663
    %5269 = vmatprep.subr.bf16.mxu0 %v3666
    %5270 = vmatpush1.bf16.msra.mxu0 %v3665
    %5271 = vmatprep.subr.bf16.mxu0 %v3668
    %5272 = vmatpush1.bf16.msra.mxu0 %v3667
    %5273 = vmatprep.subr.bf16.mxu0 %v3670
    %5274 = vmatpush1.bf16.msra.mxu0 %v3669
    %5275 = vmatprep.mubr.bf16.mxu0 %v323
    %5276 = vmatmul.mubr.bf16.gmra.mrb[0].mxu0 %v322
    %v5277 = vpop.f32.mrb[0].mxu0
    %v5278 = vadd.f32 %v5237, %v5277
    %v5279 = vpop.f32.mrb[0].mxu0
    %v5280 = vadd.f32 %v5239, %v5279
    %v5281 = vpop.f32.mrb[0].mxu0
    %v5282 = vpop.f32.mrb[0].mxu0
    %5283 = vdwg.mxu0
    %5284 = vmatprep.subr.bf16.mxu0 %v3672
    %5285 = vmatpush1.bf16.msra.mxu0 %v3671
    %5286 = vmatprep.subr.bf16.mxu0 %v3674
    %5287 = vmatpush1.bf16.msra.mxu0 %v3673
    %5288 = vmatprep.subr.bf16.mxu0 %v3676
    %5289 = vmatpush1.bf16.msra.mxu0 %v3675
    %5290 = vmatprep.subr.bf16.mxu0 %v3678
    %5291 = vmatpush1.bf16.msra.mxu0 %v3677
    %5292 = vmatprep.subr.bf16.mxu0 %v3680
    %5293 = vmatpush1.bf16.msra.mxu0 %v3679
    %5294 = vmatprep.subr.bf16.mxu0 %v3682
    %5295 = vmatpush1.bf16.msra.mxu0 %v3681
    %5296 = vmatprep.subr.bf16.mxu0 %v3684
    %5297 = vmatpush1.bf16.msra.mxu0 %v3683
    %5298 = vmatprep.subr.bf16.mxu0 %v3686
    %5299 = vmatpush1.bf16.msra.mxu0 %v3685
    %5300 = vmatprep.subr.bf16.mxu0 %v3688
    %5301 = vmatpush1.bf16.msra.mxu0 %v3687
    %5302 = vmatprep.subr.bf16.mxu0 %v3690
    %5303 = vmatpush1.bf16.msra.mxu0 %v3689
    %5304 = vmatprep.subr.bf16.mxu0 %v3692
    %5305 = vmatpush1.bf16.msra.mxu0 %v3691
    %5306 = vmatprep.subr.bf16.mxu0 %v3694
    %5307 = vmatpush1.bf16.msra.mxu0 %v3693
    %5308 = vmatprep.subr.bf16.mxu0 %v3696
    %5309 = vmatpush1.bf16.msra.mxu0 %v3695
    %5310 = vmatprep.subr.bf16.mxu0 %v3698
    %5311 = vmatpush1.bf16.msra.mxu0 %v3697
    %5312 = vmatprep.subr.bf16.mxu0 %v3700
    %5313 = vmatpush1.bf16.msra.mxu0 %v3699
    %5314 = vmatprep.subr.bf16.mxu0 %v3702
    %5315 = vmatpush1.bf16.msra.mxu0 %v3701
    %5316 = vmatprep.mubr.bf16.mxu0 %v325
    %5317 = vmatmul.mubr.bf16.gmra.mrb[0].mxu0 %v324
    %v5318 = vpop.f32.mrb[0].mxu0
    %v5319 = vadd.f32 %v5278, %v5318
    %v5320 = vpop.f32.mrb[0].mxu0
    %v5321 = vadd.f32 %v5280, %v5320
    %v5322 = vpop.f32.mrb[0].mxu0
    %v5323 = vpop.f32.mrb[0].mxu0
    %5324 = vdwg.mxu0
    %5325 = vmatprep.subr.bf16.mxu0 %v3704
    %5326 = vmatpush1.bf16.msra.mxu0 %v3703
    %5327 = vmatprep.subr.bf16.mxu0 %v3706
    %5328 = vmatpush1.bf16.msra.mxu0 %v3705
    %5329 = vmatprep.subr.bf16.mxu0 %v3708
    %5330 = vmatpush1.bf16.msra.mxu0 %v3707
    %5331 = vmatprep.subr.bf16.mxu0 %v3710
    %5332 = vmatpush1.bf16.msra.mxu0 %v3709
    %5333 = vmatprep.subr.bf16.mxu0 %v3712
    %5334 = vmatpush1.bf16.msra.mxu0 %v3711
    %5335 = vmatprep.subr.bf16.mxu0 %v3714
    %5336 = vmatpush1.bf16.msra.mxu0 %v3713
    %5337 = vmatprep.subr.bf16.mxu0 %v3716
    %5338 = vmatpush1.bf16.msra.mxu0 %v3715
    %5339 = vmatprep.subr.bf16.mxu0 %v3718
    %5340 = vmatpush1.bf16.msra.mxu0 %v3717
    %5341 = vmatprep.subr.bf16.mxu0 %v3720
    %5342 = vmatpush1.bf16.msra.mxu0 %v3719
    %5343 = vmatprep.subr.bf16.mxu0 %v3722
    %5344 = vmatpush1.bf16.msra.mxu0 %v3721
    %5345 = vmatprep.subr.bf16.mxu0 %v3724
    %5346 = vmatpush1.bf16.msra.mxu0 %v3723
    %5347 = vmatprep.subr.bf16.mxu0 %v3726
    %5348 = vmatpush1.bf16.msra.mxu0 %v3725
    %5349 = vmatprep.subr.bf16.mxu0 %v3728
    %5350 = vmatpush1.bf16.msra.mxu0 %v3727
    %5351 = vmatprep.subr.bf16.mxu0 %v3730
    %5352 = vmatpush1.bf16.msra.mxu0 %v3729
    %5353 = vmatprep.subr.bf16.mxu0 %v3732
    %5354 = vmatpush1.bf16.msra.mxu0 %v3731
    %5355 = vmatprep.subr.bf16.mxu0 %v3734
    %5356 = vmatpush1.bf16.msra.mxu0 %v3733
    %5357 = vmatprep.mubr.bf16.mxu0 %v327
    %5358 = vmatmul.mubr.bf16.gmra.mrb[0].mxu0 %v326
    %v5359 = vpop.f32.mrb[0].mxu0
    %v5360 = vadd.f32 %v5319, %v5359
    %v5361 = vpop.f32.mrb[0].mxu0
    %v5362 = vadd.f32 %v5321, %v5361
    %v5363 = vpop.f32.mrb[0].mxu0
    %v5364 = vpop.f32.mrb[0].mxu0
    %5365 = vdwg.mxu0
    %5366 = vmatprep.subr.bf16.mxu0 %v3736
    %5367 = vmatpush1.bf16.msra.mxu0 %v3735
    %5368 = vmatprep.subr.bf16.mxu0 %v3738
    %5369 = vmatpush1.bf16.msra.mxu0 %v3737
    %5370 = vmatprep.subr.bf16.mxu0 %v3740
    %5371 = vmatpush1.bf16.msra.mxu0 %v3739
    %5372 = vmatprep.subr.bf16.mxu0 %v3742
    %5373 = vmatpush1.bf16.msra.mxu0 %v3741
    %5374 = vmatprep.subr.bf16.mxu0 %v3744
    %5375 = vmatpush1.bf16.msra.mxu0 %v3743
    %5376 = vmatprep.subr.bf16.mxu0 %v3746
    %5377 = vmatpush1.bf16.msra.mxu0 %v3745
    %5378 = vmatprep.subr.bf16.mxu0 %v3748
    %5379 = vmatpush1.bf16.msra.mxu0 %v3747
    %5380 = vmatprep.subr.bf16.mxu0 %v3750
    %5381 = vmatpush1.bf16.msra.mxu0 %v3749
    %5382 = vmatprep.subr.bf16.mxu0 %v3752
    %5383 = vmatpush1.bf16.msra.mxu0 %v3751
    %5384 = vmatprep.subr.bf16.mxu0 %v3754
    %5385 = vmatpush1.bf16.msra.mxu0 %v3753
    %5386 = vmatprep.subr.bf16.mxu0 %v3756
    %5387 = vmatpush1.bf16.msra.mxu0 %v3755
    %5388 = vmatprep.subr.bf16.mxu0 %v3758
    %5389 = vmatpush1.bf16.msra.mxu0 %v3757
    %5390 = vmatprep.subr.bf16.mxu0 %v3760
    %5391 = vmatpush1.bf16.msra.mxu0 %v3759
    %5392 = vmatprep.subr.bf16.mxu0 %v3762
    %5393 = vmatpush1.bf16.msra.mxu0 %v3761
    %5394 = vmatprep.subr.bf16.mxu0 %v3764
    %5395 = vmatpush1.bf16.msra.mxu0 %v3763
    %5396 = vmatprep.subr.bf16.mxu0 %v3766
    %5397 = vmatpush1.bf16.msra.mxu0 %v3765
    %5398 = vmatprep.mubr.bf16.mxu0 %v329
    %5399 = vmatmul.mubr.bf16.gmra.mrb[0].mxu0 %v328
    %v5400 = vpop.f32.mrb[0].mxu0
    %v5401 = vadd.f32 %v5360, %v5400
    %v5402 = vpop.f32.mrb[0].mxu0
    %v5403 = vadd.f32 %v5362, %v5402
    %v5404 = vpop.f32.mrb[0].mxu0
    %v5405 = vpop.f32.mrb[0].mxu0
    %5406 = vdwg.mxu0
    %5407 = vmatprep.subr.bf16.mxu0 %v3768
    %5408 = vmatpush1.bf16.msra.mxu0 %v3767
    %5409 = vmatprep.subr.bf16.mxu0 %v3770
    %5410 = vmatpush1.bf16.msra.mxu0 %v3769
    %5411 = vmatprep.subr.bf16.mxu0 %v3772
    %5412 = vmatpush1.bf16.msra.mxu0 %v3771
    %5413 = vmatprep.subr.bf16.mxu0 %v3774
    %5414 = vmatpush1.bf16.msra.mxu0 %v3773
    %5415 = vmatprep.subr.bf16.mxu0 %v3776
    %5416 = vmatpush1.bf16.msra.mxu0 %v3775
    %5417 = vmatprep.subr.bf16.mxu0 %v3778
    %5418 = vmatpush1.bf16.msra.mxu0 %v3777
    %5419 = vmatprep.subr.bf16.mxu0 %v3780
    %5420 = vmatpush1.bf16.msra.mxu0 %v3779
    %5421 = vmatprep.subr.bf16.mxu0 %v3782
    %5422 = vmatpush1.bf16.msra.mxu0 %v3781
    %5423 = vmatprep.subr.bf16.mxu0 %v3784
    %5424 = vmatpush1.bf16.msra.mxu0 %v3783
    %5425 = vmatprep.subr.bf16.mxu0 %v3786
    %5426 = vmatpush1.bf16.msra.mxu0 %v3785
    %5427 = vmatprep.subr.bf16.mxu0 %v3788
    %5428 = vmatpush1.bf16.msra.mxu0 %v3787
    %5429 = vmatprep.subr.bf16.mxu0 %v3790
    %5430 = vmatpush1.bf16.msra.mxu0 %v3789
    %5431 = vmatprep.subr.bf16.mxu0 %v3792
    %5432 = vmatpush1.bf16.msra.mxu0 %v3791
    %5433 = vmatprep.subr.bf16.mxu0 %v3794
    %5434 = vmatpush1.bf16.msra.mxu0 %v3793
    %5435 = vmatprep.subr.bf16.mxu0 %v3796
    %5436 = vmatpush1.bf16.msra.mxu0 %v3795
    %5437 = vmatprep.subr.bf16.mxu0 %v3798
    %5438 = vmatpush1.bf16.msra.mxu0 %v3797
    %5439 = vmatprep.mubr.bf16.mxu0 %v331
    %5440 = vmatmul.mubr.bf16.gmra.mrb[0].mxu0 %v330
    %v5441 = vpop.f32.mrb[0].mxu0
    %v5442 = vadd.f32 %v5401, %v5441
    %v5443 = vpop.f32.mrb[0].mxu0
    %v5444 = vadd.f32 %v5403, %v5443
    %v5445 = vpop.f32.mrb[0].mxu0
    %v5446 = vpop.f32.mrb[0].mxu0
    %5447 = vdwg.mxu0
    %5448 = vmatprep.subr.bf16.mxu0 %v3800
    %5449 = vmatpush1.bf16.msra.mxu0 %v3799
    %5450 = vmatprep.subr.bf16.mxu0 %v3802
    %5451 = vmatpush1.bf16.msra.mxu0 %v3801
    %5452 = vmatprep.subr.bf16.mxu0 %v3804
    %5453 = vmatpush1.bf16.msra.mxu0 %v3803
    %5454 = vmatprep.subr.bf16.mxu0 %v3806
    %5455 = vmatpush1.bf16.msra.mxu0 %v3805
    %5456 = vmatprep.subr.bf16.mxu0 %v3808
    %5457 = vmatpush1.bf16.msra.mxu0 %v3807
    %5458 = vmatprep.subr.bf16.mxu0 %v3810
    %5459 = vmatpush1.bf16.msra.mxu0 %v3809
    %5460 = vmatprep.subr.bf16.mxu0 %v3812
    %5461 = vmatpush1.bf16.msra.mxu0 %v3811
    %5462 = vmatprep.subr.bf16.mxu0 %v3814
    %5463 = vmatpush1.bf16.msra.mxu0 %v3813
    %5464 = vmatprep.subr.bf16.mxu0 %v3816
    %5465 = vmatpush1.bf16.msra.mxu0 %v3815
    %5466 = vmatprep.subr.bf16.mxu0 %v3818
    %5467 = vmatpush1.bf16.msra.mxu0 %v3817
    %5468 = vmatprep.subr.bf16.mxu0 %v3820
    %5469 = vmatpush1.bf16.msra.mxu0 %v3819
    %5470 = vmatprep.subr.bf16.mxu0 %v3822
    %5471 = vmatpush1.bf16.msra.mxu0 %v3821
    %5472 = vmatprep.subr.bf16.mxu0 %v3824
    %5473 = vmatpush1.bf16.msra.mxu0 %v3823
    %5474 = vmatprep.subr.bf16.mxu0 %v3826
    %5475 = vmatpush1.bf16.msra.mxu0 %v3825
    %5476 = vmatprep.subr.bf16.mxu0 %v3828
    %5477 = vmatpush1.bf16.msra.mxu0 %v3827
    %5478 = vmatprep.subr.bf16.mxu0 %v3830
    %5479 = vmatpush1.bf16.msra.mxu0 %v3829
    %5480 = vmatprep.mubr.bf16.mxu0 %v333
    %5481 = vmatmul.mubr.bf16.gmra.mrb[0].mxu0 %v332
    %v5482 = vpop.f32.mrb[0].mxu0
    %v5483 = vadd.f32 %v5442, %v5482
    %v5484 = vpop.f32.mrb[0].mxu0
    %v5485 = vadd.f32 %v5444, %v5484
    %v5486 = vpop.f32.mrb[0].mxu0
    %v5487 = vpop.f32.mrb[0].mxu0
    %5488 = vdwg.mxu0
    %5489 = vmatprep.subr.bf16.mxu0 %v3832
    %5490 = vmatpush1.bf16.msra.mxu0 %v3831
    %5491 = vmatprep.subr.bf16.mxu0 %v3834
    %5492 = vmatpush1.bf16.msra.mxu0 %v3833
    %5493 = vmatprep.subr.bf16.mxu0 %v3836
    %5494 = vmatpush1.bf16.msra.mxu0 %v3835
    %5495 = vmatprep.subr.bf16.mxu0 %v3838
    %5496 = vmatpush1.bf16.msra.mxu0 %v3837
    %5497 = vmatprep.subr.bf16.mxu0 %v3840
    %5498 = vmatpush1.bf16.msra.mxu0 %v3839
    %5499 = vmatprep.subr.bf16.mxu0 %v3842
    %5500 = vmatpush1.bf16.msra.mxu0 %v3841
    %5501 = vmatprep.subr.bf16.mxu0 %v3844
    %5502 = vmatpush1.bf16.msra.mxu0 %v3843
    %5503 = vmatprep.subr.bf16.mxu0 %v3846
    %5504 = vmatpush1.bf16.msra.mxu0 %v3845
    %5505 = vmatprep.subr.bf16.mxu0 %v3848
    %5506 = vmatpush1.bf16.msra.mxu0 %v3847
    %5507 = vmatprep.subr.bf16.mxu0 %v3850
    %5508 = vmatpush1.bf16.msra.mxu0 %v3849
    %5509 = vmatprep.subr.bf16.mxu0 %v3852
    %5510 = vmatpush1.bf16.msra.mxu0 %v3851
    %5511 = vmatprep.subr.bf16.mxu0 %v3854
    %5512 = vmatpush1.bf16.msra.mxu0 %v3853
    %5513 = vmatprep.subr.bf16.mxu0 %v3856
    %5514 = vmatpush1.bf16.msra.mxu0 %v3855
    %5515 = vmatprep.subr.bf16.mxu0 %v3858
    %5516 = vmatpush1.bf16.msra.mxu0 %v3857
    %5517 = vmatprep.subr.bf16.mxu0 %v3860
    %5518 = vmatpush1.bf16.msra.mxu0 %v3859
    %5519 = vmatprep.subr.bf16.mxu0 %v3862
    %5520 = vmatpush1.bf16.msra.mxu0 %v3861
    %5521 = vmatprep.mubr.bf16.mxu0 %v335
    %5522 = vmatmul.mubr.bf16.gmra.mrb[0].mxu0 %v334
    %v5523 = vpop.f32.mrb[0].mxu0
    %v5524 = vadd.f32 %v5483, %v5523
    %v5525 = vpop.f32.mrb[0].mxu0
    %v5526 = vadd.f32 %v5485, %v5525
    %v5527 = vpop.f32.mrb[0].mxu0
    %v5528 = vpop.f32.mrb[0].mxu0
    %5529 = vdwg.mxu0
    %5530 = vmatprep.subr.bf16.mxu0 %v3864
    %5531 = vmatpush1.bf16.msra.mxu0 %v3863
    %5532 = vmatprep.subr.bf16.mxu0 %v3866
    %5533 = vmatpush1.bf16.msra.mxu0 %v3865
    %5534 = vmatprep.subr.bf16.mxu0 %v3868
    %5535 = vmatpush1.bf16.msra.mxu0 %v3867
    %5536 = vmatprep.subr.bf16.mxu0 %v3870
    %5537 = vmatpush1.bf16.msra.mxu0 %v3869
    %5538 = vmatprep.subr.bf16.mxu0 %v3872
    %5539 = vmatpush1.bf16.msra.mxu0 %v3871
    %5540 = vmatprep.subr.bf16.mxu0 %v3874
    %5541 = vmatpush1.bf16.msra.mxu0 %v3873
    %5542 = vmatprep.subr.bf16.mxu0 %v3876
    %5543 = vmatpush1.bf16.msra.mxu0 %v3875
    %5544 = vmatprep.subr.bf16.mxu0 %v3878
    %5545 = vmatpush1.bf16.msra.mxu0 %v3877
    %5546 = vmatprep.subr.bf16.mxu0 %v3880
    %5547 = vmatpush1.bf16.msra.mxu0 %v3879
    %5548 = vmatprep.subr.bf16.mxu0 %v3882
    %5549 = vmatpush1.bf16.msra.mxu0 %v3881
    %5550 = vmatprep.subr.bf16.mxu0 %v3884
    %5551 = vmatpush1.bf16.msra.mxu0 %v3883
    %5552 = vmatprep.subr.bf16.mxu0 %v3886
    %5553 = vmatpush1.bf16.msra.mxu0 %v3885
    %5554 = vmatprep.subr.bf16.mxu0 %v3888
    %5555 = vmatpush1.bf16.msra.mxu0 %v3887
    %5556 = vmatprep.subr.bf16.mxu0 %v3890
    %5557 = vmatpush1.bf16.msra.mxu0 %v3889
    %5558 = vmatprep.subr.bf16.mxu0 %v3892
    %5559 = vmatpush1.bf16.msra.mxu0 %v3891
    %5560 = vmatprep.subr.bf16.mxu0 %v3894
    %5561 = vmatpush1.bf16.msra.mxu0 %v3893
    %5562 = vmatprep.mubr.bf16.mxu0 %v337
    %5563 = vmatmul.mubr.bf16.gmra.mrb[0].mxu0 %v336
    %v5564 = vpop.f32.mrb[0].mxu0
    %v5565 = vadd.f32 %v5524, %v5564
    %v5566 = vpop.f32.mrb[0].mxu0
    %v5567 = vadd.f32 %v5526, %v5566
    %v5568 = vpop.f32.mrb[0].mxu0
    %v5569 = vpop.f32.mrb[0].mxu0
    %5570 = vdwg.mxu0
    %5571 = vmatprep.subr.bf16.mxu0 %v3896
    %5572 = vmatpush1.bf16.msra.mxu0 %v3895
    %5573 = vmatprep.subr.bf16.mxu0 %v3898
    %5574 = vmatpush1.bf16.msra.mxu0 %v3897
    %5575 = vmatprep.subr.bf16.mxu0 %v3900
    %5576 = vmatpush1.bf16.msra.mxu0 %v3899
    %5577 = vmatprep.subr.bf16.mxu0 %v3902
    %5578 = vmatpush1.bf16.msra.mxu0 %v3901
    %5579 = vmatprep.subr.bf16.mxu0 %v3904
    %5580 = vmatpush1.bf16.msra.mxu0 %v3903
    %5581 = vmatprep.subr.bf16.mxu0 %v3906
    %5582 = vmatpush1.bf16.msra.mxu0 %v3905
    %5583 = vmatprep.subr.bf16.mxu0 %v3908
    %5584 = vmatpush1.bf16.msra.mxu0 %v3907
    %5585 = vmatprep.subr.bf16.mxu0 %v3910
    %5586 = vmatpush1.bf16.msra.mxu0 %v3909
    %5587 = vmatprep.subr.bf16.mxu0 %v3912
    %5588 = vmatpush1.bf16.msra.mxu0 %v3911
    %5589 = vmatprep.subr.bf16.mxu0 %v3914
    %5590 = vmatpush1.bf16.msra.mxu0 %v3913
    %5591 = vmatprep.subr.bf16.mxu0 %v3916
    %5592 = vmatpush1.bf16.msra.mxu0 %v3915
    %5593 = vmatprep.subr.bf16.mxu0 %v3918
    %5594 = vmatpush1.bf16.msra.mxu0 %v3917
    %5595 = vmatprep.subr.bf16.mxu0 %v3920
    %5596 = vmatpush1.bf16.msra.mxu0 %v3919
    %5597 = vmatprep.subr.bf16.mxu0 %v3922
    %5598 = vmatpush1.bf16.msra.mxu0 %v3921
    %5599 = vmatprep.subr.bf16.mxu0 %v3924
    %5600 = vmatpush1.bf16.msra.mxu0 %v3923
    %5601 = vmatprep.subr.bf16.mxu0 %v3926
    %5602 = vmatpush1.bf16.msra.mxu0 %v3925
    %5603 = vmatprep.mubr.bf16.mxu0 %v339
    %5604 = vmatmul.mubr.bf16.gmra.mrb[0].mxu0 %v338
    %v5605 = vpop.f32.mrb[0].mxu0
    %v5606 = vadd.f32 %v5565, %v5605
    %v5607 = vpop.f32.mrb[0].mxu0
    %v5608 = vadd.f32 %v5567, %v5607
    %v5609 = vpop.f32.mrb[0].mxu0
    %v5610 = vpop.f32.mrb[0].mxu0
    %5611 = vdwg.mxu0
    %5612 = vmatprep.subr.bf16.mxu0 %v3928
    %5613 = vmatpush1.bf16.msra.mxu0 %v3927
    %5614 = vmatprep.subr.bf16.mxu0 %v3930
    %5615 = vmatpush1.bf16.msra.mxu0 %v3929
    %5616 = vmatprep.subr.bf16.mxu0 %v3932
    %5617 = vmatpush1.bf16.msra.mxu0 %v3931
    %5618 = vmatprep.subr.bf16.mxu0 %v3934
    %5619 = vmatpush1.bf16.msra.mxu0 %v3933
    %5620 = vmatprep.subr.bf16.mxu0 %v3936
    %5621 = vmatpush1.bf16.msra.mxu0 %v3935
    %5622 = vmatprep.subr.bf16.mxu0 %v3938
    %5623 = vmatpush1.bf16.msra.mxu0 %v3937
    %5624 = vmatprep.subr.bf16.mxu0 %v3940
    %5625 = vmatpush1.bf16.msra.mxu0 %v3939
    %5626 = vmatprep.subr.bf16.mxu0 %v3942
    %5627 = vmatpush1.bf16.msra.mxu0 %v3941
    %5628 = vmatprep.subr.bf16.mxu0 %v3944
    %5629 = vmatpush1.bf16.msra.mxu0 %v3943
    %5630 = vmatprep.subr.bf16.mxu0 %v3946
    %5631 = vmatpush1.bf16.msra.mxu0 %v3945
    %5632 = vmatprep.subr.bf16.mxu0 %v3948
    %5633 = vmatpush1.bf16.msra.mxu0 %v3947
    %5634 = vmatprep.subr.bf16.mxu0 %v3950
    %5635 = vmatpush1.bf16.msra.mxu0 %v3949
    %5636 = vmatprep.subr.bf16.mxu0 %v3952
    %5637 = vmatpush1.bf16.msra.mxu0 %v3951
    %5638 = vmatprep.subr.bf16.mxu0 %v3954
    %5639 = vmatpush1.bf16.msra.mxu0 %v3953
    %5640 = vmatprep.subr.bf16.mxu0 %v3956
    %5641 = vmatpush1.bf16.msra.mxu0 %v3955
    %5642 = vmatprep.subr.bf16.mxu0 %v3958
    %5643 = vmatpush1.bf16.msra.mxu0 %v3957
    %5644 = vmatprep.mubr.bf16.mxu0 %v341
    %5645 = vmatmul.mubr.bf16.gmra.mrb[0].mxu0 %v340
    %v5646 = vpop.f32.mrb[0].mxu0
    %v5647 = vadd.f32 %v5606, %v5646
    %v5648 = vpop.f32.mrb[0].mxu0
    %v5649 = vadd.f32 %v5608, %v5648
    %v5650 = vpop.f32.mrb[0].mxu0
    %v5651 = vpop.f32.mrb[0].mxu0
    %5652 = vdwg.mxu0
    %5653 = vmatprep.subr.bf16.mxu0 %v3960
    %5654 = vmatpush1.bf16.msra.mxu0 %v3959
    %5655 = vmatprep.subr.bf16.mxu0 %v3962
    %5656 = vmatpush1.bf16.msra.mxu0 %v3961
    %5657 = vmatprep.subr.bf16.mxu0 %v3964
    %5658 = vmatpush1.bf16.msra.mxu0 %v3963
    %5659 = vmatprep.subr.bf16.mxu0 %v3966
    %5660 = vmatpush1.bf16.msra.mxu0 %v3965
    %5661 = vmatprep.subr.bf16.mxu0 %v3968
    %5662 = vmatpush1.bf16.msra.mxu0 %v3967
    %5663 = vmatprep.subr.bf16.mxu0 %v3970
    %5664 = vmatpush1.bf16.msra.mxu0 %v3969
    %5665 = vmatprep.subr.bf16.mxu0 %v3972
    %5666 = vmatpush1.bf16.msra.mxu0 %v3971
    %5667 = vmatprep.subr.bf16.mxu0 %v3974
    %5668 = vmatpush1.bf16.msra.mxu0 %v3973
    %5669 = vmatprep.subr.bf16.mxu0 %v3976
    %5670 = vmatpush1.bf16.msra.mxu0 %v3975
    %5671 = vmatprep.subr.bf16.mxu0 %v3978
    %5672 = vmatpush1.bf16.msra.mxu0 %v3977
    %5673 = vmatprep.subr.bf16.mxu0 %v3980
    %5674 = vmatpush1.bf16.msra.mxu0 %v3979
    %5675 = vmatprep.subr.bf16.mxu0 %v3982
    %5676 = vmatpush1.bf16.msra.mxu0 %v3981
    %5677 = vmatprep.subr.bf16.mxu0 %v3984
    %5678 = vmatpush1.bf16.msra.mxu0 %v3983
    %5679 = vmatprep.subr.bf16.mxu0 %v3986
    %5680 = vmatpush1.bf16.msra.mxu0 %v3985
    %5681 = vmatprep.subr.bf16.mxu0 %v3988
    %5682 = vmatpush1.bf16.msra.mxu0 %v3987
    %5683 = vmatprep.subr.bf16.mxu0 %v3990
    %5684 = vmatpush1.bf16.msra.mxu0 %v3989
    %5685 = vmatprep.mubr.bf16.mxu0 %v343
    %5686 = vmatmul.mubr.bf16.gmra.mrb[0].mxu0 %v342
    %v5687 = vpop.f32.mrb[0].mxu0
    %v5688 = vadd.f32 %v5647, %v5687
    %v5689 = vpop.f32.mrb[0].mxu0
    %v5690 = vadd.f32 %v5649, %v5689
    %v5691 = vpop.f32.mrb[0].mxu0
    %v5692 = vpop.f32.mrb[0].mxu0
    %5693 = vdwg.mxu0
    %5694 = vmatprep.subr.bf16.mxu0 %v3992
    %5695 = vmatpush1.bf16.msra.mxu0 %v3991
    %5696 = vmatprep.subr.bf16.mxu0 %v3994
    %5697 = vmatpush1.bf16.msra.mxu0 %v3993
    %5698 = vmatprep.subr.bf16.mxu0 %v3996
    %5699 = vmatpush1.bf16.msra.mxu0 %v3995
    %5700 = vmatprep.subr.bf16.mxu0 %v3998
    %5701 = vmatpush1.bf16.msra.mxu0 %v3997
    %5702 = vmatprep.subr.bf16.mxu0 %v4000
    %5703 = vmatpush1.bf16.msra.mxu0 %v3999
    %5704 = vmatprep.subr.bf16.mxu0 %v4002
    %5705 = vmatpush1.bf16.msra.mxu0 %v4001
    %5706 = vmatprep.subr.bf16.mxu0 %v4004
    %5707 = vmatpush1.bf16.msra.mxu0 %v4003
    %5708 = vmatprep.subr.bf16.mxu0 %v4006
    %5709 = vmatpush1.bf16.msra.mxu0 %v4005
    %5710 = vmatprep.subr.bf16.mxu0 %v4008
    %5711 = vmatpush1.bf16.msra.mxu0 %v4007
    %5712 = vmatprep.subr.bf16.mxu0 %v4010
    %5713 = vmatpush1.bf16.msra.mxu0 %v4009
    %5714 = vmatprep.subr.bf16.mxu0 %v4012
    %5715 = vmatpush1.bf16.msra.mxu0 %v4011
    %5716 = vmatprep.subr.bf16.mxu0 %v4014
    %5717 = vmatpush1.bf16.msra.mxu0 %v4013
    %5718 = vmatprep.subr.bf16.mxu0 %v4016
    %5719 = vmatpush1.bf16.msra.mxu0 %v4015
    %5720 = vmatprep.subr.bf16.mxu0 %v4018
    %5721 = vmatpush1.bf16.msra.mxu0 %v4017
    %5722 = vmatprep.subr.bf16.mxu0 %v4020
    %5723 = vmatpush1.bf16.msra.mxu0 %v4019
    %5724 = vmatprep.subr.bf16.mxu0 %v4022
    %5725 = vmatpush1.bf16.msra.mxu0 %v4021
    %5726 = vmatprep.mubr.bf16.mxu0 %v345
    %5727 = vmatmul.mubr.bf16.gmra.mrb[0].mxu0 %v344
    %v5728 = vpop.f32.mrb[0].mxu0
    %v5729 = vadd.f32 %v5688, %v5728
    %v5730 = vpop.f32.mrb[0].mxu0
    %v5731 = vadd.f32 %v5690, %v5730
    %v5732 = vpop.f32.mrb[0].mxu0
    %v5733 = vpop.f32.mrb[0].mxu0
    %5734 = vdwg.mxu0
    %5735 = vmatprep.subr.bf16.mxu0 %v4024
    %5736 = vmatpush1.bf16.msra.mxu0 %v4023
    %5737 = vmatprep.subr.bf16.mxu0 %v4026
    %5738 = vmatpush1.bf16.msra.mxu0 %v4025
    %5739 = vmatprep.subr.bf16.mxu0 %v4028
    %5740 = vmatpush1.bf16.msra.mxu0 %v4027
    %5741 = vmatprep.subr.bf16.mxu0 %v4030
    %5742 = vmatpush1.bf16.msra.mxu0 %v4029
    %5743 = vmatprep.subr.bf16.mxu0 %v4032
    %5744 = vmatpush1.bf16.msra.mxu0 %v4031
    %5745 = vmatprep.subr.bf16.mxu0 %v4034
    %5746 = vmatpush1.bf16.msra.mxu0 %v4033
    %5747 = vmatprep.subr.bf16.mxu0 %v4036
    %5748 = vmatpush1.bf16.msra.mxu0 %v4035
    %5749 = vmatprep.subr.bf16.mxu0 %v4038
    %5750 = vmatpush1.bf16.msra.mxu0 %v4037
    %5751 = vmatprep.subr.bf16.mxu0 %v4040
    %5752 = vmatpush1.bf16.msra.mxu0 %v4039
    %5753 = vmatprep.subr.bf16.mxu0 %v4042
    %5754 = vmatpush1.bf16.msra.mxu0 %v4041
    %5755 = vmatprep.subr.bf16.mxu0 %v4044
    %5756 = vmatpush1.bf16.msra.mxu0 %v4043
    %5757 = vmatprep.subr.bf16.mxu0 %v4046
    %5758 = vmatpush1.bf16.msra.mxu0 %v4045
    %5759 = vmatprep.subr.bf16.mxu0 %v4048
    %5760 = vmatpush1.bf16.msra.mxu0 %v4047
    %5761 = vmatprep.subr.bf16.mxu0 %v4050
    %5762 = vmatpush1.bf16.msra.mxu0 %v4049
    %5763 = vmatprep.subr.bf16.mxu0 %v4052
    %5764 = vmatpush1.bf16.msra.mxu0 %v4051
    %5765 = vmatprep.subr.bf16.mxu0 %v4054
    %5766 = vmatpush1.bf16.msra.mxu0 %v4053
    %5767 = vmatprep.mubr.bf16.mxu0 %v347
    %5768 = vmatmul.mubr.bf16.gmra.mrb[0].mxu0 %v346
    %v5769 = vpop.f32.mrb[0].mxu0
    %v5770 = vadd.f32 %v5729, %v5769
    %v5771 = vpop.f32.mrb[0].mxu0
    %v5772 = vadd.f32 %v5731, %v5771
    %v5773 = vpop.f32.mrb[0].mxu0
    %v5774 = vpop.f32.mrb[0].mxu0
    %5775 = vdwg.mxu0
    %5776 = vmatprep.subr.bf16.mxu0 %v4056
    %5777 = vmatpush1.bf16.msra.mxu0 %v4055
    %5778 = vmatprep.subr.bf16.mxu0 %v4058
    %5779 = vmatpush1.bf16.msra.mxu0 %v4057
    %5780 = vmatprep.subr.bf16.mxu0 %v4060
    %5781 = vmatpush1.bf16.msra.mxu0 %v4059
    %5782 = vmatprep.subr.bf16.mxu0 %v4062
    %5783 = vmatpush1.bf16.msra.mxu0 %v4061
    %5784 = vmatprep.subr.bf16.mxu0 %v4064
    %5785 = vmatpush1.bf16.msra.mxu0 %v4063
    %5786 = vmatprep.subr.bf16.mxu0 %v4066
    %5787 = vmatpush1.bf16.msra.mxu0 %v4065
    %5788 = vmatprep.subr.bf16.mxu0 %v4068
    %5789 = vmatpush1.bf16.msra.mxu0 %v4067
    %5790 = vmatprep.subr.bf16.mxu0 %v4070
    %5791 = vmatpush1.bf16.msra.mxu0 %v4069
    %5792 = vmatprep.subr.bf16.mxu0 %v4072
    %5793 = vmatpush1.bf16.msra.mxu0 %v4071
    %5794 = vmatprep.subr.bf16.mxu0 %v4074
    %5795 = vmatpush1.bf16.msra.mxu0 %v4073
    %5796 = vmatprep.subr.bf16.mxu0 %v4076
    %5797 = vmatpush1.bf16.msra.mxu0 %v4075
    %5798 = vmatprep.subr.bf16.mxu0 %v4078
    %5799 = vmatpush1.bf16.msra.mxu0 %v4077
    %5800 = vmatprep.subr.bf16.mxu0 %v4080
    %5801 = vmatpush1.bf16.msra.mxu0 %v4079
    %5802 = vmatprep.subr.bf16.mxu0 %v4082
    %5803 = vmatpush1.bf16.msra.mxu0 %v4081
    %5804 = vmatprep.subr.bf16.mxu0 %v4084
    %5805 = vmatpush1.bf16.msra.mxu0 %v4083
    %5806 = vmatprep.subr.bf16.mxu0 %v4086
    %5807 = vmatpush1.bf16.msra.mxu0 %v4085
    %5808 = vmatprep.mubr.bf16.mxu0 %v349
    %5809 = vmatmul.mubr.bf16.gmra.mrb[0].mxu0 %v348
    %v5810 = vpop.f32.mrb[0].mxu0
    %v5811 = vadd.f32 %v5770, %v5810
    %v5812 = vpop.f32.mrb[0].mxu0
    %v5813 = vadd.f32 %v5772, %v5812
    %v5814 = vpop.f32.mrb[0].mxu0
    %v5815 = vpop.f32.mrb[0].mxu0
    %5816 = vdwg.mxu0
    %5817 = vmatprep.subr.bf16.mxu0 %v4088
    %5818 = vmatpush1.bf16.msra.mxu0 %v4087
    %5819 = vmatprep.subr.bf16.mxu0 %v4090
    %5820 = vmatpush1.bf16.msra.mxu0 %v4089
    %5821 = vmatprep.subr.bf16.mxu0 %v4092
    %5822 = vmatpush1.bf16.msra.mxu0 %v4091
    %5823 = vmatprep.subr.bf16.mxu0 %v4094
    %5824 = vmatpush1.bf16.msra.mxu0 %v4093
    %5825 = vmatprep.subr.bf16.mxu0 %v4096
    %5826 = vmatpush1.bf16.msra.mxu0 %v4095
    %5827 = vmatprep.subr.bf16.mxu0 %v4098
    %5828 = vmatpush1.bf16.msra.mxu0 %v4097
    %5829 = vmatprep.subr.bf16.mxu0 %v4100
    %5830 = vmatpush1.bf16.msra.mxu0 %v4099
    %5831 = vmatprep.subr.bf16.mxu0 %v4102
    %5832 = vmatpush1.bf16.msra.mxu0 %v4101
    %5833 = vmatprep.subr.bf16.mxu0 %v4104
    %5834 = vmatpush1.bf16.msra.mxu0 %v4103
    %5835 = vmatprep.subr.bf16.mxu0 %v4106
    %5836 = vmatpush1.bf16.msra.mxu0 %v4105
    %5837 = vmatprep.subr.bf16.mxu0 %v4108
    %5838 = vmatpush1.bf16.msra.mxu0 %v4107
    %5839 = vmatprep.subr.bf16.mxu0 %v4110
    %5840 = vmatpush1.bf16.msra.mxu0 %v4109
    %5841 = vmatprep.subr.bf16.mxu0 %v4112
    %5842 = vmatpush1.bf16.msra.mxu0 %v4111
    %5843 = vmatprep.subr.bf16.mxu0 %v4114
    %5844 = vmatpush1.bf16.msra.mxu0 %v4113
    %5845 = vmatprep.subr.bf16.mxu0 %v4116
    %5846 = vmatpush1.bf16.msra.mxu0 %v4115
    %5847 = vmatprep.subr.bf16.mxu0 %v4118
    %5848 = vmatpush1.bf16.msra.mxu0 %v4117
    %5849 = vmatprep.mubr.bf16.mxu0 %v351
    %5850 = vmatmul.mubr.bf16.gmra.mrb[0].mxu0 %v350
    %v5851 = vpop.f32.mrb[0].mxu0
    %v5852 = vadd.f32 %v5811, %v5851
    %v5853 = vpop.f32.mrb[0].mxu0
    %v5854 = vadd.f32 %v5813, %v5853
    %v5855 = vpop.f32.mrb[0].mxu0
    %v5856 = vpop.f32.mrb[0].mxu0
    %5857 = vdwg.mxu0
    %5858 = vmatprep.subr.bf16.mxu0 %v4120
    %5859 = vmatpush1.bf16.msra.mxu0 %v4119
    %5860 = vmatprep.subr.bf16.mxu0 %v4122
    %5861 = vmatpush1.bf16.msra.mxu0 %v4121
    %5862 = vmatprep.subr.bf16.mxu0 %v4124
    %5863 = vmatpush1.bf16.msra.mxu0 %v4123
    %5864 = vmatprep.subr.bf16.mxu0 %v4126
    %5865 = vmatpush1.bf16.msra.mxu0 %v4125
    %5866 = vmatprep.subr.bf16.mxu0 %v4128
    %5867 = vmatpush1.bf16.msra.mxu0 %v4127
    %5868 = vmatprep.subr.bf16.mxu0 %v4130
    %5869 = vmatpush1.bf16.msra.mxu0 %v4129
    %5870 = vmatprep.subr.bf16.mxu0 %v4132
    %5871 = vmatpush1.bf16.msra.mxu0 %v4131
    %5872 = vmatprep.subr.bf16.mxu0 %v4134
    %5873 = vmatpush1.bf16.msra.mxu0 %v4133
    %5874 = vmatprep.subr.bf16.mxu0 %v4136
    %5875 = vmatpush1.bf16.msra.mxu0 %v4135
    %5876 = vmatprep.subr.bf16.mxu0 %v4138
    %5877 = vmatpush1.bf16.msra.mxu0 %v4137
    %5878 = vmatprep.subr.bf16.mxu0 %v4140
    %5879 = vmatpush1.bf16.msra.mxu0 %v4139
    %5880 = vmatprep.subr.bf16.mxu0 %v4142
    %5881 = vmatpush1.bf16.msra.mxu0 %v4141
    %5882 = vmatprep.subr.bf16.mxu0 %v4144
    %5883 = vmatpush1.bf16.msra.mxu0 %v4143
    %5884 = vmatprep.subr.bf16.mxu0 %v4146
    %5885 = vmatpush1.bf16.msra.mxu0 %v4145
    %5886 = vmatprep.subr.bf16.mxu0 %v4148
    %5887 = vmatpush1.bf16.msra.mxu0 %v4147
    %5888 = vmatprep.subr.bf16.mxu0 %v4150
    %5889 = vmatpush1.bf16.msra.mxu0 %v4149
    %5890 = vmatprep.mubr.bf16.mxu0 %v353
    %5891 = vmatmul.mubr.bf16.gmra.mrb[0].mxu0 %v352
    %v5892 = vpop.f32.mrb[0].mxu0
    %v5893 = vadd.f32 %v5852, %v5892
    %v5894 = vpop.f32.mrb[0].mxu0
    %v5895 = vadd.f32 %v5854, %v5894
    %v5896 = vpop.f32.mrb[0].mxu0
    %v5897 = vpop.f32.mrb[0].mxu0
    %5898 = vdwg.mxu0
    %5899 = vmatprep.subr.bf16.mxu0 %v4152
    %5900 = vmatpush1.bf16.msra.mxu0 %v4151
    %5901 = vmatprep.subr.bf16.mxu0 %v4154
    %5902 = vmatpush1.bf16.msra.mxu0 %v4153
    %5903 = vmatprep.subr.bf16.mxu0 %v4156
    %5904 = vmatpush1.bf16.msra.mxu0 %v4155
    %5905 = vmatprep.subr.bf16.mxu0 %v4158
    %5906 = vmatpush1.bf16.msra.mxu0 %v4157
    %5907 = vmatprep.subr.bf16.mxu0 %v4160
    %5908 = vmatpush1.bf16.msra.mxu0 %v4159
    %5909 = vmatprep.subr.bf16.mxu0 %v4162
    %5910 = vmatpush1.bf16.msra.mxu0 %v4161
    %5911 = vmatprep.subr.bf16.mxu0 %v4164
    %5912 = vmatpush1.bf16.msra.mxu0 %v4163
    %5913 = vmatprep.subr.bf16.mxu0 %v4166
    %5914 = vmatpush1.bf16.msra.mxu0 %v4165
    %5915 = vmatprep.subr.bf16.mxu0 %v4168
    %5916 = vmatpush1.bf16.msra.mxu0 %v4167
    %5917 = vmatprep.subr.bf16.mxu0 %v4170
    %5918 = vmatpush1.bf16.msra.mxu0 %v4169
    %5919 = vmatprep.subr.bf16.mxu0 %v4172
    %5920 = vmatpush1.bf16.msra.mxu0 %v4171
    %5921 = vmatprep.subr.bf16.mxu0 %v4174
    %5922 = vmatpush1.bf16.msra.mxu0 %v4173
    %5923 = vmatprep.subr.bf16.mxu0 %v4176
    %5924 = vmatpush1.bf16.msra.mxu0 %v4175
    %5925 = vmatprep.subr.bf16.mxu0 %v4178
    %5926 = vmatpush1.bf16.msra.mxu0 %v4177
    %5927 = vmatprep.subr.bf16.mxu0 %v4180
    %5928 = vmatpush1.bf16.msra.mxu0 %v4179
    %5929 = vmatprep.subr.bf16.mxu0 %v4182
    %5930 = vmatpush1.bf16.msra.mxu0 %v4181
    %5931 = vmatprep.mubr.bf16.mxu0 %v355
    %5932 = vmatmul.mubr.bf16.gmra.mrb[0].mxu0 %v354
    %v5933 = vpop.f32.mrb[0].mxu0
    %v5934 = vadd.f32 %v5893, %v5933
    %v5935 = vpop.f32.mrb[0].mxu0
    %v5936 = vadd.f32 %v5895, %v5935
    %v5937 = vpop.f32.mrb[0].mxu0
    %v5938 = vpop.f32.mrb[0].mxu0
    %5939 = vdwg.mxu0
    %5940 = vmatprep.subr.bf16.mxu0 %v4184
    %5941 = vmatpush1.bf16.msra.mxu0 %v4183
    %5942 = vmatprep.subr.bf16.mxu0 %v4186
    %5943 = vmatpush1.bf16.msra.mxu0 %v4185
    %5944 = vmatprep.subr.bf16.mxu0 %v4188
    %5945 = vmatpush1.bf16.msra.mxu0 %v4187
    %5946 = vmatprep.subr.bf16.mxu0 %v4190
    %5947 = vmatpush1.bf16.msra.mxu0 %v4189
    %5948 = vmatprep.subr.bf16.mxu0 %v4192
    %5949 = vmatpush1.bf16.msra.mxu0 %v4191
    %5950 = vmatprep.subr.bf16.mxu0 %v4194
    %5951 = vmatpush1.bf16.msra.mxu0 %v4193
    %5952 = vmatprep.subr.bf16.mxu0 %v4196
    %5953 = vmatpush1.bf16.msra.mxu0 %v4195
    %5954 = vmatprep.subr.bf16.mxu0 %v4198
    %5955 = vmatpush1.bf16.msra.mxu0 %v4197
    %5956 = vmatprep.subr.bf16.mxu0 %v4200
    %5957 = vmatpush1.bf16.msra.mxu0 %v4199
    %5958 = vmatprep.subr.bf16.mxu0 %v4202
    %5959 = vmatpush1.bf16.msra.mxu0 %v4201
    %5960 = vmatprep.subr.bf16.mxu0 %v4204
    %5961 = vmatpush1.bf16.msra.mxu0 %v4203
    %5962 = vmatprep.subr.bf16.mxu0 %v4206
    %5963 = vmatpush1.bf16.msra.mxu0 %v4205
    %5964 = vmatprep.subr.bf16.mxu0 %v4208
    %5965 = vmatpush1.bf16.msra.mxu0 %v4207
    %5966 = vmatprep.subr.bf16.mxu0 %v4210
    %5967 = vmatpush1.bf16.msra.mxu0 %v4209
    %5968 = vmatprep.subr.bf16.mxu0 %v4212
    %5969 = vmatpush1.bf16.msra.mxu0 %v4211
    %5970 = vmatprep.subr.bf16.mxu0 %v4214
    %5971 = vmatpush1.bf16.msra.mxu0 %v4213
    %5972 = vmatprep.mubr.bf16.mxu0 %v357
    %5973 = vmatmul.mubr.bf16.gmra.mrb[0].mxu0 %v356
    %v5974 = vpop.f32.mrb[0].mxu0
    %v5975 = vadd.f32 %v5934, %v5974
    %v5976 = vpop.f32.mrb[0].mxu0
    %v5977 = vadd.f32 %v5936, %v5976
    %v5978 = vpop.f32.mrb[0].mxu0
    %v5979 = vpop.f32.mrb[0].mxu0
    %5980 = vdwg.mxu0
    %5981 = vmatprep.subr.bf16.mxu0 %v4216
    %5982 = vmatpush1.bf16.msra.mxu0 %v4215
    %5983 = vmatprep.subr.bf16.mxu0 %v4218
    %5984 = vmatpush1.bf16.msra.mxu0 %v4217
    %5985 = vmatprep.subr.bf16.mxu0 %v4220
    %5986 = vmatpush1.bf16.msra.mxu0 %v4219
    %5987 = vmatprep.subr.bf16.mxu0 %v4222
    %5988 = vmatpush1.bf16.msra.mxu0 %v4221
    %5989 = vmatprep.subr.bf16.mxu0 %v4224
    %5990 = vmatpush1.bf16.msra.mxu0 %v4223
    %5991 = vmatprep.subr.bf16.mxu0 %v4226
    %5992 = vmatpush1.bf16.msra.mxu0 %v4225
    %5993 = vmatprep.subr.bf16.mxu0 %v4228
    %5994 = vmatpush1.bf16.msra.mxu0 %v4227
    %5995 = vmatprep.subr.bf16.mxu0 %v4230
    %5996 = vmatpush1.bf16.msra.mxu0 %v4229
    %5997 = vmatprep.subr.bf16.mxu0 %v4232
    %5998 = vmatpush1.bf16.msra.mxu0 %v4231
    %5999 = vmatprep.subr.bf16.mxu0 %v4234
    %6000 = vmatpush1.bf16.msra.mxu0 %v4233
    %6001 = vmatprep.subr.bf16.mxu0 %v4236
    %6002 = vmatpush1.bf16.msra.mxu0 %v4235
    %6003 = vmatprep.subr.bf16.mxu0 %v4238
    %6004 = vmatpush1.bf16.msra.mxu0 %v4237
    %6005 = vmatprep.subr.bf16.mxu0 %v4240
    %6006 = vmatpush1.bf16.msra.mxu0 %v4239
    %6007 = vmatprep.subr.bf16.mxu0 %v4242
    %6008 = vmatpush1.bf16.msra.mxu0 %v4241
    %6009 = vmatprep.subr.bf16.mxu0 %v4244
    %6010 = vmatpush1.bf16.msra.mxu0 %v4243
    %6011 = vmatprep.subr.bf16.mxu0 %v4246
    %6012 = vmatpush1.bf16.msra.mxu0 %v4245
    %6013 = vmatprep.mubr.bf16.mxu0 %v359
    %6014 = vmatmul.mubr.bf16.gmra.mrb[0].mxu0 %v358
    %v6015 = vpop.f32.mrb[0].mxu0
    %v6016 = vadd.f32 %v5975, %v6015
    %v6017 = vpop.f32.mrb[0].mxu0
    %v6018 = vadd.f32 %v5977, %v6017
    %v6019 = vpop.f32.mrb[0].mxu0
    %v6020 = vpop.f32.mrb[0].mxu0
    %6021 = vdwg.mxu0
    %6022 = vmatprep.subr.bf16.mxu0 %v4248
    %6023 = vmatpush1.bf16.msra.mxu0 %v4247
    %6024 = vmatprep.subr.bf16.mxu0 %v4250
    %6025 = vmatpush1.bf16.msra.mxu0 %v4249
    %6026 = vmatprep.subr.bf16.mxu0 %v4252
    %6027 = vmatpush1.bf16.msra.mxu0 %v4251
    %6028 = vmatprep.subr.bf16.mxu0 %v4254
    %6029 = vmatpush1.bf16.msra.mxu0 %v4253
    %6030 = vmatprep.subr.bf16.mxu0 %v4256
    %6031 = vmatpush1.bf16.msra.mxu0 %v4255
    %6032 = vmatprep.subr.bf16.mxu0 %v4258
    %6033 = vmatpush1.bf16.msra.mxu0 %v4257
    %6034 = vmatprep.subr.bf16.mxu0 %v4260
    %6035 = vmatpush1.bf16.msra.mxu0 %v4259
    %6036 = vmatprep.subr.bf16.mxu0 %v4262
    %6037 = vmatpush1.bf16.msra.mxu0 %v4261
    %6038 = vmatprep.subr.bf16.mxu0 %v4264
    %6039 = vmatpush1.bf16.msra.mxu0 %v4263
    %6040 = vmatprep.subr.bf16.mxu0 %v4266
    %6041 = vmatpush1.bf16.msra.mxu0 %v4265
    %6042 = vmatprep.subr.bf16.mxu0 %v4268
    %6043 = vmatpush1.bf16.msra.mxu0 %v4267
    %6044 = vmatprep.subr.bf16.mxu0 %v4270
    %6045 = vmatpush1.bf16.msra.mxu0 %v4269
    %6046 = vmatprep.subr.bf16.mxu0 %v4272
    %6047 = vmatpush1.bf16.msra.mxu0 %v4271
    %6048 = vmatprep.subr.bf16.mxu0 %v4274
    %6049 = vmatpush1.bf16.msra.mxu0 %v4273
    %6050 = vmatprep.subr.bf16.mxu0 %v4276
    %6051 = vmatpush1.bf16.msra.mxu0 %v4275
    %6052 = vmatprep.subr.bf16.mxu0 %v4278
    %6053 = vmatpush1.bf16.msra.mxu0 %v4277
    %6054 = vmatprep.mubr.bf16.mxu0 %v361
    %6055 = vmatmul.mubr.bf16.gmra.mrb[0].mxu0 %v360
    %v6056 = vpop.f32.mrb[0].mxu0
    %v6057 = vadd.f32 %v6016, %v6056
    %v6058 = vpop.f32.mrb[0].mxu0
    %v6059 = vadd.f32 %v6018, %v6058
    %v6060 = vpop.f32.mrb[0].mxu0
    %v6061 = vpop.f32.mrb[0].mxu0
    %6062 = vdwg.mxu0
    %6063 = vmatprep.subr.bf16.mxu0 %v4280
    %6064 = vmatpush1.bf16.msra.mxu0 %v4279
    %6065 = vmatprep.subr.bf16.mxu0 %v4282
    %6066 = vmatpush1.bf16.msra.mxu0 %v4281
    %6067 = vmatprep.subr.bf16.mxu0 %v4284
    %6068 = vmatpush1.bf16.msra.mxu0 %v4283
    %6069 = vmatprep.subr.bf16.mxu0 %v4286
    %6070 = vmatpush1.bf16.msra.mxu0 %v4285
    %6071 = vmatprep.subr.bf16.mxu0 %v4288
    %6072 = vmatpush1.bf16.msra.mxu0 %v4287
    %6073 = vmatprep.subr.bf16.mxu0 %v4290
    %6074 = vmatpush1.bf16.msra.mxu0 %v4289
    %6075 = vmatprep.subr.bf16.mxu0 %v4292
    %6076 = vmatpush1.bf16.msra.mxu0 %v4291
    %6077 = vmatprep.subr.bf16.mxu0 %v4294
    %6078 = vmatpush1.bf16.msra.mxu0 %v4293
    %6079 = vmatprep.subr.bf16.mxu0 0
    %6080 = vmatpush1.bf16.msra.mxu0 0
    %6081 = vmatprep.subr.bf16.mxu0 0
    %6082 = vmatpush1.bf16.msra.mxu0 0
    %6083 = vmatprep.subr.bf16.mxu0 0
    %6084 = vmatpush1.bf16.msra.mxu0 0
    %6085 = vmatprep.subr.bf16.mxu0 0
    %6086 = vmatpush1.bf16.msra.mxu0 0
    %6087 = vmatprep.subr.bf16.mxu0 0
    %6088 = vmatpush1.bf16.msra.mxu0 0
    %6089 = vmatprep.subr.bf16.mxu0 0
    %6090 = vmatpush1.bf16.msra.mxu0 0
    %6091 = vmatprep.subr.bf16.mxu0 0
    %6092 = vmatpush1.bf16.msra.mxu0 0
    %6093 = vmatprep.subr.bf16.mxu0 0
    %6094 = vmatpush1.bf16.msra.mxu0 0
    %6095 = vmatprep.mubr.bf16.mxu0 0
    %6096 = vmatmul.mubr.bf16.gmra.mrb[0].mxu0 %v362
    %v6097 = vpop.f32.mrb[0].mxu0
    %v6098 = vadd.f32 %v6057, %v6097
    %v6099 = vpop.f32.mrb[0].mxu0
    %v6100 = vadd.f32 %v6059, %v6099
    %v6101 = vpop.f32.mrb[0].mxu0
    %v6102 = vpop.f32.mrb[0].mxu0
    %6103 = vdwg.mxu0
    %v6104 = vmax.f32 %v6098, 0.0
    %v6105 = vmax.f32 %v6100, 0.0
    %v6106 = vpack.c.bf16 %v6104, %v6104
    %v6107 = vpack.c.bf16 %v6105, %v6105
    %v6108 = vld [vmem:[%s3] sm:$0xf]
    %v6109 = vld [vmem:[%s3 + $0x4] sm:$0xf]
    %v6110 = vld [vmem:[%s3 + $0x8] sm:$0xf]
    %v6111 = vld [vmem:[%s3 + $0xc] sm:$0xf]
    %v6112 = vld [vmem:[%s3 + $0x10] sm:$0xf]
    %v6113 = vld [vmem:[%s3 + $0x14] sm:$0xf]
    %v6114 = vld [vmem:[%s3 + $0x18] sm:$0xf]
    %v6115 = vld [vmem:[%s3 + $0x1c] sm:$0xf]
    %v6116 = vld [vmem:[%s3 + $0x20] sm:$0xf]
    %v6117 = vld [vmem:[%s3 + $0x24] sm:$0xf]
    %v6118 = vld [vmem:[%s3 + $0x28] sm:$0xf]
    %v6119 = vld [vmem:[%s3 + $0x2c] sm:$0xf]
    %v6120 = vld [vmem:[%s3 + $0x30] sm:$0xf]
    %v6121 = vld [vmem:[%s3 + $0x34] sm:$0xf]
    %v6122 = vld [vmem:[%s3 + $0x38] sm:$0xf]
    %v6123 = vld [vmem:[%s3 + $0x3c] sm:$0xf]
    %v6124 = vld [vmem:[%s3 + $0x40] sm:$0xf]
    %v6125 = vld [vmem:[%s3 + $0x44] sm:$0xf]
    %v6126 = vld [vmem:[%s3 + $0x48] sm:$0xf]
    %v6127 = vld [vmem:[%s3 + $0x4c] sm:$0xf]
    %v6128 = vld [vmem:[%s3 + $0x50] sm:$0xf]
    %v6129 = vld [vmem:[%s3 + $0x54] sm:$0xf]
    %v6130 = vld [vmem:[%s3 + $0x58] sm:$0xf]
    %v6131 = vld [vmem:[%s3 + $0x5c] sm:$0xf]
    %v6132 = vld [vmem:[%s3 + $0x60] sm:$0xf]
    %v6133 = vld [vmem:[%s3 + $0x64] sm:$0xf]
    %v6134 = vld [vmem:[%s3 + $0x68] sm:$0xf]
    %v6135 = vld [vmem:[%s3 + $0x6c] sm:$0xf]
    %v6136 = vld [vmem:[%s3 + $0x70] sm:$0xf]
    %v6137 = vld [vmem:[%s3 + $0x74] sm:$0xf]
    %v6138 = vld [vmem:[%s3 + $0x78] sm:$0xf]
    %v6139 = vld [vmem:[%s3 + $0x7c] sm:$0xf]
    %v6140 = vld [vmem:[%s4] sm:$0x1]
    %v6142 = vlaneseq
    %v6143 = vshrl.u32 %v6142, 7
    %v6144 = vsub.s32 0, %v6143
    %v6145 = vrot.slane %v6140, %v6144
    %v6179 = vunpack.c.l.b16 %v6108
    %v6180 = vunpack.c.l.b16 %v6109
    %v6181 = vunpack.c.l.b16 %v6110
    %v6182 = vunpack.c.l.b16 %v6111
    %v6183 = vunpack.c.l.b16 %v6112
    %v6184 = vunpack.c.l.b16 %v6113
    %v6185 = vunpack.c.l.b16 %v6114
    %v6186 = vunpack.c.l.b16 %v6115
    %v6187 = vunpack.c.l.b16 %v6116
    %v6188 = vunpack.c.l.b16 %v6117
    %v6189 = vunpack.c.l.b16 %v6118
    %v6190 = vunpack.c.l.b16 %v6119
    %v6191 = vunpack.c.l.b16 %v6120
    %v6192 = vunpack.c.l.b16 %v6121
    %v6193 = vunpack.c.l.b16 %v6122
    %v6194 = vunpack.c.l.b16 %v6123
    %v6195 = vunpack.c.l.b16 %v6124
    %v6196 = vunpack.c.l.b16 %v6125
    %v6197 = vunpack.c.l.b16 %v6126
    %v6198 = vunpack.c.l.b16 %v6127
    %v6199 = vunpack.c.l.b16 %v6128
    %v6200 = vunpack.c.l.b16 %v6129
    %v6201 = vunpack.c.l.b16 %v6130
    %v6202 = vunpack.c.l.b16 %v6131
    %v6203 = vunpack.c.l.b16 %v6132
    %v6204 = vunpack.c.l.b16 %v6133
    %v6205 = vunpack.c.l.b16 %v6134
    %v6206 = vunpack.c.l.b16 %v6135
    %v6207 = vunpack.c.l.b16 %v6136
    %v6208 = vunpack.c.l.b16 %v6137
    %v6209 = vunpack.c.l.b16 %v6138
    %v6210 = vunpack.c.l.b16 %v6139
    %v6211 = vpack.c.b16 %v6180, %v6179
    %v6212 = vpack.c.b16 %v6182, %v6181
    %v6213 = vpack.c.b16 %v6184, %v6183
    %v6214 = vpack.c.b16 %v6186, %v6185
    %v6215 = vpack.c.b16 %v6188, %v6187
    %v6216 = vpack.c.b16 %v6190, %v6189
    %v6217 = vpack.c.b16 %v6192, %v6191
    %v6218 = vpack.c.b16 %v6194, %v6193
    %v6219 = vpack.c.b16 %v6196, %v6195
    %v6220 = vpack.c.b16 %v6198, %v6197
    %v6221 = vpack.c.b16 %v6200, %v6199
    %v6222 = vpack.c.b16 %v6202, %v6201
    %v6223 = vpack.c.b16 %v6204, %v6203
    %v6224 = vpack.c.b16 %v6206, %v6205
    %v6225 = vpack.c.b16 %v6208, %v6207
    %v6226 = vpack.c.b16 %v6210, %v6209
    %6243 = vmatprep.subr.bf16.mxu0 0
    %6244 = vmatpush1.bf16.msra.mxu0 %v6211
    %6245 = vmatprep.subr.bf16.mxu0 0
    %6246 = vmatpush1.bf16.msra.mxu0 %v6212
    %6247 = vmatprep.subr.bf16.mxu0 0
    %6248 = vmatpush1.bf16.msra.mxu0 %v6213
    %6249 = vmatprep.subr.bf16.mxu0 0
    %6250 = vmatpush1.bf16.msra.mxu0 %v6214
    %6251 = vmatprep.subr.bf16.mxu0 0
    %6252 = vmatpush1.bf16.msra.mxu0 %v6215
    %6253 = vmatprep.subr.bf16.mxu0 0
    %6254 = vmatpush1.bf16.msra.mxu0 %v6216
    %6255 = vmatprep.subr.bf16.mxu0 0
    %6256 = vmatpush1.bf16.msra.mxu0 %v6217
    %6257 = vmatprep.subr.bf16.mxu0 0
    %6258 = vmatpush1.bf16.msra.mxu0 %v6218
    %6259 = vmatprep.subr.bf16.mxu0 0
    %6260 = vmatpush1.bf16.msra.mxu0 %v6219
    %6261 = vmatprep.subr.bf16.mxu0 0
    %6262 = vmatpush1.bf16.msra.mxu0 %v6220
    %6263 = vmatprep.subr.bf16.mxu0 0
    %6264 = vmatpush1.bf16.msra.mxu0 %v6221
    %6265 = vmatprep.subr.bf16.mxu0 0
    %6266 = vmatpush1.bf16.msra.mxu0 %v6222
    %6267 = vmatprep.subr.bf16.mxu0 0
    %6268 = vmatpush1.bf16.msra.mxu0 %v6223
    %6269 = vmatprep.subr.bf16.mxu0 0
    %6270 = vmatpush1.bf16.msra.mxu0 %v6224
    %6271 = vmatprep.subr.bf16.mxu0 0
    %6272 = vmatpush1.bf16.msra.mxu0 %v6225
    %6273 = vmatprep.subr.bf16.mxu0 0
    %6274 = vmatpush1.bf16.msra.mxu0 %v6226
    %6275 = vmatprep.mubr.bf16.mxu0 %v6107
    %6276 = vmatmul.mubr.bf16.gmra.mrb[0].mxu0 %v6106
    %v6277 = vpop.f32.mrb[0].mxu0
    %v6278 = vadd.f32 %v6145, %v6277
    %v6279 = vpop.f32.mrb[0].mxu0
    %v6280 = vpop.f32.mrb[0].mxu0
    %v6281 = vpop.f32.mrb[0].mxu0
    %6282 = vdwg.mxu0
    %v6283 = vmax.f32 %v6278, 0.0
    %v6284 = vpack.c.bf16 %v6283, %v6283
    %v6285 = vld [vmem:[%s5] sm:$0xf]
    %v6286 = vld [vmem:[%s5 + $0x4] sm:$0xf]
    %v6287 = vld [vmem:[%s5 + $0x8] sm:$0xf]
    %v6288 = vld [vmem:[%s5 + $0xc] sm:$0xf]
    %v6289 = vld [vmem:[%s5 + $0x10] sm:$0xf]
    %v6290 = vld [vmem:[%s5 + $0x14] sm:$0xf]
    %v6291 = vld [vmem:[%s5 + $0x18] sm:$0xf]
    %v6292 = vld [vmem:[%s5 + $0x1c] sm:$0xf]
    %v6293 = vld [vmem:[%s5 + $0x20] sm:$0xf]
    %v6294 = vld [vmem:[%s5 + $0x24] sm:$0xf]
    %v6295 = vld [vmem:[%s5 + $0x28] sm:$0xf]
    %v6296 = vld [vmem:[%s5 + $0x2c] sm:$0xf]
    %v6297 = vld [vmem:[%s5 + $0x30] sm:$0xf]
    %v6298 = vld [vmem:[%s5 + $0x34] sm:$0xf]
    %v6299 = vld [vmem:[%s5 + $0x38] sm:$0xf]
    %v6300 = vld [vmem:[%s5 + $0x3c] sm:$0xf]
    %v6301 = vld [vmem:[%s6] sm:$0x1]
    %v6303 = vlaneseq
    %v6304 = vshrl.u32 %v6303, 7
    %v6305 = vsub.s32 0, %v6304
    %v6306 = vrot.slane %v6301, %v6305
    %v6324 = vunpack.c.l.b16 %v6285
    %v6325 = vunpack.c.l.b16 %v6286
    %v6326 = vunpack.c.l.b16 %v6287
    %v6327 = vunpack.c.l.b16 %v6288
    %v6328 = vunpack.c.l.b16 %v6289
    %v6329 = vunpack.c.l.b16 %v6290
    %v6330 = vunpack.c.l.b16 %v6291
    %v6331 = vunpack.c.l.b16 %v6292
    %v6332 = vunpack.c.l.b16 %v6293
    %v6333 = vunpack.c.l.b16 %v6294
    %v6334 = vunpack.c.l.b16 %v6295
    %v6335 = vunpack.c.l.b16 %v6296
    %v6336 = vunpack.c.l.b16 %v6297
    %v6337 = vunpack.c.l.b16 %v6298
    %v6338 = vunpack.c.l.b16 %v6299
    %v6339 = vunpack.c.l.b16 %v6300
    %v6340 = vpack.c.b16 %v6325, %v6324
    %v6341 = vpack.c.b16 %v6327, %v6326
    %v6342 = vpack.c.b16 %v6329, %v6328
    %v6343 = vpack.c.b16 %v6331, %v6330
    %v6344 = vpack.c.b16 %v6333, %v6332
    %v6345 = vpack.c.b16 %v6335, %v6334
    %v6346 = vpack.c.b16 %v6337, %v6336
    %v6347 = vpack.c.b16 %v6339, %v6338
    %6356 = vmatprep.subr.bf16.mxu0 0
    %6357 = vmatpush1.bf16.msra.mxu0 %v6340
    %6358 = vmatprep.subr.bf16.mxu0 0
    %6359 = vmatpush1.bf16.msra.mxu0 %v6341
    %6360 = vmatprep.subr.bf16.mxu0 0
    %6361 = vmatpush1.bf16.msra.mxu0 %v6342
    %6362 = vmatprep.subr.bf16.mxu0 0
    %6363 = vmatpush1.bf16.msra.mxu0 %v6343
    %6364 = vmatprep.subr.bf16.mxu0 0
    %6365 = vmatpush1.bf16.msra.mxu0 %v6344
    %6366 = vmatprep.subr.bf16.mxu0 0
    %6367 = vmatpush1.bf16.msra.mxu0 %v6345
    %6368 = vmatprep.subr.bf16.mxu0 0
    %6369 = vmatpush1.bf16.msra.mxu0 %v6346
    %6370 = vmatprep.subr.bf16.mxu0 0
    %6371 = vmatpush1.bf16.msra.mxu0 %v6347
    %6372 = vmatprep.subr.bf16.mxu0 0
    %6373 = vmatpush1.bf16.msra.mxu0 0
    %6374 = vmatprep.subr.bf16.mxu0 0
    %6375 = vmatpush1.bf16.msra.mxu0 0
    %6376 = vmatprep.subr.bf16.mxu0 0
    %6377 = vmatpush1.bf16.msra.mxu0 0
    %6378 = vmatprep.subr.bf16.mxu0 0
    %6379 = vmatpush1.bf16.msra.mxu0 0
    %6380 = vmatprep.subr.bf16.mxu0 0
    %6381 = vmatpush1.bf16.msra.mxu0 0
    %6382 = vmatprep.subr.bf16.mxu0 0
    %6383 = vmatpush1.bf16.msra.mxu0 0
    %6384 = vmatprep.subr.bf16.mxu0 0
    %6385 = vmatpush1.bf16.msra.mxu0 0
    %6386 = vmatprep.subr.bf16.mxu0 0
    %6387 = vmatpush1.bf16.msra.mxu0 0
    %6388 = vmatprep.mubr.bf16.mxu0 0
    %6389 = vmatmul.mubr.bf16.gmra.mrb[0].mxu0 %v6284
    %v6390 = vpop.f32.mrb[0].mxu0
    %v6391 = vadd.f32 %v6306, %v6390
    %v6392 = vpop.f32.mrb[0].mxu0
    %v6393 = vpop.f32.mrb[0].mxu0
    %v6394 = vpop.f32.mrb[0].mxu0
    %6395 = vdwg.mxu0
    %vm6396 = vcmask 74752
    %6397 = vst.msk [vmem:[#allocation2] sm:$0x3] %vm6396, %v6391
    // Predicated region
    $region30: #{method_cnn_forward.3} parent=1 // pred_check
      _
    $region31: #{method_cnn_forward.3} parent=1 // pred_check_branch
      %6399 = sbr.rel (0) target = $region33
    $region32: #{method_cnn_forward.3} parent=1 // pred_region
      %s6401 = ssub.s32 32, 32
      %6402 = vsyncadd [#allocation3], %s6401
      %s6404 = sshll.u32 [#allocation2], 4
      %s6405 = int_to_ptr.vmem [resolvable:$true] %s6404
      %6407 = dma.vmem_to_hbm [thread:$0]  %s6405, 32, %s7, [#allocation3]
    $region33: #{method_cnn_forward.3} parent=1 // pred_fallthru
      _
    // Predicated region
    $region34: #{method_cnn_forward.3} parent=1 // pred_check
      _
    $region35: #{method_cnn_forward.3} parent=1 // pred_check_branch
      %6409 = sbr.rel (0) target = $region37
    $region36: #{method_cnn_forward.3} parent=1 // pred_region
      %6410 = dma.done [#allocation3], 32
    $region37: #{method_cnn_forward.3} parent=1 // pred_fallthru
      _
    %6411 = vsyncpa [#allocation3], 1

</llo_original>
